<compile_context>
chip_gen: v5e
topology: v5e:2x2
jax: 0.10.0
libtpu: 0.0.40
codegen_flags: <defaults>
</compile_context>

<pallas_src>
import jax
import jax.numpy as jnp
from jax import lax
from jax.experimental import pallas as pl
from jax.experimental.pallas import tpu as pltpu

# ------------------------- problem sizes (small, synthetic) -------------------
N, H, W = 2, 16, 16          # batch, height, width (dim = 1 channel, squeezed)
R = N * H                    # 32 flattened rows (sublane axis)
WP = 128                     # lane-padded width
N_CONV = 35                  # layer1 + 16 blocks * 2 + layer18 + layer19
N_BN = 33                    # 16 blocks * 2 + layer18
EPS = 1e-5
INV_COUNT = 1.0 / (N * H * W)


def imn_kernel(w_ref, b_ref, g_ref, beta_ref, s_ref, x_ref, out_ref):
    # w_ref:    SMEM (N_CONV*9,)  flattened 3x3 conv weights (1-D: tiny SMEM pad)
    # b_ref:    SMEM (N_CONV,)    conv biases
    # g_ref:    SMEM (N_BN,)      BN gammas
    # beta_ref: SMEM (N_BN,)      BN betas
    # s_ref:    VMEM (2, R, R)    constant 0/1 row-shift matrices (above, below)
    # x_ref:    VMEM (R, WP)      lane-padded input activations (dead lanes zero)
    # out_ref:  VMEM (R, WP)      lane-padded output activations
    f32 = jnp.float32

    # ---- constants, built/loaded ONCE and hoisted above the 35-conv chain ----
    col_i = lax.broadcasted_iota(jnp.int32, (R, WP), 1)
    vmask = (col_i < W).astype(f32)          # 1 in real columns, 0 in lane padding
    s_above = s_ref[0]                       # (R, R): out[r] = in[r-1] within image
    s_below = s_ref[1]                       # (R, R): out[r] = in[r+1] within image

    # Global invariant: every activation entering conv3x3 has EXACT zeros in the
    # dead lanes (cols >= W).  conv3x3 and batchnorm both re-establish it.
    def conv3x3(v, idx, add_bias=False):
        base = idx * 9
        # Column taps first: 2 XLU rolls total (was 6).  Lane wrap pulls in the
        # zero dead lanes -> conv zero-padding at the left/right image edges.
        vl = pltpu.roll(v, 1, 1)        # vl[:, c] = v[:, c-1]   (tap kj = 0)
        vr = pltpu.roll(v, WP - 1, 1)   # vr[:, c] = v[:, c+1]   (tap kj = 2)
        c0 = (w_ref[base + 0] * vl + w_ref[base + 1] * v) + w_ref[base + 2] * vr
        c1 = (w_ref[base + 3] * vl + w_ref[base + 4] * v) + w_ref[base + 5] * vr
        c2 = (w_ref[base + 6] * vl + w_ref[base + 7] * v) + w_ref[base + 8] * vr
        # Row taps via exact 0/1 shift matmuls on the MXU (XLU stays free).
        acc = (jnp.dot(s_above, c0, preferred_element_type=f32) + c1) \
              + jnp.dot(s_below, c2, preferred_element_type=f32)
        if add_bias:
            acc = acc + b_ref[idx]
        return acc * vmask              # zero the dead lanes (roll/bias spillover)

    def batchnorm(v, idx):
        # Training-mode BatchNorm2d(1): biased batch stats over (N, H, W).
        # Dead lanes of v are exactly zero, so full-slab sums are exact.
        s1 = jnp.sum(v)
        s2 = jnp.sum(v * v)                      # independent of s1 (can overlap)
        m = s1 * INV_COUNT
        var = jnp.maximum(s2 * INV_COUNT - m * m, 0.0)   # clamp tiny negatives
        scale = g_ref[idx] * lax.rsqrt(var + EPS)        # EUP rsqrt
        shift = beta_ref[idx] - m * scale
        return v * scale + shift * vmask         # masked shift keeps dead lanes 0
        # TODO(synk): running_mean / running_var momentum updates (training-only
        # side effect) are not modeled; the forward output does not depend on them.

    x = x_ref[...].astype(f32)

    # layer1: Conv (+bias) + ReLU
    x1 = jnp.maximum(conv3x3(x, 0, add_bias=True), 0.0)

    # blocks1..16: h = h + BN(Conv(ReLU(BN(Conv(h)))))
    # Conv biases feeding a BatchNorm are exactly cancelled by the mean
    # subtraction -> skipped (identical normalized output, fewer sweeps).
    h = x1
    ci, bi = 1, 0
    for _ in range(16):
        y = jnp.maximum(batchnorm(conv3x3(h, ci), bi), 0.0)
        y = batchnorm(conv3x3(y, ci + 1), bi + 1)
        h = h + y
        ci += 2
        bi += 2

    # layer18: x18 = x1 + BN(Conv(x17))
    x18 = x1 + batchnorm(conv3x3(h, ci), bi)

    # layer19: final Conv (+bias); 128-lane-wide masked-clean output -> unmasked store.
    out_ref[...] = conv3x3(x18, ci + 1, add_bias=True)


def _row_shift_matrices():
    """Constant 0/1 block-diagonal shift matrices (no wrap across images)."""
    r = jnp.arange(R)[:, None]
    c = jnp.arange(R)[None, :]
    same_img = (r // H) == (c // H)
    s_above = ((c == r - 1) & same_img).astype(jnp.float32)   # out[r] = in[r-1]
    s_below = ((c == r + 1) & same_img).astype(jnp.float32)   # out[r] = in[r+1]
    return jnp.stack([s_above, s_below])                      # (2, R, R)


def imn_forward(x_nchw, w_flat, b, gamma, beta):
    """x_nchw: (N, 1, H, W) float32 -> (N, 1, H, W) float32."""
    x2d = x_nchw[:, 0].reshape(R, W)                       # (N*H, W)
    x_pad = jnp.pad(x2d, ((0, 0), (0, WP - W)))            # lane-dense (R, 128)
    smats = _row_shift_matrices()

    out = pl.pallas_call(
        imn_kernel,
        out_shape=jax.ShapeDtypeStruct((R, WP), jnp.float32),
        grid_spec=pltpu.PrefetchScalarGridSpec(
            num_scalar_prefetch=0,
            grid=(1,),
            in_specs=[
                pl.BlockSpec(memory_space=pltpu.MemorySpace.SMEM),   # conv weights (flat)
                pl.BlockSpec(memory_space=pltpu.MemorySpace.SMEM),   # conv biases
                pl.BlockSpec(memory_space=pltpu.MemorySpace.SMEM),   # bn gammas
                pl.BlockSpec(memory_space=pltpu.MemorySpace.SMEM),   # bn betas
                pl.BlockSpec((2, R, R), lambda i: (0, 0, 0)),        # row-shift mats
                pl.BlockSpec((R, WP), lambda i: (0, 0)),             # x (padded)
            ],
            out_specs=pl.BlockSpec((R, WP), lambda i: (0, 0)),
        ),
        compiler_params=pltpu.CompilerParams(
            dimension_semantics=("arbitrary",)),
        # TODO(synk): with a real (larger) batch, add a leading "parallel" grid
        # axis over batch tiles to engage the second TensorCore on v7x.
    )(w_flat, b, gamma, beta, smats, x_pad)

    return out[:, :W].reshape(N, H, W)[:, None]            # back to NCHW


if __name__ == "__main__":
    key = jax.random.PRNGKey(0)
    k_w, k_g, k_x = jax.random.split(key, 3)

    # Deterministic parameter init matching init_weights('normal', 0.02):
    #   conv weights ~ N(0, 0.02), conv biases = 0
    #   BN gamma     ~ N(1, 0.02), BN beta     = 0
    w = (0.02 * jax.random.normal(k_w, (N_CONV * 9,))).astype(jnp.float32)
    b = jnp.zeros((N_CONV,), jnp.float32)
    gamma = (1.0 + 0.02 * jax.random.normal(k_g, (N_BN,))).astype(jnp.float32)
    beta = jnp.zeros((N_BN,), jnp.float32)

    # Input: NCHW with C = dim = 1
    x = jax.random.normal(k_x, (N, 1, H, W), dtype=jnp.float32)

    y = imn_forward(x, w, b, gamma, beta)
    y = jax.block_until_ready(y)

    assert y.shape == (N, 1, H, W)
    assert bool(jnp.all(jnp.isfinite(y)))
    print("KERNEL_OK")
</pallas_src>

<mosaic_0001>
module attributes {stable_mosaic.version = 11 : i64} {
  func.func @imn_kernel(%arg0: i32, %arg1: memref<315xf32, #tpu.memory_space<smem>>, %arg2: memref<35xf32, #tpu.memory_space<smem>>, %arg3: memref<33xf32, #tpu.memory_space<smem>>, %arg4: memref<33xf32, #tpu.memory_space<smem>>, %arg5: memref<2x32x32xf32, #tpu.memory_space<vmem>>, %arg6: memref<32x128xf32, #tpu.memory_space<vmem>>, %arg7: memref<32x128xf32, #tpu.memory_space<vmem>>) attributes {dimension_semantics = [#tpu.dimension_semantics<arbitrary>], iteration_bounds = array<i64: 1>, scalar_prefetch = 0 : i64, scratch_operands = 0 : i64, tpu.core_type = #tpu.core_type<tc>, window_params = [{transform_indices = @transform_0, window_bounds = array<i64: 315>}, {transform_indices = @transform_1, window_bounds = array<i64: 35>}, {transform_indices = @transform_2, window_bounds = array<i64: 33>}, {transform_indices = @transform_3, window_bounds = array<i64: 33>}, {pipeline_mode = #tpu.pipeline_mode<synchronous>, transform_indices = @transform_4, window_bounds = array<i64: 2, 32, 32>}, {pipeline_mode = #tpu.pipeline_mode<synchronous>, transform_indices = @transform_5, window_bounds = array<i64: 32, 128>}, {pipeline_mode = #tpu.pipeline_mode<synchronous>, transform_indices = @transform_6, window_bounds = array<i64: 32, 128>}]} {
    %0 = tpu.iota {dimensions = array<i32: 1>} : vector<32x128xi32>
    %c16_i32 = arith.constant 16 : i32
    %1 = vector.broadcast %c16_i32 : i32 to vector<32x128xi32>
    %2 = arith.cmpi slt, %0, %1 : vector<32x128xi32>
    %3 = arith.extui %2 : vector<32x128xi1> to vector<32x128xi32>
    %4 = arith.sitofp %3 : vector<32x128xi32> to vector<32x128xf32>
    %c0 = arith.constant 0 : index
    %c0_0 = arith.constant 0 : index
    %c0_1 = arith.constant 0 : index
    %5 = vector.load %arg5[%c0, %c0_0, %c0_1] : memref<2x32x32xf32, #tpu.memory_space<vmem>>, vector<1x32x32xf32>
    %6 = vector.shape_cast %5 : vector<1x32x32xf32> to vector<32x32xf32>
    %c1 = arith.constant 1 : index
    %c0_2 = arith.constant 0 : index
    %c0_3 = arith.constant 0 : index
    %7 = vector.load %arg5[%c1, %c0_2, %c0_3] : memref<2x32x32xf32, #tpu.memory_space<vmem>>, vector<1x32x32xf32>
    %8 = vector.shape_cast %7 : vector<1x32x32xf32> to vector<32x32xf32>
    %c0_4 = arith.constant 0 : index
    %c0_5 = arith.constant 0 : index
    %9 = vector.load %arg6[%c0_4, %c0_5] : memref<32x128xf32, #tpu.memory_space<vmem>>, vector<32x128xf32>
    %c1_i32 = arith.constant 1 : i32
    %10 = tpu.dynamic_rotate %9 by %c1_i32 dim 1 : vector<32x128xf32>, i32 -> vector<32x128xf32>
    %c127_i32 = arith.constant 127 : i32
    %11 = tpu.dynamic_rotate %9 by %c127_i32 dim 1 : vector<32x128xf32>, i32 -> vector<32x128xf32>
    %c0_6 = arith.constant 0 : index
    %12 = memref.load %arg1[%c0_6] : memref<315xf32, #tpu.memory_space<smem>>
    %13 = vector.broadcast %12 : f32 to vector<32x128xf32>
    %14 = arith.mulf %13, %10 : vector<32x128xf32>
    %c1_7 = arith.constant 1 : index
    %15 = memref.load %arg1[%c1_7] : memref<315xf32, #tpu.memory_space<smem>>
    %16 = vector.broadcast %15 : f32 to vector<32x128xf32>
    %17 = arith.mulf %16, %9 : vector<32x128xf32>
    %18 = arith.addf %14, %17 : vector<32x128xf32>
    %c2 = arith.constant 2 : index
    %19 = memref.load %arg1[%c2] : memref<315xf32, #tpu.memory_space<smem>>
    %20 = vector.broadcast %19 : f32 to vector<32x128xf32>
    %21 = arith.mulf %20, %11 : vector<32x128xf32>
    %22 = arith.addf %18, %21 : vector<32x128xf32>
    %c3 = arith.constant 3 : index
    %23 = memref.load %arg1[%c3] : memref<315xf32, #tpu.memory_space<smem>>
    %24 = vector.broadcast %23 : f32 to vector<32x128xf32>
    %25 = arith.mulf %24, %10 : vector<32x128xf32>
    %c4 = arith.constant 4 : index
    %26 = memref.load %arg1[%c4] : memref<315xf32, #tpu.memory_space<smem>>
    %27 = vector.broadcast %26 : f32 to vector<32x128xf32>
    %28 = arith.mulf %27, %9 : vector<32x128xf32>
    %29 = arith.addf %25, %28 : vector<32x128xf32>
    %c5 = arith.constant 5 : index
    %30 = memref.load %arg1[%c5] : memref<315xf32, #tpu.memory_space<smem>>
    %31 = vector.broadcast %30 : f32 to vector<32x128xf32>
    %32 = arith.mulf %31, %11 : vector<32x128xf32>
    %33 = arith.addf %29, %32 : vector<32x128xf32>
    %c6 = arith.constant 6 : index
    %34 = memref.load %arg1[%c6] : memref<315xf32, #tpu.memory_space<smem>>
    %35 = vector.broadcast %34 : f32 to vector<32x128xf32>
    %36 = arith.mulf %35, %10 : vector<32x128xf32>
    %c7 = arith.constant 7 : index
    %37 = memref.load %arg1[%c7] : memref<315xf32, #tpu.memory_space<smem>>
    %38 = vector.broadcast %37 : f32 to vector<32x128xf32>
    %39 = arith.mulf %38, %9 : vector<32x128xf32>
    %40 = arith.addf %36, %39 : vector<32x128xf32>
    %c8 = arith.constant 8 : index
    %41 = memref.load %arg1[%c8] : memref<315xf32, #tpu.memory_space<smem>>
    %42 = vector.broadcast %41 : f32 to vector<32x128xf32>
    %43 = arith.mulf %42, %11 : vector<32x128xf32>
    %44 = arith.addf %40, %43 : vector<32x128xf32>
    %cst = arith.constant dense<0.000000e+00> : vector<32x128xf32>
    %45 = tpu.matmul %6, %22, %cst {dimension_numbers = #tpu.dot_dimension_numbers<[1], [0], [0], [1], [0, 0, 1, 1], [], []>} : vector<32x32xf32>, vector<32x128xf32>, vector<32x128xf32> -> vector<32x128xf32>
    %46 = arith.addf %45, %33 : vector<32x128xf32>
    %cst_8 = arith.constant dense<0.000000e+00> : vector<32x128xf32>
    %47 = tpu.matmul %8, %44, %cst_8 {dimension_numbers = #tpu.dot_dimension_numbers<[1], [0], [0], [1], [0, 0, 1, 1], [], []>} : vector<32x32xf32>, vector<32x128xf32>, vector<32x128xf32> -> vector<32x128xf32>
    %48 = arith.addf %46, %47 : vector<32x128xf32>
    %c0_9 = arith.constant 0 : index
    %49 = memref.load %arg2[%c0_9] : memref<35xf32, #tpu.memory_space<smem>>
    %50 = vector.broadcast %49 : f32 to vector<32x128xf32>
    %51 = arith.addf %48, %50 : vector<32x128xf32>
    %52 = arith.mulf %51, %4 : vector<32x128xf32>
    %cst_10 = arith.constant 0.000000e+00 : f32
    %53 = vector.broadcast %cst_10 : f32 to vector<32x128xf32>
    %54 = arith.maximumf %52, %53 : vector<32x128xf32>
    %c1_i32_11 = arith.constant 1 : i32
    %55 = tpu.dynamic_rotate %54 by %c1_i32_11 dim 1 : vector<32x128xf32>, i32 -> vector<32x128xf32>
    %c127_i32_12 = arith.constant 127 : i32
    %56 = tpu.dynamic_rotate %54 by %c127_i32_12 dim 1 : vector<32x128xf32>, i32 -> vector<32x128xf32>
    %c9 = arith.constant 9 : index
    %57 = memref.load %arg1[%c9] : memref<315xf32, #tpu.memory_space<smem>>
    %58 = vector.broadcast %57 : f32 to vector<32x128xf32>
    %59 = arith.mulf %58, %55 : vector<32x128xf32>
    %c10 = arith.constant 10 : index
    %60 = memref.load %arg1[%c10] : memref<315xf32, #tpu.memory_space<smem>>
    %61 = vector.broadcast %60 : f32 to vector<32x128xf32>
    %62 = arith.mulf %61, %54 : vector<32x128xf32>
    %63 = arith.addf %59, %62 : vector<32x128xf32>
    %c11 = arith.constant 11 : index
    %64 = memref.load %arg1[%c11] : memref<315xf32, #tpu.memory_space<smem>>
    %65 = vector.broadcast %64 : f32 to vector<32x128xf32>
    %66 = arith.mulf %65, %56 : vector<32x128xf32>
    %67 = arith.addf %63, %66 : vector<32x128xf32>
    %c12 = arith.constant 12 : index
    %68 = memref.load %arg1[%c12] : memref<315xf32, #tpu.memory_space<smem>>
    %69 = vector.broadcast %68 : f32 to vector<32x128xf32>
    %70 = arith.mulf %69, %55 : vector<32x128xf32>
    %c13 = arith.constant 13 : index
    %71 = memref.load %arg1[%c13] : memref<315xf32, #tpu.memory_space<smem>>
    %72 = vector.broadcast %71 : f32 to vector<32x128xf32>
    %73 = arith.mulf %72, %54 : vector<32x128xf32>
    %74 = arith.addf %70, %73 : vector<32x128xf32>
    %c14 = arith.constant 14 : index
    %75 = memref.load %arg1[%c14] : memref<315xf32, #tpu.memory_space<smem>>
    %76 = vector.broadcast %75 : f32 to vector<32x128xf32>
    %77 = arith.mulf %76, %56 : vector<32x128xf32>
    %78 = arith.addf %74, %77 : vector<32x128xf32>
    %c15 = arith.constant 15 : index
    %79 = memref.load %arg1[%c15] : memref<315xf32, #tpu.memory_space<smem>>
    %80 = vector.broadcast %79 : f32 to vector<32x128xf32>
    %81 = arith.mulf %80, %55 : vector<32x128xf32>
    %c16 = arith.constant 16 : index
    %82 = memref.load %arg1[%c16] : memref<315xf32, #tpu.memory_space<smem>>
    %83 = vector.broadcast %82 : f32 to vector<32x128xf32>
    %84 = arith.mulf %83, %54 : vector<32x128xf32>
    %85 = arith.addf %81, %84 : vector<32x128xf32>
    %c17 = arith.constant 17 : index
    %86 = memref.load %arg1[%c17] : memref<315xf32, #tpu.memory_space<smem>>
    %87 = vector.broadcast %86 : f32 to vector<32x128xf32>
    %88 = arith.mulf %87, %56 : vector<32x128xf32>
    %89 = arith.addf %85, %88 : vector<32x128xf32>
    %cst_13 = arith.constant dense<0.000000e+00> : vector<32x128xf32>
    %90 = tpu.matmul %6, %67, %cst_13 {dimension_numbers = #tpu.dot_dimension_numbers<[1], [0], [0], [1], [0, 0, 1, 1], [], []>} : vector<32x32xf32>, vector<32x128xf32>, vector<32x128xf32> -> vector<32x128xf32>
    %91 = arith.addf %90, %78 : vector<32x128xf32>
    %cst_14 = arith.constant dense<0.000000e+00> : vector<32x128xf32>
    %92 = tpu.matmul %8, %89, %cst_14 {dimension_numbers = #tpu.dot_dimension_numbers<[1], [0], [0], [1], [0, 0, 1, 1], [], []>} : vector<32x32xf32>, vector<32x128xf32>, vector<32x128xf32> -> vector<32x128xf32>
    %93 = arith.addf %91, %92 : vector<32x128xf32>
    %94 = arith.mulf %93, %4 : vector<32x128xf32>
    %95 = vector.shape_cast %94 : vector<32x128xf32> to vector<1x32x128xf32>
    %cst_15 = arith.constant dense<0.000000e+00> : vector<1xf32>
    %96 = vector.multi_reduction <add>, %95, %cst_15 [1, 2] : vector<1x32x128xf32> to vector<1xf32>
    %97 = vector.shape_cast %96 : vector<1xf32> to vector<1x1x1xf32>
    %98 = vector.extract %97[0, 0, 0] : f32 from vector<1x1x1xf32>
    %99 = arith.mulf %94, %94 : vector<32x128xf32>
    %100 = vector.shape_cast %99 : vector<32x128xf32> to vector<1x32x128xf32>
    %cst_16 = arith.constant dense<0.000000e+00> : vector<1xf32>
    %101 = vector.multi_reduction <add>, %100, %cst_16 [1, 2] : vector<1x32x128xf32> to vector<1xf32>
    %102 = vector.shape_cast %101 : vector<1xf32> to vector<1x1x1xf32>
    %103 = vector.extract %102[0, 0, 0] : f32 from vector<1x1x1xf32>
    %cst_17 = arith.constant 0.001953125 : f32
    %104 = arith.mulf %98, %cst_17 : f32
    %cst_18 = arith.constant 0.001953125 : f32
    %105 = arith.mulf %103, %cst_18 : f32
    %106 = arith.mulf %104, %104 : f32
    %107 = arith.subf %105, %106 : f32
    %cst_19 = arith.constant 0.000000e+00 : f32
    %108 = arith.maximumf %107, %cst_19 : f32
    %c0_20 = arith.constant 0 : index
    %109 = memref.load %arg3[%c0_20] : memref<33xf32, #tpu.memory_space<smem>>
    %cst_21 = arith.constant 9.99999974E-6 : f32
    %110 = arith.addf %108, %cst_21 : f32
    %111 = math.rsqrt %110 : f32
    %112 = arith.mulf %109, %111 : f32
    %c0_22 = arith.constant 0 : index
    %113 = memref.load %arg4[%c0_22] : memref<33xf32, #tpu.memory_space<smem>>
    %114 = arith.mulf %104, %112 : f32
    %115 = arith.subf %113, %114 : f32
    %116 = vector.broadcast %112 : f32 to vector<32x128xf32>
    %117 = arith.mulf %94, %116 : vector<32x128xf32>
    %118 = vector.broadcast %115 : f32 to vector<32x128xf32>
    %119 = arith.mulf %118, %4 : vector<32x128xf32>
    %120 = arith.addf %117, %119 : vector<32x128xf32>
    %cst_23 = arith.constant 0.000000e+00 : f32
    %121 = vector.broadcast %cst_23 : f32 to vector<32x128xf32>
    %122 = arith.maximumf %120, %121 : vector<32x128xf32>
    %c1_i32_24 = arith.constant 1 : i32
    %123 = tpu.dynamic_rotate %122 by %c1_i32_24 dim 1 : vector<32x128xf32>, i32 -> vector<32x128xf32>
    %c127_i32_25 = arith.constant 127 : i32
    %124 = tpu.dynamic_rotate %122 by %c127_i32_25 dim 1 : vector<32x128xf32>, i32 -> vector<32x128xf32>
    %c18 = arith.constant 18 : index
    %125 = memref.load %arg1[%c18] : memref<315xf32, #tpu.memory_space<smem>>
    %126 = vector.broadcast %125 : f32 to vector<32x128xf32>
    %127 = arith.mulf %126, %123 : vector<32x128xf32>
    %c19 = arith.constant 19 : index
    %128 = memref.load %arg1[%c19] : memref<315xf32, #tpu.memory_space<smem>>
    %129 = vector.broadcast %128 : f32 to vector<32x128xf32>
    %130 = arith.mulf %129, %122 : vector<32x128xf32>
    %131 = arith.addf %127, %130 : vector<32x128xf32>
    %c20 = arith.constant 20 : index
    %132 = memref.load %arg1[%c20] : memref<315xf32, #tpu.memory_space<smem>>
    %133 = vector.broadcast %132 : f32 to vector<32x128xf32>
    %134 = arith.mulf %133, %124 : vector<32x128xf32>
    %135 = arith.addf %131, %134 : vector<32x128xf32>
    %c21 = arith.constant 21 : index
    %136 = memref.load %arg1[%c21] : memref<315xf32, #tpu.memory_space<smem>>
    %137 = vector.broadcast %136 : f32 to vector<32x128xf32>
    %138 = arith.mulf %137, %123 : vector<32x128xf32>
    %c22 = arith.constant 22 : index
    %139 = memref.load %arg1[%c22] : memref<315xf32, #tpu.memory_space<smem>>
    %140 = vector.broadcast %139 : f32 to vector<32x128xf32>
    %141 = arith.mulf %140, %122 : vector<32x128xf32>
    %142 = arith.addf %138, %141 : vector<32x128xf32>
    %c23 = arith.constant 23 : index
    %143 = memref.load %arg1[%c23] : memref<315xf32, #tpu.memory_space<smem>>
    %144 = vector.broadcast %143 : f32 to vector<32x128xf32>
    %145 = arith.mulf %144, %124 : vector<32x128xf32>
    %146 = arith.addf %142, %145 : vector<32x128xf32>
    %c24 = arith.constant 24 : index
    %147 = memref.load %arg1[%c24] : memref<315xf32, #tpu.memory_space<smem>>
    %148 = vector.broadcast %147 : f32 to vector<32x128xf32>
    %149 = arith.mulf %148, %123 : vector<32x128xf32>
    %c25 = arith.constant 25 : index
    %150 = memref.load %arg1[%c25] : memref<315xf32, #tpu.memory_space<smem>>
    %151 = vector.broadcast %150 : f32 to vector<32x128xf32>
    %152 = arith.mulf %151, %122 : vector<32x128xf32>
    %153 = arith.addf %149, %152 : vector<32x128xf32>
    %c26 = arith.constant 26 : index
    %154 = memref.load %arg1[%c26] : memref<315xf32, #tpu.memory_space<smem>>
    %155 = vector.broadcast %154 : f32 to vector<32x128xf32>
    %156 = arith.mulf %155, %124 : vector<32x128xf32>
    %157 = arith.addf %153, %156 : vector<32x128xf32>
    %cst_26 = arith.constant dense<0.000000e+00> : vector<32x128xf32>
    %158 = tpu.matmul %6, %135, %cst_26 {dimension_numbers = #tpu.dot_dimension_numbers<[1], [0], [0], [1], [0, 0, 1, 1], [], []>} : vector<32x32xf32>, vector<32x128xf32>, vector<32x128xf32> -> vector<32x128xf32>
    %159 = arith.addf %158, %146 : vector<32x128xf32>
    %cst_27 = arith.constant dense<0.000000e+00> : vector<32x128xf32>
    %160 = tpu.matmul %8, %157, %cst_27 {dimension_numbers = #tpu.dot_dimension_numbers<[1], [0], [0], [1], [0, 0, 1, 1], [], []>} : vector<32x32xf32>, vector<32x128xf32>, vector<32x128xf32> -> vector<32x128xf32>
    %161 = arith.addf %159, %160 : vector<32x128xf32>
    %162 = arith.mulf %161, %4 : vector<32x128xf32>
    %163 = vector.shape_cast %162 : vector<32x128xf32> to vector<1x32x128xf32>
    %cst_28 = arith.constant dense<0.000000e+00> : vector<1xf32>
    %164 = vector.multi_reduction <add>, %163, %cst_28 [1, 2] : vector<1x32x128xf32> to vector<1xf32>
    %165 = vector.shape_cast %164 : vector<1xf32> to vector<1x1x1xf32>
    %166 = vector.extract %165[0, 0, 0] : f32 from vector<1x1x1xf32>
    %167 = arith.mulf %162, %162 : vector<32x128xf32>
    %168 = vector.shape_cast %167 : vector<32x128xf32> to vector<1x32x128xf32>
    %cst_29 = arith.constant dense<0.000000e+00> : vector<1xf32>
    %169 = vector.multi_reduction <add>, %168, %cst_29 [1, 2] : vector<1x32x128xf32> to vector<1xf32>
    %170 = vector.shape_cast %169 : vector<1xf32> to vector<1x1x1xf32>
    %171 = vector.extract %170[0, 0, 0] : f32 from vector<1x1x1xf32>
    %cst_30 = arith.constant 0.001953125 : f32
    %172 = arith.mulf %166, %cst_30 : f32
    %cst_31 = arith.constant 0.001953125 : f32
    %173 = arith.mulf %171, %cst_31 : f32
    %174 = arith.mulf %172, %172 : f32
    %175 = arith.subf %173, %174 : f32
    %cst_32 = arith.constant 0.000000e+00 : f32
    %176 = arith.maximumf %175, %cst_32 : f32
    %c1_33 = arith.constant 1 : index
    %177 = memref.load %arg3[%c1_33] : memref<33xf32, #tpu.memory_space<smem>>
    %cst_34 = arith.constant 9.99999974E-6 : f32
    %178 = arith.addf %176, %cst_34 : f32
    %179 = math.rsqrt %178 : f32
    %180 = arith.mulf %177, %179 : f32
    %c1_35 = arith.constant 1 : index
    %181 = memref.load %arg4[%c1_35] : memref<33xf32, #tpu.memory_space<smem>>
    %182 = arith.mulf %172, %180 : f32
    %183 = arith.subf %181, %182 : f32
    %184 = vector.broadcast %180 : f32 to vector<32x128xf32>
    %185 = arith.mulf %162, %184 : vector<32x128xf32>
    %186 = vector.broadcast %183 : f32 to vector<32x128xf32>
    %187 = arith.mulf %186, %4 : vector<32x128xf32>
    %188 = arith.addf %185, %187 : vector<32x128xf32>
    %189 = arith.addf %54, %188 : vector<32x128xf32>
    %c1_i32_36 = arith.constant 1 : i32
    %190 = tpu.dynamic_rotate %189 by %c1_i32_36 dim 1 : vector<32x128xf32>, i32 -> vector<32x128xf32>
    %c127_i32_37 = arith.constant 127 : i32
    %191 = tpu.dynamic_rotate %189 by %c127_i32_37 dim 1 : vector<32x128xf32>, i32 -> vector<32x128xf32>
    %c27 = arith.constant 27 : index
    %192 = memref.load %arg1[%c27] : memref<315xf32, #tpu.memory_space<smem>>
    %193 = vector.broadcast %192 : f32 to vector<32x128xf32>
    %194 = arith.mulf %193, %190 : vector<32x128xf32>
    %c28 = arith.constant 28 : index
    %195 = memref.load %arg1[%c28] : memref<315xf32, #tpu.memory_space<smem>>
    %196 = vector.broadcast %195 : f32 to vector<32x128xf32>
    %197 = arith.mulf %196, %189 : vector<32x128xf32>
    %198 = arith.addf %194, %197 : vector<32x128xf32>
    %c29 = arith.constant 29 : index
    %199 = memref.load %arg1[%c29] : memref<315xf32, #tpu.memory_space<smem>>
    %200 = vector.broadcast %199 : f32 to vector<32x128xf32>
    %201 = arith.mulf %200, %191 : vector<32x128xf32>
    %202 = arith.addf %198, %201 : vector<32x128xf32>
    %c30 = arith.constant 30 : index
    %203 = memref.load %arg1[%c30] : memref<315xf32, #tpu.memory_space<smem>>
    %204 = vector.broadcast %203 : f32 to vector<32x128xf32>
    %205 = arith.mulf %204, %190 : vector<32x128xf32>
    %c31 = arith.constant 31 : index
    %206 = memref.load %arg1[%c31] : memref<315xf32, #tpu.memory_space<smem>>
    %207 = vector.broadcast %206 : f32 to vector<32x128xf32>
    %208 = arith.mulf %207, %189 : vector<32x128xf32>
    %209 = arith.addf %205, %208 : vector<32x128xf32>
    %c32 = arith.constant 32 : index
    %210 = memref.load %arg1[%c32] : memref<315xf32, #tpu.memory_space<smem>>
    %211 = vector.broadcast %210 : f32 to vector<32x128xf32>
    %212 = arith.mulf %211, %191 : vector<32x128xf32>
    %213 = arith.addf %209, %212 : vector<32x128xf32>
    %c33 = arith.constant 33 : index
    %214 = memref.load %arg1[%c33] : memref<315xf32, #tpu.memory_space<smem>>
    %215 = vector.broadcast %214 : f32 to vector<32x128xf32>
    %216 = arith.mulf %215, %190 : vector<32x128xf32>
    %c34 = arith.constant 34 : index
    %217 = memref.load %arg1[%c34] : memref<315xf32, #tpu.memory_space<smem>>
    %218 = vector.broadcast %217 : f32 to vector<32x128xf32>
    %219 = arith.mulf %218, %189 : vector<32x128xf32>
    %220 = arith.addf %216, %219 : vector<32x128xf32>
    %c35 = arith.constant 35 : index
    %221 = memref.load %arg1[%c35] : memref<315xf32, #tpu.memory_space<smem>>
    %222 = vector.broadcast %221 : f32 to vector<32x128xf32>
    %223 = arith.mulf %222, %191 : vector<32x128xf32>
    %224 = arith.addf %220, %223 : vector<32x128xf32>
    %cst_38 = arith.constant dense<0.000000e+00> : vector<32x128xf32>
    %225 = tpu.matmul %6, %202, %cst_38 {dimension_numbers = #tpu.dot_dimension_numbers<[1], [0], [0], [1], [0, 0, 1, 1], [], []>} : vector<32x32xf32>, vector<32x128xf32>, vector<32x128xf32> -> vector<32x128xf32>
    %226 = arith.addf %225, %213 : vector<32x128xf32>
    %cst_39 = arith.constant dense<0.000000e+00> : vector<32x128xf32>
    %227 = tpu.matmul %8, %224, %cst_39 {dimension_numbers = #tpu.dot_dimension_numbers<[1], [0], [0], [1], [0, 0, 1, 1], [], []>} : vector<32x32xf32>, vector<32x128xf32>, vector<32x128xf32> -> vector<32x128xf32>
    %228 = arith.addf %226, %227 : vector<32x128xf32>
    %229 = arith.mulf %228, %4 : vector<32x128xf32>
    %230 = vector.shape_cast %229 : vector<32x128xf32> to vector<1x32x128xf32>
    %cst_40 = arith.constant dense<0.000000e+00> : vector<1xf32>
    %231 = vector.multi_reduction <add>, %230, %cst_40 [1, 2] : vector<1x32x128xf32> to vector<1xf32>
    %232 = vector.shape_cast %231 : vector<1xf32> to vector<1x1x1xf32>
    %233 = vector.extract %232[0, 0, 0] : f32 from vector<1x1x1xf32>
    %234 = arith.mulf %229, %229 : vector<32x128xf32>
    %235 = vector.shape_cast %234 : vector<32x128xf32> to vector<1x32x128xf32>
    %cst_41 = arith.constant dense<0.000000e+00> : vector<1xf32>
    %236 = vector.multi_reduction <add>, %235, %cst_41 [1, 2] : vector<1x32x128xf32> to vector<1xf32>
    %237 = vector.shape_cast %236 : vector<1xf32> to vector<1x1x1xf32>
    %238 = vector.extract %237[0, 0, 0] : f32 from vector<1x1x1xf32>
    %cst_42 = arith.constant 0.001953125 : f32
    %239 = arith.mulf %233, %cst_42 : f32
    %cst_43 = arith.constant 0.001953125 : f32
    %240 = arith.mulf %238, %cst_43 : f32
    %241 = arith.mulf %239, %239 : f32
    %242 = arith.subf %240, %241 : f32
    %cst_44 = arith.constant 0.000000e+00 : f32
    %243 = arith.maximumf %242, %cst_44 : f32
    %c2_45 = arith.constant 2 : index
    %244 = memref.load %arg3[%c2_45] : memref<33xf32, #tpu.memory_space<smem>>
    %cst_46 = arith.constant 9.99999974E-6 : f32
    %245 = arith.addf %243, %cst_46 : f32
    %246 = math.rsqrt %245 : f32
    %247 = arith.mulf %244, %246 : f32
    %c2_47 = arith.constant 2 : index
    %248 = memref.load %arg4[%c2_47] : memref<33xf32, #tpu.memory_space<smem>>
    %249 = arith.mulf %239, %247 : f32
    %250 = arith.subf %248, %249 : f32
    %251 = vector.broadcast %247 : f32 to vector<32x128xf32>
    %252 = arith.mulf %229, %251 : vector<32x128xf32>
    %253 = vector.broadcast %250 : f32 to vector<32x128xf32>
    %254 = arith.mulf %253, %4 : vector<32x128xf32>
    %255 = arith.addf %252, %254 : vector<32x128xf32>
    %cst_48 = arith.constant 0.000000e+00 : f32
    %256 = vector.broadcast %cst_48 : f32 to vector<32x128xf32>
    %257 = arith.maximumf %255, %256 : vector<32x128xf32>
    %c1_i32_49 = arith.constant 1 : i32
    %258 = tpu.dynamic_rotate %257 by %c1_i32_49 dim 1 : vector<32x128xf32>, i32 -> vector<32x128xf32>
    %c127_i32_50 = arith.constant 127 : i32
    %259 = tpu.dynamic_rotate %257 by %c127_i32_50 dim 1 : vector<32x128xf32>, i32 -> vector<32x128xf32>
    %c36 = arith.constant 36 : index
    %260 = memref.load %arg1[%c36] : memref<315xf32, #tpu.memory_space<smem>>
    %261 = vector.broadcast %260 : f32 to vector<32x128xf32>
    %262 = arith.mulf %261, %258 : vector<32x128xf32>
    %c37 = arith.constant 37 : index
    %263 = memref.load %arg1[%c37] : memref<315xf32, #tpu.memory_space<smem>>
    %264 = vector.broadcast %263 : f32 to vector<32x128xf32>
    %265 = arith.mulf %264, %257 : vector<32x128xf32>
    %266 = arith.addf %262, %265 : vector<32x128xf32>
    %c38 = arith.constant 38 : index
    %267 = memref.load %arg1[%c38] : memref<315xf32, #tpu.memory_space<smem>>
    %268 = vector.broadcast %267 : f32 to vector<32x128xf32>
    %269 = arith.mulf %268, %259 : vector<32x128xf32>
    %270 = arith.addf %266, %269 : vector<32x128xf32>
    %c39 = arith.constant 39 : index
    %271 = memref.load %arg1[%c39] : memref<315xf32, #tpu.memory_space<smem>>
    %272 = vector.broadcast %271 : f32 to vector<32x128xf32>
    %273 = arith.mulf %272, %258 : vector<32x128xf32>
    %c40 = arith.constant 40 : index
    %274 = memref.load %arg1[%c40] : memref<315xf32, #tpu.memory_space<smem>>
    %275 = vector.broadcast %274 : f32 to vector<32x128xf32>
    %276 = arith.mulf %275, %257 : vector<32x128xf32>
    %277 = arith.addf %273, %276 : vector<32x128xf32>
    %c41 = arith.constant 41 : index
    %278 = memref.load %arg1[%c41] : memref<315xf32, #tpu.memory_space<smem>>
    %279 = vector.broadcast %278 : f32 to vector<32x128xf32>
    %280 = arith.mulf %279, %259 : vector<32x128xf32>
    %281 = arith.addf %277, %280 : vector<32x128xf32>
    %c42 = arith.constant 42 : index
    %282 = memref.load %arg1[%c42] : memref<315xf32, #tpu.memory_space<smem>>
    %283 = vector.broadcast %282 : f32 to vector<32x128xf32>
    %284 = arith.mulf %283, %258 : vector<32x128xf32>
    %c43 = arith.constant 43 : index
    %285 = memref.load %arg1[%c43] : memref<315xf32, #tpu.memory_space<smem>>
    %286 = vector.broadcast %285 : f32 to vector<32x128xf32>
    %287 = arith.mulf %286, %257 : vector<32x128xf32>
    %288 = arith.addf %284, %287 : vector<32x128xf32>
    %c44 = arith.constant 44 : index
    %289 = memref.load %arg1[%c44] : memref<315xf32, #tpu.memory_space<smem>>
    %290 = vector.broadcast %289 : f32 to vector<32x128xf32>
    %291 = arith.mulf %290, %259 : vector<32x128xf32>
    %292 = arith.addf %288, %291 : vector<32x128xf32>
    %cst_51 = arith.constant dense<0.000000e+00> : vector<32x128xf32>
    %293 = tpu.matmul %6, %270, %cst_51 {dimension_numbers = #tpu.dot_dimension_numbers<[1], [0], [0], [1], [0, 0, 1, 1], [], []>} : vector<32x32xf32>, vector<32x128xf32>, vector<32x128xf32> -> vector<32x128xf32>
    %294 = arith.addf %293, %281 : vector<32x128xf32>
    %cst_52 = arith.constant dense<0.000000e+00> : vector<32x128xf32>
    %295 = tpu.matmul %8, %292, %cst_52 {dimension_numbers = #tpu.dot_dimension_numbers<[1], [0], [0], [1], [0, 0, 1, 1], [], []>} : vector<32x32xf32>, vector<32x128xf32>, vector<32x128xf32> -> vector<32x128xf32>
    %296 = arith.addf %294, %295 : vector<32x128xf32>
    %297 = arith.mulf %296, %4 : vector<32x128xf32>
    %298 = vector.shape_cast %297 : vector<32x128xf32> to vector<1x32x128xf32>
    %cst_53 = arith.constant dense<0.000000e+00> : vector<1xf32>
    %299 = vector.multi_reduction <add>, %298, %cst_53 [1, 2] : vector<1x32x128xf32> to vector<1xf32>
    %300 = vector.shape_cast %299 : vector<1xf32> to vector<1x1x1xf32>
    %301 = vector.extract %300[0, 0, 0] : f32 from vector<1x1x1xf32>
    %302 = arith.mulf %297, %297 : vector<32x128xf32>
    %303 = vector.shape_cast %302 : vector<32x128xf32> to vector<1x32x128xf32>
    %cst_54 = arith.constant dense<0.000000e+00> : vector<1xf32>
    %304 = vector.multi_reduction <add>, %303, %cst_54 [1, 2] : vector<1x32x128xf32> to vector<1xf32>
    %305 = vector.shape_cast %304 : vector<1xf32> to vector<1x1x1xf32>
    %306 = vector.extract %305[0, 0, 0] : f32 from vector<1x1x1xf32>
    %cst_55 = arith.constant 0.001953125 : f32
    %307 = arith.mulf %301, %cst_55 : f32
    %cst_56 = arith.constant 0.001953125 : f32
    %308 = arith.mulf %306, %cst_56 : f32
    %309 = arith.mulf %307, %307 : f32
    %310 = arith.subf %308, %309 : f32
    %cst_57 = arith.constant 0.000000e+00 : f32
    %311 = arith.maximumf %310, %cst_57 : f32
    %c3_58 = arith.constant 3 : index
    %312 = memref.load %arg3[%c3_58] : memref<33xf32, #tpu.memory_space<smem>>
    %cst_59 = arith.constant 9.99999974E-6 : f32
    %313 = arith.addf %311, %cst_59 : f32
    %314 = math.rsqrt %313 : f32
    %315 = arith.mulf %312, %314 : f32
    %c3_60 = arith.constant 3 : index
    %316 = memref.load %arg4[%c3_60] : memref<33xf32, #tpu.memory_space<smem>>
    %317 = arith.mulf %307, %315 : f32
    %318 = arith.subf %316, %317 : f32
    %319 = vector.broadcast %315 : f32 to vector<32x128xf32>
    %320 = arith.mulf %297, %319 : vector<32x128xf32>
    %321 = vector.broadcast %318 : f32 to vector<32x128xf32>
    %322 = arith.mulf %321, %4 : vector<32x128xf32>
    %323 = arith.addf %320, %322 : vector<32x128xf32>
    %324 = arith.addf %189, %323 : vector<32x128xf32>
    %c1_i32_61 = arith.constant 1 : i32
    %325 = tpu.dynamic_rotate %324 by %c1_i32_61 dim 1 : vector<32x128xf32>, i32 -> vector<32x128xf32>
    %c127_i32_62 = arith.constant 127 : i32
    %326 = tpu.dynamic_rotate %324 by %c127_i32_62 dim 1 : vector<32x128xf32>, i32 -> vector<32x128xf32>
    %c45 = arith.constant 45 : index
    %327 = memref.load %arg1[%c45] : memref<315xf32, #tpu.memory_space<smem>>
    %328 = vector.broadcast %327 : f32 to vector<32x128xf32>
    %329 = arith.mulf %328, %325 : vector<32x128xf32>
    %c46 = arith.constant 46 : index
    %330 = memref.load %arg1[%c46] : memref<315xf32, #tpu.memory_space<smem>>
    %331 = vector.broadcast %330 : f32 to vector<32x128xf32>
    %332 = arith.mulf %331, %324 : vector<32x128xf32>
    %333 = arith.addf %329, %332 : vector<32x128xf32>
    %c47 = arith.constant 47 : index
    %334 = memref.load %arg1[%c47] : memref<315xf32, #tpu.memory_space<smem>>
    %335 = vector.broadcast %334 : f32 to vector<32x128xf32>
    %336 = arith.mulf %335, %326 : vector<32x128xf32>
    %337 = arith.addf %333, %336 : vector<32x128xf32>
    %c48 = arith.constant 48 : index
    %338 = memref.load %arg1[%c48] : memref<315xf32, #tpu.memory_space<smem>>
    %339 = vector.broadcast %338 : f32 to vector<32x128xf32>
    %340 = arith.mulf %339, %325 : vector<32x128xf32>
    %c49 = arith.constant 49 : index
    %341 = memref.load %arg1[%c49] : memref<315xf32, #tpu.memory_space<smem>>
    %342 = vector.broadcast %341 : f32 to vector<32x128xf32>
    %343 = arith.mulf %342, %324 : vector<32x128xf32>
    %344 = arith.addf %340, %343 : vector<32x128xf32>
    %c50 = arith.constant 50 : index
    %345 = memref.load %arg1[%c50] : memref<315xf32, #tpu.memory_space<smem>>
    %346 = vector.broadcast %345 : f32 to vector<32x128xf32>
    %347 = arith.mulf %346, %326 : vector<32x128xf32>
    %348 = arith.addf %344, %347 : vector<32x128xf32>
    %c51 = arith.constant 51 : index
    %349 = memref.load %arg1[%c51] : memref<315xf32, #tpu.memory_space<smem>>
    %350 = vector.broadcast %349 : f32 to vector<32x128xf32>
    %351 = arith.mulf %350, %325 : vector<32x128xf32>
    %c52 = arith.constant 52 : index
    %352 = memref.load %arg1[%c52] : memref<315xf32, #tpu.memory_space<smem>>
    %353 = vector.broadcast %352 : f32 to vector<32x128xf32>
    %354 = arith.mulf %353, %324 : vector<32x128xf32>
    %355 = arith.addf %351, %354 : vector<32x128xf32>
    %c53 = arith.constant 53 : index
    %356 = memref.load %arg1[%c53] : memref<315xf32, #tpu.memory_space<smem>>
    %357 = vector.broadcast %356 : f32 to vector<32x128xf32>
    %358 = arith.mulf %357, %326 : vector<32x128xf32>
    %359 = arith.addf %355, %358 : vector<32x128xf32>
    %cst_63 = arith.constant dense<0.000000e+00> : vector<32x128xf32>
    %360 = tpu.matmul %6, %337, %cst_63 {dimension_numbers = #tpu.dot_dimension_numbers<[1], [0], [0], [1], [0, 0, 1, 1], [], []>} : vector<32x32xf32>, vector<32x128xf32>, vector<32x128xf32> -> vector<32x128xf32>
    %361 = arith.addf %360, %348 : vector<32x128xf32>
    %cst_64 = arith.constant dense<0.000000e+00> : vector<32x128xf32>
    %362 = tpu.matmul %8, %359, %cst_64 {dimension_numbers = #tpu.dot_dimension_numbers<[1], [0], [0], [1], [0, 0, 1, 1], [], []>} : vector<32x32xf32>, vector<32x128xf32>, vector<32x128xf32> -> vector<32x128xf32>
    %363 = arith.addf %361, %362 : vector<32x128xf32>
    %364 = arith.mulf %363, %4 : vector<32x128xf32>
    %365 = vector.shape_cast %364 : vector<32x128xf32> to vector<1x32x128xf32>
    %cst_65 = arith.constant dense<0.000000e+00> : vector<1xf32>
    %366 = vector.multi_reduction <add>, %365, %cst_65 [1, 2] : vector<1x32x128xf32> to vector<1xf32>
    %367 = vector.shape_cast %366 : vector<1xf32> to vector<1x1x1xf32>
    %368 = vector.extract %367[0, 0, 0] : f32 from vector<1x1x1xf32>
    %369 = arith.mulf %364, %364 : vector<32x128xf32>
    %370 = vector.shape_cast %369 : vector<32x128xf32> to vector<1x32x128xf32>
    %cst_66 = arith.constant dense<0.000000e+00> : vector<1xf32>
    %371 = vector.multi_reduction <add>, %370, %cst_66 [1, 2] : vector<1x32x128xf32> to vector<1xf32>
    %372 = vector.shape_cast %371 : vector<1xf32> to vector<1x1x1xf32>
    %373 = vector.extract %372[0, 0, 0] : f32 from vector<1x1x1xf32>
    %cst_67 = arith.constant 0.001953125 : f32
    %374 = arith.mulf %368, %cst_67 : f32
    %cst_68 = arith.constant 0.001953125 : f32
    %375 = arith.mulf %373, %cst_68 : f32
    %376 = arith.mulf %374, %374 : f32
    %377 = arith.subf %375, %376 : f32
    %cst_69 = arith.constant 0.000000e+00 : f32
    %378 = arith.maximumf %377, %cst_69 : f32
    %c4_70 = arith.constant 4 : index
    %379 = memref.load %arg3[%c4_70] : memref<33xf32, #tpu.memory_space<smem>>
    %cst_71 = arith.constant 9.99999974E-6 : f32
    %380 = arith.addf %378, %cst_71 : f32
    %381 = math.rsqrt %380 : f32
    %382 = arith.mulf %379, %381 : f32
    %c4_72 = arith.constant 4 : index
    %383 = memref.load %arg4[%c4_72] : memref<33xf32, #tpu.memory_space<smem>>
    %384 = arith.mulf %374, %382 : f32
    %385 = arith.subf %383, %384 : f32
    %386 = vector.broadcast %382 : f32 to vector<32x128xf32>
    %387 = arith.mulf %364, %386 : vector<32x128xf32>
    %388 = vector.broadcast %385 : f32 to vector<32x128xf32>
    %389 = arith.mulf %388, %4 : vector<32x128xf32>
    %390 = arith.addf %387, %389 : vector<32x128xf32>
    %cst_73 = arith.constant 0.000000e+00 : f32
    %391 = vector.broadcast %cst_73 : f32 to vector<32x128xf32>
    %392 = arith.maximumf %390, %391 : vector<32x128xf32>
    %c1_i32_74 = arith.constant 1 : i32
    %393 = tpu.dynamic_rotate %392 by %c1_i32_74 dim 1 : vector<32x128xf32>, i32 -> vector<32x128xf32>
    %c127_i32_75 = arith.constant 127 : i32
    %394 = tpu.dynamic_rotate %392 by %c127_i32_75 dim 1 : vector<32x128xf32>, i32 -> vector<32x128xf32>
    %c54 = arith.constant 54 : index
    %395 = memref.load %arg1[%c54] : memref<315xf32, #tpu.memory_space<smem>>
    %396 = vector.broadcast %395 : f32 to vector<32x128xf32>
    %397 = arith.mulf %396, %393 : vector<32x128xf32>
    %c55 = arith.constant 55 : index
    %398 = memref.load %arg1[%c55] : memref<315xf32, #tpu.memory_space<smem>>
    %399 = vector.broadcast %398 : f32 to vector<32x128xf32>
    %400 = arith.mulf %399, %392 : vector<32x128xf32>
    %401 = arith.addf %397, %400 : vector<32x128xf32>
    %c56 = arith.constant 56 : index
    %402 = memref.load %arg1[%c56] : memref<315xf32, #tpu.memory_space<smem>>
    %403 = vector.broadcast %402 : f32 to vector<32x128xf32>
    %404 = arith.mulf %403, %394 : vector<32x128xf32>
    %405 = arith.addf %401, %404 : vector<32x128xf32>
    %c57 = arith.constant 57 : index
    %406 = memref.load %arg1[%c57] : memref<315xf32, #tpu.memory_space<smem>>
    %407 = vector.broadcast %406 : f32 to vector<32x128xf32>
    %408 = arith.mulf %407, %393 : vector<32x128xf32>
    %c58 = arith.constant 58 : index
    %409 = memref.load %arg1[%c58] : memref<315xf32, #tpu.memory_space<smem>>
    %410 = vector.broadcast %409 : f32 to vector<32x128xf32>
    %411 = arith.mulf %410, %392 : vector<32x128xf32>
    %412 = arith.addf %408, %411 : vector<32x128xf32>
    %c59 = arith.constant 59 : index
    %413 = memref.load %arg1[%c59] : memref<315xf32, #tpu.memory_space<smem>>
    %414 = vector.broadcast %413 : f32 to vector<32x128xf32>
    %415 = arith.mulf %414, %394 : vector<32x128xf32>
    %416 = arith.addf %412, %415 : vector<32x128xf32>
    %c60 = arith.constant 60 : index
    %417 = memref.load %arg1[%c60] : memref<315xf32, #tpu.memory_space<smem>>
    %418 = vector.broadcast %417 : f32 to vector<32x128xf32>
    %419 = arith.mulf %418, %393 : vector<32x128xf32>
    %c61 = arith.constant 61 : index
    %420 = memref.load %arg1[%c61] : memref<315xf32, #tpu.memory_space<smem>>
    %421 = vector.broadcast %420 : f32 to vector<32x128xf32>
    %422 = arith.mulf %421, %392 : vector<32x128xf32>
    %423 = arith.addf %419, %422 : vector<32x128xf32>
    %c62 = arith.constant 62 : index
    %424 = memref.load %arg1[%c62] : memref<315xf32, #tpu.memory_space<smem>>
    %425 = vector.broadcast %424 : f32 to vector<32x128xf32>
    %426 = arith.mulf %425, %394 : vector<32x128xf32>
    %427 = arith.addf %423, %426 : vector<32x128xf32>
    %cst_76 = arith.constant dense<0.000000e+00> : vector<32x128xf32>
    %428 = tpu.matmul %6, %405, %cst_76 {dimension_numbers = #tpu.dot_dimension_numbers<[1], [0], [0], [1], [0, 0, 1, 1], [], []>} : vector<32x32xf32>, vector<32x128xf32>, vector<32x128xf32> -> vector<32x128xf32>
    %429 = arith.addf %428, %416 : vector<32x128xf32>
    %cst_77 = arith.constant dense<0.000000e+00> : vector<32x128xf32>
    %430 = tpu.matmul %8, %427, %cst_77 {dimension_numbers = #tpu.dot_dimension_numbers<[1], [0], [0], [1], [0, 0, 1, 1], [], []>} : vector<32x32xf32>, vector<32x128xf32>, vector<32x128xf32> -> vector<32x128xf32>
    %431 = arith.addf %429, %430 : vector<32x128xf32>
    %432 = arith.mulf %431, %4 : vector<32x128xf32>
    %433 = vector.shape_cast %432 : vector<32x128xf32> to vector<1x32x128xf32>
    %cst_78 = arith.constant dense<0.000000e+00> : vector<1xf32>
    %434 = vector.multi_reduction <add>, %433, %cst_78 [1, 2] : vector<1x32x128xf32> to vector<1xf32>
    %435 = vector.shape_cast %434 : vector<1xf32> to vector<1x1x1xf32>
    %436 = vector.extract %435[0, 0, 0] : f32 from vector<1x1x1xf32>
    %437 = arith.mulf %432, %432 : vector<32x128xf32>
    %438 = vector.shape_cast %437 : vector<32x128xf32> to vector<1x32x128xf32>
    %cst_79 = arith.constant dense<0.000000e+00> : vector<1xf32>
    %439 = vector.multi_reduction <add>, %438, %cst_79 [1, 2] : vector<1x32x128xf32> to vector<1xf32>
    %440 = vector.shape_cast %439 : vector<1xf32> to vector<1x1x1xf32>
    %441 = vector.extract %440[0, 0, 0] : f32 from vector<1x1x1xf32>
    %cst_80 = arith.constant 0.001953125 : f32
    %442 = arith.mulf %436, %cst_80 : f32
    %cst_81 = arith.constant 0.001953125 : f32
    %443 = arith.mulf %441, %cst_81 : f32
    %444 = arith.mulf %442, %442 : f32
    %445 = arith.subf %443, %444 : f32
    %cst_82 = arith.constant 0.000000e+00 : f32
    %446 = arith.maximumf %445, %cst_82 : f32
    %c5_83 = arith.constant 5 : index
    %447 = memref.load %arg3[%c5_83] : memref<33xf32, #tpu.memory_space<smem>>
    %cst_84 = arith.constant 9.99999974E-6 : f32
    %448 = arith.addf %446, %cst_84 : f32
    %449 = math.rsqrt %448 : f32
    %450 = arith.mulf %447, %449 : f32
    %c5_85 = arith.constant 5 : index
    %451 = memref.load %arg4[%c5_85] : memref<33xf32, #tpu.memory_space<smem>>
    %452 = arith.mulf %442, %450 : f32
    %453 = arith.subf %451, %452 : f32
    %454 = vector.broadcast %450 : f32 to vector<32x128xf32>
    %455 = arith.mulf %432, %454 : vector<32x128xf32>
    %456 = vector.broadcast %453 : f32 to vector<32x128xf32>
    %457 = arith.mulf %456, %4 : vector<32x128xf32>
    %458 = arith.addf %455, %457 : vector<32x128xf32>
    %459 = arith.addf %324, %458 : vector<32x128xf32>
    %c1_i32_86 = arith.constant 1 : i32
    %460 = tpu.dynamic_rotate %459 by %c1_i32_86 dim 1 : vector<32x128xf32>, i32 -> vector<32x128xf32>
    %c127_i32_87 = arith.constant 127 : i32
    %461 = tpu.dynamic_rotate %459 by %c127_i32_87 dim 1 : vector<32x128xf32>, i32 -> vector<32x128xf32>
    %c63 = arith.constant 63 : index
    %462 = memref.load %arg1[%c63] : memref<315xf32, #tpu.memory_space<smem>>
    %463 = vector.broadcast %462 : f32 to vector<32x128xf32>
    %464 = arith.mulf %463, %460 : vector<32x128xf32>
    %c64 = arith.constant 64 : index
    %465 = memref.load %arg1[%c64] : memref<315xf32, #tpu.memory_space<smem>>
    %466 = vector.broadcast %465 : f32 to vector<32x128xf32>
    %467 = arith.mulf %466, %459 : vector<32x128xf32>
    %468 = arith.addf %464, %467 : vector<32x128xf32>
    %c65 = arith.constant 65 : index
    %469 = memref.load %arg1[%c65] : memref<315xf32, #tpu.memory_space<smem>>
    %470 = vector.broadcast %469 : f32 to vector<32x128xf32>
    %471 = arith.mulf %470, %461 : vector<32x128xf32>
    %472 = arith.addf %468, %471 : vector<32x128xf32>
    %c66 = arith.constant 66 : index
    %473 = memref.load %arg1[%c66] : memref<315xf32, #tpu.memory_space<smem>>
    %474 = vector.broadcast %473 : f32 to vector<32x128xf32>
    %475 = arith.mulf %474, %460 : vector<32x128xf32>
    %c67 = arith.constant 67 : index
    %476 = memref.load %arg1[%c67] : memref<315xf32, #tpu.memory_space<smem>>
    %477 = vector.broadcast %476 : f32 to vector<32x128xf32>
    %478 = arith.mulf %477, %459 : vector<32x128xf32>
    %479 = arith.addf %475, %478 : vector<32x128xf32>
    %c68 = arith.constant 68 : index
    %480 = memref.load %arg1[%c68] : memref<315xf32, #tpu.memory_space<smem>>
    %481 = vector.broadcast %480 : f32 to vector<32x128xf32>
    %482 = arith.mulf %481, %461 : vector<32x128xf32>
    %483 = arith.addf %479, %482 : vector<32x128xf32>
    %c69 = arith.constant 69 : index
    %484 = memref.load %arg1[%c69] : memref<315xf32, #tpu.memory_space<smem>>
    %485 = vector.broadcast %484 : f32 to vector<32x128xf32>
    %486 = arith.mulf %485, %460 : vector<32x128xf32>
    %c70 = arith.constant 70 : index
    %487 = memref.load %arg1[%c70] : memref<315xf32, #tpu.memory_space<smem>>
    %488 = vector.broadcast %487 : f32 to vector<32x128xf32>
    %489 = arith.mulf %488, %459 : vector<32x128xf32>
    %490 = arith.addf %486, %489 : vector<32x128xf32>
    %c71 = arith.constant 71 : index
    %491 = memref.load %arg1[%c71] : memref<315xf32, #tpu.memory_space<smem>>
    %492 = vector.broadcast %491 : f32 to vector<32x128xf32>
    %493 = arith.mulf %492, %461 : vector<32x128xf32>
    %494 = arith.addf %490, %493 : vector<32x128xf32>
    %cst_88 = arith.constant dense<0.000000e+00> : vector<32x128xf32>
    %495 = tpu.matmul %6, %472, %cst_88 {dimension_numbers = #tpu.dot_dimension_numbers<[1], [0], [0], [1], [0, 0, 1, 1], [], []>} : vector<32x32xf32>, vector<32x128xf32>, vector<32x128xf32> -> vector<32x128xf32>
    %496 = arith.addf %495, %483 : vector<32x128xf32>
    %cst_89 = arith.constant dense<0.000000e+00> : vector<32x128xf32>
    %497 = tpu.matmul %8, %494, %cst_89 {dimension_numbers = #tpu.dot_dimension_numbers<[1], [0], [0], [1], [0, 0, 1, 1], [], []>} : vector<32x32xf32>, vector<32x128xf32>, vector<32x128xf32> -> vector<32x128xf32>
    %498 = arith.addf %496, %497 : vector<32x128xf32>
    %499 = arith.mulf %498, %4 : vector<32x128xf32>
    %500 = vector.shape_cast %499 : vector<32x128xf32> to vector<1x32x128xf32>
    %cst_90 = arith.constant dense<0.000000e+00> : vector<1xf32>
    %501 = vector.multi_reduction <add>, %500, %cst_90 [1, 2] : vector<1x32x128xf32> to vector<1xf32>
    %502 = vector.shape_cast %501 : vector<1xf32> to vector<1x1x1xf32>
    %503 = vector.extract %502[0, 0, 0] : f32 from vector<1x1x1xf32>
    %504 = arith.mulf %499, %499 : vector<32x128xf32>
    %505 = vector.shape_cast %504 : vector<32x128xf32> to vector<1x32x128xf32>
    %cst_91 = arith.constant dense<0.000000e+00> : vector<1xf32>
    %506 = vector.multi_reduction <add>, %505, %cst_91 [1, 2] : vector<1x32x128xf32> to vector<1xf32>
    %507 = vector.shape_cast %506 : vector<1xf32> to vector<1x1x1xf32>
    %508 = vector.extract %507[0, 0, 0] : f32 from vector<1x1x1xf32>
    %cst_92 = arith.constant 0.001953125 : f32
    %509 = arith.mulf %503, %cst_92 : f32
    %cst_93 = arith.constant 0.001953125 : f32
    %510 = arith.mulf %508, %cst_93 : f32
    %511 = arith.mulf %509, %509 : f32
    %512 = arith.subf %510, %511 : f32
    %cst_94 = arith.constant 0.000000e+00 : f32
    %513 = arith.maximumf %512, %cst_94 : f32
    %c6_95 = arith.constant 6 : index
    %514 = memref.load %arg3[%c6_95] : memref<33xf32, #tpu.memory_space<smem>>
    %cst_96 = arith.constant 9.99999974E-6 : f32
    %515 = arith.addf %513, %cst_96 : f32
    %516 = math.rsqrt %515 : f32
    %517 = arith.mulf %514, %516 : f32
    %c6_97 = arith.constant 6 : index
    %518 = memref.load %arg4[%c6_97] : memref<33xf32, #tpu.memory_space<smem>>
    %519 = arith.mulf %509, %517 : f32
    %520 = arith.subf %518, %519 : f32
    %521 = vector.broadcast %517 : f32 to vector<32x128xf32>
    %522 = arith.mulf %499, %521 : vector<32x128xf32>
    %523 = vector.broadcast %520 : f32 to vector<32x128xf32>
    %524 = arith.mulf %523, %4 : vector<32x128xf32>
    %525 = arith.addf %522, %524 : vector<32x128xf32>
    %cst_98 = arith.constant 0.000000e+00 : f32
    %526 = vector.broadcast %cst_98 : f32 to vector<32x128xf32>
    %527 = arith.maximumf %525, %526 : vector<32x128xf32>
    %c1_i32_99 = arith.constant 1 : i32
    %528 = tpu.dynamic_rotate %527 by %c1_i32_99 dim 1 : vector<32x128xf32>, i32 -> vector<32x128xf32>
    %c127_i32_100 = arith.constant 127 : i32
    %529 = tpu.dynamic_rotate %527 by %c127_i32_100 dim 1 : vector<32x128xf32>, i32 -> vector<32x128xf32>
    %c72 = arith.constant 72 : index
    %530 = memref.load %arg1[%c72] : memref<315xf32, #tpu.memory_space<smem>>
    %531 = vector.broadcast %530 : f32 to vector<32x128xf32>
    %532 = arith.mulf %531, %528 : vector<32x128xf32>
    %c73 = arith.constant 73 : index
    %533 = memref.load %arg1[%c73] : memref<315xf32, #tpu.memory_space<smem>>
    %534 = vector.broadcast %533 : f32 to vector<32x128xf32>
    %535 = arith.mulf %534, %527 : vector<32x128xf32>
    %536 = arith.addf %532, %535 : vector<32x128xf32>
    %c74 = arith.constant 74 : index
    %537 = memref.load %arg1[%c74] : memref<315xf32, #tpu.memory_space<smem>>
    %538 = vector.broadcast %537 : f32 to vector<32x128xf32>
    %539 = arith.mulf %538, %529 : vector<32x128xf32>
    %540 = arith.addf %536, %539 : vector<32x128xf32>
    %c75 = arith.constant 75 : index
    %541 = memref.load %arg1[%c75] : memref<315xf32, #tpu.memory_space<smem>>
    %542 = vector.broadcast %541 : f32 to vector<32x128xf32>
    %543 = arith.mulf %542, %528 : vector<32x128xf32>
    %c76 = arith.constant 76 : index
    %544 = memref.load %arg1[%c76] : memref<315xf32, #tpu.memory_space<smem>>
    %545 = vector.broadcast %544 : f32 to vector<32x128xf32>
    %546 = arith.mulf %545, %527 : vector<32x128xf32>
    %547 = arith.addf %543, %546 : vector<32x128xf32>
    %c77 = arith.constant 77 : index
    %548 = memref.load %arg1[%c77] : memref<315xf32, #tpu.memory_space<smem>>
    %549 = vector.broadcast %548 : f32 to vector<32x128xf32>
    %550 = arith.mulf %549, %529 : vector<32x128xf32>
    %551 = arith.addf %547, %550 : vector<32x128xf32>
    %c78 = arith.constant 78 : index
    %552 = memref.load %arg1[%c78] : memref<315xf32, #tpu.memory_space<smem>>
    %553 = vector.broadcast %552 : f32 to vector<32x128xf32>
    %554 = arith.mulf %553, %528 : vector<32x128xf32>
    %c79 = arith.constant 79 : index
    %555 = memref.load %arg1[%c79] : memref<315xf32, #tpu.memory_space<smem>>
    %556 = vector.broadcast %555 : f32 to vector<32x128xf32>
    %557 = arith.mulf %556, %527 : vector<32x128xf32>
    %558 = arith.addf %554, %557 : vector<32x128xf32>
    %c80 = arith.constant 80 : index
    %559 = memref.load %arg1[%c80] : memref<315xf32, #tpu.memory_space<smem>>
    %560 = vector.broadcast %559 : f32 to vector<32x128xf32>
    %561 = arith.mulf %560, %529 : vector<32x128xf32>
    %562 = arith.addf %558, %561 : vector<32x128xf32>
    %cst_101 = arith.constant dense<0.000000e+00> : vector<32x128xf32>
    %563 = tpu.matmul %6, %540, %cst_101 {dimension_numbers = #tpu.dot_dimension_numbers<[1], [0], [0], [1], [0, 0, 1, 1], [], []>} : vector<32x32xf32>, vector<32x128xf32>, vector<32x128xf32> -> vector<32x128xf32>
    %564 = arith.addf %563, %551 : vector<32x128xf32>
    %cst_102 = arith.constant dense<0.000000e+00> : vector<32x128xf32>
    %565 = tpu.matmul %8, %562, %cst_102 {dimension_numbers = #tpu.dot_dimension_numbers<[1], [0], [0], [1], [0, 0, 1, 1], [], []>} : vector<32x32xf32>, vector<32x128xf32>, vector<32x128xf32> -> vector<32x128xf32>
    %566 = arith.addf %564, %565 : vector<32x128xf32>
    %567 = arith.mulf %566, %4 : vector<32x128xf32>
    %568 = vector.shape_cast %567 : vector<32x128xf32> to vector<1x32x128xf32>
    %cst_103 = arith.constant dense<0.000000e+00> : vector<1xf32>
    %569 = vector.multi_reduction <add>, %568, %cst_103 [1, 2] : vector<1x32x128xf32> to vector<1xf32>
    %570 = vector.shape_cast %569 : vector<1xf32> to vector<1x1x1xf32>
    %571 = vector.extract %570[0, 0, 0] : f32 from vector<1x1x1xf32>
    %572 = arith.mulf %567, %567 : vector<32x128xf32>
    %573 = vector.shape_cast %572 : vector<32x128xf32> to vector<1x32x128xf32>
    %cst_104 = arith.constant dense<0.000000e+00> : vector<1xf32>
    %574 = vector.multi_reduction <add>, %573, %cst_104 [1, 2] : vector<1x32x128xf32> to vector<1xf32>
    %575 = vector.shape_cast %574 : vector<1xf32> to vector<1x1x1xf32>
    %576 = vector.extract %575[0, 0, 0] : f32 from vector<1x1x1xf32>
    %cst_105 = arith.constant 0.001953125 : f32
    %577 = arith.mulf %571, %cst_105 : f32
    %cst_106 = arith.constant 0.001953125 : f32
    %578 = arith.mulf %576, %cst_106 : f32
    %579 = arith.mulf %577, %577 : f32
    %580 = arith.subf %578, %579 : f32
    %cst_107 = arith.constant 0.000000e+00 : f32
    %581 = arith.maximumf %580, %cst_107 : f32
    %c7_108 = arith.constant 7 : index
    %582 = memref.load %arg3[%c7_108] : memref<33xf32, #tpu.memory_space<smem>>
    %cst_109 = arith.constant 9.99999974E-6 : f32
    %583 = arith.addf %581, %cst_109 : f32
    %584 = math.rsqrt %583 : f32
    %585 = arith.mulf %582, %584 : f32
    %c7_110 = arith.constant 7 : index
    %586 = memref.load %arg4[%c7_110] : memref<33xf32, #tpu.memory_space<smem>>
    %587 = arith.mulf %577, %585 : f32
    %588 = arith.subf %586, %587 : f32
    %589 = vector.broadcast %585 : f32 to vector<32x128xf32>
    %590 = arith.mulf %567, %589 : vector<32x128xf32>
    %591 = vector.broadcast %588 : f32 to vector<32x128xf32>
    %592 = arith.mulf %591, %4 : vector<32x128xf32>
    %593 = arith.addf %590, %592 : vector<32x128xf32>
    %594 = arith.addf %459, %593 : vector<32x128xf32>
    %c1_i32_111 = arith.constant 1 : i32
    %595 = tpu.dynamic_rotate %594 by %c1_i32_111 dim 1 : vector<32x128xf32>, i32 -> vector<32x128xf32>
    %c127_i32_112 = arith.constant 127 : i32
    %596 = tpu.dynamic_rotate %594 by %c127_i32_112 dim 1 : vector<32x128xf32>, i32 -> vector<32x128xf32>
    %c81 = arith.constant 81 : index
    %597 = memref.load %arg1[%c81] : memref<315xf32, #tpu.memory_space<smem>>
    %598 = vector.broadcast %597 : f32 to vector<32x128xf32>
    %599 = arith.mulf %598, %595 : vector<32x128xf32>
    %c82 = arith.constant 82 : index
    %600 = memref.load %arg1[%c82] : memref<315xf32, #tpu.memory_space<smem>>
    %601 = vector.broadcast %600 : f32 to vector<32x128xf32>
    %602 = arith.mulf %601, %594 : vector<32x128xf32>
    %603 = arith.addf %599, %602 : vector<32x128xf32>
    %c83 = arith.constant 83 : index
    %604 = memref.load %arg1[%c83] : memref<315xf32, #tpu.memory_space<smem>>
    %605 = vector.broadcast %604 : f32 to vector<32x128xf32>
    %606 = arith.mulf %605, %596 : vector<32x128xf32>
    %607 = arith.addf %603, %606 : vector<32x128xf32>
    %c84 = arith.constant 84 : index
    %608 = memref.load %arg1[%c84] : memref<315xf32, #tpu.memory_space<smem>>
    %609 = vector.broadcast %608 : f32 to vector<32x128xf32>
    %610 = arith.mulf %609, %595 : vector<32x128xf32>
    %c85 = arith.constant 85 : index
    %611 = memref.load %arg1[%c85] : memref<315xf32, #tpu.memory_space<smem>>
    %612 = vector.broadcast %611 : f32 to vector<32x128xf32>
    %613 = arith.mulf %612, %594 : vector<32x128xf32>
    %614 = arith.addf %610, %613 : vector<32x128xf32>
    %c86 = arith.constant 86 : index
    %615 = memref.load %arg1[%c86] : memref<315xf32, #tpu.memory_space<smem>>
    %616 = vector.broadcast %615 : f32 to vector<32x128xf32>
    %617 = arith.mulf %616, %596 : vector<32x128xf32>
    %618 = arith.addf %614, %617 : vector<32x128xf32>
    %c87 = arith.constant 87 : index
    %619 = memref.load %arg1[%c87] : memref<315xf32, #tpu.memory_space<smem>>
    %620 = vector.broadcast %619 : f32 to vector<32x128xf32>
    %621 = arith.mulf %620, %595 : vector<32x128xf32>
    %c88 = arith.constant 88 : index
    %622 = memref.load %arg1[%c88] : memref<315xf32, #tpu.memory_space<smem>>
    %623 = vector.broadcast %622 : f32 to vector<32x128xf32>
    %624 = arith.mulf %623, %594 : vector<32x128xf32>
    %625 = arith.addf %621, %624 : vector<32x128xf32>
    %c89 = arith.constant 89 : index
    %626 = memref.load %arg1[%c89] : memref<315xf32, #tpu.memory_space<smem>>
    %627 = vector.broadcast %626 : f32 to vector<32x128xf32>
    %628 = arith.mulf %627, %596 : vector<32x128xf32>
    %629 = arith.addf %625, %628 : vector<32x128xf32>
    %cst_113 = arith.constant dense<0.000000e+00> : vector<32x128xf32>
    %630 = tpu.matmul %6, %607, %cst_113 {dimension_numbers = #tpu.dot_dimension_numbers<[1], [0], [0], [1], [0, 0, 1, 1], [], []>} : vector<32x32xf32>, vector<32x128xf32>, vector<32x128xf32> -> vector<32x128xf32>
    %631 = arith.addf %630, %618 : vector<32x128xf32>
    %cst_114 = arith.constant dense<0.000000e+00> : vector<32x128xf32>
    %632 = tpu.matmul %8, %629, %cst_114 {dimension_numbers = #tpu.dot_dimension_numbers<[1], [0], [0], [1], [0, 0, 1, 1], [], []>} : vector<32x32xf32>, vector<32x128xf32>, vector<32x128xf32> -> vector<32x128xf32>
    %633 = arith.addf %631, %632 : vector<32x128xf32>
    %634 = arith.mulf %633, %4 : vector<32x128xf32>
    %635 = vector.shape_cast %634 : vector<32x128xf32> to vector<1x32x128xf32>
    %cst_115 = arith.constant dense<0.000000e+00> : vector<1xf32>
    %636 = vector.multi_reduction <add>, %635, %cst_115 [1, 2] : vector<1x32x128xf32> to vector<1xf32>
    %637 = vector.shape_cast %636 : vector<1xf32> to vector<1x1x1xf32>
    %638 = vector.extract %637[0, 0, 0] : f32 from vector<1x1x1xf32>
    %639 = arith.mulf %634, %634 : vector<32x128xf32>
    %640 = vector.shape_cast %639 : vector<32x128xf32> to vector<1x32x128xf32>
    %cst_116 = arith.constant dense<0.000000e+00> : vector<1xf32>
    %641 = vector.multi_reduction <add>, %640, %cst_116 [1, 2] : vector<1x32x128xf32> to vector<1xf32>
    %642 = vector.shape_cast %641 : vector<1xf32> to vector<1x1x1xf32>
    %643 = vector.extract %642[0, 0, 0] : f32 from vector<1x1x1xf32>
    %cst_117 = arith.constant 0.001953125 : f32
    %644 = arith.mulf %638, %cst_117 : f32
    %cst_118 = arith.constant 0.001953125 : f32
    %645 = arith.mulf %643, %cst_118 : f32
    %646 = arith.mulf %644, %644 : f32
    %647 = arith.subf %645, %646 : f32
    %cst_119 = arith.constant 0.000000e+00 : f32
    %648 = arith.maximumf %647, %cst_119 : f32
    %c8_120 = arith.constant 8 : index
    %649 = memref.load %arg3[%c8_120] : memref<33xf32, #tpu.memory_space<smem>>
    %cst_121 = arith.constant 9.99999974E-6 : f32
    %650 = arith.addf %648, %cst_121 : f32
    %651 = math.rsqrt %650 : f32
    %652 = arith.mulf %649, %651 : f32
    %c8_122 = arith.constant 8 : index
    %653 = memref.load %arg4[%c8_122] : memref<33xf32, #tpu.memory_space<smem>>
    %654 = arith.mulf %644, %652 : f32
    %655 = arith.subf %653, %654 : f32
    %656 = vector.broadcast %652 : f32 to vector<32x128xf32>
    %657 = arith.mulf %634, %656 : vector<32x128xf32>
    %658 = vector.broadcast %655 : f32 to vector<32x128xf32>
    %659 = arith.mulf %658, %4 : vector<32x128xf32>
    %660 = arith.addf %657, %659 : vector<32x128xf32>
    %cst_123 = arith.constant 0.000000e+00 : f32
    %661 = vector.broadcast %cst_123 : f32 to vector<32x128xf32>
    %662 = arith.maximumf %660, %661 : vector<32x128xf32>
    %c1_i32_124 = arith.constant 1 : i32
    %663 = tpu.dynamic_rotate %662 by %c1_i32_124 dim 1 : vector<32x128xf32>, i32 -> vector<32x128xf32>
    %c127_i32_125 = arith.constant 127 : i32
    %664 = tpu.dynamic_rotate %662 by %c127_i32_125 dim 1 : vector<32x128xf32>, i32 -> vector<32x128xf32>
    %c90 = arith.constant 90 : index
    %665 = memref.load %arg1[%c90] : memref<315xf32, #tpu.memory_space<smem>>
    %666 = vector.broadcast %665 : f32 to vector<32x128xf32>
    %667 = arith.mulf %666, %663 : vector<32x128xf32>
    %c91 = arith.constant 91 : index
    %668 = memref.load %arg1[%c91] : memref<315xf32, #tpu.memory_space<smem>>
    %669 = vector.broadcast %668 : f32 to vector<32x128xf32>
    %670 = arith.mulf %669, %662 : vector<32x128xf32>
    %671 = arith.addf %667, %670 : vector<32x128xf32>
    %c92 = arith.constant 92 : index
    %672 = memref.load %arg1[%c92] : memref<315xf32, #tpu.memory_space<smem>>
    %673 = vector.broadcast %672 : f32 to vector<32x128xf32>
    %674 = arith.mulf %673, %664 : vector<32x128xf32>
    %675 = arith.addf %671, %674 : vector<32x128xf32>
    %c93 = arith.constant 93 : index
    %676 = memref.load %arg1[%c93] : memref<315xf32, #tpu.memory_space<smem>>
    %677 = vector.broadcast %676 : f32 to vector<32x128xf32>
    %678 = arith.mulf %677, %663 : vector<32x128xf32>
    %c94 = arith.constant 94 : index
    %679 = memref.load %arg1[%c94] : memref<315xf32, #tpu.memory_space<smem>>
    %680 = vector.broadcast %679 : f32 to vector<32x128xf32>
    %681 = arith.mulf %680, %662 : vector<32x128xf32>
    %682 = arith.addf %678, %681 : vector<32x128xf32>
    %c95 = arith.constant 95 : index
    %683 = memref.load %arg1[%c95] : memref<315xf32, #tpu.memory_space<smem>>
    %684 = vector.broadcast %683 : f32 to vector<32x128xf32>
    %685 = arith.mulf %684, %664 : vector<32x128xf32>
    %686 = arith.addf %682, %685 : vector<32x128xf32>
    %c96 = arith.constant 96 : index
    %687 = memref.load %arg1[%c96] : memref<315xf32, #tpu.memory_space<smem>>
    %688 = vector.broadcast %687 : f32 to vector<32x128xf32>
    %689 = arith.mulf %688, %663 : vector<32x128xf32>
    %c97 = arith.constant 97 : index
    %690 = memref.load %arg1[%c97] : memref<315xf32, #tpu.memory_space<smem>>
    %691 = vector.broadcast %690 : f32 to vector<32x128xf32>
    %692 = arith.mulf %691, %662 : vector<32x128xf32>
    %693 = arith.addf %689, %692 : vector<32x128xf32>
    %c98 = arith.constant 98 : index
    %694 = memref.load %arg1[%c98] : memref<315xf32, #tpu.memory_space<smem>>
    %695 = vector.broadcast %694 : f32 to vector<32x128xf32>
    %696 = arith.mulf %695, %664 : vector<32x128xf32>
    %697 = arith.addf %693, %696 : vector<32x128xf32>
    %cst_126 = arith.constant dense<0.000000e+00> : vector<32x128xf32>
    %698 = tpu.matmul %6, %675, %cst_126 {dimension_numbers = #tpu.dot_dimension_numbers<[1], [0], [0], [1], [0, 0, 1, 1], [], []>} : vector<32x32xf32>, vector<32x128xf32>, vector<32x128xf32> -> vector<32x128xf32>
    %699 = arith.addf %698, %686 : vector<32x128xf32>
    %cst_127 = arith.constant dense<0.000000e+00> : vector<32x128xf32>
    %700 = tpu.matmul %8, %697, %cst_127 {dimension_numbers = #tpu.dot_dimension_numbers<[1], [0], [0], [1], [0, 0, 1, 1], [], []>} : vector<32x32xf32>, vector<32x128xf32>, vector<32x128xf32> -> vector<32x128xf32>
    %701 = arith.addf %699, %700 : vector<32x128xf32>
    %702 = arith.mulf %701, %4 : vector<32x128xf32>
    %703 = vector.shape_cast %702 : vector<32x128xf32> to vector<1x32x128xf32>
    %cst_128 = arith.constant dense<0.000000e+00> : vector<1xf32>
    %704 = vector.multi_reduction <add>, %703, %cst_128 [1, 2] : vector<1x32x128xf32> to vector<1xf32>
    %705 = vector.shape_cast %704 : vector<1xf32> to vector<1x1x1xf32>
    %706 = vector.extract %705[0, 0, 0] : f32 from vector<1x1x1xf32>
    %707 = arith.mulf %702, %702 : vector<32x128xf32>
    %708 = vector.shape_cast %707 : vector<32x128xf32> to vector<1x32x128xf32>
    %cst_129 = arith.constant dense<0.000000e+00> : vector<1xf32>
    %709 = vector.multi_reduction <add>, %708, %cst_129 [1, 2] : vector<1x32x128xf32> to vector<1xf32>
    %710 = vector.shape_cast %709 : vector<1xf32> to vector<1x1x1xf32>
    %711 = vector.extract %710[0, 0, 0] : f32 from vector<1x1x1xf32>
    %cst_130 = arith.constant 0.001953125 : f32
    %712 = arith.mulf %706, %cst_130 : f32
    %cst_131 = arith.constant 0.001953125 : f32
    %713 = arith.mulf %711, %cst_131 : f32
    %714 = arith.mulf %712, %712 : f32
    %715 = arith.subf %713, %714 : f32
    %cst_132 = arith.constant 0.000000e+00 : f32
    %716 = arith.maximumf %715, %cst_132 : f32
    %c9_133 = arith.constant 9 : index
    %717 = memref.load %arg3[%c9_133] : memref<33xf32, #tpu.memory_space<smem>>
    %cst_134 = arith.constant 9.99999974E-6 : f32
    %718 = arith.addf %716, %cst_134 : f32
    %719 = math.rsqrt %718 : f32
    %720 = arith.mulf %717, %719 : f32
    %c9_135 = arith.constant 9 : index
    %721 = memref.load %arg4[%c9_135] : memref<33xf32, #tpu.memory_space<smem>>
    %722 = arith.mulf %712, %720 : f32
    %723 = arith.subf %721, %722 : f32
    %724 = vector.broadcast %720 : f32 to vector<32x128xf32>
    %725 = arith.mulf %702, %724 : vector<32x128xf32>
    %726 = vector.broadcast %723 : f32 to vector<32x128xf32>
    %727 = arith.mulf %726, %4 : vector<32x128xf32>
    %728 = arith.addf %725, %727 : vector<32x128xf32>
    %729 = arith.addf %594, %728 : vector<32x128xf32>
    %c1_i32_136 = arith.constant 1 : i32
    %730 = tpu.dynamic_rotate %729 by %c1_i32_136 dim 1 : vector<32x128xf32>, i32 -> vector<32x128xf32>
    %c127_i32_137 = arith.constant 127 : i32
    %731 = tpu.dynamic_rotate %729 by %c127_i32_137 dim 1 : vector<32x128xf32>, i32 -> vector<32x128xf32>
    %c99 = arith.constant 99 : index
    %732 = memref.load %arg1[%c99] : memref<315xf32, #tpu.memory_space<smem>>
    %733 = vector.broadcast %732 : f32 to vector<32x128xf32>
    %734 = arith.mulf %733, %730 : vector<32x128xf32>
    %c100 = arith.constant 100 : index
    %735 = memref.load %arg1[%c100] : memref<315xf32, #tpu.memory_space<smem>>
    %736 = vector.broadcast %735 : f32 to vector<32x128xf32>
    %737 = arith.mulf %736, %729 : vector<32x128xf32>
    %738 = arith.addf %734, %737 : vector<32x128xf32>
    %c101 = arith.constant 101 : index
    %739 = memref.load %arg1[%c101] : memref<315xf32, #tpu.memory_space<smem>>
    %740 = vector.broadcast %739 : f32 to vector<32x128xf32>
    %741 = arith.mulf %740, %731 : vector<32x128xf32>
    %742 = arith.addf %738, %741 : vector<32x128xf32>
    %c102 = arith.constant 102 : index
    %743 = memref.load %arg1[%c102] : memref<315xf32, #tpu.memory_space<smem>>
    %744 = vector.broadcast %743 : f32 to vector<32x128xf32>
    %745 = arith.mulf %744, %730 : vector<32x128xf32>
    %c103 = arith.constant 103 : index
    %746 = memref.load %arg1[%c103] : memref<315xf32, #tpu.memory_space<smem>>
    %747 = vector.broadcast %746 : f32 to vector<32x128xf32>
    %748 = arith.mulf %747, %729 : vector<32x128xf32>
    %749 = arith.addf %745, %748 : vector<32x128xf32>
    %c104 = arith.constant 104 : index
    %750 = memref.load %arg1[%c104] : memref<315xf32, #tpu.memory_space<smem>>
    %751 = vector.broadcast %750 : f32 to vector<32x128xf32>
    %752 = arith.mulf %751, %731 : vector<32x128xf32>
    %753 = arith.addf %749, %752 : vector<32x128xf32>
    %c105 = arith.constant 105 : index
    %754 = memref.load %arg1[%c105] : memref<315xf32, #tpu.memory_space<smem>>
    %755 = vector.broadcast %754 : f32 to vector<32x128xf32>
    %756 = arith.mulf %755, %730 : vector<32x128xf32>
    %c106 = arith.constant 106 : index
    %757 = memref.load %arg1[%c106] : memref<315xf32, #tpu.memory_space<smem>>
    %758 = vector.broadcast %757 : f32 to vector<32x128xf32>
    %759 = arith.mulf %758, %729 : vector<32x128xf32>
    %760 = arith.addf %756, %759 : vector<32x128xf32>
    %c107 = arith.constant 107 : index
    %761 = memref.load %arg1[%c107] : memref<315xf32, #tpu.memory_space<smem>>
    %762 = vector.broadcast %761 : f32 to vector<32x128xf32>
    %763 = arith.mulf %762, %731 : vector<32x128xf32>
    %764 = arith.addf %760, %763 : vector<32x128xf32>
    %cst_138 = arith.constant dense<0.000000e+00> : vector<32x128xf32>
    %765 = tpu.matmul %6, %742, %cst_138 {dimension_numbers = #tpu.dot_dimension_numbers<[1], [0], [0], [1], [0, 0, 1, 1], [], []>} : vector<32x32xf32>, vector<32x128xf32>, vector<32x128xf32> -> vector<32x128xf32>
    %766 = arith.addf %765, %753 : vector<32x128xf32>
    %cst_139 = arith.constant dense<0.000000e+00> : vector<32x128xf32>
    %767 = tpu.matmul %8, %764, %cst_139 {dimension_numbers = #tpu.dot_dimension_numbers<[1], [0], [0], [1], [0, 0, 1, 1], [], []>} : vector<32x32xf32>, vector<32x128xf32>, vector<32x128xf32> -> vector<32x128xf32>
    %768 = arith.addf %766, %767 : vector<32x128xf32>
    %769 = arith.mulf %768, %4 : vector<32x128xf32>
    %770 = vector.shape_cast %769 : vector<32x128xf32> to vector<1x32x128xf32>
    %cst_140 = arith.constant dense<0.000000e+00> : vector<1xf32>
    %771 = vector.multi_reduction <add>, %770, %cst_140 [1, 2] : vector<1x32x128xf32> to vector<1xf32>
    %772 = vector.shape_cast %771 : vector<1xf32> to vector<1x1x1xf32>
    %773 = vector.extract %772[0, 0, 0] : f32 from vector<1x1x1xf32>
    %774 = arith.mulf %769, %769 : vector<32x128xf32>
    %775 = vector.shape_cast %774 : vector<32x128xf32> to vector<1x32x128xf32>
    %cst_141 = arith.constant dense<0.000000e+00> : vector<1xf32>
    %776 = vector.multi_reduction <add>, %775, %cst_141 [1, 2] : vector<1x32x128xf32> to vector<1xf32>
    %777 = vector.shape_cast %776 : vector<1xf32> to vector<1x1x1xf32>
    %778 = vector.extract %777[0, 0, 0] : f32 from vector<1x1x1xf32>
    %cst_142 = arith.constant 0.001953125 : f32
    %779 = arith.mulf %773, %cst_142 : f32
    %cst_143 = arith.constant 0.001953125 : f32
    %780 = arith.mulf %778, %cst_143 : f32
    %781 = arith.mulf %779, %779 : f32
    %782 = arith.subf %780, %781 : f32
    %cst_144 = arith.constant 0.000000e+00 : f32
    %783 = arith.maximumf %782, %cst_144 : f32
    %c10_145 = arith.constant 10 : index
    %784 = memref.load %arg3[%c10_145] : memref<33xf32, #tpu.memory_space<smem>>
    %cst_146 = arith.constant 9.99999974E-6 : f32
    %785 = arith.addf %783, %cst_146 : f32
    %786 = math.rsqrt %785 : f32
    %787 = arith.mulf %784, %786 : f32
    %c10_147 = arith.constant 10 : index
    %788 = memref.load %arg4[%c10_147] : memref<33xf32, #tpu.memory_space<smem>>
    %789 = arith.mulf %779, %787 : f32
    %790 = arith.subf %788, %789 : f32
    %791 = vector.broadcast %787 : f32 to vector<32x128xf32>
    %792 = arith.mulf %769, %791 : vector<32x128xf32>
    %793 = vector.broadcast %790 : f32 to vector<32x128xf32>
    %794 = arith.mulf %793, %4 : vector<32x128xf32>
    %795 = arith.addf %792, %794 : vector<32x128xf32>
    %cst_148 = arith.constant 0.000000e+00 : f32
    %796 = vector.broadcast %cst_148 : f32 to vector<32x128xf32>
    %797 = arith.maximumf %795, %796 : vector<32x128xf32>
    %c1_i32_149 = arith.constant 1 : i32
    %798 = tpu.dynamic_rotate %797 by %c1_i32_149 dim 1 : vector<32x128xf32>, i32 -> vector<32x128xf32>
    %c127_i32_150 = arith.constant 127 : i32
    %799 = tpu.dynamic_rotate %797 by %c127_i32_150 dim 1 : vector<32x128xf32>, i32 -> vector<32x128xf32>
    %c108 = arith.constant 108 : index
    %800 = memref.load %arg1[%c108] : memref<315xf32, #tpu.memory_space<smem>>
    %801 = vector.broadcast %800 : f32 to vector<32x128xf32>
    %802 = arith.mulf %801, %798 : vector<32x128xf32>
    %c109 = arith.constant 109 : index
    %803 = memref.load %arg1[%c109] : memref<315xf32, #tpu.memory_space<smem>>
    %804 = vector.broadcast %803 : f32 to vector<32x128xf32>
    %805 = arith.mulf %804, %797 : vector<32x128xf32>
    %806 = arith.addf %802, %805 : vector<32x128xf32>
    %c110 = arith.constant 110 : index
    %807 = memref.load %arg1[%c110] : memref<315xf32, #tpu.memory_space<smem>>
    %808 = vector.broadcast %807 : f32 to vector<32x128xf32>
    %809 = arith.mulf %808, %799 : vector<32x128xf32>
    %810 = arith.addf %806, %809 : vector<32x128xf32>
    %c111 = arith.constant 111 : index
    %811 = memref.load %arg1[%c111] : memref<315xf32, #tpu.memory_space<smem>>
    %812 = vector.broadcast %811 : f32 to vector<32x128xf32>
    %813 = arith.mulf %812, %798 : vector<32x128xf32>
    %c112 = arith.constant 112 : index
    %814 = memref.load %arg1[%c112] : memref<315xf32, #tpu.memory_space<smem>>
    %815 = vector.broadcast %814 : f32 to vector<32x128xf32>
    %816 = arith.mulf %815, %797 : vector<32x128xf32>
    %817 = arith.addf %813, %816 : vector<32x128xf32>
    %c113 = arith.constant 113 : index
    %818 = memref.load %arg1[%c113] : memref<315xf32, #tpu.memory_space<smem>>
    %819 = vector.broadcast %818 : f32 to vector<32x128xf32>
    %820 = arith.mulf %819, %799 : vector<32x128xf32>
    %821 = arith.addf %817, %820 : vector<32x128xf32>
    %c114 = arith.constant 114 : index
    %822 = memref.load %arg1[%c114] : memref<315xf32, #tpu.memory_space<smem>>
    %823 = vector.broadcast %822 : f32 to vector<32x128xf32>
    %824 = arith.mulf %823, %798 : vector<32x128xf32>
    %c115 = arith.constant 115 : index
    %825 = memref.load %arg1[%c115] : memref<315xf32, #tpu.memory_space<smem>>
    %826 = vector.broadcast %825 : f32 to vector<32x128xf32>
    %827 = arith.mulf %826, %797 : vector<32x128xf32>
    %828 = arith.addf %824, %827 : vector<32x128xf32>
    %c116 = arith.constant 116 : index
    %829 = memref.load %arg1[%c116] : memref<315xf32, #tpu.memory_space<smem>>
    %830 = vector.broadcast %829 : f32 to vector<32x128xf32>
    %831 = arith.mulf %830, %799 : vector<32x128xf32>
    %832 = arith.addf %828, %831 : vector<32x128xf32>
    %cst_151 = arith.constant dense<0.000000e+00> : vector<32x128xf32>
    %833 = tpu.matmul %6, %810, %cst_151 {dimension_numbers = #tpu.dot_dimension_numbers<[1], [0], [0], [1], [0, 0, 1, 1], [], []>} : vector<32x32xf32>, vector<32x128xf32>, vector<32x128xf32> -> vector<32x128xf32>
    %834 = arith.addf %833, %821 : vector<32x128xf32>
    %cst_152 = arith.constant dense<0.000000e+00> : vector<32x128xf32>
    %835 = tpu.matmul %8, %832, %cst_152 {dimension_numbers = #tpu.dot_dimension_numbers<[1], [0], [0], [1], [0, 0, 1, 1], [], []>} : vector<32x32xf32>, vector<32x128xf32>, vector<32x128xf32> -> vector<32x128xf32>
    %836 = arith.addf %834, %835 : vector<32x128xf32>
    %837 = arith.mulf %836, %4 : vector<32x128xf32>
    %838 = vector.shape_cast %837 : vector<32x128xf32> to vector<1x32x128xf32>
    %cst_153 = arith.constant dense<0.000000e+00> : vector<1xf32>
    %839 = vector.multi_reduction <add>, %838, %cst_153 [1, 2] : vector<1x32x128xf32> to vector<1xf32>
    %840 = vector.shape_cast %839 : vector<1xf32> to vector<1x1x1xf32>
    %841 = vector.extract %840[0, 0, 0] : f32 from vector<1x1x1xf32>
    %842 = arith.mulf %837, %837 : vector<32x128xf32>
    %843 = vector.shape_cast %842 : vector<32x128xf32> to vector<1x32x128xf32>
    %cst_154 = arith.constant dense<0.000000e+00> : vector<1xf32>
    %844 = vector.multi_reduction <add>, %843, %cst_154 [1, 2] : vector<1x32x128xf32> to vector<1xf32>
    %845 = vector.shape_cast %844 : vector<1xf32> to vector<1x1x1xf32>
    %846 = vector.extract %845[0, 0, 0] : f32 from vector<1x1x1xf32>
    %cst_155 = arith.constant 0.001953125 : f32
    %847 = arith.mulf %841, %cst_155 : f32
    %cst_156 = arith.constant 0.001953125 : f32
    %848 = arith.mulf %846, %cst_156 : f32
    %849 = arith.mulf %847, %847 : f32
    %850 = arith.subf %848, %849 : f32
    %cst_157 = arith.constant 0.000000e+00 : f32
    %851 = arith.maximumf %850, %cst_157 : f32
    %c11_158 = arith.constant 11 : index
    %852 = memref.load %arg3[%c11_158] : memref<33xf32, #tpu.memory_space<smem>>
    %cst_159 = arith.constant 9.99999974E-6 : f32
    %853 = arith.addf %851, %cst_159 : f32
    %854 = math.rsqrt %853 : f32
    %855 = arith.mulf %852, %854 : f32
    %c11_160 = arith.constant 11 : index
    %856 = memref.load %arg4[%c11_160] : memref<33xf32, #tpu.memory_space<smem>>
    %857 = arith.mulf %847, %855 : f32
    %858 = arith.subf %856, %857 : f32
    %859 = vector.broadcast %855 : f32 to vector<32x128xf32>
    %860 = arith.mulf %837, %859 : vector<32x128xf32>
    %861 = vector.broadcast %858 : f32 to vector<32x128xf32>
    %862 = arith.mulf %861, %4 : vector<32x128xf32>
    %863 = arith.addf %860, %862 : vector<32x128xf32>
    %864 = arith.addf %729, %863 : vector<32x128xf32>
    %c1_i32_161 = arith.constant 1 : i32
    %865 = tpu.dynamic_rotate %864 by %c1_i32_161 dim 1 : vector<32x128xf32>, i32 -> vector<32x128xf32>
    %c127_i32_162 = arith.constant 127 : i32
    %866 = tpu.dynamic_rotate %864 by %c127_i32_162 dim 1 : vector<32x128xf32>, i32 -> vector<32x128xf32>
    %c117 = arith.constant 117 : index
    %867 = memref.load %arg1[%c117] : memref<315xf32, #tpu.memory_space<smem>>
    %868 = vector.broadcast %867 : f32 to vector<32x128xf32>
    %869 = arith.mulf %868, %865 : vector<32x128xf32>
    %c118 = arith.constant 118 : index
    %870 = memref.load %arg1[%c118] : memref<315xf32, #tpu.memory_space<smem>>
    %871 = vector.broadcast %870 : f32 to vector<32x128xf32>
    %872 = arith.mulf %871, %864 : vector<32x128xf32>
    %873 = arith.addf %869, %872 : vector<32x128xf32>
    %c119 = arith.constant 119 : index
    %874 = memref.load %arg1[%c119] : memref<315xf32, #tpu.memory_space<smem>>
    %875 = vector.broadcast %874 : f32 to vector<32x128xf32>
    %876 = arith.mulf %875, %866 : vector<32x128xf32>
    %877 = arith.addf %873, %876 : vector<32x128xf32>
    %c120 = arith.constant 120 : index
    %878 = memref.load %arg1[%c120] : memref<315xf32, #tpu.memory_space<smem>>
    %879 = vector.broadcast %878 : f32 to vector<32x128xf32>
    %880 = arith.mulf %879, %865 : vector<32x128xf32>
    %c121 = arith.constant 121 : index
    %881 = memref.load %arg1[%c121] : memref<315xf32, #tpu.memory_space<smem>>
    %882 = vector.broadcast %881 : f32 to vector<32x128xf32>
    %883 = arith.mulf %882, %864 : vector<32x128xf32>
    %884 = arith.addf %880, %883 : vector<32x128xf32>
    %c122 = arith.constant 122 : index
    %885 = memref.load %arg1[%c122] : memref<315xf32, #tpu.memory_space<smem>>
    %886 = vector.broadcast %885 : f32 to vector<32x128xf32>
    %887 = arith.mulf %886, %866 : vector<32x128xf32>
    %888 = arith.addf %884, %887 : vector<32x128xf32>
    %c123 = arith.constant 123 : index
    %889 = memref.load %arg1[%c123] : memref<315xf32, #tpu.memory_space<smem>>
    %890 = vector.broadcast %889 : f32 to vector<32x128xf32>
    %891 = arith.mulf %890, %865 : vector<32x128xf32>
    %c124 = arith.constant 124 : index
    %892 = memref.load %arg1[%c124] : memref<315xf32, #tpu.memory_space<smem>>
    %893 = vector.broadcast %892 : f32 to vector<32x128xf32>
    %894 = arith.mulf %893, %864 : vector<32x128xf32>
    %895 = arith.addf %891, %894 : vector<32x128xf32>
    %c125 = arith.constant 125 : index
    %896 = memref.load %arg1[%c125] : memref<315xf32, #tpu.memory_space<smem>>
    %897 = vector.broadcast %896 : f32 to vector<32x128xf32>
    %898 = arith.mulf %897, %866 : vector<32x128xf32>
    %899 = arith.addf %895, %898 : vector<32x128xf32>
    %cst_163 = arith.constant dense<0.000000e+00> : vector<32x128xf32>
    %900 = tpu.matmul %6, %877, %cst_163 {dimension_numbers = #tpu.dot_dimension_numbers<[1], [0], [0], [1], [0, 0, 1, 1], [], []>} : vector<32x32xf32>, vector<32x128xf32>, vector<32x128xf32> -> vector<32x128xf32>
    %901 = arith.addf %900, %888 : vector<32x128xf32>
    %cst_164 = arith.constant dense<0.000000e+00> : vector<32x128xf32>
    %902 = tpu.matmul %8, %899, %cst_164 {dimension_numbers = #tpu.dot_dimension_numbers<[1], [0], [0], [1], [0, 0, 1, 1], [], []>} : vector<32x32xf32>, vector<32x128xf32>, vector<32x128xf32> -> vector<32x128xf32>
    %903 = arith.addf %901, %902 : vector<32x128xf32>
    %904 = arith.mulf %903, %4 : vector<32x128xf32>
    %905 = vector.shape_cast %904 : vector<32x128xf32> to vector<1x32x128xf32>
    %cst_165 = arith.constant dense<0.000000e+00> : vector<1xf32>
    %906 = vector.multi_reduction <add>, %905, %cst_165 [1, 2] : vector<1x32x128xf32> to vector<1xf32>
    %907 = vector.shape_cast %906 : vector<1xf32> to vector<1x1x1xf32>
    %908 = vector.extract %907[0, 0, 0] : f32 from vector<1x1x1xf32>
    %909 = arith.mulf %904, %904 : vector<32x128xf32>
    %910 = vector.shape_cast %909 : vector<32x128xf32> to vector<1x32x128xf32>
    %cst_166 = arith.constant dense<0.000000e+00> : vector<1xf32>
    %911 = vector.multi_reduction <add>, %910, %cst_166 [1, 2] : vector<1x32x128xf32> to vector<1xf32>
    %912 = vector.shape_cast %911 : vector<1xf32> to vector<1x1x1xf32>
    %913 = vector.extract %912[0, 0, 0] : f32 from vector<1x1x1xf32>
    %cst_167 = arith.constant 0.001953125 : f32
    %914 = arith.mulf %908, %cst_167 : f32
    %cst_168 = arith.constant 0.001953125 : f32
    %915 = arith.mulf %913, %cst_168 : f32
    %916 = arith.mulf %914, %914 : f32
    %917 = arith.subf %915, %916 : f32
    %cst_169 = arith.constant 0.000000e+00 : f32
    %918 = arith.maximumf %917, %cst_169 : f32
    %c12_170 = arith.constant 12 : index
    %919 = memref.load %arg3[%c12_170] : memref<33xf32, #tpu.memory_space<smem>>
    %cst_171 = arith.constant 9.99999974E-6 : f32
    %920 = arith.addf %918, %cst_171 : f32
    %921 = math.rsqrt %920 : f32
    %922 = arith.mulf %919, %921 : f32
    %c12_172 = arith.constant 12 : index
    %923 = memref.load %arg4[%c12_172] : memref<33xf32, #tpu.memory_space<smem>>
    %924 = arith.mulf %914, %922 : f32
    %925 = arith.subf %923, %924 : f32
    %926 = vector.broadcast %922 : f32 to vector<32x128xf32>
    %927 = arith.mulf %904, %926 : vector<32x128xf32>
    %928 = vector.broadcast %925 : f32 to vector<32x128xf32>
    %929 = arith.mulf %928, %4 : vector<32x128xf32>
    %930 = arith.addf %927, %929 : vector<32x128xf32>
    %cst_173 = arith.constant 0.000000e+00 : f32
    %931 = vector.broadcast %cst_173 : f32 to vector<32x128xf32>
    %932 = arith.maximumf %930, %931 : vector<32x128xf32>
    %c1_i32_174 = arith.constant 1 : i32
    %933 = tpu.dynamic_rotate %932 by %c1_i32_174 dim 1 : vector<32x128xf32>, i32 -> vector<32x128xf32>
    %c127_i32_175 = arith.constant 127 : i32
    %934 = tpu.dynamic_rotate %932 by %c127_i32_175 dim 1 : vector<32x128xf32>, i32 -> vector<32x128xf32>
    %c126 = arith.constant 126 : index
    %935 = memref.load %arg1[%c126] : memref<315xf32, #tpu.memory_space<smem>>
    %936 = vector.broadcast %935 : f32 to vector<32x128xf32>
    %937 = arith.mulf %936, %933 : vector<32x128xf32>
    %c127 = arith.constant 127 : index
    %938 = memref.load %arg1[%c127] : memref<315xf32, #tpu.memory_space<smem>>
    %939 = vector.broadcast %938 : f32 to vector<32x128xf32>
    %940 = arith.mulf %939, %932 : vector<32x128xf32>
    %941 = arith.addf %937, %940 : vector<32x128xf32>
    %c128 = arith.constant 128 : index
    %942 = memref.load %arg1[%c128] : memref<315xf32, #tpu.memory_space<smem>>
    %943 = vector.broadcast %942 : f32 to vector<32x128xf32>
    %944 = arith.mulf %943, %934 : vector<32x128xf32>
    %945 = arith.addf %941, %944 : vector<32x128xf32>
    %c129 = arith.constant 129 : index
    %946 = memref.load %arg1[%c129] : memref<315xf32, #tpu.memory_space<smem>>
    %947 = vector.broadcast %946 : f32 to vector<32x128xf32>
    %948 = arith.mulf %947, %933 : vector<32x128xf32>
    %c130 = arith.constant 130 : index
    %949 = memref.load %arg1[%c130] : memref<315xf32, #tpu.memory_space<smem>>
    %950 = vector.broadcast %949 : f32 to vector<32x128xf32>
    %951 = arith.mulf %950, %932 : vector<32x128xf32>
    %952 = arith.addf %948, %951 : vector<32x128xf32>
    %c131 = arith.constant 131 : index
    %953 = memref.load %arg1[%c131] : memref<315xf32, #tpu.memory_space<smem>>
    %954 = vector.broadcast %953 : f32 to vector<32x128xf32>
    %955 = arith.mulf %954, %934 : vector<32x128xf32>
    %956 = arith.addf %952, %955 : vector<32x128xf32>
    %c132 = arith.constant 132 : index
    %957 = memref.load %arg1[%c132] : memref<315xf32, #tpu.memory_space<smem>>
    %958 = vector.broadcast %957 : f32 to vector<32x128xf32>
    %959 = arith.mulf %958, %933 : vector<32x128xf32>
    %c133 = arith.constant 133 : index
    %960 = memref.load %arg1[%c133] : memref<315xf32, #tpu.memory_space<smem>>
    %961 = vector.broadcast %960 : f32 to vector<32x128xf32>
    %962 = arith.mulf %961, %932 : vector<32x128xf32>
    %963 = arith.addf %959, %962 : vector<32x128xf32>
    %c134 = arith.constant 134 : index
    %964 = memref.load %arg1[%c134] : memref<315xf32, #tpu.memory_space<smem>>
    %965 = vector.broadcast %964 : f32 to vector<32x128xf32>
    %966 = arith.mulf %965, %934 : vector<32x128xf32>
    %967 = arith.addf %963, %966 : vector<32x128xf32>
    %cst_176 = arith.constant dense<0.000000e+00> : vector<32x128xf32>
    %968 = tpu.matmul %6, %945, %cst_176 {dimension_numbers = #tpu.dot_dimension_numbers<[1], [0], [0], [1], [0, 0, 1, 1], [], []>} : vector<32x32xf32>, vector<32x128xf32>, vector<32x128xf32> -> vector<32x128xf32>
    %969 = arith.addf %968, %956 : vector<32x128xf32>
    %cst_177 = arith.constant dense<0.000000e+00> : vector<32x128xf32>
    %970 = tpu.matmul %8, %967, %cst_177 {dimension_numbers = #tpu.dot_dimension_numbers<[1], [0], [0], [1], [0, 0, 1, 1], [], []>} : vector<32x32xf32>, vector<32x128xf32>, vector<32x128xf32> -> vector<32x128xf32>
    %971 = arith.addf %969, %970 : vector<32x128xf32>
    %972 = arith.mulf %971, %4 : vector<32x128xf32>
    %973 = vector.shape_cast %972 : vector<32x128xf32> to vector<1x32x128xf32>
    %cst_178 = arith.constant dense<0.000000e+00> : vector<1xf32>
    %974 = vector.multi_reduction <add>, %973, %cst_178 [1, 2] : vector<1x32x128xf32> to vector<1xf32>
    %975 = vector.shape_cast %974 : vector<1xf32> to vector<1x1x1xf32>
    %976 = vector.extract %975[0, 0, 0] : f32 from vector<1x1x1xf32>
    %977 = arith.mulf %972, %972 : vector<32x128xf32>
    %978 = vector.shape_cast %977 : vector<32x128xf32> to vector<1x32x128xf32>
    %cst_179 = arith.constant dense<0.000000e+00> : vector<1xf32>
    %979 = vector.multi_reduction <add>, %978, %cst_179 [1, 2] : vector<1x32x128xf32> to vector<1xf32>
    %980 = vector.shape_cast %979 : vector<1xf32> to vector<1x1x1xf32>
    %981 = vector.extract %980[0, 0, 0] : f32 from vector<1x1x1xf32>
    %cst_180 = arith.constant 0.001953125 : f32
    %982 = arith.mulf %976, %cst_180 : f32
    %cst_181 = arith.constant 0.001953125 : f32
    %983 = arith.mulf %981, %cst_181 : f32
    %984 = arith.mulf %982, %982 : f32
    %985 = arith.subf %983, %984 : f32
    %cst_182 = arith.constant 0.000000e+00 : f32
    %986 = arith.maximumf %985, %cst_182 : f32
    %c13_183 = arith.constant 13 : index
    %987 = memref.load %arg3[%c13_183] : memref<33xf32, #tpu.memory_space<smem>>
    %cst_184 = arith.constant 9.99999974E-6 : f32
    %988 = arith.addf %986, %cst_184 : f32
    %989 = math.rsqrt %988 : f32
    %990 = arith.mulf %987, %989 : f32
    %c13_185 = arith.constant 13 : index
    %991 = memref.load %arg4[%c13_185] : memref<33xf32, #tpu.memory_space<smem>>
    %992 = arith.mulf %982, %990 : f32
    %993 = arith.subf %991, %992 : f32
    %994 = vector.broadcast %990 : f32 to vector<32x128xf32>
    %995 = arith.mulf %972, %994 : vector<32x128xf32>
    %996 = vector.broadcast %993 : f32 to vector<32x128xf32>
    %997 = arith.mulf %996, %4 : vector<32x128xf32>
    %998 = arith.addf %995, %997 : vector<32x128xf32>
    %999 = arith.addf %864, %998 : vector<32x128xf32>
    %c1_i32_186 = arith.constant 1 : i32
    %1000 = tpu.dynamic_rotate %999 by %c1_i32_186 dim 1 : vector<32x128xf32>, i32 -> vector<32x128xf32>
    %c127_i32_187 = arith.constant 127 : i32
    %1001 = tpu.dynamic_rotate %999 by %c127_i32_187 dim 1 : vector<32x128xf32>, i32 -> vector<32x128xf32>
    %c135 = arith.constant 135 : index
    %1002 = memref.load %arg1[%c135] : memref<315xf32, #tpu.memory_space<smem>>
    %1003 = vector.broadcast %1002 : f32 to vector<32x128xf32>
    %1004 = arith.mulf %1003, %1000 : vector<32x128xf32>
    %c136 = arith.constant 136 : index
    %1005 = memref.load %arg1[%c136] : memref<315xf32, #tpu.memory_space<smem>>
    %1006 = vector.broadcast %1005 : f32 to vector<32x128xf32>
    %1007 = arith.mulf %1006, %999 : vector<32x128xf32>
    %1008 = arith.addf %1004, %1007 : vector<32x128xf32>
    %c137 = arith.constant 137 : index
    %1009 = memref.load %arg1[%c137] : memref<315xf32, #tpu.memory_space<smem>>
    %1010 = vector.broadcast %1009 : f32 to vector<32x128xf32>
    %1011 = arith.mulf %1010, %1001 : vector<32x128xf32>
    %1012 = arith.addf %1008, %1011 : vector<32x128xf32>
    %c138 = arith.constant 138 : index
    %1013 = memref.load %arg1[%c138] : memref<315xf32, #tpu.memory_space<smem>>
    %1014 = vector.broadcast %1013 : f32 to vector<32x128xf32>
    %1015 = arith.mulf %1014, %1000 : vector<32x128xf32>
    %c139 = arith.constant 139 : index
    %1016 = memref.load %arg1[%c139] : memref<315xf32, #tpu.memory_space<smem>>
    %1017 = vector.broadcast %1016 : f32 to vector<32x128xf32>
    %1018 = arith.mulf %1017, %999 : vector<32x128xf32>
    %1019 = arith.addf %1015, %1018 : vector<32x128xf32>
    %c140 = arith.constant 140 : index
    %1020 = memref.load %arg1[%c140] : memref<315xf32, #tpu.memory_space<smem>>
    %1021 = vector.broadcast %1020 : f32 to vector<32x128xf32>
    %1022 = arith.mulf %1021, %1001 : vector<32x128xf32>
    %1023 = arith.addf %1019, %1022 : vector<32x128xf32>
    %c141 = arith.constant 141 : index
    %1024 = memref.load %arg1[%c141] : memref<315xf32, #tpu.memory_space<smem>>
    %1025 = vector.broadcast %1024 : f32 to vector<32x128xf32>
    %1026 = arith.mulf %1025, %1000 : vector<32x128xf32>
    %c142 = arith.constant 142 : index
    %1027 = memref.load %arg1[%c142] : memref<315xf32, #tpu.memory_space<smem>>
    %1028 = vector.broadcast %1027 : f32 to vector<32x128xf32>
    %1029 = arith.mulf %1028, %999 : vector<32x128xf32>
    %1030 = arith.addf %1026, %1029 : vector<32x128xf32>
    %c143 = arith.constant 143 : index
    %1031 = memref.load %arg1[%c143] : memref<315xf32, #tpu.memory_space<smem>>
    %1032 = vector.broadcast %1031 : f32 to vector<32x128xf32>
    %1033 = arith.mulf %1032, %1001 : vector<32x128xf32>
    %1034 = arith.addf %1030, %1033 : vector<32x128xf32>
    %cst_188 = arith.constant dense<0.000000e+00> : vector<32x128xf32>
    %1035 = tpu.matmul %6, %1012, %cst_188 {dimension_numbers = #tpu.dot_dimension_numbers<[1], [0], [0], [1], [0, 0, 1, 1], [], []>} : vector<32x32xf32>, vector<32x128xf32>, vector<32x128xf32> -> vector<32x128xf32>
    %1036 = arith.addf %1035, %1023 : vector<32x128xf32>
    %cst_189 = arith.constant dense<0.000000e+00> : vector<32x128xf32>
    %1037 = tpu.matmul %8, %1034, %cst_189 {dimension_numbers = #tpu.dot_dimension_numbers<[1], [0], [0], [1], [0, 0, 1, 1], [], []>} : vector<32x32xf32>, vector<32x128xf32>, vector<32x128xf32> -> vector<32x128xf32>
    %1038 = arith.addf %1036, %1037 : vector<32x128xf32>
    %1039 = arith.mulf %1038, %4 : vector<32x128xf32>
    %1040 = vector.shape_cast %1039 : vector<32x128xf32> to vector<1x32x128xf32>
    %cst_190 = arith.constant dense<0.000000e+00> : vector<1xf32>
    %1041 = vector.multi_reduction <add>, %1040, %cst_190 [1, 2] : vector<1x32x128xf32> to vector<1xf32>
    %1042 = vector.shape_cast %1041 : vector<1xf32> to vector<1x1x1xf32>
    %1043 = vector.extract %1042[0, 0, 0] : f32 from vector<1x1x1xf32>
    %1044 = arith.mulf %1039, %1039 : vector<32x128xf32>
    %1045 = vector.shape_cast %1044 : vector<32x128xf32> to vector<1x32x128xf32>
    %cst_191 = arith.constant dense<0.000000e+00> : vector<1xf32>
    %1046 = vector.multi_reduction <add>, %1045, %cst_191 [1, 2] : vector<1x32x128xf32> to vector<1xf32>
    %1047 = vector.shape_cast %1046 : vector<1xf32> to vector<1x1x1xf32>
    %1048 = vector.extract %1047[0, 0, 0] : f32 from vector<1x1x1xf32>
    %cst_192 = arith.constant 0.001953125 : f32
    %1049 = arith.mulf %1043, %cst_192 : f32
    %cst_193 = arith.constant 0.001953125 : f32
    %1050 = arith.mulf %1048, %cst_193 : f32
    %1051 = arith.mulf %1049, %1049 : f32
    %1052 = arith.subf %1050, %1051 : f32
    %cst_194 = arith.constant 0.000000e+00 : f32
    %1053 = arith.maximumf %1052, %cst_194 : f32
    %c14_195 = arith.constant 14 : index
    %1054 = memref.load %arg3[%c14_195] : memref<33xf32, #tpu.memory_space<smem>>
    %cst_196 = arith.constant 9.99999974E-6 : f32
    %1055 = arith.addf %1053, %cst_196 : f32
    %1056 = math.rsqrt %1055 : f32
    %1057 = arith.mulf %1054, %1056 : f32
    %c14_197 = arith.constant 14 : index
    %1058 = memref.load %arg4[%c14_197] : memref<33xf32, #tpu.memory_space<smem>>
    %1059 = arith.mulf %1049, %1057 : f32
    %1060 = arith.subf %1058, %1059 : f32
    %1061 = vector.broadcast %1057 : f32 to vector<32x128xf32>
    %1062 = arith.mulf %1039, %1061 : vector<32x128xf32>
    %1063 = vector.broadcast %1060 : f32 to vector<32x128xf32>
    %1064 = arith.mulf %1063, %4 : vector<32x128xf32>
    %1065 = arith.addf %1062, %1064 : vector<32x128xf32>
    %cst_198 = arith.constant 0.000000e+00 : f32
    %1066 = vector.broadcast %cst_198 : f32 to vector<32x128xf32>
    %1067 = arith.maximumf %1065, %1066 : vector<32x128xf32>
    %c1_i32_199 = arith.constant 1 : i32
    %1068 = tpu.dynamic_rotate %1067 by %c1_i32_199 dim 1 : vector<32x128xf32>, i32 -> vector<32x128xf32>
    %c127_i32_200 = arith.constant 127 : i32
    %1069 = tpu.dynamic_rotate %1067 by %c127_i32_200 dim 1 : vector<32x128xf32>, i32 -> vector<32x128xf32>
    %c144 = arith.constant 144 : index
    %1070 = memref.load %arg1[%c144] : memref<315xf32, #tpu.memory_space<smem>>
    %1071 = vector.broadcast %1070 : f32 to vector<32x128xf32>
    %1072 = arith.mulf %1071, %1068 : vector<32x128xf32>
    %c145 = arith.constant 145 : index
    %1073 = memref.load %arg1[%c145] : memref<315xf32, #tpu.memory_space<smem>>
    %1074 = vector.broadcast %1073 : f32 to vector<32x128xf32>
    %1075 = arith.mulf %1074, %1067 : vector<32x128xf32>
    %1076 = arith.addf %1072, %1075 : vector<32x128xf32>
    %c146 = arith.constant 146 : index
    %1077 = memref.load %arg1[%c146] : memref<315xf32, #tpu.memory_space<smem>>
    %1078 = vector.broadcast %1077 : f32 to vector<32x128xf32>
    %1079 = arith.mulf %1078, %1069 : vector<32x128xf32>
    %1080 = arith.addf %1076, %1079 : vector<32x128xf32>
    %c147 = arith.constant 147 : index
    %1081 = memref.load %arg1[%c147] : memref<315xf32, #tpu.memory_space<smem>>
    %1082 = vector.broadcast %1081 : f32 to vector<32x128xf32>
    %1083 = arith.mulf %1082, %1068 : vector<32x128xf32>
    %c148 = arith.constant 148 : index
    %1084 = memref.load %arg1[%c148] : memref<315xf32, #tpu.memory_space<smem>>
    %1085 = vector.broadcast %1084 : f32 to vector<32x128xf32>
    %1086 = arith.mulf %1085, %1067 : vector<32x128xf32>
    %1087 = arith.addf %1083, %1086 : vector<32x128xf32>
    %c149 = arith.constant 149 : index
    %1088 = memref.load %arg1[%c149] : memref<315xf32, #tpu.memory_space<smem>>
    %1089 = vector.broadcast %1088 : f32 to vector<32x128xf32>
    %1090 = arith.mulf %1089, %1069 : vector<32x128xf32>
    %1091 = arith.addf %1087, %1090 : vector<32x128xf32>
    %c150 = arith.constant 150 : index
    %1092 = memref.load %arg1[%c150] : memref<315xf32, #tpu.memory_space<smem>>
    %1093 = vector.broadcast %1092 : f32 to vector<32x128xf32>
    %1094 = arith.mulf %1093, %1068 : vector<32x128xf32>
    %c151 = arith.constant 151 : index
    %1095 = memref.load %arg1[%c151] : memref<315xf32, #tpu.memory_space<smem>>
    %1096 = vector.broadcast %1095 : f32 to vector<32x128xf32>
    %1097 = arith.mulf %1096, %1067 : vector<32x128xf32>
    %1098 = arith.addf %1094, %1097 : vector<32x128xf32>
    %c152 = arith.constant 152 : index
    %1099 = memref.load %arg1[%c152] : memref<315xf32, #tpu.memory_space<smem>>
    %1100 = vector.broadcast %1099 : f32 to vector<32x128xf32>
    %1101 = arith.mulf %1100, %1069 : vector<32x128xf32>
    %1102 = arith.addf %1098, %1101 : vector<32x128xf32>
    %cst_201 = arith.constant dense<0.000000e+00> : vector<32x128xf32>
    %1103 = tpu.matmul %6, %1080, %cst_201 {dimension_numbers = #tpu.dot_dimension_numbers<[1], [0], [0], [1], [0, 0, 1, 1], [], []>} : vector<32x32xf32>, vector<32x128xf32>, vector<32x128xf32> -> vector<32x128xf32>
    %1104 = arith.addf %1103, %1091 : vector<32x128xf32>
    %cst_202 = arith.constant dense<0.000000e+00> : vector<32x128xf32>
    %1105 = tpu.matmul %8, %1102, %cst_202 {dimension_numbers = #tpu.dot_dimension_numbers<[1], [0], [0], [1], [0, 0, 1, 1], [], []>} : vector<32x32xf32>, vector<32x128xf32>, vector<32x128xf32> -> vector<32x128xf32>
    %1106 = arith.addf %1104, %1105 : vector<32x128xf32>
    %1107 = arith.mulf %1106, %4 : vector<32x128xf32>
    %1108 = vector.shape_cast %1107 : vector<32x128xf32> to vector<1x32x128xf32>
    %cst_203 = arith.constant dense<0.000000e+00> : vector<1xf32>
    %1109 = vector.multi_reduction <add>, %1108, %cst_203 [1, 2] : vector<1x32x128xf32> to vector<1xf32>
    %1110 = vector.shape_cast %1109 : vector<1xf32> to vector<1x1x1xf32>
    %1111 = vector.extract %1110[0, 0, 0] : f32 from vector<1x1x1xf32>
    %1112 = arith.mulf %1107, %1107 : vector<32x128xf32>
    %1113 = vector.shape_cast %1112 : vector<32x128xf32> to vector<1x32x128xf32>
    %cst_204 = arith.constant dense<0.000000e+00> : vector<1xf32>
    %1114 = vector.multi_reduction <add>, %1113, %cst_204 [1, 2] : vector<1x32x128xf32> to vector<1xf32>
    %1115 = vector.shape_cast %1114 : vector<1xf32> to vector<1x1x1xf32>
    %1116 = vector.extract %1115[0, 0, 0] : f32 from vector<1x1x1xf32>
    %cst_205 = arith.constant 0.001953125 : f32
    %1117 = arith.mulf %1111, %cst_205 : f32
    %cst_206 = arith.constant 0.001953125 : f32
    %1118 = arith.mulf %1116, %cst_206 : f32
    %1119 = arith.mulf %1117, %1117 : f32
    %1120 = arith.subf %1118, %1119 : f32
    %cst_207 = arith.constant 0.000000e+00 : f32
    %1121 = arith.maximumf %1120, %cst_207 : f32
    %c15_208 = arith.constant 15 : index
    %1122 = memref.load %arg3[%c15_208] : memref<33xf32, #tpu.memory_space<smem>>
    %cst_209 = arith.constant 9.99999974E-6 : f32
    %1123 = arith.addf %1121, %cst_209 : f32
    %1124 = math.rsqrt %1123 : f32
    %1125 = arith.mulf %1122, %1124 : f32
    %c15_210 = arith.constant 15 : index
    %1126 = memref.load %arg4[%c15_210] : memref<33xf32, #tpu.memory_space<smem>>
    %1127 = arith.mulf %1117, %1125 : f32
    %1128 = arith.subf %1126, %1127 : f32
    %1129 = vector.broadcast %1125 : f32 to vector<32x128xf32>
    %1130 = arith.mulf %1107, %1129 : vector<32x128xf32>
    %1131 = vector.broadcast %1128 : f32 to vector<32x128xf32>
    %1132 = arith.mulf %1131, %4 : vector<32x128xf32>
    %1133 = arith.addf %1130, %1132 : vector<32x128xf32>
    %1134 = arith.addf %999, %1133 : vector<32x128xf32>
    %c1_i32_211 = arith.constant 1 : i32
    %1135 = tpu.dynamic_rotate %1134 by %c1_i32_211 dim 1 : vector<32x128xf32>, i32 -> vector<32x128xf32>
    %c127_i32_212 = arith.constant 127 : i32
    %1136 = tpu.dynamic_rotate %1134 by %c127_i32_212 dim 1 : vector<32x128xf32>, i32 -> vector<32x128xf32>
    %c153 = arith.constant 153 : index
    %1137 = memref.load %arg1[%c153] : memref<315xf32, #tpu.memory_space<smem>>
    %1138 = vector.broadcast %1137 : f32 to vector<32x128xf32>
    %1139 = arith.mulf %1138, %1135 : vector<32x128xf32>
    %c154 = arith.constant 154 : index
    %1140 = memref.load %arg1[%c154] : memref<315xf32, #tpu.memory_space<smem>>
    %1141 = vector.broadcast %1140 : f32 to vector<32x128xf32>
    %1142 = arith.mulf %1141, %1134 : vector<32x128xf32>
    %1143 = arith.addf %1139, %1142 : vector<32x128xf32>
    %c155 = arith.constant 155 : index
    %1144 = memref.load %arg1[%c155] : memref<315xf32, #tpu.memory_space<smem>>
    %1145 = vector.broadcast %1144 : f32 to vector<32x128xf32>
    %1146 = arith.mulf %1145, %1136 : vector<32x128xf32>
    %1147 = arith.addf %1143, %1146 : vector<32x128xf32>
    %c156 = arith.constant 156 : index
    %1148 = memref.load %arg1[%c156] : memref<315xf32, #tpu.memory_space<smem>>
    %1149 = vector.broadcast %1148 : f32 to vector<32x128xf32>
    %1150 = arith.mulf %1149, %1135 : vector<32x128xf32>
    %c157 = arith.constant 157 : index
    %1151 = memref.load %arg1[%c157] : memref<315xf32, #tpu.memory_space<smem>>
    %1152 = vector.broadcast %1151 : f32 to vector<32x128xf32>
    %1153 = arith.mulf %1152, %1134 : vector<32x128xf32>
    %1154 = arith.addf %1150, %1153 : vector<32x128xf32>
    %c158 = arith.constant 158 : index
    %1155 = memref.load %arg1[%c158] : memref<315xf32, #tpu.memory_space<smem>>
    %1156 = vector.broadcast %1155 : f32 to vector<32x128xf32>
    %1157 = arith.mulf %1156, %1136 : vector<32x128xf32>
    %1158 = arith.addf %1154, %1157 : vector<32x128xf32>
    %c159 = arith.constant 159 : index
    %1159 = memref.load %arg1[%c159] : memref<315xf32, #tpu.memory_space<smem>>
    %1160 = vector.broadcast %1159 : f32 to vector<32x128xf32>
    %1161 = arith.mulf %1160, %1135 : vector<32x128xf32>
    %c160 = arith.constant 160 : index
    %1162 = memref.load %arg1[%c160] : memref<315xf32, #tpu.memory_space<smem>>
    %1163 = vector.broadcast %1162 : f32 to vector<32x128xf32>
    %1164 = arith.mulf %1163, %1134 : vector<32x128xf32>
    %1165 = arith.addf %1161, %1164 : vector<32x128xf32>
    %c161 = arith.constant 161 : index
    %1166 = memref.load %arg1[%c161] : memref<315xf32, #tpu.memory_space<smem>>
    %1167 = vector.broadcast %1166 : f32 to vector<32x128xf32>
    %1168 = arith.mulf %1167, %1136 : vector<32x128xf32>
    %1169 = arith.addf %1165, %1168 : vector<32x128xf32>
    %cst_213 = arith.constant dense<0.000000e+00> : vector<32x128xf32>
    %1170 = tpu.matmul %6, %1147, %cst_213 {dimension_numbers = #tpu.dot_dimension_numbers<[1], [0], [0], [1], [0, 0, 1, 1], [], []>} : vector<32x32xf32>, vector<32x128xf32>, vector<32x128xf32> -> vector<32x128xf32>
    %1171 = arith.addf %1170, %1158 : vector<32x128xf32>
    %cst_214 = arith.constant dense<0.000000e+00> : vector<32x128xf32>
    %1172 = tpu.matmul %8, %1169, %cst_214 {dimension_numbers = #tpu.dot_dimension_numbers<[1], [0], [0], [1], [0, 0, 1, 1], [], []>} : vector<32x32xf32>, vector<32x128xf32>, vector<32x128xf32> -> vector<32x128xf32>
    %1173 = arith.addf %1171, %1172 : vector<32x128xf32>
    %1174 = arith.mulf %1173, %4 : vector<32x128xf32>
    %1175 = vector.shape_cast %1174 : vector<32x128xf32> to vector<1x32x128xf32>
    %cst_215 = arith.constant dense<0.000000e+00> : vector<1xf32>
    %1176 = vector.multi_reduction <add>, %1175, %cst_215 [1, 2] : vector<1x32x128xf32> to vector<1xf32>
    %1177 = vector.shape_cast %1176 : vector<1xf32> to vector<1x1x1xf32>
    %1178 = vector.extract %1177[0, 0, 0] : f32 from vector<1x1x1xf32>
    %1179 = arith.mulf %1174, %1174 : vector<32x128xf32>
    %1180 = vector.shape_cast %1179 : vector<32x128xf32> to vector<1x32x128xf32>
    %cst_216 = arith.constant dense<0.000000e+00> : vector<1xf32>
    %1181 = vector.multi_reduction <add>, %1180, %cst_216 [1, 2] : vector<1x32x128xf32> to vector<1xf32>
    %1182 = vector.shape_cast %1181 : vector<1xf32> to vector<1x1x1xf32>
    %1183 = vector.extract %1182[0, 0, 0] : f32 from vector<1x1x1xf32>
    %cst_217 = arith.constant 0.001953125 : f32
    %1184 = arith.mulf %1178, %cst_217 : f32
    %cst_218 = arith.constant 0.001953125 : f32
    %1185 = arith.mulf %1183, %cst_218 : f32
    %1186 = arith.mulf %1184, %1184 : f32
    %1187 = arith.subf %1185, %1186 : f32
    %cst_219 = arith.constant 0.000000e+00 : f32
    %1188 = arith.maximumf %1187, %cst_219 : f32
    %c16_220 = arith.constant 16 : index
    %1189 = memref.load %arg3[%c16_220] : memref<33xf32, #tpu.memory_space<smem>>
    %cst_221 = arith.constant 9.99999974E-6 : f32
    %1190 = arith.addf %1188, %cst_221 : f32
    %1191 = math.rsqrt %1190 : f32
    %1192 = arith.mulf %1189, %1191 : f32
    %c16_222 = arith.constant 16 : index
    %1193 = memref.load %arg4[%c16_222] : memref<33xf32, #tpu.memory_space<smem>>
    %1194 = arith.mulf %1184, %1192 : f32
    %1195 = arith.subf %1193, %1194 : f32
    %1196 = vector.broadcast %1192 : f32 to vector<32x128xf32>
    %1197 = arith.mulf %1174, %1196 : vector<32x128xf32>
    %1198 = vector.broadcast %1195 : f32 to vector<32x128xf32>
    %1199 = arith.mulf %1198, %4 : vector<32x128xf32>
    %1200 = arith.addf %1197, %1199 : vector<32x128xf32>
    %cst_223 = arith.constant 0.000000e+00 : f32
    %1201 = vector.broadcast %cst_223 : f32 to vector<32x128xf32>
    %1202 = arith.maximumf %1200, %1201 : vector<32x128xf32>
    %c1_i32_224 = arith.constant 1 : i32
    %1203 = tpu.dynamic_rotate %1202 by %c1_i32_224 dim 1 : vector<32x128xf32>, i32 -> vector<32x128xf32>
    %c127_i32_225 = arith.constant 127 : i32
    %1204 = tpu.dynamic_rotate %1202 by %c127_i32_225 dim 1 : vector<32x128xf32>, i32 -> vector<32x128xf32>
    %c162 = arith.constant 162 : index
    %1205 = memref.load %arg1[%c162] : memref<315xf32, #tpu.memory_space<smem>>
    %1206 = vector.broadcast %1205 : f32 to vector<32x128xf32>
    %1207 = arith.mulf %1206, %1203 : vector<32x128xf32>
    %c163 = arith.constant 163 : index
    %1208 = memref.load %arg1[%c163] : memref<315xf32, #tpu.memory_space<smem>>
    %1209 = vector.broadcast %1208 : f32 to vector<32x128xf32>
    %1210 = arith.mulf %1209, %1202 : vector<32x128xf32>
    %1211 = arith.addf %1207, %1210 : vector<32x128xf32>
    %c164 = arith.constant 164 : index
    %1212 = memref.load %arg1[%c164] : memref<315xf32, #tpu.memory_space<smem>>
    %1213 = vector.broadcast %1212 : f32 to vector<32x128xf32>
    %1214 = arith.mulf %1213, %1204 : vector<32x128xf32>
    %1215 = arith.addf %1211, %1214 : vector<32x128xf32>
    %c165 = arith.constant 165 : index
    %1216 = memref.load %arg1[%c165] : memref<315xf32, #tpu.memory_space<smem>>
    %1217 = vector.broadcast %1216 : f32 to vector<32x128xf32>
    %1218 = arith.mulf %1217, %1203 : vector<32x128xf32>
    %c166 = arith.constant 166 : index
    %1219 = memref.load %arg1[%c166] : memref<315xf32, #tpu.memory_space<smem>>
    %1220 = vector.broadcast %1219 : f32 to vector<32x128xf32>
    %1221 = arith.mulf %1220, %1202 : vector<32x128xf32>
    %1222 = arith.addf %1218, %1221 : vector<32x128xf32>
    %c167 = arith.constant 167 : index
    %1223 = memref.load %arg1[%c167] : memref<315xf32, #tpu.memory_space<smem>>
    %1224 = vector.broadcast %1223 : f32 to vector<32x128xf32>
    %1225 = arith.mulf %1224, %1204 : vector<32x128xf32>
    %1226 = arith.addf %1222, %1225 : vector<32x128xf32>
    %c168 = arith.constant 168 : index
    %1227 = memref.load %arg1[%c168] : memref<315xf32, #tpu.memory_space<smem>>
    %1228 = vector.broadcast %1227 : f32 to vector<32x128xf32>
    %1229 = arith.mulf %1228, %1203 : vector<32x128xf32>
    %c169 = arith.constant 169 : index
    %1230 = memref.load %arg1[%c169] : memref<315xf32, #tpu.memory_space<smem>>
    %1231 = vector.broadcast %1230 : f32 to vector<32x128xf32>
    %1232 = arith.mulf %1231, %1202 : vector<32x128xf32>
    %1233 = arith.addf %1229, %1232 : vector<32x128xf32>
    %c170 = arith.constant 170 : index
    %1234 = memref.load %arg1[%c170] : memref<315xf32, #tpu.memory_space<smem>>
    %1235 = vector.broadcast %1234 : f32 to vector<32x128xf32>
    %1236 = arith.mulf %1235, %1204 : vector<32x128xf32>
    %1237 = arith.addf %1233, %1236 : vector<32x128xf32>
    %cst_226 = arith.constant dense<0.000000e+00> : vector<32x128xf32>
    %1238 = tpu.matmul %6, %1215, %cst_226 {dimension_numbers = #tpu.dot_dimension_numbers<[1], [0], [0], [1], [0, 0, 1, 1], [], []>} : vector<32x32xf32>, vector<32x128xf32>, vector<32x128xf32> -> vector<32x128xf32>
    %1239 = arith.addf %1238, %1226 : vector<32x128xf32>
    %cst_227 = arith.constant dense<0.000000e+00> : vector<32x128xf32>
    %1240 = tpu.matmul %8, %1237, %cst_227 {dimension_numbers = #tpu.dot_dimension_numbers<[1], [0], [0], [1], [0, 0, 1, 1], [], []>} : vector<32x32xf32>, vector<32x128xf32>, vector<32x128xf32> -> vector<32x128xf32>
    %1241 = arith.addf %1239, %1240 : vector<32x128xf32>
    %1242 = arith.mulf %1241, %4 : vector<32x128xf32>
    %1243 = vector.shape_cast %1242 : vector<32x128xf32> to vector<1x32x128xf32>
    %cst_228 = arith.constant dense<0.000000e+00> : vector<1xf32>
    %1244 = vector.multi_reduction <add>, %1243, %cst_228 [1, 2] : vector<1x32x128xf32> to vector<1xf32>
    %1245 = vector.shape_cast %1244 : vector<1xf32> to vector<1x1x1xf32>
    %1246 = vector.extract %1245[0, 0, 0] : f32 from vector<1x1x1xf32>
    %1247 = arith.mulf %1242, %1242 : vector<32x128xf32>
    %1248 = vector.shape_cast %1247 : vector<32x128xf32> to vector<1x32x128xf32>
    %cst_229 = arith.constant dense<0.000000e+00> : vector<1xf32>
    %1249 = vector.multi_reduction <add>, %1248, %cst_229 [1, 2] : vector<1x32x128xf32> to vector<1xf32>
    %1250 = vector.shape_cast %1249 : vector<1xf32> to vector<1x1x1xf32>
    %1251 = vector.extract %1250[0, 0, 0] : f32 from vector<1x1x1xf32>
    %cst_230 = arith.constant 0.001953125 : f32
    %1252 = arith.mulf %1246, %cst_230 : f32
    %cst_231 = arith.constant 0.001953125 : f32
    %1253 = arith.mulf %1251, %cst_231 : f32
    %1254 = arith.mulf %1252, %1252 : f32
    %1255 = arith.subf %1253, %1254 : f32
    %cst_232 = arith.constant 0.000000e+00 : f32
    %1256 = arith.maximumf %1255, %cst_232 : f32
    %c17_233 = arith.constant 17 : index
    %1257 = memref.load %arg3[%c17_233] : memref<33xf32, #tpu.memory_space<smem>>
    %cst_234 = arith.constant 9.99999974E-6 : f32
    %1258 = arith.addf %1256, %cst_234 : f32
    %1259 = math.rsqrt %1258 : f32
    %1260 = arith.mulf %1257, %1259 : f32
    %c17_235 = arith.constant 17 : index
    %1261 = memref.load %arg4[%c17_235] : memref<33xf32, #tpu.memory_space<smem>>
    %1262 = arith.mulf %1252, %1260 : f32
    %1263 = arith.subf %1261, %1262 : f32
    %1264 = vector.broadcast %1260 : f32 to vector<32x128xf32>
    %1265 = arith.mulf %1242, %1264 : vector<32x128xf32>
    %1266 = vector.broadcast %1263 : f32 to vector<32x128xf32>
    %1267 = arith.mulf %1266, %4 : vector<32x128xf32>
    %1268 = arith.addf %1265, %1267 : vector<32x128xf32>
    %1269 = arith.addf %1134, %1268 : vector<32x128xf32>
    %c1_i32_236 = arith.constant 1 : i32
    %1270 = tpu.dynamic_rotate %1269 by %c1_i32_236 dim 1 : vector<32x128xf32>, i32 -> vector<32x128xf32>
    %c127_i32_237 = arith.constant 127 : i32
    %1271 = tpu.dynamic_rotate %1269 by %c127_i32_237 dim 1 : vector<32x128xf32>, i32 -> vector<32x128xf32>
    %c171 = arith.constant 171 : index
    %1272 = memref.load %arg1[%c171] : memref<315xf32, #tpu.memory_space<smem>>
    %1273 = vector.broadcast %1272 : f32 to vector<32x128xf32>
    %1274 = arith.mulf %1273, %1270 : vector<32x128xf32>
    %c172 = arith.constant 172 : index
    %1275 = memref.load %arg1[%c172] : memref<315xf32, #tpu.memory_space<smem>>
    %1276 = vector.broadcast %1275 : f32 to vector<32x128xf32>
    %1277 = arith.mulf %1276, %1269 : vector<32x128xf32>
    %1278 = arith.addf %1274, %1277 : vector<32x128xf32>
    %c173 = arith.constant 173 : index
    %1279 = memref.load %arg1[%c173] : memref<315xf32, #tpu.memory_space<smem>>
    %1280 = vector.broadcast %1279 : f32 to vector<32x128xf32>
    %1281 = arith.mulf %1280, %1271 : vector<32x128xf32>
    %1282 = arith.addf %1278, %1281 : vector<32x128xf32>
    %c174 = arith.constant 174 : index
    %1283 = memref.load %arg1[%c174] : memref<315xf32, #tpu.memory_space<smem>>
    %1284 = vector.broadcast %1283 : f32 to vector<32x128xf32>
    %1285 = arith.mulf %1284, %1270 : vector<32x128xf32>
    %c175 = arith.constant 175 : index
    %1286 = memref.load %arg1[%c175] : memref<315xf32, #tpu.memory_space<smem>>
    %1287 = vector.broadcast %1286 : f32 to vector<32x128xf32>
    %1288 = arith.mulf %1287, %1269 : vector<32x128xf32>
    %1289 = arith.addf %1285, %1288 : vector<32x128xf32>
    %c176 = arith.constant 176 : index
    %1290 = memref.load %arg1[%c176] : memref<315xf32, #tpu.memory_space<smem>>
    %1291 = vector.broadcast %1290 : f32 to vector<32x128xf32>
    %1292 = arith.mulf %1291, %1271 : vector<32x128xf32>
    %1293 = arith.addf %1289, %1292 : vector<32x128xf32>
    %c177 = arith.constant 177 : index
    %1294 = memref.load %arg1[%c177] : memref<315xf32, #tpu.memory_space<smem>>
    %1295 = vector.broadcast %1294 : f32 to vector<32x128xf32>
    %1296 = arith.mulf %1295, %1270 : vector<32x128xf32>
    %c178 = arith.constant 178 : index
    %1297 = memref.load %arg1[%c178] : memref<315xf32, #tpu.memory_space<smem>>
    %1298 = vector.broadcast %1297 : f32 to vector<32x128xf32>
    %1299 = arith.mulf %1298, %1269 : vector<32x128xf32>
    %1300 = arith.addf %1296, %1299 : vector<32x128xf32>
    %c179 = arith.constant 179 : index
    %1301 = memref.load %arg1[%c179] : memref<315xf32, #tpu.memory_space<smem>>
    %1302 = vector.broadcast %1301 : f32 to vector<32x128xf32>
    %1303 = arith.mulf %1302, %1271 : vector<32x128xf32>
    %1304 = arith.addf %1300, %1303 : vector<32x128xf32>
    %cst_238 = arith.constant dense<0.000000e+00> : vector<32x128xf32>
    %1305 = tpu.matmul %6, %1282, %cst_238 {dimension_numbers = #tpu.dot_dimension_numbers<[1], [0], [0], [1], [0, 0, 1, 1], [], []>} : vector<32x32xf32>, vector<32x128xf32>, vector<32x128xf32> -> vector<32x128xf32>
    %1306 = arith.addf %1305, %1293 : vector<32x128xf32>
    %cst_239 = arith.constant dense<0.000000e+00> : vector<32x128xf32>
    %1307 = tpu.matmul %8, %1304, %cst_239 {dimension_numbers = #tpu.dot_dimension_numbers<[1], [0], [0], [1], [0, 0, 1, 1], [], []>} : vector<32x32xf32>, vector<32x128xf32>, vector<32x128xf32> -> vector<32x128xf32>
    %1308 = arith.addf %1306, %1307 : vector<32x128xf32>
    %1309 = arith.mulf %1308, %4 : vector<32x128xf32>
    %1310 = vector.shape_cast %1309 : vector<32x128xf32> to vector<1x32x128xf32>
    %cst_240 = arith.constant dense<0.000000e+00> : vector<1xf32>
    %1311 = vector.multi_reduction <add>, %1310, %cst_240 [1, 2] : vector<1x32x128xf32> to vector<1xf32>
    %1312 = vector.shape_cast %1311 : vector<1xf32> to vector<1x1x1xf32>
    %1313 = vector.extract %1312[0, 0, 0] : f32 from vector<1x1x1xf32>
    %1314 = arith.mulf %1309, %1309 : vector<32x128xf32>
    %1315 = vector.shape_cast %1314 : vector<32x128xf32> to vector<1x32x128xf32>
    %cst_241 = arith.constant dense<0.000000e+00> : vector<1xf32>
    %1316 = vector.multi_reduction <add>, %1315, %cst_241 [1, 2] : vector<1x32x128xf32> to vector<1xf32>
    %1317 = vector.shape_cast %1316 : vector<1xf32> to vector<1x1x1xf32>
    %1318 = vector.extract %1317[0, 0, 0] : f32 from vector<1x1x1xf32>
    %cst_242 = arith.constant 0.001953125 : f32
    %1319 = arith.mulf %1313, %cst_242 : f32
    %cst_243 = arith.constant 0.001953125 : f32
    %1320 = arith.mulf %1318, %cst_243 : f32
    %1321 = arith.mulf %1319, %1319 : f32
    %1322 = arith.subf %1320, %1321 : f32
    %cst_244 = arith.constant 0.000000e+00 : f32
    %1323 = arith.maximumf %1322, %cst_244 : f32
    %c18_245 = arith.constant 18 : index
    %1324 = memref.load %arg3[%c18_245] : memref<33xf32, #tpu.memory_space<smem>>
    %cst_246 = arith.constant 9.99999974E-6 : f32
    %1325 = arith.addf %1323, %cst_246 : f32
    %1326 = math.rsqrt %1325 : f32
    %1327 = arith.mulf %1324, %1326 : f32
    %c18_247 = arith.constant 18 : index
    %1328 = memref.load %arg4[%c18_247] : memref<33xf32, #tpu.memory_space<smem>>
    %1329 = arith.mulf %1319, %1327 : f32
    %1330 = arith.subf %1328, %1329 : f32
    %1331 = vector.broadcast %1327 : f32 to vector<32x128xf32>
    %1332 = arith.mulf %1309, %1331 : vector<32x128xf32>
    %1333 = vector.broadcast %1330 : f32 to vector<32x128xf32>
    %1334 = arith.mulf %1333, %4 : vector<32x128xf32>
    %1335 = arith.addf %1332, %1334 : vector<32x128xf32>
    %cst_248 = arith.constant 0.000000e+00 : f32
    %1336 = vector.broadcast %cst_248 : f32 to vector<32x128xf32>
    %1337 = arith.maximumf %1335, %1336 : vector<32x128xf32>
    %c1_i32_249 = arith.constant 1 : i32
    %1338 = tpu.dynamic_rotate %1337 by %c1_i32_249 dim 1 : vector<32x128xf32>, i32 -> vector<32x128xf32>
    %c127_i32_250 = arith.constant 127 : i32
    %1339 = tpu.dynamic_rotate %1337 by %c127_i32_250 dim 1 : vector<32x128xf32>, i32 -> vector<32x128xf32>
    %c180 = arith.constant 180 : index
    %1340 = memref.load %arg1[%c180] : memref<315xf32, #tpu.memory_space<smem>>
    %1341 = vector.broadcast %1340 : f32 to vector<32x128xf32>
    %1342 = arith.mulf %1341, %1338 : vector<32x128xf32>
    %c181 = arith.constant 181 : index
    %1343 = memref.load %arg1[%c181] : memref<315xf32, #tpu.memory_space<smem>>
    %1344 = vector.broadcast %1343 : f32 to vector<32x128xf32>
    %1345 = arith.mulf %1344, %1337 : vector<32x128xf32>
    %1346 = arith.addf %1342, %1345 : vector<32x128xf32>
    %c182 = arith.constant 182 : index
    %1347 = memref.load %arg1[%c182] : memref<315xf32, #tpu.memory_space<smem>>
    %1348 = vector.broadcast %1347 : f32 to vector<32x128xf32>
    %1349 = arith.mulf %1348, %1339 : vector<32x128xf32>
    %1350 = arith.addf %1346, %1349 : vector<32x128xf32>
    %c183 = arith.constant 183 : index
    %1351 = memref.load %arg1[%c183] : memref<315xf32, #tpu.memory_space<smem>>
    %1352 = vector.broadcast %1351 : f32 to vector<32x128xf32>
    %1353 = arith.mulf %1352, %1338 : vector<32x128xf32>
    %c184 = arith.constant 184 : index
    %1354 = memref.load %arg1[%c184] : memref<315xf32, #tpu.memory_space<smem>>
    %1355 = vector.broadcast %1354 : f32 to vector<32x128xf32>
    %1356 = arith.mulf %1355, %1337 : vector<32x128xf32>
    %1357 = arith.addf %1353, %1356 : vector<32x128xf32>
    %c185 = arith.constant 185 : index
    %1358 = memref.load %arg1[%c185] : memref<315xf32, #tpu.memory_space<smem>>
    %1359 = vector.broadcast %1358 : f32 to vector<32x128xf32>
    %1360 = arith.mulf %1359, %1339 : vector<32x128xf32>
    %1361 = arith.addf %1357, %1360 : vector<32x128xf32>
    %c186 = arith.constant 186 : index
    %1362 = memref.load %arg1[%c186] : memref<315xf32, #tpu.memory_space<smem>>
    %1363 = vector.broadcast %1362 : f32 to vector<32x128xf32>
    %1364 = arith.mulf %1363, %1338 : vector<32x128xf32>
    %c187 = arith.constant 187 : index
    %1365 = memref.load %arg1[%c187] : memref<315xf32, #tpu.memory_space<smem>>
    %1366 = vector.broadcast %1365 : f32 to vector<32x128xf32>
    %1367 = arith.mulf %1366, %1337 : vector<32x128xf32>
    %1368 = arith.addf %1364, %1367 : vector<32x128xf32>
    %c188 = arith.constant 188 : index
    %1369 = memref.load %arg1[%c188] : memref<315xf32, #tpu.memory_space<smem>>
    %1370 = vector.broadcast %1369 : f32 to vector<32x128xf32>
    %1371 = arith.mulf %1370, %1339 : vector<32x128xf32>
    %1372 = arith.addf %1368, %1371 : vector<32x128xf32>
    %cst_251 = arith.constant dense<0.000000e+00> : vector<32x128xf32>
    %1373 = tpu.matmul %6, %1350, %cst_251 {dimension_numbers = #tpu.dot_dimension_numbers<[1], [0], [0], [1], [0, 0, 1, 1], [], []>} : vector<32x32xf32>, vector<32x128xf32>, vector<32x128xf32> -> vector<32x128xf32>
    %1374 = arith.addf %1373, %1361 : vector<32x128xf32>
    %cst_252 = arith.constant dense<0.000000e+00> : vector<32x128xf32>
    %1375 = tpu.matmul %8, %1372, %cst_252 {dimension_numbers = #tpu.dot_dimension_numbers<[1], [0], [0], [1], [0, 0, 1, 1], [], []>} : vector<32x32xf32>, vector<32x128xf32>, vector<32x128xf32> -> vector<32x128xf32>
    %1376 = arith.addf %1374, %1375 : vector<32x128xf32>
    %1377 = arith.mulf %1376, %4 : vector<32x128xf32>
    %1378 = vector.shape_cast %1377 : vector<32x128xf32> to vector<1x32x128xf32>
    %cst_253 = arith.constant dense<0.000000e+00> : vector<1xf32>
    %1379 = vector.multi_reduction <add>, %1378, %cst_253 [1, 2] : vector<1x32x128xf32> to vector<1xf32>
    %1380 = vector.shape_cast %1379 : vector<1xf32> to vector<1x1x1xf32>
    %1381 = vector.extract %1380[0, 0, 0] : f32 from vector<1x1x1xf32>
    %1382 = arith.mulf %1377, %1377 : vector<32x128xf32>
    %1383 = vector.shape_cast %1382 : vector<32x128xf32> to vector<1x32x128xf32>
    %cst_254 = arith.constant dense<0.000000e+00> : vector<1xf32>
    %1384 = vector.multi_reduction <add>, %1383, %cst_254 [1, 2] : vector<1x32x128xf32> to vector<1xf32>
    %1385 = vector.shape_cast %1384 : vector<1xf32> to vector<1x1x1xf32>
    %1386 = vector.extract %1385[0, 0, 0] : f32 from vector<1x1x1xf32>
    %cst_255 = arith.constant 0.001953125 : f32
    %1387 = arith.mulf %1381, %cst_255 : f32
    %cst_256 = arith.constant 0.001953125 : f32
    %1388 = arith.mulf %1386, %cst_256 : f32
    %1389 = arith.mulf %1387, %1387 : f32
    %1390 = arith.subf %1388, %1389 : f32
    %cst_257 = arith.constant 0.000000e+00 : f32
    %1391 = arith.maximumf %1390, %cst_257 : f32
    %c19_258 = arith.constant 19 : index
    %1392 = memref.load %arg3[%c19_258] : memref<33xf32, #tpu.memory_space<smem>>
    %cst_259 = arith.constant 9.99999974E-6 : f32
    %1393 = arith.addf %1391, %cst_259 : f32
    %1394 = math.rsqrt %1393 : f32
    %1395 = arith.mulf %1392, %1394 : f32
    %c19_260 = arith.constant 19 : index
    %1396 = memref.load %arg4[%c19_260] : memref<33xf32, #tpu.memory_space<smem>>
    %1397 = arith.mulf %1387, %1395 : f32
    %1398 = arith.subf %1396, %1397 : f32
    %1399 = vector.broadcast %1395 : f32 to vector<32x128xf32>
    %1400 = arith.mulf %1377, %1399 : vector<32x128xf32>
    %1401 = vector.broadcast %1398 : f32 to vector<32x128xf32>
    %1402 = arith.mulf %1401, %4 : vector<32x128xf32>
    %1403 = arith.addf %1400, %1402 : vector<32x128xf32>
    %1404 = arith.addf %1269, %1403 : vector<32x128xf32>
    %c1_i32_261 = arith.constant 1 : i32
    %1405 = tpu.dynamic_rotate %1404 by %c1_i32_261 dim 1 : vector<32x128xf32>, i32 -> vector<32x128xf32>
    %c127_i32_262 = arith.constant 127 : i32
    %1406 = tpu.dynamic_rotate %1404 by %c127_i32_262 dim 1 : vector<32x128xf32>, i32 -> vector<32x128xf32>
    %c189 = arith.constant 189 : index
    %1407 = memref.load %arg1[%c189] : memref<315xf32, #tpu.memory_space<smem>>
    %1408 = vector.broadcast %1407 : f32 to vector<32x128xf32>
    %1409 = arith.mulf %1408, %1405 : vector<32x128xf32>
    %c190 = arith.constant 190 : index
    %1410 = memref.load %arg1[%c190] : memref<315xf32, #tpu.memory_space<smem>>
    %1411 = vector.broadcast %1410 : f32 to vector<32x128xf32>
    %1412 = arith.mulf %1411, %1404 : vector<32x128xf32>
    %1413 = arith.addf %1409, %1412 : vector<32x128xf32>
    %c191 = arith.constant 191 : index
    %1414 = memref.load %arg1[%c191] : memref<315xf32, #tpu.memory_space<smem>>
    %1415 = vector.broadcast %1414 : f32 to vector<32x128xf32>
    %1416 = arith.mulf %1415, %1406 : vector<32x128xf32>
    %1417 = arith.addf %1413, %1416 : vector<32x128xf32>
    %c192 = arith.constant 192 : index
    %1418 = memref.load %arg1[%c192] : memref<315xf32, #tpu.memory_space<smem>>
    %1419 = vector.broadcast %1418 : f32 to vector<32x128xf32>
    %1420 = arith.mulf %1419, %1405 : vector<32x128xf32>
    %c193 = arith.constant 193 : index
    %1421 = memref.load %arg1[%c193] : memref<315xf32, #tpu.memory_space<smem>>
    %1422 = vector.broadcast %1421 : f32 to vector<32x128xf32>
    %1423 = arith.mulf %1422, %1404 : vector<32x128xf32>
    %1424 = arith.addf %1420, %1423 : vector<32x128xf32>
    %c194 = arith.constant 194 : index
    %1425 = memref.load %arg1[%c194] : memref<315xf32, #tpu.memory_space<smem>>
    %1426 = vector.broadcast %1425 : f32 to vector<32x128xf32>
    %1427 = arith.mulf %1426, %1406 : vector<32x128xf32>
    %1428 = arith.addf %1424, %1427 : vector<32x128xf32>
    %c195 = arith.constant 195 : index
    %1429 = memref.load %arg1[%c195] : memref<315xf32, #tpu.memory_space<smem>>
    %1430 = vector.broadcast %1429 : f32 to vector<32x128xf32>
    %1431 = arith.mulf %1430, %1405 : vector<32x128xf32>
    %c196 = arith.constant 196 : index
    %1432 = memref.load %arg1[%c196] : memref<315xf32, #tpu.memory_space<smem>>
    %1433 = vector.broadcast %1432 : f32 to vector<32x128xf32>
    %1434 = arith.mulf %1433, %1404 : vector<32x128xf32>
    %1435 = arith.addf %1431, %1434 : vector<32x128xf32>
    %c197 = arith.constant 197 : index
    %1436 = memref.load %arg1[%c197] : memref<315xf32, #tpu.memory_space<smem>>
    %1437 = vector.broadcast %1436 : f32 to vector<32x128xf32>
    %1438 = arith.mulf %1437, %1406 : vector<32x128xf32>
    %1439 = arith.addf %1435, %1438 : vector<32x128xf32>
    %cst_263 = arith.constant dense<0.000000e+00> : vector<32x128xf32>
    %1440 = tpu.matmul %6, %1417, %cst_263 {dimension_numbers = #tpu.dot_dimension_numbers<[1], [0], [0], [1], [0, 0, 1, 1], [], []>} : vector<32x32xf32>, vector<32x128xf32>, vector<32x128xf32> -> vector<32x128xf32>
    %1441 = arith.addf %1440, %1428 : vector<32x128xf32>
    %cst_264 = arith.constant dense<0.000000e+00> : vector<32x128xf32>
    %1442 = tpu.matmul %8, %1439, %cst_264 {dimension_numbers = #tpu.dot_dimension_numbers<[1], [0], [0], [1], [0, 0, 1, 1], [], []>} : vector<32x32xf32>, vector<32x128xf32>, vector<32x128xf32> -> vector<32x128xf32>
    %1443 = arith.addf %1441, %1442 : vector<32x128xf32>
    %1444 = arith.mulf %1443, %4 : vector<32x128xf32>
    %1445 = vector.shape_cast %1444 : vector<32x128xf32> to vector<1x32x128xf32>
    %cst_265 = arith.constant dense<0.000000e+00> : vector<1xf32>
    %1446 = vector.multi_reduction <add>, %1445, %cst_265 [1, 2] : vector<1x32x128xf32> to vector<1xf32>
    %1447 = vector.shape_cast %1446 : vector<1xf32> to vector<1x1x1xf32>
    %1448 = vector.extract %1447[0, 0, 0] : f32 from vector<1x1x1xf32>
    %1449 = arith.mulf %1444, %1444 : vector<32x128xf32>
    %1450 = vector.shape_cast %1449 : vector<32x128xf32> to vector<1x32x128xf32>
    %cst_266 = arith.constant dense<0.000000e+00> : vector<1xf32>
    %1451 = vector.multi_reduction <add>, %1450, %cst_266 [1, 2] : vector<1x32x128xf32> to vector<1xf32>
    %1452 = vector.shape_cast %1451 : vector<1xf32> to vector<1x1x1xf32>
    %1453 = vector.extract %1452[0, 0, 0] : f32 from vector<1x1x1xf32>
    %cst_267 = arith.constant 0.001953125 : f32
    %1454 = arith.mulf %1448, %cst_267 : f32
    %cst_268 = arith.constant 0.001953125 : f32
    %1455 = arith.mulf %1453, %cst_268 : f32
    %1456 = arith.mulf %1454, %1454 : f32
    %1457 = arith.subf %1455, %1456 : f32
    %cst_269 = arith.constant 0.000000e+00 : f32
    %1458 = arith.maximumf %1457, %cst_269 : f32
    %c20_270 = arith.constant 20 : index
    %1459 = memref.load %arg3[%c20_270] : memref<33xf32, #tpu.memory_space<smem>>
    %cst_271 = arith.constant 9.99999974E-6 : f32
    %1460 = arith.addf %1458, %cst_271 : f32
    %1461 = math.rsqrt %1460 : f32
    %1462 = arith.mulf %1459, %1461 : f32
    %c20_272 = arith.constant 20 : index
    %1463 = memref.load %arg4[%c20_272] : memref<33xf32, #tpu.memory_space<smem>>
    %1464 = arith.mulf %1454, %1462 : f32
    %1465 = arith.subf %1463, %1464 : f32
    %1466 = vector.broadcast %1462 : f32 to vector<32x128xf32>
    %1467 = arith.mulf %1444, %1466 : vector<32x128xf32>
    %1468 = vector.broadcast %1465 : f32 to vector<32x128xf32>
    %1469 = arith.mulf %1468, %4 : vector<32x128xf32>
    %1470 = arith.addf %1467, %1469 : vector<32x128xf32>
    %cst_273 = arith.constant 0.000000e+00 : f32
    %1471 = vector.broadcast %cst_273 : f32 to vector<32x128xf32>
    %1472 = arith.maximumf %1470, %1471 : vector<32x128xf32>
    %c1_i32_274 = arith.constant 1 : i32
    %1473 = tpu.dynamic_rotate %1472 by %c1_i32_274 dim 1 : vector<32x128xf32>, i32 -> vector<32x128xf32>
    %c127_i32_275 = arith.constant 127 : i32
    %1474 = tpu.dynamic_rotate %1472 by %c127_i32_275 dim 1 : vector<32x128xf32>, i32 -> vector<32x128xf32>
    %c198 = arith.constant 198 : index
    %1475 = memref.load %arg1[%c198] : memref<315xf32, #tpu.memory_space<smem>>
    %1476 = vector.broadcast %1475 : f32 to vector<32x128xf32>
    %1477 = arith.mulf %1476, %1473 : vector<32x128xf32>
    %c199 = arith.constant 199 : index
    %1478 = memref.load %arg1[%c199] : memref<315xf32, #tpu.memory_space<smem>>
    %1479 = vector.broadcast %1478 : f32 to vector<32x128xf32>
    %1480 = arith.mulf %1479, %1472 : vector<32x128xf32>
    %1481 = arith.addf %1477, %1480 : vector<32x128xf32>
    %c200 = arith.constant 200 : index
    %1482 = memref.load %arg1[%c200] : memref<315xf32, #tpu.memory_space<smem>>
    %1483 = vector.broadcast %1482 : f32 to vector<32x128xf32>
    %1484 = arith.mulf %1483, %1474 : vector<32x128xf32>
    %1485 = arith.addf %1481, %1484 : vector<32x128xf32>
    %c201 = arith.constant 201 : index
    %1486 = memref.load %arg1[%c201] : memref<315xf32, #tpu.memory_space<smem>>
    %1487 = vector.broadcast %1486 : f32 to vector<32x128xf32>
    %1488 = arith.mulf %1487, %1473 : vector<32x128xf32>
    %c202 = arith.constant 202 : index
    %1489 = memref.load %arg1[%c202] : memref<315xf32, #tpu.memory_space<smem>>
    %1490 = vector.broadcast %1489 : f32 to vector<32x128xf32>
    %1491 = arith.mulf %1490, %1472 : vector<32x128xf32>
    %1492 = arith.addf %1488, %1491 : vector<32x128xf32>
    %c203 = arith.constant 203 : index
    %1493 = memref.load %arg1[%c203] : memref<315xf32, #tpu.memory_space<smem>>
    %1494 = vector.broadcast %1493 : f32 to vector<32x128xf32>
    %1495 = arith.mulf %1494, %1474 : vector<32x128xf32>
    %1496 = arith.addf %1492, %1495 : vector<32x128xf32>
    %c204 = arith.constant 204 : index
    %1497 = memref.load %arg1[%c204] : memref<315xf32, #tpu.memory_space<smem>>
    %1498 = vector.broadcast %1497 : f32 to vector<32x128xf32>
    %1499 = arith.mulf %1498, %1473 : vector<32x128xf32>
    %c205 = arith.constant 205 : index
    %1500 = memref.load %arg1[%c205] : memref<315xf32, #tpu.memory_space<smem>>
    %1501 = vector.broadcast %1500 : f32 to vector<32x128xf32>
    %1502 = arith.mulf %1501, %1472 : vector<32x128xf32>
    %1503 = arith.addf %1499, %1502 : vector<32x128xf32>
    %c206 = arith.constant 206 : index
    %1504 = memref.load %arg1[%c206] : memref<315xf32, #tpu.memory_space<smem>>
    %1505 = vector.broadcast %1504 : f32 to vector<32x128xf32>
    %1506 = arith.mulf %1505, %1474 : vector<32x128xf32>
    %1507 = arith.addf %1503, %1506 : vector<32x128xf32>
    %cst_276 = arith.constant dense<0.000000e+00> : vector<32x128xf32>
    %1508 = tpu.matmul %6, %1485, %cst_276 {dimension_numbers = #tpu.dot_dimension_numbers<[1], [0], [0], [1], [0, 0, 1, 1], [], []>} : vector<32x32xf32>, vector<32x128xf32>, vector<32x128xf32> -> vector<32x128xf32>
    %1509 = arith.addf %1508, %1496 : vector<32x128xf32>
    %cst_277 = arith.constant dense<0.000000e+00> : vector<32x128xf32>
    %1510 = tpu.matmul %8, %1507, %cst_277 {dimension_numbers = #tpu.dot_dimension_numbers<[1], [0], [0], [1], [0, 0, 1, 1], [], []>} : vector<32x32xf32>, vector<32x128xf32>, vector<32x128xf32> -> vector<32x128xf32>
    %1511 = arith.addf %1509, %1510 : vector<32x128xf32>
    %1512 = arith.mulf %1511, %4 : vector<32x128xf32>
    %1513 = vector.shape_cast %1512 : vector<32x128xf32> to vector<1x32x128xf32>
    %cst_278 = arith.constant dense<0.000000e+00> : vector<1xf32>
    %1514 = vector.multi_reduction <add>, %1513, %cst_278 [1, 2] : vector<1x32x128xf32> to vector<1xf32>
    %1515 = vector.shape_cast %1514 : vector<1xf32> to vector<1x1x1xf32>
    %1516 = vector.extract %1515[0, 0, 0] : f32 from vector<1x1x1xf32>
    %1517 = arith.mulf %1512, %1512 : vector<32x128xf32>
    %1518 = vector.shape_cast %1517 : vector<32x128xf32> to vector<1x32x128xf32>
    %cst_279 = arith.constant dense<0.000000e+00> : vector<1xf32>
    %1519 = vector.multi_reduction <add>, %1518, %cst_279 [1, 2] : vector<1x32x128xf32> to vector<1xf32>
    %1520 = vector.shape_cast %1519 : vector<1xf32> to vector<1x1x1xf32>
    %1521 = vector.extract %1520[0, 0, 0] : f32 from vector<1x1x1xf32>
    %cst_280 = arith.constant 0.001953125 : f32
    %1522 = arith.mulf %1516, %cst_280 : f32
    %cst_281 = arith.constant 0.001953125 : f32
    %1523 = arith.mulf %1521, %cst_281 : f32
    %1524 = arith.mulf %1522, %1522 : f32
    %1525 = arith.subf %1523, %1524 : f32
    %cst_282 = arith.constant 0.000000e+00 : f32
    %1526 = arith.maximumf %1525, %cst_282 : f32
    %c21_283 = arith.constant 21 : index
    %1527 = memref.load %arg3[%c21_283] : memref<33xf32, #tpu.memory_space<smem>>
    %cst_284 = arith.constant 9.99999974E-6 : f32
    %1528 = arith.addf %1526, %cst_284 : f32
    %1529 = math.rsqrt %1528 : f32
    %1530 = arith.mulf %1527, %1529 : f32
    %c21_285 = arith.constant 21 : index
    %1531 = memref.load %arg4[%c21_285] : memref<33xf32, #tpu.memory_space<smem>>
    %1532 = arith.mulf %1522, %1530 : f32
    %1533 = arith.subf %1531, %1532 : f32
    %1534 = vector.broadcast %1530 : f32 to vector<32x128xf32>
    %1535 = arith.mulf %1512, %1534 : vector<32x128xf32>
    %1536 = vector.broadcast %1533 : f32 to vector<32x128xf32>
    %1537 = arith.mulf %1536, %4 : vector<32x128xf32>
    %1538 = arith.addf %1535, %1537 : vector<32x128xf32>
    %1539 = arith.addf %1404, %1538 : vector<32x128xf32>
    %c1_i32_286 = arith.constant 1 : i32
    %1540 = tpu.dynamic_rotate %1539 by %c1_i32_286 dim 1 : vector<32x128xf32>, i32 -> vector<32x128xf32>
    %c127_i32_287 = arith.constant 127 : i32
    %1541 = tpu.dynamic_rotate %1539 by %c127_i32_287 dim 1 : vector<32x128xf32>, i32 -> vector<32x128xf32>
    %c207 = arith.constant 207 : index
    %1542 = memref.load %arg1[%c207] : memref<315xf32, #tpu.memory_space<smem>>
    %1543 = vector.broadcast %1542 : f32 to vector<32x128xf32>
    %1544 = arith.mulf %1543, %1540 : vector<32x128xf32>
    %c208 = arith.constant 208 : index
    %1545 = memref.load %arg1[%c208] : memref<315xf32, #tpu.memory_space<smem>>
    %1546 = vector.broadcast %1545 : f32 to vector<32x128xf32>
    %1547 = arith.mulf %1546, %1539 : vector<32x128xf32>
    %1548 = arith.addf %1544, %1547 : vector<32x128xf32>
    %c209 = arith.constant 209 : index
    %1549 = memref.load %arg1[%c209] : memref<315xf32, #tpu.memory_space<smem>>
    %1550 = vector.broadcast %1549 : f32 to vector<32x128xf32>
    %1551 = arith.mulf %1550, %1541 : vector<32x128xf32>
    %1552 = arith.addf %1548, %1551 : vector<32x128xf32>
    %c210 = arith.constant 210 : index
    %1553 = memref.load %arg1[%c210] : memref<315xf32, #tpu.memory_space<smem>>
    %1554 = vector.broadcast %1553 : f32 to vector<32x128xf32>
    %1555 = arith.mulf %1554, %1540 : vector<32x128xf32>
    %c211 = arith.constant 211 : index
    %1556 = memref.load %arg1[%c211] : memref<315xf32, #tpu.memory_space<smem>>
    %1557 = vector.broadcast %1556 : f32 to vector<32x128xf32>
    %1558 = arith.mulf %1557, %1539 : vector<32x128xf32>
    %1559 = arith.addf %1555, %1558 : vector<32x128xf32>
    %c212 = arith.constant 212 : index
    %1560 = memref.load %arg1[%c212] : memref<315xf32, #tpu.memory_space<smem>>
    %1561 = vector.broadcast %1560 : f32 to vector<32x128xf32>
    %1562 = arith.mulf %1561, %1541 : vector<32x128xf32>
    %1563 = arith.addf %1559, %1562 : vector<32x128xf32>
    %c213 = arith.constant 213 : index
    %1564 = memref.load %arg1[%c213] : memref<315xf32, #tpu.memory_space<smem>>
    %1565 = vector.broadcast %1564 : f32 to vector<32x128xf32>
    %1566 = arith.mulf %1565, %1540 : vector<32x128xf32>
    %c214 = arith.constant 214 : index
    %1567 = memref.load %arg1[%c214] : memref<315xf32, #tpu.memory_space<smem>>
    %1568 = vector.broadcast %1567 : f32 to vector<32x128xf32>
    %1569 = arith.mulf %1568, %1539 : vector<32x128xf32>
    %1570 = arith.addf %1566, %1569 : vector<32x128xf32>
    %c215 = arith.constant 215 : index
    %1571 = memref.load %arg1[%c215] : memref<315xf32, #tpu.memory_space<smem>>
    %1572 = vector.broadcast %1571 : f32 to vector<32x128xf32>
    %1573 = arith.mulf %1572, %1541 : vector<32x128xf32>
    %1574 = arith.addf %1570, %1573 : vector<32x128xf32>
    %cst_288 = arith.constant dense<0.000000e+00> : vector<32x128xf32>
    %1575 = tpu.matmul %6, %1552, %cst_288 {dimension_numbers = #tpu.dot_dimension_numbers<[1], [0], [0], [1], [0, 0, 1, 1], [], []>} : vector<32x32xf32>, vector<32x128xf32>, vector<32x128xf32> -> vector<32x128xf32>
    %1576 = arith.addf %1575, %1563 : vector<32x128xf32>
    %cst_289 = arith.constant dense<0.000000e+00> : vector<32x128xf32>
    %1577 = tpu.matmul %8, %1574, %cst_289 {dimension_numbers = #tpu.dot_dimension_numbers<[1], [0], [0], [1], [0, 0, 1, 1], [], []>} : vector<32x32xf32>, vector<32x128xf32>, vector<32x128xf32> -> vector<32x128xf32>
    %1578 = arith.addf %1576, %1577 : vector<32x128xf32>
    %1579 = arith.mulf %1578, %4 : vector<32x128xf32>
    %1580 = vector.shape_cast %1579 : vector<32x128xf32> to vector<1x32x128xf32>
    %cst_290 = arith.constant dense<0.000000e+00> : vector<1xf32>
    %1581 = vector.multi_reduction <add>, %1580, %cst_290 [1, 2] : vector<1x32x128xf32> to vector<1xf32>
    %1582 = vector.shape_cast %1581 : vector<1xf32> to vector<1x1x1xf32>
    %1583 = vector.extract %1582[0, 0, 0] : f32 from vector<1x1x1xf32>
    %1584 = arith.mulf %1579, %1579 : vector<32x128xf32>
    %1585 = vector.shape_cast %1584 : vector<32x128xf32> to vector<1x32x128xf32>
    %cst_291 = arith.constant dense<0.000000e+00> : vector<1xf32>
    %1586 = vector.multi_reduction <add>, %1585, %cst_291 [1, 2] : vector<1x32x128xf32> to vector<1xf32>
    %1587 = vector.shape_cast %1586 : vector<1xf32> to vector<1x1x1xf32>
    %1588 = vector.extract %1587[0, 0, 0] : f32 from vector<1x1x1xf32>
    %cst_292 = arith.constant 0.001953125 : f32
    %1589 = arith.mulf %1583, %cst_292 : f32
    %cst_293 = arith.constant 0.001953125 : f32
    %1590 = arith.mulf %1588, %cst_293 : f32
    %1591 = arith.mulf %1589, %1589 : f32
    %1592 = arith.subf %1590, %1591 : f32
    %cst_294 = arith.constant 0.000000e+00 : f32
    %1593 = arith.maximumf %1592, %cst_294 : f32
    %c22_295 = arith.constant 22 : index
    %1594 = memref.load %arg3[%c22_295] : memref<33xf32, #tpu.memory_space<smem>>
    %cst_296 = arith.constant 9.99999974E-6 : f32
    %1595 = arith.addf %1593, %cst_296 : f32
    %1596 = math.rsqrt %1595 : f32
    %1597 = arith.mulf %1594, %1596 : f32
    %c22_297 = arith.constant 22 : index
    %1598 = memref.load %arg4[%c22_297] : memref<33xf32, #tpu.memory_space<smem>>
    %1599 = arith.mulf %1589, %1597 : f32
    %1600 = arith.subf %1598, %1599 : f32
    %1601 = vector.broadcast %1597 : f32 to vector<32x128xf32>
    %1602 = arith.mulf %1579, %1601 : vector<32x128xf32>
    %1603 = vector.broadcast %1600 : f32 to vector<32x128xf32>
    %1604 = arith.mulf %1603, %4 : vector<32x128xf32>
    %1605 = arith.addf %1602, %1604 : vector<32x128xf32>
    %cst_298 = arith.constant 0.000000e+00 : f32
    %1606 = vector.broadcast %cst_298 : f32 to vector<32x128xf32>
    %1607 = arith.maximumf %1605, %1606 : vector<32x128xf32>
    %c1_i32_299 = arith.constant 1 : i32
    %1608 = tpu.dynamic_rotate %1607 by %c1_i32_299 dim 1 : vector<32x128xf32>, i32 -> vector<32x128xf32>
    %c127_i32_300 = arith.constant 127 : i32
    %1609 = tpu.dynamic_rotate %1607 by %c127_i32_300 dim 1 : vector<32x128xf32>, i32 -> vector<32x128xf32>
    %c216 = arith.constant 216 : index
    %1610 = memref.load %arg1[%c216] : memref<315xf32, #tpu.memory_space<smem>>
    %1611 = vector.broadcast %1610 : f32 to vector<32x128xf32>
    %1612 = arith.mulf %1611, %1608 : vector<32x128xf32>
    %c217 = arith.constant 217 : index
    %1613 = memref.load %arg1[%c217] : memref<315xf32, #tpu.memory_space<smem>>
    %1614 = vector.broadcast %1613 : f32 to vector<32x128xf32>
    %1615 = arith.mulf %1614, %1607 : vector<32x128xf32>
    %1616 = arith.addf %1612, %1615 : vector<32x128xf32>
    %c218 = arith.constant 218 : index
    %1617 = memref.load %arg1[%c218] : memref<315xf32, #tpu.memory_space<smem>>
    %1618 = vector.broadcast %1617 : f32 to vector<32x128xf32>
    %1619 = arith.mulf %1618, %1609 : vector<32x128xf32>
    %1620 = arith.addf %1616, %1619 : vector<32x128xf32>
    %c219 = arith.constant 219 : index
    %1621 = memref.load %arg1[%c219] : memref<315xf32, #tpu.memory_space<smem>>
    %1622 = vector.broadcast %1621 : f32 to vector<32x128xf32>
    %1623 = arith.mulf %1622, %1608 : vector<32x128xf32>
    %c220 = arith.constant 220 : index
    %1624 = memref.load %arg1[%c220] : memref<315xf32, #tpu.memory_space<smem>>
    %1625 = vector.broadcast %1624 : f32 to vector<32x128xf32>
    %1626 = arith.mulf %1625, %1607 : vector<32x128xf32>
    %1627 = arith.addf %1623, %1626 : vector<32x128xf32>
    %c221 = arith.constant 221 : index
    %1628 = memref.load %arg1[%c221] : memref<315xf32, #tpu.memory_space<smem>>
    %1629 = vector.broadcast %1628 : f32 to vector<32x128xf32>
    %1630 = arith.mulf %1629, %1609 : vector<32x128xf32>
    %1631 = arith.addf %1627, %1630 : vector<32x128xf32>
    %c222 = arith.constant 222 : index
    %1632 = memref.load %arg1[%c222] : memref<315xf32, #tpu.memory_space<smem>>
    %1633 = vector.broadcast %1632 : f32 to vector<32x128xf32>
    %1634 = arith.mulf %1633, %1608 : vector<32x128xf32>
    %c223 = arith.constant 223 : index
    %1635 = memref.load %arg1[%c223] : memref<315xf32, #tpu.memory_space<smem>>
    %1636 = vector.broadcast %1635 : f32 to vector<32x128xf32>
    %1637 = arith.mulf %1636, %1607 : vector<32x128xf32>
    %1638 = arith.addf %1634, %1637 : vector<32x128xf32>
    %c224 = arith.constant 224 : index
    %1639 = memref.load %arg1[%c224] : memref<315xf32, #tpu.memory_space<smem>>
    %1640 = vector.broadcast %1639 : f32 to vector<32x128xf32>
    %1641 = arith.mulf %1640, %1609 : vector<32x128xf32>
    %1642 = arith.addf %1638, %1641 : vector<32x128xf32>
    %cst_301 = arith.constant dense<0.000000e+00> : vector<32x128xf32>
    %1643 = tpu.matmul %6, %1620, %cst_301 {dimension_numbers = #tpu.dot_dimension_numbers<[1], [0], [0], [1], [0, 0, 1, 1], [], []>} : vector<32x32xf32>, vector<32x128xf32>, vector<32x128xf32> -> vector<32x128xf32>
    %1644 = arith.addf %1643, %1631 : vector<32x128xf32>
    %cst_302 = arith.constant dense<0.000000e+00> : vector<32x128xf32>
    %1645 = tpu.matmul %8, %1642, %cst_302 {dimension_numbers = #tpu.dot_dimension_numbers<[1], [0], [0], [1], [0, 0, 1, 1], [], []>} : vector<32x32xf32>, vector<32x128xf32>, vector<32x128xf32> -> vector<32x128xf32>
    %1646 = arith.addf %1644, %1645 : vector<32x128xf32>
    %1647 = arith.mulf %1646, %4 : vector<32x128xf32>
    %1648 = vector.shape_cast %1647 : vector<32x128xf32> to vector<1x32x128xf32>
    %cst_303 = arith.constant dense<0.000000e+00> : vector<1xf32>
    %1649 = vector.multi_reduction <add>, %1648, %cst_303 [1, 2] : vector<1x32x128xf32> to vector<1xf32>
    %1650 = vector.shape_cast %1649 : vector<1xf32> to vector<1x1x1xf32>
    %1651 = vector.extract %1650[0, 0, 0] : f32 from vector<1x1x1xf32>
    %1652 = arith.mulf %1647, %1647 : vector<32x128xf32>
    %1653 = vector.shape_cast %1652 : vector<32x128xf32> to vector<1x32x128xf32>
    %cst_304 = arith.constant dense<0.000000e+00> : vector<1xf32>
    %1654 = vector.multi_reduction <add>, %1653, %cst_304 [1, 2] : vector<1x32x128xf32> to vector<1xf32>
    %1655 = vector.shape_cast %1654 : vector<1xf32> to vector<1x1x1xf32>
    %1656 = vector.extract %1655[0, 0, 0] : f32 from vector<1x1x1xf32>
    %cst_305 = arith.constant 0.001953125 : f32
    %1657 = arith.mulf %1651, %cst_305 : f32
    %cst_306 = arith.constant 0.001953125 : f32
    %1658 = arith.mulf %1656, %cst_306 : f32
    %1659 = arith.mulf %1657, %1657 : f32
    %1660 = arith.subf %1658, %1659 : f32
    %cst_307 = arith.constant 0.000000e+00 : f32
    %1661 = arith.maximumf %1660, %cst_307 : f32
    %c23_308 = arith.constant 23 : index
    %1662 = memref.load %arg3[%c23_308] : memref<33xf32, #tpu.memory_space<smem>>
    %cst_309 = arith.constant 9.99999974E-6 : f32
    %1663 = arith.addf %1661, %cst_309 : f32
    %1664 = math.rsqrt %1663 : f32
    %1665 = arith.mulf %1662, %1664 : f32
    %c23_310 = arith.constant 23 : index
    %1666 = memref.load %arg4[%c23_310] : memref<33xf32, #tpu.memory_space<smem>>
    %1667 = arith.mulf %1657, %1665 : f32
    %1668 = arith.subf %1666, %1667 : f32
    %1669 = vector.broadcast %1665 : f32 to vector<32x128xf32>
    %1670 = arith.mulf %1647, %1669 : vector<32x128xf32>
    %1671 = vector.broadcast %1668 : f32 to vector<32x128xf32>
    %1672 = arith.mulf %1671, %4 : vector<32x128xf32>
    %1673 = arith.addf %1670, %1672 : vector<32x128xf32>
    %1674 = arith.addf %1539, %1673 : vector<32x128xf32>
    %c1_i32_311 = arith.constant 1 : i32
    %1675 = tpu.dynamic_rotate %1674 by %c1_i32_311 dim 1 : vector<32x128xf32>, i32 -> vector<32x128xf32>
    %c127_i32_312 = arith.constant 127 : i32
    %1676 = tpu.dynamic_rotate %1674 by %c127_i32_312 dim 1 : vector<32x128xf32>, i32 -> vector<32x128xf32>
    %c225 = arith.constant 225 : index
    %1677 = memref.load %arg1[%c225] : memref<315xf32, #tpu.memory_space<smem>>
    %1678 = vector.broadcast %1677 : f32 to vector<32x128xf32>
    %1679 = arith.mulf %1678, %1675 : vector<32x128xf32>
    %c226 = arith.constant 226 : index
    %1680 = memref.load %arg1[%c226] : memref<315xf32, #tpu.memory_space<smem>>
    %1681 = vector.broadcast %1680 : f32 to vector<32x128xf32>
    %1682 = arith.mulf %1681, %1674 : vector<32x128xf32>
    %1683 = arith.addf %1679, %1682 : vector<32x128xf32>
    %c227 = arith.constant 227 : index
    %1684 = memref.load %arg1[%c227] : memref<315xf32, #tpu.memory_space<smem>>
    %1685 = vector.broadcast %1684 : f32 to vector<32x128xf32>
    %1686 = arith.mulf %1685, %1676 : vector<32x128xf32>
    %1687 = arith.addf %1683, %1686 : vector<32x128xf32>
    %c228 = arith.constant 228 : index
    %1688 = memref.load %arg1[%c228] : memref<315xf32, #tpu.memory_space<smem>>
    %1689 = vector.broadcast %1688 : f32 to vector<32x128xf32>
    %1690 = arith.mulf %1689, %1675 : vector<32x128xf32>
    %c229 = arith.constant 229 : index
    %1691 = memref.load %arg1[%c229] : memref<315xf32, #tpu.memory_space<smem>>
    %1692 = vector.broadcast %1691 : f32 to vector<32x128xf32>
    %1693 = arith.mulf %1692, %1674 : vector<32x128xf32>
    %1694 = arith.addf %1690, %1693 : vector<32x128xf32>
    %c230 = arith.constant 230 : index
    %1695 = memref.load %arg1[%c230] : memref<315xf32, #tpu.memory_space<smem>>
    %1696 = vector.broadcast %1695 : f32 to vector<32x128xf32>
    %1697 = arith.mulf %1696, %1676 : vector<32x128xf32>
    %1698 = arith.addf %1694, %1697 : vector<32x128xf32>
    %c231 = arith.constant 231 : index
    %1699 = memref.load %arg1[%c231] : memref<315xf32, #tpu.memory_space<smem>>
    %1700 = vector.broadcast %1699 : f32 to vector<32x128xf32>
    %1701 = arith.mulf %1700, %1675 : vector<32x128xf32>
    %c232 = arith.constant 232 : index
    %1702 = memref.load %arg1[%c232] : memref<315xf32, #tpu.memory_space<smem>>
    %1703 = vector.broadcast %1702 : f32 to vector<32x128xf32>
    %1704 = arith.mulf %1703, %1674 : vector<32x128xf32>
    %1705 = arith.addf %1701, %1704 : vector<32x128xf32>
    %c233 = arith.constant 233 : index
    %1706 = memref.load %arg1[%c233] : memref<315xf32, #tpu.memory_space<smem>>
    %1707 = vector.broadcast %1706 : f32 to vector<32x128xf32>
    %1708 = arith.mulf %1707, %1676 : vector<32x128xf32>
    %1709 = arith.addf %1705, %1708 : vector<32x128xf32>
    %cst_313 = arith.constant dense<0.000000e+00> : vector<32x128xf32>
    %1710 = tpu.matmul %6, %1687, %cst_313 {dimension_numbers = #tpu.dot_dimension_numbers<[1], [0], [0], [1], [0, 0, 1, 1], [], []>} : vector<32x32xf32>, vector<32x128xf32>, vector<32x128xf32> -> vector<32x128xf32>
    %1711 = arith.addf %1710, %1698 : vector<32x128xf32>
    %cst_314 = arith.constant dense<0.000000e+00> : vector<32x128xf32>
    %1712 = tpu.matmul %8, %1709, %cst_314 {dimension_numbers = #tpu.dot_dimension_numbers<[1], [0], [0], [1], [0, 0, 1, 1], [], []>} : vector<32x32xf32>, vector<32x128xf32>, vector<32x128xf32> -> vector<32x128xf32>
    %1713 = arith.addf %1711, %1712 : vector<32x128xf32>
    %1714 = arith.mulf %1713, %4 : vector<32x128xf32>
    %1715 = vector.shape_cast %1714 : vector<32x128xf32> to vector<1x32x128xf32>
    %cst_315 = arith.constant dense<0.000000e+00> : vector<1xf32>
    %1716 = vector.multi_reduction <add>, %1715, %cst_315 [1, 2] : vector<1x32x128xf32> to vector<1xf32>
    %1717 = vector.shape_cast %1716 : vector<1xf32> to vector<1x1x1xf32>
    %1718 = vector.extract %1717[0, 0, 0] : f32 from vector<1x1x1xf32>
    %1719 = arith.mulf %1714, %1714 : vector<32x128xf32>
    %1720 = vector.shape_cast %1719 : vector<32x128xf32> to vector<1x32x128xf32>
    %cst_316 = arith.constant dense<0.000000e+00> : vector<1xf32>
    %1721 = vector.multi_reduction <add>, %1720, %cst_316 [1, 2] : vector<1x32x128xf32> to vector<1xf32>
    %1722 = vector.shape_cast %1721 : vector<1xf32> to vector<1x1x1xf32>
    %1723 = vector.extract %1722[0, 0, 0] : f32 from vector<1x1x1xf32>
    %cst_317 = arith.constant 0.001953125 : f32
    %1724 = arith.mulf %1718, %cst_317 : f32
    %cst_318 = arith.constant 0.001953125 : f32
    %1725 = arith.mulf %1723, %cst_318 : f32
    %1726 = arith.mulf %1724, %1724 : f32
    %1727 = arith.subf %1725, %1726 : f32
    %cst_319 = arith.constant 0.000000e+00 : f32
    %1728 = arith.maximumf %1727, %cst_319 : f32
    %c24_320 = arith.constant 24 : index
    %1729 = memref.load %arg3[%c24_320] : memref<33xf32, #tpu.memory_space<smem>>
    %cst_321 = arith.constant 9.99999974E-6 : f32
    %1730 = arith.addf %1728, %cst_321 : f32
    %1731 = math.rsqrt %1730 : f32
    %1732 = arith.mulf %1729, %1731 : f32
    %c24_322 = arith.constant 24 : index
    %1733 = memref.load %arg4[%c24_322] : memref<33xf32, #tpu.memory_space<smem>>
    %1734 = arith.mulf %1724, %1732 : f32
    %1735 = arith.subf %1733, %1734 : f32
    %1736 = vector.broadcast %1732 : f32 to vector<32x128xf32>
    %1737 = arith.mulf %1714, %1736 : vector<32x128xf32>
    %1738 = vector.broadcast %1735 : f32 to vector<32x128xf32>
    %1739 = arith.mulf %1738, %4 : vector<32x128xf32>
    %1740 = arith.addf %1737, %1739 : vector<32x128xf32>
    %cst_323 = arith.constant 0.000000e+00 : f32
    %1741 = vector.broadcast %cst_323 : f32 to vector<32x128xf32>
    %1742 = arith.maximumf %1740, %1741 : vector<32x128xf32>
    %c1_i32_324 = arith.constant 1 : i32
    %1743 = tpu.dynamic_rotate %1742 by %c1_i32_324 dim 1 : vector<32x128xf32>, i32 -> vector<32x128xf32>
    %c127_i32_325 = arith.constant 127 : i32
    %1744 = tpu.dynamic_rotate %1742 by %c127_i32_325 dim 1 : vector<32x128xf32>, i32 -> vector<32x128xf32>
    %c234 = arith.constant 234 : index
    %1745 = memref.load %arg1[%c234] : memref<315xf32, #tpu.memory_space<smem>>
    %1746 = vector.broadcast %1745 : f32 to vector<32x128xf32>
    %1747 = arith.mulf %1746, %1743 : vector<32x128xf32>
    %c235 = arith.constant 235 : index
    %1748 = memref.load %arg1[%c235] : memref<315xf32, #tpu.memory_space<smem>>
    %1749 = vector.broadcast %1748 : f32 to vector<32x128xf32>
    %1750 = arith.mulf %1749, %1742 : vector<32x128xf32>
    %1751 = arith.addf %1747, %1750 : vector<32x128xf32>
    %c236 = arith.constant 236 : index
    %1752 = memref.load %arg1[%c236] : memref<315xf32, #tpu.memory_space<smem>>
    %1753 = vector.broadcast %1752 : f32 to vector<32x128xf32>
    %1754 = arith.mulf %1753, %1744 : vector<32x128xf32>
    %1755 = arith.addf %1751, %1754 : vector<32x128xf32>
    %c237 = arith.constant 237 : index
    %1756 = memref.load %arg1[%c237] : memref<315xf32, #tpu.memory_space<smem>>
    %1757 = vector.broadcast %1756 : f32 to vector<32x128xf32>
    %1758 = arith.mulf %1757, %1743 : vector<32x128xf32>
    %c238 = arith.constant 238 : index
    %1759 = memref.load %arg1[%c238] : memref<315xf32, #tpu.memory_space<smem>>
    %1760 = vector.broadcast %1759 : f32 to vector<32x128xf32>
    %1761 = arith.mulf %1760, %1742 : vector<32x128xf32>
    %1762 = arith.addf %1758, %1761 : vector<32x128xf32>
    %c239 = arith.constant 239 : index
    %1763 = memref.load %arg1[%c239] : memref<315xf32, #tpu.memory_space<smem>>
    %1764 = vector.broadcast %1763 : f32 to vector<32x128xf32>
    %1765 = arith.mulf %1764, %1744 : vector<32x128xf32>
    %1766 = arith.addf %1762, %1765 : vector<32x128xf32>
    %c240 = arith.constant 240 : index
    %1767 = memref.load %arg1[%c240] : memref<315xf32, #tpu.memory_space<smem>>
    %1768 = vector.broadcast %1767 : f32 to vector<32x128xf32>
    %1769 = arith.mulf %1768, %1743 : vector<32x128xf32>
    %c241 = arith.constant 241 : index
    %1770 = memref.load %arg1[%c241] : memref<315xf32, #tpu.memory_space<smem>>
    %1771 = vector.broadcast %1770 : f32 to vector<32x128xf32>
    %1772 = arith.mulf %1771, %1742 : vector<32x128xf32>
    %1773 = arith.addf %1769, %1772 : vector<32x128xf32>
    %c242 = arith.constant 242 : index
    %1774 = memref.load %arg1[%c242] : memref<315xf32, #tpu.memory_space<smem>>
    %1775 = vector.broadcast %1774 : f32 to vector<32x128xf32>
    %1776 = arith.mulf %1775, %1744 : vector<32x128xf32>
    %1777 = arith.addf %1773, %1776 : vector<32x128xf32>
    %cst_326 = arith.constant dense<0.000000e+00> : vector<32x128xf32>
    %1778 = tpu.matmul %6, %1755, %cst_326 {dimension_numbers = #tpu.dot_dimension_numbers<[1], [0], [0], [1], [0, 0, 1, 1], [], []>} : vector<32x32xf32>, vector<32x128xf32>, vector<32x128xf32> -> vector<32x128xf32>
    %1779 = arith.addf %1778, %1766 : vector<32x128xf32>
    %cst_327 = arith.constant dense<0.000000e+00> : vector<32x128xf32>
    %1780 = tpu.matmul %8, %1777, %cst_327 {dimension_numbers = #tpu.dot_dimension_numbers<[1], [0], [0], [1], [0, 0, 1, 1], [], []>} : vector<32x32xf32>, vector<32x128xf32>, vector<32x128xf32> -> vector<32x128xf32>
    %1781 = arith.addf %1779, %1780 : vector<32x128xf32>
    %1782 = arith.mulf %1781, %4 : vector<32x128xf32>
    %1783 = vector.shape_cast %1782 : vector<32x128xf32> to vector<1x32x128xf32>
    %cst_328 = arith.constant dense<0.000000e+00> : vector<1xf32>
    %1784 = vector.multi_reduction <add>, %1783, %cst_328 [1, 2] : vector<1x32x128xf32> to vector<1xf32>
    %1785 = vector.shape_cast %1784 : vector<1xf32> to vector<1x1x1xf32>
    %1786 = vector.extract %1785[0, 0, 0] : f32 from vector<1x1x1xf32>
    %1787 = arith.mulf %1782, %1782 : vector<32x128xf32>
    %1788 = vector.shape_cast %1787 : vector<32x128xf32> to vector<1x32x128xf32>
    %cst_329 = arith.constant dense<0.000000e+00> : vector<1xf32>
    %1789 = vector.multi_reduction <add>, %1788, %cst_329 [1, 2] : vector<1x32x128xf32> to vector<1xf32>
    %1790 = vector.shape_cast %1789 : vector<1xf32> to vector<1x1x1xf32>
    %1791 = vector.extract %1790[0, 0, 0] : f32 from vector<1x1x1xf32>
    %cst_330 = arith.constant 0.001953125 : f32
    %1792 = arith.mulf %1786, %cst_330 : f32
    %cst_331 = arith.constant 0.001953125 : f32
    %1793 = arith.mulf %1791, %cst_331 : f32
    %1794 = arith.mulf %1792, %1792 : f32
    %1795 = arith.subf %1793, %1794 : f32
    %cst_332 = arith.constant 0.000000e+00 : f32
    %1796 = arith.maximumf %1795, %cst_332 : f32
    %c25_333 = arith.constant 25 : index
    %1797 = memref.load %arg3[%c25_333] : memref<33xf32, #tpu.memory_space<smem>>
    %cst_334 = arith.constant 9.99999974E-6 : f32
    %1798 = arith.addf %1796, %cst_334 : f32
    %1799 = math.rsqrt %1798 : f32
    %1800 = arith.mulf %1797, %1799 : f32
    %c25_335 = arith.constant 25 : index
    %1801 = memref.load %arg4[%c25_335] : memref<33xf32, #tpu.memory_space<smem>>
    %1802 = arith.mulf %1792, %1800 : f32
    %1803 = arith.subf %1801, %1802 : f32
    %1804 = vector.broadcast %1800 : f32 to vector<32x128xf32>
    %1805 = arith.mulf %1782, %1804 : vector<32x128xf32>
    %1806 = vector.broadcast %1803 : f32 to vector<32x128xf32>
    %1807 = arith.mulf %1806, %4 : vector<32x128xf32>
    %1808 = arith.addf %1805, %1807 : vector<32x128xf32>
    %1809 = arith.addf %1674, %1808 : vector<32x128xf32>
    %c1_i32_336 = arith.constant 1 : i32
    %1810 = tpu.dynamic_rotate %1809 by %c1_i32_336 dim 1 : vector<32x128xf32>, i32 -> vector<32x128xf32>
    %c127_i32_337 = arith.constant 127 : i32
    %1811 = tpu.dynamic_rotate %1809 by %c127_i32_337 dim 1 : vector<32x128xf32>, i32 -> vector<32x128xf32>
    %c243 = arith.constant 243 : index
    %1812 = memref.load %arg1[%c243] : memref<315xf32, #tpu.memory_space<smem>>
    %1813 = vector.broadcast %1812 : f32 to vector<32x128xf32>
    %1814 = arith.mulf %1813, %1810 : vector<32x128xf32>
    %c244 = arith.constant 244 : index
    %1815 = memref.load %arg1[%c244] : memref<315xf32, #tpu.memory_space<smem>>
    %1816 = vector.broadcast %1815 : f32 to vector<32x128xf32>
    %1817 = arith.mulf %1816, %1809 : vector<32x128xf32>
    %1818 = arith.addf %1814, %1817 : vector<32x128xf32>
    %c245 = arith.constant 245 : index
    %1819 = memref.load %arg1[%c245] : memref<315xf32, #tpu.memory_space<smem>>
    %1820 = vector.broadcast %1819 : f32 to vector<32x128xf32>
    %1821 = arith.mulf %1820, %1811 : vector<32x128xf32>
    %1822 = arith.addf %1818, %1821 : vector<32x128xf32>
    %c246 = arith.constant 246 : index
    %1823 = memref.load %arg1[%c246] : memref<315xf32, #tpu.memory_space<smem>>
    %1824 = vector.broadcast %1823 : f32 to vector<32x128xf32>
    %1825 = arith.mulf %1824, %1810 : vector<32x128xf32>
    %c247 = arith.constant 247 : index
    %1826 = memref.load %arg1[%c247] : memref<315xf32, #tpu.memory_space<smem>>
    %1827 = vector.broadcast %1826 : f32 to vector<32x128xf32>
    %1828 = arith.mulf %1827, %1809 : vector<32x128xf32>
    %1829 = arith.addf %1825, %1828 : vector<32x128xf32>
    %c248 = arith.constant 248 : index
    %1830 = memref.load %arg1[%c248] : memref<315xf32, #tpu.memory_space<smem>>
    %1831 = vector.broadcast %1830 : f32 to vector<32x128xf32>
    %1832 = arith.mulf %1831, %1811 : vector<32x128xf32>
    %1833 = arith.addf %1829, %1832 : vector<32x128xf32>
    %c249 = arith.constant 249 : index
    %1834 = memref.load %arg1[%c249] : memref<315xf32, #tpu.memory_space<smem>>
    %1835 = vector.broadcast %1834 : f32 to vector<32x128xf32>
    %1836 = arith.mulf %1835, %1810 : vector<32x128xf32>
    %c250 = arith.constant 250 : index
    %1837 = memref.load %arg1[%c250] : memref<315xf32, #tpu.memory_space<smem>>
    %1838 = vector.broadcast %1837 : f32 to vector<32x128xf32>
    %1839 = arith.mulf %1838, %1809 : vector<32x128xf32>
    %1840 = arith.addf %1836, %1839 : vector<32x128xf32>
    %c251 = arith.constant 251 : index
    %1841 = memref.load %arg1[%c251] : memref<315xf32, #tpu.memory_space<smem>>
    %1842 = vector.broadcast %1841 : f32 to vector<32x128xf32>
    %1843 = arith.mulf %1842, %1811 : vector<32x128xf32>
    %1844 = arith.addf %1840, %1843 : vector<32x128xf32>
    %cst_338 = arith.constant dense<0.000000e+00> : vector<32x128xf32>
    %1845 = tpu.matmul %6, %1822, %cst_338 {dimension_numbers = #tpu.dot_dimension_numbers<[1], [0], [0], [1], [0, 0, 1, 1], [], []>} : vector<32x32xf32>, vector<32x128xf32>, vector<32x128xf32> -> vector<32x128xf32>
    %1846 = arith.addf %1845, %1833 : vector<32x128xf32>
    %cst_339 = arith.constant dense<0.000000e+00> : vector<32x128xf32>
    %1847 = tpu.matmul %8, %1844, %cst_339 {dimension_numbers = #tpu.dot_dimension_numbers<[1], [0], [0], [1], [0, 0, 1, 1], [], []>} : vector<32x32xf32>, vector<32x128xf32>, vector<32x128xf32> -> vector<32x128xf32>
    %1848 = arith.addf %1846, %1847 : vector<32x128xf32>
    %1849 = arith.mulf %1848, %4 : vector<32x128xf32>
    %1850 = vector.shape_cast %1849 : vector<32x128xf32> to vector<1x32x128xf32>
    %cst_340 = arith.constant dense<0.000000e+00> : vector<1xf32>
    %1851 = vector.multi_reduction <add>, %1850, %cst_340 [1, 2] : vector<1x32x128xf32> to vector<1xf32>
    %1852 = vector.shape_cast %1851 : vector<1xf32> to vector<1x1x1xf32>
    %1853 = vector.extract %1852[0, 0, 0] : f32 from vector<1x1x1xf32>
    %1854 = arith.mulf %1849, %1849 : vector<32x128xf32>
    %1855 = vector.shape_cast %1854 : vector<32x128xf32> to vector<1x32x128xf32>
    %cst_341 = arith.constant dense<0.000000e+00> : vector<1xf32>
    %1856 = vector.multi_reduction <add>, %1855, %cst_341 [1, 2] : vector<1x32x128xf32> to vector<1xf32>
    %1857 = vector.shape_cast %1856 : vector<1xf32> to vector<1x1x1xf32>
    %1858 = vector.extract %1857[0, 0, 0] : f32 from vector<1x1x1xf32>
    %cst_342 = arith.constant 0.001953125 : f32
    %1859 = arith.mulf %1853, %cst_342 : f32
    %cst_343 = arith.constant 0.001953125 : f32
    %1860 = arith.mulf %1858, %cst_343 : f32
    %1861 = arith.mulf %1859, %1859 : f32
    %1862 = arith.subf %1860, %1861 : f32
    %cst_344 = arith.constant 0.000000e+00 : f32
    %1863 = arith.maximumf %1862, %cst_344 : f32
    %c26_345 = arith.constant 26 : index
    %1864 = memref.load %arg3[%c26_345] : memref<33xf32, #tpu.memory_space<smem>>
    %cst_346 = arith.constant 9.99999974E-6 : f32
    %1865 = arith.addf %1863, %cst_346 : f32
    %1866 = math.rsqrt %1865 : f32
    %1867 = arith.mulf %1864, %1866 : f32
    %c26_347 = arith.constant 26 : index
    %1868 = memref.load %arg4[%c26_347] : memref<33xf32, #tpu.memory_space<smem>>
    %1869 = arith.mulf %1859, %1867 : f32
    %1870 = arith.subf %1868, %1869 : f32
    %1871 = vector.broadcast %1867 : f32 to vector<32x128xf32>
    %1872 = arith.mulf %1849, %1871 : vector<32x128xf32>
    %1873 = vector.broadcast %1870 : f32 to vector<32x128xf32>
    %1874 = arith.mulf %1873, %4 : vector<32x128xf32>
    %1875 = arith.addf %1872, %1874 : vector<32x128xf32>
    %cst_348 = arith.constant 0.000000e+00 : f32
    %1876 = vector.broadcast %cst_348 : f32 to vector<32x128xf32>
    %1877 = arith.maximumf %1875, %1876 : vector<32x128xf32>
    %c1_i32_349 = arith.constant 1 : i32
    %1878 = tpu.dynamic_rotate %1877 by %c1_i32_349 dim 1 : vector<32x128xf32>, i32 -> vector<32x128xf32>
    %c127_i32_350 = arith.constant 127 : i32
    %1879 = tpu.dynamic_rotate %1877 by %c127_i32_350 dim 1 : vector<32x128xf32>, i32 -> vector<32x128xf32>
    %c252 = arith.constant 252 : index
    %1880 = memref.load %arg1[%c252] : memref<315xf32, #tpu.memory_space<smem>>
    %1881 = vector.broadcast %1880 : f32 to vector<32x128xf32>
    %1882 = arith.mulf %1881, %1878 : vector<32x128xf32>
    %c253 = arith.constant 253 : index
    %1883 = memref.load %arg1[%c253] : memref<315xf32, #tpu.memory_space<smem>>
    %1884 = vector.broadcast %1883 : f32 to vector<32x128xf32>
    %1885 = arith.mulf %1884, %1877 : vector<32x128xf32>
    %1886 = arith.addf %1882, %1885 : vector<32x128xf32>
    %c254 = arith.constant 254 : index
    %1887 = memref.load %arg1[%c254] : memref<315xf32, #tpu.memory_space<smem>>
    %1888 = vector.broadcast %1887 : f32 to vector<32x128xf32>
    %1889 = arith.mulf %1888, %1879 : vector<32x128xf32>
    %1890 = arith.addf %1886, %1889 : vector<32x128xf32>
    %c255 = arith.constant 255 : index
    %1891 = memref.load %arg1[%c255] : memref<315xf32, #tpu.memory_space<smem>>
    %1892 = vector.broadcast %1891 : f32 to vector<32x128xf32>
    %1893 = arith.mulf %1892, %1878 : vector<32x128xf32>
    %c256 = arith.constant 256 : index
    %1894 = memref.load %arg1[%c256] : memref<315xf32, #tpu.memory_space<smem>>
    %1895 = vector.broadcast %1894 : f32 to vector<32x128xf32>
    %1896 = arith.mulf %1895, %1877 : vector<32x128xf32>
    %1897 = arith.addf %1893, %1896 : vector<32x128xf32>
    %c257 = arith.constant 257 : index
    %1898 = memref.load %arg1[%c257] : memref<315xf32, #tpu.memory_space<smem>>
    %1899 = vector.broadcast %1898 : f32 to vector<32x128xf32>
    %1900 = arith.mulf %1899, %1879 : vector<32x128xf32>
    %1901 = arith.addf %1897, %1900 : vector<32x128xf32>
    %c258 = arith.constant 258 : index
    %1902 = memref.load %arg1[%c258] : memref<315xf32, #tpu.memory_space<smem>>
    %1903 = vector.broadcast %1902 : f32 to vector<32x128xf32>
    %1904 = arith.mulf %1903, %1878 : vector<32x128xf32>
    %c259 = arith.constant 259 : index
    %1905 = memref.load %arg1[%c259] : memref<315xf32, #tpu.memory_space<smem>>
    %1906 = vector.broadcast %1905 : f32 to vector<32x128xf32>
    %1907 = arith.mulf %1906, %1877 : vector<32x128xf32>
    %1908 = arith.addf %1904, %1907 : vector<32x128xf32>
    %c260 = arith.constant 260 : index
    %1909 = memref.load %arg1[%c260] : memref<315xf32, #tpu.memory_space<smem>>
    %1910 = vector.broadcast %1909 : f32 to vector<32x128xf32>
    %1911 = arith.mulf %1910, %1879 : vector<32x128xf32>
    %1912 = arith.addf %1908, %1911 : vector<32x128xf32>
    %cst_351 = arith.constant dense<0.000000e+00> : vector<32x128xf32>
    %1913 = tpu.matmul %6, %1890, %cst_351 {dimension_numbers = #tpu.dot_dimension_numbers<[1], [0], [0], [1], [0, 0, 1, 1], [], []>} : vector<32x32xf32>, vector<32x128xf32>, vector<32x128xf32> -> vector<32x128xf32>
    %1914 = arith.addf %1913, %1901 : vector<32x128xf32>
    %cst_352 = arith.constant dense<0.000000e+00> : vector<32x128xf32>
    %1915 = tpu.matmul %8, %1912, %cst_352 {dimension_numbers = #tpu.dot_dimension_numbers<[1], [0], [0], [1], [0, 0, 1, 1], [], []>} : vector<32x32xf32>, vector<32x128xf32>, vector<32x128xf32> -> vector<32x128xf32>
    %1916 = arith.addf %1914, %1915 : vector<32x128xf32>
    %1917 = arith.mulf %1916, %4 : vector<32x128xf32>
    %1918 = vector.shape_cast %1917 : vector<32x128xf32> to vector<1x32x128xf32>
    %cst_353 = arith.constant dense<0.000000e+00> : vector<1xf32>
    %1919 = vector.multi_reduction <add>, %1918, %cst_353 [1, 2] : vector<1x32x128xf32> to vector<1xf32>
    %1920 = vector.shape_cast %1919 : vector<1xf32> to vector<1x1x1xf32>
    %1921 = vector.extract %1920[0, 0, 0] : f32 from vector<1x1x1xf32>
    %1922 = arith.mulf %1917, %1917 : vector<32x128xf32>
    %1923 = vector.shape_cast %1922 : vector<32x128xf32> to vector<1x32x128xf32>
    %cst_354 = arith.constant dense<0.000000e+00> : vector<1xf32>
    %1924 = vector.multi_reduction <add>, %1923, %cst_354 [1, 2] : vector<1x32x128xf32> to vector<1xf32>
    %1925 = vector.shape_cast %1924 : vector<1xf32> to vector<1x1x1xf32>
    %1926 = vector.extract %1925[0, 0, 0] : f32 from vector<1x1x1xf32>
    %cst_355 = arith.constant 0.001953125 : f32
    %1927 = arith.mulf %1921, %cst_355 : f32
    %cst_356 = arith.constant 0.001953125 : f32
    %1928 = arith.mulf %1926, %cst_356 : f32
    %1929 = arith.mulf %1927, %1927 : f32
    %1930 = arith.subf %1928, %1929 : f32
    %cst_357 = arith.constant 0.000000e+00 : f32
    %1931 = arith.maximumf %1930, %cst_357 : f32
    %c27_358 = arith.constant 27 : index
    %1932 = memref.load %arg3[%c27_358] : memref<33xf32, #tpu.memory_space<smem>>
    %cst_359 = arith.constant 9.99999974E-6 : f32
    %1933 = arith.addf %1931, %cst_359 : f32
    %1934 = math.rsqrt %1933 : f32
    %1935 = arith.mulf %1932, %1934 : f32
    %c27_360 = arith.constant 27 : index
    %1936 = memref.load %arg4[%c27_360] : memref<33xf32, #tpu.memory_space<smem>>
    %1937 = arith.mulf %1927, %1935 : f32
    %1938 = arith.subf %1936, %1937 : f32
    %1939 = vector.broadcast %1935 : f32 to vector<32x128xf32>
    %1940 = arith.mulf %1917, %1939 : vector<32x128xf32>
    %1941 = vector.broadcast %1938 : f32 to vector<32x128xf32>
    %1942 = arith.mulf %1941, %4 : vector<32x128xf32>
    %1943 = arith.addf %1940, %1942 : vector<32x128xf32>
    %1944 = arith.addf %1809, %1943 : vector<32x128xf32>
    %c1_i32_361 = arith.constant 1 : i32
    %1945 = tpu.dynamic_rotate %1944 by %c1_i32_361 dim 1 : vector<32x128xf32>, i32 -> vector<32x128xf32>
    %c127_i32_362 = arith.constant 127 : i32
    %1946 = tpu.dynamic_rotate %1944 by %c127_i32_362 dim 1 : vector<32x128xf32>, i32 -> vector<32x128xf32>
    %c261 = arith.constant 261 : index
    %1947 = memref.load %arg1[%c261] : memref<315xf32, #tpu.memory_space<smem>>
    %1948 = vector.broadcast %1947 : f32 to vector<32x128xf32>
    %1949 = arith.mulf %1948, %1945 : vector<32x128xf32>
    %c262 = arith.constant 262 : index
    %1950 = memref.load %arg1[%c262] : memref<315xf32, #tpu.memory_space<smem>>
    %1951 = vector.broadcast %1950 : f32 to vector<32x128xf32>
    %1952 = arith.mulf %1951, %1944 : vector<32x128xf32>
    %1953 = arith.addf %1949, %1952 : vector<32x128xf32>
    %c263 = arith.constant 263 : index
    %1954 = memref.load %arg1[%c263] : memref<315xf32, #tpu.memory_space<smem>>
    %1955 = vector.broadcast %1954 : f32 to vector<32x128xf32>
    %1956 = arith.mulf %1955, %1946 : vector<32x128xf32>
    %1957 = arith.addf %1953, %1956 : vector<32x128xf32>
    %c264 = arith.constant 264 : index
    %1958 = memref.load %arg1[%c264] : memref<315xf32, #tpu.memory_space<smem>>
    %1959 = vector.broadcast %1958 : f32 to vector<32x128xf32>
    %1960 = arith.mulf %1959, %1945 : vector<32x128xf32>
    %c265 = arith.constant 265 : index
    %1961 = memref.load %arg1[%c265] : memref<315xf32, #tpu.memory_space<smem>>
    %1962 = vector.broadcast %1961 : f32 to vector<32x128xf32>
    %1963 = arith.mulf %1962, %1944 : vector<32x128xf32>
    %1964 = arith.addf %1960, %1963 : vector<32x128xf32>
    %c266 = arith.constant 266 : index
    %1965 = memref.load %arg1[%c266] : memref<315xf32, #tpu.memory_space<smem>>
    %1966 = vector.broadcast %1965 : f32 to vector<32x128xf32>
    %1967 = arith.mulf %1966, %1946 : vector<32x128xf32>
    %1968 = arith.addf %1964, %1967 : vector<32x128xf32>
    %c267 = arith.constant 267 : index
    %1969 = memref.load %arg1[%c267] : memref<315xf32, #tpu.memory_space<smem>>
    %1970 = vector.broadcast %1969 : f32 to vector<32x128xf32>
    %1971 = arith.mulf %1970, %1945 : vector<32x128xf32>
    %c268 = arith.constant 268 : index
    %1972 = memref.load %arg1[%c268] : memref<315xf32, #tpu.memory_space<smem>>
    %1973 = vector.broadcast %1972 : f32 to vector<32x128xf32>
    %1974 = arith.mulf %1973, %1944 : vector<32x128xf32>
    %1975 = arith.addf %1971, %1974 : vector<32x128xf32>
    %c269 = arith.constant 269 : index
    %1976 = memref.load %arg1[%c269] : memref<315xf32, #tpu.memory_space<smem>>
    %1977 = vector.broadcast %1976 : f32 to vector<32x128xf32>
    %1978 = arith.mulf %1977, %1946 : vector<32x128xf32>
    %1979 = arith.addf %1975, %1978 : vector<32x128xf32>
    %cst_363 = arith.constant dense<0.000000e+00> : vector<32x128xf32>
    %1980 = tpu.matmul %6, %1957, %cst_363 {dimension_numbers = #tpu.dot_dimension_numbers<[1], [0], [0], [1], [0, 0, 1, 1], [], []>} : vector<32x32xf32>, vector<32x128xf32>, vector<32x128xf32> -> vector<32x128xf32>
    %1981 = arith.addf %1980, %1968 : vector<32x128xf32>
    %cst_364 = arith.constant dense<0.000000e+00> : vector<32x128xf32>
    %1982 = tpu.matmul %8, %1979, %cst_364 {dimension_numbers = #tpu.dot_dimension_numbers<[1], [0], [0], [1], [0, 0, 1, 1], [], []>} : vector<32x32xf32>, vector<32x128xf32>, vector<32x128xf32> -> vector<32x128xf32>
    %1983 = arith.addf %1981, %1982 : vector<32x128xf32>
    %1984 = arith.mulf %1983, %4 : vector<32x128xf32>
    %1985 = vector.shape_cast %1984 : vector<32x128xf32> to vector<1x32x128xf32>
    %cst_365 = arith.constant dense<0.000000e+00> : vector<1xf32>
    %1986 = vector.multi_reduction <add>, %1985, %cst_365 [1, 2] : vector<1x32x128xf32> to vector<1xf32>
    %1987 = vector.shape_cast %1986 : vector<1xf32> to vector<1x1x1xf32>
    %1988 = vector.extract %1987[0, 0, 0] : f32 from vector<1x1x1xf32>
    %1989 = arith.mulf %1984, %1984 : vector<32x128xf32>
    %1990 = vector.shape_cast %1989 : vector<32x128xf32> to vector<1x32x128xf32>
    %cst_366 = arith.constant dense<0.000000e+00> : vector<1xf32>
    %1991 = vector.multi_reduction <add>, %1990, %cst_366 [1, 2] : vector<1x32x128xf32> to vector<1xf32>
    %1992 = vector.shape_cast %1991 : vector<1xf32> to vector<1x1x1xf32>
    %1993 = vector.extract %1992[0, 0, 0] : f32 from vector<1x1x1xf32>
    %cst_367 = arith.constant 0.001953125 : f32
    %1994 = arith.mulf %1988, %cst_367 : f32
    %cst_368 = arith.constant 0.001953125 : f32
    %1995 = arith.mulf %1993, %cst_368 : f32
    %1996 = arith.mulf %1994, %1994 : f32
    %1997 = arith.subf %1995, %1996 : f32
    %cst_369 = arith.constant 0.000000e+00 : f32
    %1998 = arith.maximumf %1997, %cst_369 : f32
    %c28_370 = arith.constant 28 : index
    %1999 = memref.load %arg3[%c28_370] : memref<33xf32, #tpu.memory_space<smem>>
    %cst_371 = arith.constant 9.99999974E-6 : f32
    %2000 = arith.addf %1998, %cst_371 : f32
    %2001 = math.rsqrt %2000 : f32
    %2002 = arith.mulf %1999, %2001 : f32
    %c28_372 = arith.constant 28 : index
    %2003 = memref.load %arg4[%c28_372] : memref<33xf32, #tpu.memory_space<smem>>
    %2004 = arith.mulf %1994, %2002 : f32
    %2005 = arith.subf %2003, %2004 : f32
    %2006 = vector.broadcast %2002 : f32 to vector<32x128xf32>
    %2007 = arith.mulf %1984, %2006 : vector<32x128xf32>
    %2008 = vector.broadcast %2005 : f32 to vector<32x128xf32>
    %2009 = arith.mulf %2008, %4 : vector<32x128xf32>
    %2010 = arith.addf %2007, %2009 : vector<32x128xf32>
    %cst_373 = arith.constant 0.000000e+00 : f32
    %2011 = vector.broadcast %cst_373 : f32 to vector<32x128xf32>
    %2012 = arith.maximumf %2010, %2011 : vector<32x128xf32>
    %c1_i32_374 = arith.constant 1 : i32
    %2013 = tpu.dynamic_rotate %2012 by %c1_i32_374 dim 1 : vector<32x128xf32>, i32 -> vector<32x128xf32>
    %c127_i32_375 = arith.constant 127 : i32
    %2014 = tpu.dynamic_rotate %2012 by %c127_i32_375 dim 1 : vector<32x128xf32>, i32 -> vector<32x128xf32>
    %c270 = arith.constant 270 : index
    %2015 = memref.load %arg1[%c270] : memref<315xf32, #tpu.memory_space<smem>>
    %2016 = vector.broadcast %2015 : f32 to vector<32x128xf32>
    %2017 = arith.mulf %2016, %2013 : vector<32x128xf32>
    %c271 = arith.constant 271 : index
    %2018 = memref.load %arg1[%c271] : memref<315xf32, #tpu.memory_space<smem>>
    %2019 = vector.broadcast %2018 : f32 to vector<32x128xf32>
    %2020 = arith.mulf %2019, %2012 : vector<32x128xf32>
    %2021 = arith.addf %2017, %2020 : vector<32x128xf32>
    %c272 = arith.constant 272 : index
    %2022 = memref.load %arg1[%c272] : memref<315xf32, #tpu.memory_space<smem>>
    %2023 = vector.broadcast %2022 : f32 to vector<32x128xf32>
    %2024 = arith.mulf %2023, %2014 : vector<32x128xf32>
    %2025 = arith.addf %2021, %2024 : vector<32x128xf32>
    %c273 = arith.constant 273 : index
    %2026 = memref.load %arg1[%c273] : memref<315xf32, #tpu.memory_space<smem>>
    %2027 = vector.broadcast %2026 : f32 to vector<32x128xf32>
    %2028 = arith.mulf %2027, %2013 : vector<32x128xf32>
    %c274 = arith.constant 274 : index
    %2029 = memref.load %arg1[%c274] : memref<315xf32, #tpu.memory_space<smem>>
    %2030 = vector.broadcast %2029 : f32 to vector<32x128xf32>
    %2031 = arith.mulf %2030, %2012 : vector<32x128xf32>
    %2032 = arith.addf %2028, %2031 : vector<32x128xf32>
    %c275 = arith.constant 275 : index
    %2033 = memref.load %arg1[%c275] : memref<315xf32, #tpu.memory_space<smem>>
    %2034 = vector.broadcast %2033 : f32 to vector<32x128xf32>
    %2035 = arith.mulf %2034, %2014 : vector<32x128xf32>
    %2036 = arith.addf %2032, %2035 : vector<32x128xf32>
    %c276 = arith.constant 276 : index
    %2037 = memref.load %arg1[%c276] : memref<315xf32, #tpu.memory_space<smem>>
    %2038 = vector.broadcast %2037 : f32 to vector<32x128xf32>
    %2039 = arith.mulf %2038, %2013 : vector<32x128xf32>
    %c277 = arith.constant 277 : index
    %2040 = memref.load %arg1[%c277] : memref<315xf32, #tpu.memory_space<smem>>
    %2041 = vector.broadcast %2040 : f32 to vector<32x128xf32>
    %2042 = arith.mulf %2041, %2012 : vector<32x128xf32>
    %2043 = arith.addf %2039, %2042 : vector<32x128xf32>
    %c278 = arith.constant 278 : index
    %2044 = memref.load %arg1[%c278] : memref<315xf32, #tpu.memory_space<smem>>
    %2045 = vector.broadcast %2044 : f32 to vector<32x128xf32>
    %2046 = arith.mulf %2045, %2014 : vector<32x128xf32>
    %2047 = arith.addf %2043, %2046 : vector<32x128xf32>
    %cst_376 = arith.constant dense<0.000000e+00> : vector<32x128xf32>
    %2048 = tpu.matmul %6, %2025, %cst_376 {dimension_numbers = #tpu.dot_dimension_numbers<[1], [0], [0], [1], [0, 0, 1, 1], [], []>} : vector<32x32xf32>, vector<32x128xf32>, vector<32x128xf32> -> vector<32x128xf32>
    %2049 = arith.addf %2048, %2036 : vector<32x128xf32>
    %cst_377 = arith.constant dense<0.000000e+00> : vector<32x128xf32>
    %2050 = tpu.matmul %8, %2047, %cst_377 {dimension_numbers = #tpu.dot_dimension_numbers<[1], [0], [0], [1], [0, 0, 1, 1], [], []>} : vector<32x32xf32>, vector<32x128xf32>, vector<32x128xf32> -> vector<32x128xf32>
    %2051 = arith.addf %2049, %2050 : vector<32x128xf32>
    %2052 = arith.mulf %2051, %4 : vector<32x128xf32>
    %2053 = vector.shape_cast %2052 : vector<32x128xf32> to vector<1x32x128xf32>
    %cst_378 = arith.constant dense<0.000000e+00> : vector<1xf32>
    %2054 = vector.multi_reduction <add>, %2053, %cst_378 [1, 2] : vector<1x32x128xf32> to vector<1xf32>
    %2055 = vector.shape_cast %2054 : vector<1xf32> to vector<1x1x1xf32>
    %2056 = vector.extract %2055[0, 0, 0] : f32 from vector<1x1x1xf32>
    %2057 = arith.mulf %2052, %2052 : vector<32x128xf32>
    %2058 = vector.shape_cast %2057 : vector<32x128xf32> to vector<1x32x128xf32>
    %cst_379 = arith.constant dense<0.000000e+00> : vector<1xf32>
    %2059 = vector.multi_reduction <add>, %2058, %cst_379 [1, 2] : vector<1x32x128xf32> to vector<1xf32>
    %2060 = vector.shape_cast %2059 : vector<1xf32> to vector<1x1x1xf32>
    %2061 = vector.extract %2060[0, 0, 0] : f32 from vector<1x1x1xf32>
    %cst_380 = arith.constant 0.001953125 : f32
    %2062 = arith.mulf %2056, %cst_380 : f32
    %cst_381 = arith.constant 0.001953125 : f32
    %2063 = arith.mulf %2061, %cst_381 : f32
    %2064 = arith.mulf %2062, %2062 : f32
    %2065 = arith.subf %2063, %2064 : f32
    %cst_382 = arith.constant 0.000000e+00 : f32
    %2066 = arith.maximumf %2065, %cst_382 : f32
    %c29_383 = arith.constant 29 : index
    %2067 = memref.load %arg3[%c29_383] : memref<33xf32, #tpu.memory_space<smem>>
    %cst_384 = arith.constant 9.99999974E-6 : f32
    %2068 = arith.addf %2066, %cst_384 : f32
    %2069 = math.rsqrt %2068 : f32
    %2070 = arith.mulf %2067, %2069 : f32
    %c29_385 = arith.constant 29 : index
    %2071 = memref.load %arg4[%c29_385] : memref<33xf32, #tpu.memory_space<smem>>
    %2072 = arith.mulf %2062, %2070 : f32
    %2073 = arith.subf %2071, %2072 : f32
    %2074 = vector.broadcast %2070 : f32 to vector<32x128xf32>
    %2075 = arith.mulf %2052, %2074 : vector<32x128xf32>
    %2076 = vector.broadcast %2073 : f32 to vector<32x128xf32>
    %2077 = arith.mulf %2076, %4 : vector<32x128xf32>
    %2078 = arith.addf %2075, %2077 : vector<32x128xf32>
    %2079 = arith.addf %1944, %2078 : vector<32x128xf32>
    %c1_i32_386 = arith.constant 1 : i32
    %2080 = tpu.dynamic_rotate %2079 by %c1_i32_386 dim 1 : vector<32x128xf32>, i32 -> vector<32x128xf32>
    %c127_i32_387 = arith.constant 127 : i32
    %2081 = tpu.dynamic_rotate %2079 by %c127_i32_387 dim 1 : vector<32x128xf32>, i32 -> vector<32x128xf32>
    %c279 = arith.constant 279 : index
    %2082 = memref.load %arg1[%c279] : memref<315xf32, #tpu.memory_space<smem>>
    %2083 = vector.broadcast %2082 : f32 to vector<32x128xf32>
    %2084 = arith.mulf %2083, %2080 : vector<32x128xf32>
    %c280 = arith.constant 280 : index
    %2085 = memref.load %arg1[%c280] : memref<315xf32, #tpu.memory_space<smem>>
    %2086 = vector.broadcast %2085 : f32 to vector<32x128xf32>
    %2087 = arith.mulf %2086, %2079 : vector<32x128xf32>
    %2088 = arith.addf %2084, %2087 : vector<32x128xf32>
    %c281 = arith.constant 281 : index
    %2089 = memref.load %arg1[%c281] : memref<315xf32, #tpu.memory_space<smem>>
    %2090 = vector.broadcast %2089 : f32 to vector<32x128xf32>
    %2091 = arith.mulf %2090, %2081 : vector<32x128xf32>
    %2092 = arith.addf %2088, %2091 : vector<32x128xf32>
    %c282 = arith.constant 282 : index
    %2093 = memref.load %arg1[%c282] : memref<315xf32, #tpu.memory_space<smem>>
    %2094 = vector.broadcast %2093 : f32 to vector<32x128xf32>
    %2095 = arith.mulf %2094, %2080 : vector<32x128xf32>
    %c283 = arith.constant 283 : index
    %2096 = memref.load %arg1[%c283] : memref<315xf32, #tpu.memory_space<smem>>
    %2097 = vector.broadcast %2096 : f32 to vector<32x128xf32>
    %2098 = arith.mulf %2097, %2079 : vector<32x128xf32>
    %2099 = arith.addf %2095, %2098 : vector<32x128xf32>
    %c284 = arith.constant 284 : index
    %2100 = memref.load %arg1[%c284] : memref<315xf32, #tpu.memory_space<smem>>
    %2101 = vector.broadcast %2100 : f32 to vector<32x128xf32>
    %2102 = arith.mulf %2101, %2081 : vector<32x128xf32>
    %2103 = arith.addf %2099, %2102 : vector<32x128xf32>
    %c285 = arith.constant 285 : index
    %2104 = memref.load %arg1[%c285] : memref<315xf32, #tpu.memory_space<smem>>
    %2105 = vector.broadcast %2104 : f32 to vector<32x128xf32>
    %2106 = arith.mulf %2105, %2080 : vector<32x128xf32>
    %c286 = arith.constant 286 : index
    %2107 = memref.load %arg1[%c286] : memref<315xf32, #tpu.memory_space<smem>>
    %2108 = vector.broadcast %2107 : f32 to vector<32x128xf32>
    %2109 = arith.mulf %2108, %2079 : vector<32x128xf32>
    %2110 = arith.addf %2106, %2109 : vector<32x128xf32>
    %c287 = arith.constant 287 : index
    %2111 = memref.load %arg1[%c287] : memref<315xf32, #tpu.memory_space<smem>>
    %2112 = vector.broadcast %2111 : f32 to vector<32x128xf32>
    %2113 = arith.mulf %2112, %2081 : vector<32x128xf32>
    %2114 = arith.addf %2110, %2113 : vector<32x128xf32>
    %cst_388 = arith.constant dense<0.000000e+00> : vector<32x128xf32>
    %2115 = tpu.matmul %6, %2092, %cst_388 {dimension_numbers = #tpu.dot_dimension_numbers<[1], [0], [0], [1], [0, 0, 1, 1], [], []>} : vector<32x32xf32>, vector<32x128xf32>, vector<32x128xf32> -> vector<32x128xf32>
    %2116 = arith.addf %2115, %2103 : vector<32x128xf32>
    %cst_389 = arith.constant dense<0.000000e+00> : vector<32x128xf32>
    %2117 = tpu.matmul %8, %2114, %cst_389 {dimension_numbers = #tpu.dot_dimension_numbers<[1], [0], [0], [1], [0, 0, 1, 1], [], []>} : vector<32x32xf32>, vector<32x128xf32>, vector<32x128xf32> -> vector<32x128xf32>
    %2118 = arith.addf %2116, %2117 : vector<32x128xf32>
    %2119 = arith.mulf %2118, %4 : vector<32x128xf32>
    %2120 = vector.shape_cast %2119 : vector<32x128xf32> to vector<1x32x128xf32>
    %cst_390 = arith.constant dense<0.000000e+00> : vector<1xf32>
    %2121 = vector.multi_reduction <add>, %2120, %cst_390 [1, 2] : vector<1x32x128xf32> to vector<1xf32>
    %2122 = vector.shape_cast %2121 : vector<1xf32> to vector<1x1x1xf32>
    %2123 = vector.extract %2122[0, 0, 0] : f32 from vector<1x1x1xf32>
    %2124 = arith.mulf %2119, %2119 : vector<32x128xf32>
    %2125 = vector.shape_cast %2124 : vector<32x128xf32> to vector<1x32x128xf32>
    %cst_391 = arith.constant dense<0.000000e+00> : vector<1xf32>
    %2126 = vector.multi_reduction <add>, %2125, %cst_391 [1, 2] : vector<1x32x128xf32> to vector<1xf32>
    %2127 = vector.shape_cast %2126 : vector<1xf32> to vector<1x1x1xf32>
    %2128 = vector.extract %2127[0, 0, 0] : f32 from vector<1x1x1xf32>
    %cst_392 = arith.constant 0.001953125 : f32
    %2129 = arith.mulf %2123, %cst_392 : f32
    %cst_393 = arith.constant 0.001953125 : f32
    %2130 = arith.mulf %2128, %cst_393 : f32
    %2131 = arith.mulf %2129, %2129 : f32
    %2132 = arith.subf %2130, %2131 : f32
    %cst_394 = arith.constant 0.000000e+00 : f32
    %2133 = arith.maximumf %2132, %cst_394 : f32
    %c30_395 = arith.constant 30 : index
    %2134 = memref.load %arg3[%c30_395] : memref<33xf32, #tpu.memory_space<smem>>
    %cst_396 = arith.constant 9.99999974E-6 : f32
    %2135 = arith.addf %2133, %cst_396 : f32
    %2136 = math.rsqrt %2135 : f32
    %2137 = arith.mulf %2134, %2136 : f32
    %c30_397 = arith.constant 30 : index
    %2138 = memref.load %arg4[%c30_397] : memref<33xf32, #tpu.memory_space<smem>>
    %2139 = arith.mulf %2129, %2137 : f32
    %2140 = arith.subf %2138, %2139 : f32
    %2141 = vector.broadcast %2137 : f32 to vector<32x128xf32>
    %2142 = arith.mulf %2119, %2141 : vector<32x128xf32>
    %2143 = vector.broadcast %2140 : f32 to vector<32x128xf32>
    %2144 = arith.mulf %2143, %4 : vector<32x128xf32>
    %2145 = arith.addf %2142, %2144 : vector<32x128xf32>
    %cst_398 = arith.constant 0.000000e+00 : f32
    %2146 = vector.broadcast %cst_398 : f32 to vector<32x128xf32>
    %2147 = arith.maximumf %2145, %2146 : vector<32x128xf32>
    %c1_i32_399 = arith.constant 1 : i32
    %2148 = tpu.dynamic_rotate %2147 by %c1_i32_399 dim 1 : vector<32x128xf32>, i32 -> vector<32x128xf32>
    %c127_i32_400 = arith.constant 127 : i32
    %2149 = tpu.dynamic_rotate %2147 by %c127_i32_400 dim 1 : vector<32x128xf32>, i32 -> vector<32x128xf32>
    %c288 = arith.constant 288 : index
    %2150 = memref.load %arg1[%c288] : memref<315xf32, #tpu.memory_space<smem>>
    %2151 = vector.broadcast %2150 : f32 to vector<32x128xf32>
    %2152 = arith.mulf %2151, %2148 : vector<32x128xf32>
    %c289 = arith.constant 289 : index
    %2153 = memref.load %arg1[%c289] : memref<315xf32, #tpu.memory_space<smem>>
    %2154 = vector.broadcast %2153 : f32 to vector<32x128xf32>
    %2155 = arith.mulf %2154, %2147 : vector<32x128xf32>
    %2156 = arith.addf %2152, %2155 : vector<32x128xf32>
    %c290 = arith.constant 290 : index
    %2157 = memref.load %arg1[%c290] : memref<315xf32, #tpu.memory_space<smem>>
    %2158 = vector.broadcast %2157 : f32 to vector<32x128xf32>
    %2159 = arith.mulf %2158, %2149 : vector<32x128xf32>
    %2160 = arith.addf %2156, %2159 : vector<32x128xf32>
    %c291 = arith.constant 291 : index
    %2161 = memref.load %arg1[%c291] : memref<315xf32, #tpu.memory_space<smem>>
    %2162 = vector.broadcast %2161 : f32 to vector<32x128xf32>
    %2163 = arith.mulf %2162, %2148 : vector<32x128xf32>
    %c292 = arith.constant 292 : index
    %2164 = memref.load %arg1[%c292] : memref<315xf32, #tpu.memory_space<smem>>
    %2165 = vector.broadcast %2164 : f32 to vector<32x128xf32>
    %2166 = arith.mulf %2165, %2147 : vector<32x128xf32>
    %2167 = arith.addf %2163, %2166 : vector<32x128xf32>
    %c293 = arith.constant 293 : index
    %2168 = memref.load %arg1[%c293] : memref<315xf32, #tpu.memory_space<smem>>
    %2169 = vector.broadcast %2168 : f32 to vector<32x128xf32>
    %2170 = arith.mulf %2169, %2149 : vector<32x128xf32>
    %2171 = arith.addf %2167, %2170 : vector<32x128xf32>
    %c294 = arith.constant 294 : index
    %2172 = memref.load %arg1[%c294] : memref<315xf32, #tpu.memory_space<smem>>
    %2173 = vector.broadcast %2172 : f32 to vector<32x128xf32>
    %2174 = arith.mulf %2173, %2148 : vector<32x128xf32>
    %c295 = arith.constant 295 : index
    %2175 = memref.load %arg1[%c295] : memref<315xf32, #tpu.memory_space<smem>>
    %2176 = vector.broadcast %2175 : f32 to vector<32x128xf32>
    %2177 = arith.mulf %2176, %2147 : vector<32x128xf32>
    %2178 = arith.addf %2174, %2177 : vector<32x128xf32>
    %c296 = arith.constant 296 : index
    %2179 = memref.load %arg1[%c296] : memref<315xf32, #tpu.memory_space<smem>>
    %2180 = vector.broadcast %2179 : f32 to vector<32x128xf32>
    %2181 = arith.mulf %2180, %2149 : vector<32x128xf32>
    %2182 = arith.addf %2178, %2181 : vector<32x128xf32>
    %cst_401 = arith.constant dense<0.000000e+00> : vector<32x128xf32>
    %2183 = tpu.matmul %6, %2160, %cst_401 {dimension_numbers = #tpu.dot_dimension_numbers<[1], [0], [0], [1], [0, 0, 1, 1], [], []>} : vector<32x32xf32>, vector<32x128xf32>, vector<32x128xf32> -> vector<32x128xf32>
    %2184 = arith.addf %2183, %2171 : vector<32x128xf32>
    %cst_402 = arith.constant dense<0.000000e+00> : vector<32x128xf32>
    %2185 = tpu.matmul %8, %2182, %cst_402 {dimension_numbers = #tpu.dot_dimension_numbers<[1], [0], [0], [1], [0, 0, 1, 1], [], []>} : vector<32x32xf32>, vector<32x128xf32>, vector<32x128xf32> -> vector<32x128xf32>
    %2186 = arith.addf %2184, %2185 : vector<32x128xf32>
    %2187 = arith.mulf %2186, %4 : vector<32x128xf32>
    %2188 = vector.shape_cast %2187 : vector<32x128xf32> to vector<1x32x128xf32>
    %cst_403 = arith.constant dense<0.000000e+00> : vector<1xf32>
    %2189 = vector.multi_reduction <add>, %2188, %cst_403 [1, 2] : vector<1x32x128xf32> to vector<1xf32>
    %2190 = vector.shape_cast %2189 : vector<1xf32> to vector<1x1x1xf32>
    %2191 = vector.extract %2190[0, 0, 0] : f32 from vector<1x1x1xf32>
    %2192 = arith.mulf %2187, %2187 : vector<32x128xf32>
    %2193 = vector.shape_cast %2192 : vector<32x128xf32> to vector<1x32x128xf32>
    %cst_404 = arith.constant dense<0.000000e+00> : vector<1xf32>
    %2194 = vector.multi_reduction <add>, %2193, %cst_404 [1, 2] : vector<1x32x128xf32> to vector<1xf32>
    %2195 = vector.shape_cast %2194 : vector<1xf32> to vector<1x1x1xf32>
    %2196 = vector.extract %2195[0, 0, 0] : f32 from vector<1x1x1xf32>
    %cst_405 = arith.constant 0.001953125 : f32
    %2197 = arith.mulf %2191, %cst_405 : f32
    %cst_406 = arith.constant 0.001953125 : f32
    %2198 = arith.mulf %2196, %cst_406 : f32
    %2199 = arith.mulf %2197, %2197 : f32
    %2200 = arith.subf %2198, %2199 : f32
    %cst_407 = arith.constant 0.000000e+00 : f32
    %2201 = arith.maximumf %2200, %cst_407 : f32
    %c31_408 = arith.constant 31 : index
    %2202 = memref.load %arg3[%c31_408] : memref<33xf32, #tpu.memory_space<smem>>
    %cst_409 = arith.constant 9.99999974E-6 : f32
    %2203 = arith.addf %2201, %cst_409 : f32
    %2204 = math.rsqrt %2203 : f32
    %2205 = arith.mulf %2202, %2204 : f32
    %c31_410 = arith.constant 31 : index
    %2206 = memref.load %arg4[%c31_410] : memref<33xf32, #tpu.memory_space<smem>>
    %2207 = arith.mulf %2197, %2205 : f32
    %2208 = arith.subf %2206, %2207 : f32
    %2209 = vector.broadcast %2205 : f32 to vector<32x128xf32>
    %2210 = arith.mulf %2187, %2209 : vector<32x128xf32>
    %2211 = vector.broadcast %2208 : f32 to vector<32x128xf32>
    %2212 = arith.mulf %2211, %4 : vector<32x128xf32>
    %2213 = arith.addf %2210, %2212 : vector<32x128xf32>
    %2214 = arith.addf %2079, %2213 : vector<32x128xf32>
    %c1_i32_411 = arith.constant 1 : i32
    %2215 = tpu.dynamic_rotate %2214 by %c1_i32_411 dim 1 : vector<32x128xf32>, i32 -> vector<32x128xf32>
    %c127_i32_412 = arith.constant 127 : i32
    %2216 = tpu.dynamic_rotate %2214 by %c127_i32_412 dim 1 : vector<32x128xf32>, i32 -> vector<32x128xf32>
    %c297 = arith.constant 297 : index
    %2217 = memref.load %arg1[%c297] : memref<315xf32, #tpu.memory_space<smem>>
    %2218 = vector.broadcast %2217 : f32 to vector<32x128xf32>
    %2219 = arith.mulf %2218, %2215 : vector<32x128xf32>
    %c298 = arith.constant 298 : index
    %2220 = memref.load %arg1[%c298] : memref<315xf32, #tpu.memory_space<smem>>
    %2221 = vector.broadcast %2220 : f32 to vector<32x128xf32>
    %2222 = arith.mulf %2221, %2214 : vector<32x128xf32>
    %2223 = arith.addf %2219, %2222 : vector<32x128xf32>
    %c299 = arith.constant 299 : index
    %2224 = memref.load %arg1[%c299] : memref<315xf32, #tpu.memory_space<smem>>
    %2225 = vector.broadcast %2224 : f32 to vector<32x128xf32>
    %2226 = arith.mulf %2225, %2216 : vector<32x128xf32>
    %2227 = arith.addf %2223, %2226 : vector<32x128xf32>
    %c300 = arith.constant 300 : index
    %2228 = memref.load %arg1[%c300] : memref<315xf32, #tpu.memory_space<smem>>
    %2229 = vector.broadcast %2228 : f32 to vector<32x128xf32>
    %2230 = arith.mulf %2229, %2215 : vector<32x128xf32>
    %c301 = arith.constant 301 : index
    %2231 = memref.load %arg1[%c301] : memref<315xf32, #tpu.memory_space<smem>>
    %2232 = vector.broadcast %2231 : f32 to vector<32x128xf32>
    %2233 = arith.mulf %2232, %2214 : vector<32x128xf32>
    %2234 = arith.addf %2230, %2233 : vector<32x128xf32>
    %c302 = arith.constant 302 : index
    %2235 = memref.load %arg1[%c302] : memref<315xf32, #tpu.memory_space<smem>>
    %2236 = vector.broadcast %2235 : f32 to vector<32x128xf32>
    %2237 = arith.mulf %2236, %2216 : vector<32x128xf32>
    %2238 = arith.addf %2234, %2237 : vector<32x128xf32>
    %c303 = arith.constant 303 : index
    %2239 = memref.load %arg1[%c303] : memref<315xf32, #tpu.memory_space<smem>>
    %2240 = vector.broadcast %2239 : f32 to vector<32x128xf32>
    %2241 = arith.mulf %2240, %2215 : vector<32x128xf32>
    %c304 = arith.constant 304 : index
    %2242 = memref.load %arg1[%c304] : memref<315xf32, #tpu.memory_space<smem>>
    %2243 = vector.broadcast %2242 : f32 to vector<32x128xf32>
    %2244 = arith.mulf %2243, %2214 : vector<32x128xf32>
    %2245 = arith.addf %2241, %2244 : vector<32x128xf32>
    %c305 = arith.constant 305 : index
    %2246 = memref.load %arg1[%c305] : memref<315xf32, #tpu.memory_space<smem>>
    %2247 = vector.broadcast %2246 : f32 to vector<32x128xf32>
    %2248 = arith.mulf %2247, %2216 : vector<32x128xf32>
    %2249 = arith.addf %2245, %2248 : vector<32x128xf32>
    %cst_413 = arith.constant dense<0.000000e+00> : vector<32x128xf32>
    %2250 = tpu.matmul %6, %2227, %cst_413 {dimension_numbers = #tpu.dot_dimension_numbers<[1], [0], [0], [1], [0, 0, 1, 1], [], []>} : vector<32x32xf32>, vector<32x128xf32>, vector<32x128xf32> -> vector<32x128xf32>
    %2251 = arith.addf %2250, %2238 : vector<32x128xf32>
    %cst_414 = arith.constant dense<0.000000e+00> : vector<32x128xf32>
    %2252 = tpu.matmul %8, %2249, %cst_414 {dimension_numbers = #tpu.dot_dimension_numbers<[1], [0], [0], [1], [0, 0, 1, 1], [], []>} : vector<32x32xf32>, vector<32x128xf32>, vector<32x128xf32> -> vector<32x128xf32>
    %2253 = arith.addf %2251, %2252 : vector<32x128xf32>
    %2254 = arith.mulf %2253, %4 : vector<32x128xf32>
    %2255 = vector.shape_cast %2254 : vector<32x128xf32> to vector<1x32x128xf32>
    %cst_415 = arith.constant dense<0.000000e+00> : vector<1xf32>
    %2256 = vector.multi_reduction <add>, %2255, %cst_415 [1, 2] : vector<1x32x128xf32> to vector<1xf32>
    %2257 = vector.shape_cast %2256 : vector<1xf32> to vector<1x1x1xf32>
    %2258 = vector.extract %2257[0, 0, 0] : f32 from vector<1x1x1xf32>
    %2259 = arith.mulf %2254, %2254 : vector<32x128xf32>
    %2260 = vector.shape_cast %2259 : vector<32x128xf32> to vector<1x32x128xf32>
    %cst_416 = arith.constant dense<0.000000e+00> : vector<1xf32>
    %2261 = vector.multi_reduction <add>, %2260, %cst_416 [1, 2] : vector<1x32x128xf32> to vector<1xf32>
    %2262 = vector.shape_cast %2261 : vector<1xf32> to vector<1x1x1xf32>
    %2263 = vector.extract %2262[0, 0, 0] : f32 from vector<1x1x1xf32>
    %cst_417 = arith.constant 0.001953125 : f32
    %2264 = arith.mulf %2258, %cst_417 : f32
    %cst_418 = arith.constant 0.001953125 : f32
    %2265 = arith.mulf %2263, %cst_418 : f32
    %2266 = arith.mulf %2264, %2264 : f32
    %2267 = arith.subf %2265, %2266 : f32
    %cst_419 = arith.constant 0.000000e+00 : f32
    %2268 = arith.maximumf %2267, %cst_419 : f32
    %c32_420 = arith.constant 32 : index
    %2269 = memref.load %arg3[%c32_420] : memref<33xf32, #tpu.memory_space<smem>>
    %cst_421 = arith.constant 9.99999974E-6 : f32
    %2270 = arith.addf %2268, %cst_421 : f32
    %2271 = math.rsqrt %2270 : f32
    %2272 = arith.mulf %2269, %2271 : f32
    %c32_422 = arith.constant 32 : index
    %2273 = memref.load %arg4[%c32_422] : memref<33xf32, #tpu.memory_space<smem>>
    %2274 = arith.mulf %2264, %2272 : f32
    %2275 = arith.subf %2273, %2274 : f32
    %2276 = vector.broadcast %2272 : f32 to vector<32x128xf32>
    %2277 = arith.mulf %2254, %2276 : vector<32x128xf32>
    %2278 = vector.broadcast %2275 : f32 to vector<32x128xf32>
    %2279 = arith.mulf %2278, %4 : vector<32x128xf32>
    %2280 = arith.addf %2277, %2279 : vector<32x128xf32>
    %2281 = arith.addf %54, %2280 : vector<32x128xf32>
    %c1_i32_423 = arith.constant 1 : i32
    %2282 = tpu.dynamic_rotate %2281 by %c1_i32_423 dim 1 : vector<32x128xf32>, i32 -> vector<32x128xf32>
    %c127_i32_424 = arith.constant 127 : i32
    %2283 = tpu.dynamic_rotate %2281 by %c127_i32_424 dim 1 : vector<32x128xf32>, i32 -> vector<32x128xf32>
    %c306 = arith.constant 306 : index
    %2284 = memref.load %arg1[%c306] : memref<315xf32, #tpu.memory_space<smem>>
    %2285 = vector.broadcast %2284 : f32 to vector<32x128xf32>
    %2286 = arith.mulf %2285, %2282 : vector<32x128xf32>
    %c307 = arith.constant 307 : index
    %2287 = memref.load %arg1[%c307] : memref<315xf32, #tpu.memory_space<smem>>
    %2288 = vector.broadcast %2287 : f32 to vector<32x128xf32>
    %2289 = arith.mulf %2288, %2281 : vector<32x128xf32>
    %2290 = arith.addf %2286, %2289 : vector<32x128xf32>
    %c308 = arith.constant 308 : index
    %2291 = memref.load %arg1[%c308] : memref<315xf32, #tpu.memory_space<smem>>
    %2292 = vector.broadcast %2291 : f32 to vector<32x128xf32>
    %2293 = arith.mulf %2292, %2283 : vector<32x128xf32>
    %2294 = arith.addf %2290, %2293 : vector<32x128xf32>
    %c309 = arith.constant 309 : index
    %2295 = memref.load %arg1[%c309] : memref<315xf32, #tpu.memory_space<smem>>
    %2296 = vector.broadcast %2295 : f32 to vector<32x128xf32>
    %2297 = arith.mulf %2296, %2282 : vector<32x128xf32>
    %c310 = arith.constant 310 : index
    %2298 = memref.load %arg1[%c310] : memref<315xf32, #tpu.memory_space<smem>>
    %2299 = vector.broadcast %2298 : f32 to vector<32x128xf32>
    %2300 = arith.mulf %2299, %2281 : vector<32x128xf32>
    %2301 = arith.addf %2297, %2300 : vector<32x128xf32>
    %c311 = arith.constant 311 : index
    %2302 = memref.load %arg1[%c311] : memref<315xf32, #tpu.memory_space<smem>>
    %2303 = vector.broadcast %2302 : f32 to vector<32x128xf32>
    %2304 = arith.mulf %2303, %2283 : vector<32x128xf32>
    %2305 = arith.addf %2301, %2304 : vector<32x128xf32>
    %c312 = arith.constant 312 : index
    %2306 = memref.load %arg1[%c312] : memref<315xf32, #tpu.memory_space<smem>>
    %2307 = vector.broadcast %2306 : f32 to vector<32x128xf32>
    %2308 = arith.mulf %2307, %2282 : vector<32x128xf32>
    %c313 = arith.constant 313 : index
    %2309 = memref.load %arg1[%c313] : memref<315xf32, #tpu.memory_space<smem>>
    %2310 = vector.broadcast %2309 : f32 to vector<32x128xf32>
    %2311 = arith.mulf %2310, %2281 : vector<32x128xf32>
    %2312 = arith.addf %2308, %2311 : vector<32x128xf32>
    %c314 = arith.constant 314 : index
    %2313 = memref.load %arg1[%c314] : memref<315xf32, #tpu.memory_space<smem>>
    %2314 = vector.broadcast %2313 : f32 to vector<32x128xf32>
    %2315 = arith.mulf %2314, %2283 : vector<32x128xf32>
    %2316 = arith.addf %2312, %2315 : vector<32x128xf32>
    %cst_425 = arith.constant dense<0.000000e+00> : vector<32x128xf32>
    %2317 = tpu.matmul %6, %2294, %cst_425 {dimension_numbers = #tpu.dot_dimension_numbers<[1], [0], [0], [1], [0, 0, 1, 1], [], []>} : vector<32x32xf32>, vector<32x128xf32>, vector<32x128xf32> -> vector<32x128xf32>
    %2318 = arith.addf %2317, %2305 : vector<32x128xf32>
    %cst_426 = arith.constant dense<0.000000e+00> : vector<32x128xf32>
    %2319 = tpu.matmul %8, %2316, %cst_426 {dimension_numbers = #tpu.dot_dimension_numbers<[1], [0], [0], [1], [0, 0, 1, 1], [], []>} : vector<32x32xf32>, vector<32x128xf32>, vector<32x128xf32> -> vector<32x128xf32>
    %2320 = arith.addf %2318, %2319 : vector<32x128xf32>
    %c34_427 = arith.constant 34 : index
    %2321 = memref.load %arg2[%c34_427] : memref<35xf32, #tpu.memory_space<smem>>
    %2322 = vector.broadcast %2321 : f32 to vector<32x128xf32>
    %2323 = arith.addf %2320, %2322 : vector<32x128xf32>
    %2324 = arith.mulf %2323, %4 : vector<32x128xf32>
    %c0_428 = arith.constant 0 : index
    %c0_429 = arith.constant 0 : index
    %2325 = vector.load %arg7[%c0_428, %c0_429] : memref<32x128xf32, #tpu.memory_space<vmem>>, vector<32x128xf32>
    tpu.vector_store %arg7[%c0_428, %c0_429], %2324 {strides = array<i32>} : memref<32x128xf32, #tpu.memory_space<vmem>>, vector<32x128xf32>,
    return
  }
  func.func @transform_0(%arg0: i32) -> i32 {
    %c0_i32 = arith.constant 0 : i32
    %c0_i32_0 = arith.constant 0 : i32
    return %c0_i32 : i32
  }
  func.func @transform_1(%arg0: i32) -> i32 {
    %c0_i32 = arith.constant 0 : i32
    %c0_i32_0 = arith.constant 0 : i32
    return %c0_i32 : i32
  }
  func.func @transform_2(%arg0: i32) -> i32 {
    %c0_i32 = arith.constant 0 : i32
    %c0_i32_0 = arith.constant 0 : i32
    return %c0_i32 : i32
  }
  func.func @transform_3(%arg0: i32) -> i32 {
    %c0_i32 = arith.constant 0 : i32
    %c0_i32_0 = arith.constant 0 : i32
    return %c0_i32 : i32
  }
  func.func @transform_4(%arg0: i32) -> (i32, i32, i32) {
    %c0_i32 = arith.constant 0 : i32
    %c0_i32_0 = arith.constant 0 : i32
    %c0_i32_1 = arith.constant 0 : i32
    %c0_i32_2 = arith.constant 0 : i32
    return %c0_i32, %c0_i32_0, %c0_i32_1 : i32, i32, i32
  }
  func.func @transform_5(%arg0: i32) -> (i32, i32) {
    %c0_i32 = arith.constant 0 : i32
    %c0_i32_0 = arith.constant 0 : i32
    %c0_i32_1 = arith.constant 0 : i32
    return %c0_i32, %c0_i32_0 : i32, i32
  }
  func.func @transform_6(%arg0: i32) -> (i32, i32) {
    %c0_i32 = arith.constant 0 : i32
    %c0_i32_0 = arith.constant 0 : i32
    %c0_i32_1 = arith.constant 0 : i32
    return %c0_i32, %c0_i32_0 : i32, i32
  }
}

</mosaic_0001>

<llo_original>
// kernel: tpu_custom_call.1
$region0: #{tpu_custom_call.1}
  #allocation0 [shape = 'u32[]', space=smem, size = 0x4, offset = 0x4, fixed_abs, tag = 'smem constant byte address 0x4 - core index']
  #allocation1 [shape = 'u32[72,128]{1,0:T(1,128)}', space=vmem, size = 0x9000, scoped, tag = 'internal scratch']
  %s0 = inlined_call_operand.hbm [shape: f32[315], index: 0, kind: input, shape index: {}]
  %s1 = inlined_call_operand.hbm [shape: f32[35], index: 1, kind: input, shape index: {}]
  %s2 = inlined_call_operand.vmem [shape: f32[33], index: 2, kind: input, shape index: {}]
  %s3 = inlined_call_operand.vmem [shape: f32[33], index: 3, kind: input, shape index: {}]
  %s4 = inlined_call_operand.hbm [shape: f32[2,32,32], index: 4, kind: input, shape index: {}]
  %s5 = inlined_call_operand.hbm [shape: f32[32,128], index: 5, kind: input, shape index: {}]
  %s6 = inlined_call_operand.hbm [shape: f32[32,128], index: 6, kind: output, shape index: {}]
  %s7 = sld [smem:[#allocation0]]
  $region58: #{tpu_custom_call.1} parent=0
    _
  %s9 = ssub.s32 1, %s7
  %s10 = scalar_select 0, %s9, %s7
  $region1: #{tpu_custom_call.1} parent=0
    #allocation2 [shape = 'u8[1536]{0}', space=smem, size = 0x600, scoped, tag = 'input window, operand 0, single buffered']
    #allocation3 [shape = 's32[1]{0}', space=sflag, size = 0x4, scoped, tag = 'scoped memory for tpu_custom_call.1']
    #allocation4 [shape = 's32[1]{0}', space=sflag, size = 0x4, scoped, tag = 'scoped memory for tpu_custom_call.1']
    #allocation5 [shape = 's32[1]{0}', space=sflag, size = 0x4, scoped, tag = 'scoped memory for tpu_custom_call.1']
    #allocation6 [shape = 's32[1]{0}', space=sflag, size = 0x4, scoped, tag = 'scoped memory for tpu_custom_call.1']
    #allocation7 [shape = 'u8[512]{0}', space=smem, size = 0x200, scoped, tag = 'input window, operand 1, single buffered']
    #allocation8 [shape = 's32[1]{0}', space=sflag, size = 0x4, scoped, tag = 'scoped memory for tpu_custom_call.1']
    #allocation9 [shape = 'u8[512]{0}', space=smem, size = 0x200, scoped, tag = 'input window, operand 2, single buffered']
    #allocation10 [shape = 'u8[512]{0}', space=smem, size = 0x200, scoped, tag = 'input window, operand 3, single buffered']
    #allocation11 [shape = 's32[1]{0}', space=sflag, size = 0x4, scoped, tag = 'scoped memory for tpu_custom_call.1']
    #allocation12 [shape = 'u8[32768]{0}', space=vmem, size = 0x8000, scoped, tag = 'input window, operand 4, single buffered']
    #allocation13 [shape = 'u8[16384]{0}', space=vmem, size = 0x4000, scoped, tag = 'input window, operand 5, single buffered']
    #allocation14 [shape = 's32[1]{0}', space=sflag, size = 0x4, scoped, tag = 'scoped memory for tpu_custom_call.1']
    #allocation15 [shape = 'u8[16384]{0}', space=vmem, size = 0x4000, scoped, tag = 'output window, operand 0, single buffered']
    %11 = vsyncpa [#allocation5], 0
    %12 = vsyncpa [#allocation8], 0
    %13 = vsyncpa [#allocation6], 0
    %14 = vsyncpa [#allocation11], 0
    %15 = vsyncpa [#allocation3], 0
    %16 = vsyncpa [#allocation14], 0
    %17 = vsyncpa [#allocation4], 0
    // Predicated region
    $region2: #{tpu_custom_call.1} parent=1 // pred_check
      _
    $region3: #{tpu_custom_call.1} parent=1 // pred_check_branch
      %19 = sbr.rel (0) target = $region5
    $region4: #{tpu_custom_call.1} parent=1 // pred_region
      %21 = vsyncadd [#allocation5], 0
      %s23 = sshll.u32 %s0, 4
      %s24 = int_to_ptr.hbm [resolvable:$true] %s23
      %26 = dma.hbm_to_smem %s24, 48, [#allocation2], [#allocation5]
    $region5: #{tpu_custom_call.1} parent=1 // pred_fallthru
      _
    // Predicated region
    $region6: #{tpu_custom_call.1} parent=1 // pred_check
      _
    $region7: #{tpu_custom_call.1} parent=1 // pred_check_branch
      %28 = sbr.rel (0) target = $region9
    $region8: #{tpu_custom_call.1} parent=1 // pred_region
      %30 = vsyncadd [#allocation8], 0
      %s32 = sshll.u32 %s1, 4
      %s33 = int_to_ptr.hbm [resolvable:$true] %s32
      %35 = dma.hbm_to_smem %s33, 16, [#allocation7], [#allocation8]
    $region9: #{tpu_custom_call.1} parent=1 // pred_fallthru
      _
    // Predicated region
    $region10: #{tpu_custom_call.1} parent=1 // pred_check
      _
    $region11: #{tpu_custom_call.1} parent=1 // pred_check_branch
      %37 = sbr.rel (0) target = $region13
    $region12: #{tpu_custom_call.1} parent=1 // pred_region
      %39 = vsyncadd [#allocation6], 0
      %s41 = sshll.u32 %s2, 4
      %s42 = int_to_ptr.vmem [resolvable:$true] %s41
      %44 = dma.vmem_to_smem %s42, 16, [#allocation9], [#allocation6]
    $region13: #{tpu_custom_call.1} parent=1 // pred_fallthru
      _
    // Predicated region
    $region14: #{tpu_custom_call.1} parent=1 // pred_check
      _
    $region15: #{tpu_custom_call.1} parent=1 // pred_check_branch
      %46 = sbr.rel (0) target = $region17
    $region16: #{tpu_custom_call.1} parent=1 // pred_region
      %48 = vsyncadd [#allocation11], 0
      %s50 = sshll.u32 %s3, 4
      %s51 = int_to_ptr.vmem [resolvable:$true] %s50
      %53 = dma.vmem_to_smem %s51, 16, [#allocation10], [#allocation11]
    $region17: #{tpu_custom_call.1} parent=1 // pred_fallthru
      _
    // Predicated region
    $region18: #{tpu_custom_call.1} parent=1 // pred_check
      _
    $region19: #{tpu_custom_call.1} parent=1 // pred_check_branch
      %55 = sbr.rel (0) target = $region21
    $region20: #{tpu_custom_call.1} parent=1 // pred_region
      %57 = vsyncadd [#allocation3], 0
      %s58 = sshll.u32 %s4, 4
      %s59 = int_to_ptr.hbm [resolvable:$true] %s58
      %s60 = sshll.u32 [#allocation12], 4
      %s61 = int_to_ptr.vmem [resolvable:$true] %s60
      %66 = dma.hbm_to_vmem [thread:$0]  %s59, 1024, %s61, [#allocation3], 128, 128, 8
    $region21: #{tpu_custom_call.1} parent=1 // pred_fallthru
      _
    // Predicated region
    $region22: #{tpu_custom_call.1} parent=1 // pred_check
      _
    $region23: #{tpu_custom_call.1} parent=1 // pred_check_branch
      %68 = sbr.rel (0) target = $region25
    $region24: #{tpu_custom_call.1} parent=1 // pred_region
      %70 = vsyncadd [#allocation14], 0
      %s71 = sshll.u32 %s5, 4
      %s72 = int_to_ptr.hbm [resolvable:$true] %s71
      %s73 = sshll.u32 [#allocation13], 4
      %s74 = int_to_ptr.vmem [resolvable:$true] %s73
      %79 = dma.hbm_to_vmem [thread:$0]  %s72, 512, %s74, [#allocation14], 128, 128, 8
    $region25: #{tpu_custom_call.1} parent=1 // pred_fallthru
      _
    // Predicated region
    $region26: #{tpu_custom_call.1} parent=1 // pred_check
      _
    $region27: #{tpu_custom_call.1} parent=1 // pred_check_branch
      %81 = sbr.rel (0) target = $region29
    $region28: #{tpu_custom_call.1} parent=1 // pred_region
      %83 = dma.done [#allocation5], 48
    $region29: #{tpu_custom_call.1} parent=1 // pred_fallthru
      _
    // Predicated region
    $region30: #{tpu_custom_call.1} parent=1 // pred_check
      _
    $region31: #{tpu_custom_call.1} parent=1 // pred_check_branch
      %85 = sbr.rel (0) target = $region33
    $region32: #{tpu_custom_call.1} parent=1 // pred_region
      %87 = dma.done [#allocation8], 16
    $region33: #{tpu_custom_call.1} parent=1 // pred_fallthru
      _
    // Predicated region
    $region34: #{tpu_custom_call.1} parent=1 // pred_check
      _
    $region35: #{tpu_custom_call.1} parent=1 // pred_check_branch
      %89 = sbr.rel (0) target = $region37
    $region36: #{tpu_custom_call.1} parent=1 // pred_region
      %91 = dma.done [#allocation6], 16
    $region37: #{tpu_custom_call.1} parent=1 // pred_fallthru
      _
    // Predicated region
    $region38: #{tpu_custom_call.1} parent=1 // pred_check
      _
    $region39: #{tpu_custom_call.1} parent=1 // pred_check_branch
      %93 = sbr.rel (0) target = $region41
    $region40: #{tpu_custom_call.1} parent=1 // pred_region
      %95 = dma.done [#allocation11], 16
    $region41: #{tpu_custom_call.1} parent=1 // pred_fallthru
      _
    // Predicated region
    $region42: #{tpu_custom_call.1} parent=1 // pred_check
      _
    $region43: #{tpu_custom_call.1} parent=1 // pred_check_branch
      %97 = sbr.rel (0) target = $region45
    $region44: #{tpu_custom_call.1} parent=1 // pred_region
      %99 = dma.done [#allocation3], 1024
    $region45: #{tpu_custom_call.1} parent=1 // pred_fallthru
      _
    // Predicated region
    $region46: #{tpu_custom_call.1} parent=1 // pred_check
      _
    $region47: #{tpu_custom_call.1} parent=1 // pred_check_branch
      %101 = sbr.rel (0) target = $region49
    $region48: #{tpu_custom_call.1} parent=1 // pred_region
      %103 = dma.done [#allocation14], 512
    $region49: #{tpu_custom_call.1} parent=1 // pred_fallthru
      _
    %104 = sfence
    %v105 = vlaneseq
    %v106 = vand.u32 %v105, 127
    %vm107 = vcmp.lt.s32.totalorder %v106, 16
    %v108 = vsel %vm107, 1, 0
    %v109 = vcvt.s32.f32 %v108
    %v110 = vld [vmem:[#allocation12] sm:$0xff]
    %v111 = vld [vmem:[#allocation12 + $0x8] sm:$0xff]
    %v112 = vld [vmem:[#allocation12 + $0x10] sm:$0xff]
    %v113 = vld [vmem:[#allocation12 + $0x18] sm:$0xff]
    %s114 = scalar_lea.vmem [#allocation12], 32
    %v115 = vld [vmem:[%s114] sm:$0xff]
    %v116 = vld [vmem:[%s114 + $0x8] sm:$0xff]
    %v117 = vld [vmem:[%s114 + $0x10] sm:$0xff]
    %v118 = vld [vmem:[%s114 + $0x18] sm:$0xff]
    %v119 = vld [vmem:[#allocation13] sm:$0xff]
    %v120 = vld [vmem:[#allocation13 + $0x8] sm:$0xff]
    %v121 = vld [vmem:[#allocation13 + $0x10] sm:$0xff]
    %v122 = vld [vmem:[#allocation13 + $0x18] sm:$0xff]
    %123 = vrot.lane.b32.xlu0 %v119, 1
    %v124 = vpop.permute.xlu0 %123
    %125 = vrot.lane.b32.xlu0 %v120, 1
    %v126 = vpop.permute.xlu0 %125
    %127 = vrot.lane.b32.xlu0 %v121, 1
    %v128 = vpop.permute.xlu0 %127
    %129 = vrot.lane.b32.xlu0 %v122, 1
    %v130 = vpop.permute.xlu0 %129
    %131 = vrot.lane.b32.xlu0 %v119, 127
    %v132 = vpop.permute.xlu0 %131
    %133 = vrot.lane.b32.xlu0 %v120, 127
    %v134 = vpop.permute.xlu0 %133
    %135 = vrot.lane.b32.xlu0 %v121, 127
    %v136 = vpop.permute.xlu0 %135
    %137 = vrot.lane.b32.xlu0 %v122, 127
    %v138 = vpop.permute.xlu0 %137
    %s139 = sld [smem:[#allocation2]]
    %v140 = vstv %s139
    %v141 = vmul.f32 %v140, %v124
    %v142 = vmul.f32 %v140, %v126
    %v143 = vmul.f32 %v140, %v128
    %v144 = vmul.f32 %v140, %v130
    %s145 = sld [smem:[#allocation2 + $0x1]]
    %v146 = vstv %s145
    %v147 = vmul.f32 %v146, %v119
    %v148 = vmul.f32 %v146, %v120
    %v149 = vmul.f32 %v146, %v121
    %v150 = vmul.f32 %v146, %v122
    %v151 = vadd.f32 %v141, %v147
    %v152 = vadd.f32 %v142, %v148
    %v153 = vadd.f32 %v143, %v149
    %v154 = vadd.f32 %v144, %v150
    %s155 = sld [smem:[#allocation2 + $0x2]]
    %v156 = vstv %s155
    %v157 = vmul.f32 %v156, %v132
    %v158 = vmul.f32 %v156, %v134
    %v159 = vmul.f32 %v156, %v136
    %v160 = vmul.f32 %v156, %v138
    %v161 = vadd.f32 %v151, %v157
    %v162 = vadd.f32 %v152, %v158
    %v163 = vadd.f32 %v153, %v159
    %v164 = vadd.f32 %v154, %v160
    %s165 = sld [smem:[#allocation2 + $0x3]]
    %v166 = vstv %s165
    %v167 = vmul.f32 %v166, %v124
    %v168 = vmul.f32 %v166, %v126
    %v169 = vmul.f32 %v166, %v128
    %v170 = vmul.f32 %v166, %v130
    %s171 = sld [smem:[#allocation2 + $0x4]]
    %v172 = vstv %s171
    %v173 = vmul.f32 %v172, %v119
    %v174 = vmul.f32 %v172, %v120
    %v175 = vmul.f32 %v172, %v121
    %v176 = vmul.f32 %v172, %v122
    %v177 = vadd.f32 %v167, %v173
    %v178 = vadd.f32 %v168, %v174
    %v179 = vadd.f32 %v169, %v175
    %v180 = vadd.f32 %v170, %v176
    %s181 = sld [smem:[#allocation2 + $0x5]]
    %v182 = vstv %s181
    %v183 = vmul.f32 %v182, %v132
    %v184 = vmul.f32 %v182, %v134
    %v185 = vmul.f32 %v182, %v136
    %v186 = vmul.f32 %v182, %v138
    %v187 = vadd.f32 %v177, %v183
    %v188 = vadd.f32 %v178, %v184
    %v189 = vadd.f32 %v179, %v185
    %v190 = vadd.f32 %v180, %v186
    %s191 = sld [smem:[#allocation2 + $0x6]]
    %v192 = vstv %s191
    %v193 = vmul.f32 %v192, %v124
    %v194 = vmul.f32 %v192, %v126
    %v195 = vmul.f32 %v192, %v128
    %v196 = vmul.f32 %v192, %v130
    %s197 = sld [smem:[#allocation2 + $0x7]]
    %v198 = vstv %s197
    %v199 = vmul.f32 %v198, %v119
    %v200 = vmul.f32 %v198, %v120
    %v201 = vmul.f32 %v198, %v121
    %v202 = vmul.f32 %v198, %v122
    %v203 = vadd.f32 %v193, %v199
    %v204 = vadd.f32 %v194, %v200
    %v205 = vadd.f32 %v195, %v201
    %v206 = vadd.f32 %v196, %v202
    %s207 = sld [smem:[#allocation2 + $0x8]]
    %v208 = vstv %s207
    %v209 = vmul.f32 %v208, %v132
    %v210 = vmul.f32 %v208, %v134
    %v211 = vmul.f32 %v208, %v136
    %v212 = vmul.f32 %v208, %v138
    %v213 = vadd.f32 %v203, %v209
    %v214 = vadd.f32 %v204, %v210
    %v215 = vadd.f32 %v205, %v211
    %v216 = vadd.f32 %v206, %v212
    %vm217 = vcmask 261120
    %v219 = vsel %vm217, %v110, 0
    %v222 = vsel %vm217, %v111, 0
    %v225 = vsel %vm217, %v112, 0
    %v228 = vsel %vm217, %v113, 0
    %230 = vmatpush.msra.mxu0 0.0
    %231 = vmatpush.msra.mxu0 0.0
    %232 = vmatpush.msra.mxu0 0.0
    %233 = vmatpush.msra.mxu0 0.0
    %234 = vmatpush.msra.mxu0 0.0
    %235 = vmatpush.msra.mxu0 0.0
    %236 = vmatpush.msra.mxu0 0.0
    %237 = vmatpush.msra.mxu0 0.0
    %238 = vmatpush.msra.mxu0 0.0
    %239 = vmatpush.msra.mxu0 0.0
    %240 = vmatpush.msra.mxu0 0.0
    %241 = vmatpush.msra.mxu0 0.0
    %242 = vmatpush.msra.mxu0 %v164
    %243 = vmatpush.msra.mxu0 %v163
    %244 = vmatpush.msra.mxu0 %v162
    %245 = vmatpush.msra.mxu0 %v161
    %246 = vmatmul.f32.gmra.mxu0 %v219
    %v247 = vpop.f32.mrf.mxu0
    %v248 = vadd.f32 %v187, %v247
    %249 = vmatmul.f32.gmra.mxu0 %v222
    %v250 = vpop.f32.mrf.mxu0
    %v251 = vadd.f32 %v188, %v250
    %252 = vmatmul.f32.gmra.mxu0 %v225
    %v253 = vpop.f32.mrf.mxu0
    %v254 = vadd.f32 %v189, %v253
    %255 = vmatmul.f32.gmra.mxu0 %v228
    %v256 = vpop.f32.mrf.mxu0
    %v257 = vadd.f32 %v190, %v256
    %258 = vdwg.mxu0
    %v260 = vsel %vm217, %v115, 0
    %v263 = vsel %vm217, %v116, 0
    %v266 = vsel %vm217, %v117, 0
    %v269 = vsel %vm217, %v118, 0
    %271 = vmatpush.msra.mxu0 0.0
    %272 = vmatpush.msra.mxu0 0.0
    %273 = vmatpush.msra.mxu0 0.0
    %274 = vmatpush.msra.mxu0 0.0
    %275 = vmatpush.msra.mxu0 0.0
    %276 = vmatpush.msra.mxu0 0.0
    %277 = vmatpush.msra.mxu0 0.0
    %278 = vmatpush.msra.mxu0 0.0
    %279 = vmatpush.msra.mxu0 0.0
    %280 = vmatpush.msra.mxu0 0.0
    %281 = vmatpush.msra.mxu0 0.0
    %282 = vmatpush.msra.mxu0 0.0
    %283 = vmatpush.msra.mxu0 %v216
    %284 = vmatpush.msra.mxu0 %v215
    %285 = vmatpush.msra.mxu0 %v214
    %286 = vmatpush.msra.mxu0 %v213
    %287 = vmatmul.f32.gmra.mxu0 %v260
    %v288 = vpop.f32.mrf.mxu0
    %v289 = vadd.f32 0.0, %v288
    %290 = vmatmul.f32.gmra.mxu0 %v263
    %v291 = vpop.f32.mrf.mxu0
    %v292 = vadd.f32 0.0, %v291
    %293 = vmatmul.f32.gmra.mxu0 %v266
    %v294 = vpop.f32.mrf.mxu0
    %v295 = vadd.f32 0.0, %v294
    %296 = vmatmul.f32.gmra.mxu0 %v269
    %v297 = vpop.f32.mrf.mxu0
    %v298 = vadd.f32 0.0, %v297
    %299 = vdwg.mxu0
    %v300 = vadd.f32 %v248, %v289
    %v301 = vadd.f32 %v251, %v292
    %v302 = vadd.f32 %v254, %v295
    %v303 = vadd.f32 %v257, %v298
    %s304 = sld [smem:[#allocation7]]
    %v305 = vstv %s304
    %v306 = vadd.f32 %v300, %v305
    %v307 = vadd.f32 %v301, %v305
    %v308 = vadd.f32 %v302, %v305
    %v309 = vadd.f32 %v303, %v305
    %v310 = vmul.f32 %v306, %v109
    %v311 = vmul.f32 %v307, %v109
    %v312 = vmul.f32 %v308, %v109
    %v313 = vmul.f32 %v309, %v109
    %v314 = vmax.f32 %v310, 0.0
    %v315 = vmax.f32 %v311, 0.0
    %v316 = vmax.f32 %v312, 0.0
    %v317 = vmax.f32 %v313, 0.0
    %318 = vrot.lane.b32.xlu0 %v314, 1
    %v319 = vpop.permute.xlu0 %318
    %320 = vrot.lane.b32.xlu0 %v315, 1
    %v321 = vpop.permute.xlu0 %320
    %322 = vrot.lane.b32.xlu0 %v316, 1
    %v323 = vpop.permute.xlu0 %322
    %324 = vrot.lane.b32.xlu0 %v317, 1
    %v325 = vpop.permute.xlu0 %324
    %326 = vrot.lane.b32.xlu0 %v314, 127
    %v327 = vpop.permute.xlu0 %326
    %328 = vrot.lane.b32.xlu0 %v315, 127
    %v329 = vpop.permute.xlu0 %328
    %330 = vrot.lane.b32.xlu0 %v316, 127
    %v331 = vpop.permute.xlu0 %330
    %332 = vrot.lane.b32.xlu0 %v317, 127
    %v333 = vpop.permute.xlu0 %332
    %s334 = sld [smem:[#allocation2 + $0x9]]
    %v335 = vstv %s334
    %v336 = vmul.f32 %v335, %v319
    %v337 = vmul.f32 %v335, %v321
    %v338 = vmul.f32 %v335, %v323
    %v339 = vmul.f32 %v335, %v325
    %s340 = sld [smem:[#allocation2 + $0xa]]
    %v341 = vstv %s340
    %v342 = vmul.f32 %v341, %v314
    %v343 = vmul.f32 %v341, %v315
    %v344 = vmul.f32 %v341, %v316
    %v345 = vmul.f32 %v341, %v317
    %v346 = vadd.f32 %v336, %v342
    %v347 = vadd.f32 %v337, %v343
    %v348 = vadd.f32 %v338, %v344
    %v349 = vadd.f32 %v339, %v345
    %s350 = sld [smem:[#allocation2 + $0xb]]
    %v351 = vstv %s350
    %v352 = vmul.f32 %v351, %v327
    %v353 = vmul.f32 %v351, %v329
    %v354 = vmul.f32 %v351, %v331
    %v355 = vmul.f32 %v351, %v333
    %v356 = vadd.f32 %v346, %v352
    %v357 = vadd.f32 %v347, %v353
    %v358 = vadd.f32 %v348, %v354
    %v359 = vadd.f32 %v349, %v355
    %s360 = sld [smem:[#allocation2 + $0xc]]
    %v361 = vstv %s360
    %v362 = vmul.f32 %v361, %v319
    %v363 = vmul.f32 %v361, %v321
    %v364 = vmul.f32 %v361, %v323
    %v365 = vmul.f32 %v361, %v325
    %s366 = sld [smem:[#allocation2 + $0xd]]
    %v367 = vstv %s366
    %v368 = vmul.f32 %v367, %v314
    %v369 = vmul.f32 %v367, %v315
    %v370 = vmul.f32 %v367, %v316
    %v371 = vmul.f32 %v367, %v317
    %v372 = vadd.f32 %v362, %v368
    %v373 = vadd.f32 %v363, %v369
    %v374 = vadd.f32 %v364, %v370
    %v375 = vadd.f32 %v365, %v371
    %s376 = sld [smem:[#allocation2 + $0xe]]
    %v377 = vstv %s376
    %v378 = vmul.f32 %v377, %v327
    %v379 = vmul.f32 %v377, %v329
    %v380 = vmul.f32 %v377, %v331
    %v381 = vmul.f32 %v377, %v333
    %v382 = vadd.f32 %v372, %v378
    %v383 = vadd.f32 %v373, %v379
    %v384 = vadd.f32 %v374, %v380
    %v385 = vadd.f32 %v375, %v381
    %s386 = sld [smem:[#allocation2 + $0xf]]
    %v387 = vstv %s386
    %v388 = vmul.f32 %v387, %v319
    %v389 = vmul.f32 %v387, %v321
    %v390 = vmul.f32 %v387, %v323
    %v391 = vmul.f32 %v387, %v325
    %s392 = sld [smem:[#allocation2 + $0x10]]
    %v393 = vstv %s392
    %v394 = vmul.f32 %v393, %v314
    %v395 = vmul.f32 %v393, %v315
    %v396 = vmul.f32 %v393, %v316
    %v397 = vmul.f32 %v393, %v317
    %v398 = vadd.f32 %v388, %v394
    %v399 = vadd.f32 %v389, %v395
    %v400 = vadd.f32 %v390, %v396
    %v401 = vadd.f32 %v391, %v397
    %s402 = sld [smem:[#allocation2 + $0x11]]
    %v403 = vstv %s402
    %v404 = vmul.f32 %v403, %v327
    %v405 = vmul.f32 %v403, %v329
    %v406 = vmul.f32 %v403, %v331
    %v407 = vmul.f32 %v403, %v333
    %v408 = vadd.f32 %v398, %v404
    %v409 = vadd.f32 %v399, %v405
    %v410 = vadd.f32 %v400, %v406
    %v411 = vadd.f32 %v401, %v407
    %412 = vmatpush.msra.mxu0 0.0
    %413 = vmatpush.msra.mxu0 0.0
    %414 = vmatpush.msra.mxu0 0.0
    %415 = vmatpush.msra.mxu0 0.0
    %416 = vmatpush.msra.mxu0 0.0
    %417 = vmatpush.msra.mxu0 0.0
    %418 = vmatpush.msra.mxu0 0.0
    %419 = vmatpush.msra.mxu0 0.0
    %420 = vmatpush.msra.mxu0 0.0
    %421 = vmatpush.msra.mxu0 0.0
    %422 = vmatpush.msra.mxu0 0.0
    %423 = vmatpush.msra.mxu0 0.0
    %424 = vmatpush.msra.mxu0 %v359
    %425 = vmatpush.msra.mxu0 %v358
    %426 = vmatpush.msra.mxu0 %v357
    %427 = vmatpush.msra.mxu0 %v356
    %428 = vmatmul.f32.gmra.mxu0 %v219
    %v429 = vpop.f32.mrf.mxu0
    %v430 = vadd.f32 %v382, %v429
    %431 = vmatmul.f32.gmra.mxu0 %v222
    %v432 = vpop.f32.mrf.mxu0
    %v433 = vadd.f32 %v383, %v432
    %434 = vmatmul.f32.gmra.mxu0 %v225
    %v435 = vpop.f32.mrf.mxu0
    %v436 = vadd.f32 %v384, %v435
    %437 = vmatmul.f32.gmra.mxu0 %v228
    %v438 = vpop.f32.mrf.mxu0
    %v439 = vadd.f32 %v385, %v438
    %440 = vdwg.mxu0
    %441 = vmatpush.msra.mxu0 0.0
    %442 = vmatpush.msra.mxu0 0.0
    %443 = vmatpush.msra.mxu0 0.0
    %444 = vmatpush.msra.mxu0 0.0
    %445 = vmatpush.msra.mxu0 0.0
    %446 = vmatpush.msra.mxu0 0.0
    %447 = vmatpush.msra.mxu0 0.0
    %448 = vmatpush.msra.mxu0 0.0
    %449 = vmatpush.msra.mxu0 0.0
    %450 = vmatpush.msra.mxu0 0.0
    %451 = vmatpush.msra.mxu0 0.0
    %452 = vmatpush.msra.mxu0 0.0
    %453 = vmatpush.msra.mxu0 %v411
    %454 = vmatpush.msra.mxu0 %v410
    %455 = vmatpush.msra.mxu0 %v409
    %456 = vmatpush.msra.mxu0 %v408
    %457 = vmatmul.f32.gmra.mxu0 %v260
    %v458 = vpop.f32.mrf.mxu0
    %v459 = vadd.f32 0.0, %v458
    %460 = vmatmul.f32.gmra.mxu0 %v263
    %v461 = vpop.f32.mrf.mxu0
    %v462 = vadd.f32 0.0, %v461
    %463 = vmatmul.f32.gmra.mxu0 %v266
    %v464 = vpop.f32.mrf.mxu0
    %v465 = vadd.f32 0.0, %v464
    %466 = vmatmul.f32.gmra.mxu0 %v269
    %v467 = vpop.f32.mrf.mxu0
    %v468 = vadd.f32 0.0, %v467
    %469 = vdwg.mxu0
    %v470 = vadd.f32 %v430, %v459
    %v471 = vadd.f32 %v433, %v462
    %v472 = vadd.f32 %v436, %v465
    %v473 = vadd.f32 %v439, %v468
    %v474 = vmul.f32 %v470, %v109
    %v475 = vmul.f32 %v471, %v109
    %v476 = vmul.f32 %v472, %v109
    %v477 = vmul.f32 %v473, %v109
    %v478 = vadd.f32 %v474, %v475
    %v479 = vadd.f32 %v478, %v476
    %v480 = vadd.f32 %v479, %v477
    %481 = vadd.xlane.f32.xlu0 %v480
    %v482 = vpop.xlane.xlu0 %481
    %v483 = vrot.slane %v482, 4
    %v484 = vadd.f32 %v482, %v483
    %v485 = vrot.slane %v484, 2
    %v486 = vadd.f32 %v484, %v485
    %v487 = vrot.slane %v486, 1
    %v488 = vadd.f32 %v486, %v487
    %s489 = vtos %v488
    %v490 = vmul.f32 %v474, %v474
    %v491 = vmul.f32 %v475, %v475
    %v492 = vmul.f32 %v476, %v476
    %v493 = vmul.f32 %v477, %v477
    %v494 = vadd.f32 %v490, %v491
    %v495 = vadd.f32 %v494, %v492
    %v496 = vadd.f32 %v495, %v493
    %497 = vadd.xlane.f32.xlu0 %v496
    %v498 = vpop.xlane.xlu0 %497
    %v499 = vrot.slane %v498, 4
    %v500 = vadd.f32 %v498, %v499
    %v501 = vrot.slane %v500, 2
    %v502 = vadd.f32 %v500, %v501
    %v503 = vrot.slane %v502, 1
    %v504 = vadd.f32 %v502, %v503
    %s505 = vtos %v504
    %s506 = smul.f32 %s489, 0.001953125
    %s507 = smul.f32 %s505, 0.001953125
    %s508 = smul.f32 %s506, %s506
    %s509 = ssub.f32 %s507, %s508
    %s510 = smax.f32 %s509, 0.0
    %s511 = sld [smem:[#allocation9]]
    %s512 = sadd.f32 %s510, 1e-05
    %v513 = vstv %s512
    %v514 = vrsqrt.pop %v513
    %v515 = vmul.f32 %v514, %v513
    %v516 = vmul.f32 %v515, %v514
    %v517 = vmul.f32 0.5, %v516
    %v518 = vsub.f32 1.5, %v517
    %v519 = vmul.f32 %v514, %v518
    %vm520 = vweird.f32 %v513
    %vm521 = vweird.f32 %v514
    %vm522 = vmor %vm520, %vm521
    %v523 = vsel %vm522, %v514, %v519
    %s524 = vtos %v523
    %s525 = smul.f32 %s511, %s524
    %s526 = sld [smem:[#allocation10]]
    %s527 = smul.f32 %s506, %s525
    %s528 = ssub.f32 %s526, %s527
    %v529 = vstv %s525
    %v530 = vmul.f32 %v474, %v529
    %v531 = vmul.f32 %v475, %v529
    %v532 = vmul.f32 %v476, %v529
    %v533 = vmul.f32 %v477, %v529
    %v534 = vstv %s528
    %v535 = vmul.f32 %v534, %v109
    %v536 = vadd.f32 %v530, %v535
    %v537 = vadd.f32 %v531, %v535
    %v538 = vadd.f32 %v532, %v535
    %v539 = vadd.f32 %v533, %v535
    %v540 = vmax.f32 %v536, 0.0
    %v541 = vmax.f32 %v537, 0.0
    %v542 = vmax.f32 %v538, 0.0
    %v543 = vmax.f32 %v539, 0.0
    %544 = vrot.lane.b32.xlu0 %v540, 1
    %v545 = vpop.permute.xlu0 %544
    %546 = vrot.lane.b32.xlu0 %v541, 1
    %v547 = vpop.permute.xlu0 %546
    %548 = vrot.lane.b32.xlu0 %v542, 1
    %v549 = vpop.permute.xlu0 %548
    %550 = vrot.lane.b32.xlu0 %v543, 1
    %v551 = vpop.permute.xlu0 %550
    %552 = vrot.lane.b32.xlu0 %v540, 127
    %v553 = vpop.permute.xlu0 %552
    %554 = vrot.lane.b32.xlu0 %v541, 127
    %v555 = vpop.permute.xlu0 %554
    %556 = vrot.lane.b32.xlu0 %v542, 127
    %v557 = vpop.permute.xlu0 %556
    %558 = vrot.lane.b32.xlu0 %v543, 127
    %v559 = vpop.permute.xlu0 %558
    %s560 = sld [smem:[#allocation2 + $0x12]]
    %v561 = vstv %s560
    %v562 = vmul.f32 %v561, %v545
    %v563 = vmul.f32 %v561, %v547
    %v564 = vmul.f32 %v561, %v549
    %v565 = vmul.f32 %v561, %v551
    %s566 = sld [smem:[#allocation2 + $0x13]]
    %v567 = vstv %s566
    %v568 = vmul.f32 %v567, %v540
    %v569 = vmul.f32 %v567, %v541
    %v570 = vmul.f32 %v567, %v542
    %v571 = vmul.f32 %v567, %v543
    %v572 = vadd.f32 %v562, %v568
    %v573 = vadd.f32 %v563, %v569
    %v574 = vadd.f32 %v564, %v570
    %v575 = vadd.f32 %v565, %v571
    %s576 = sld [smem:[#allocation2 + $0x14]]
    %v577 = vstv %s576
    %v578 = vmul.f32 %v577, %v553
    %v579 = vmul.f32 %v577, %v555
    %v580 = vmul.f32 %v577, %v557
    %v581 = vmul.f32 %v577, %v559
    %v582 = vadd.f32 %v572, %v578
    %v583 = vadd.f32 %v573, %v579
    %v584 = vadd.f32 %v574, %v580
    %v585 = vadd.f32 %v575, %v581
    %s586 = sld [smem:[#allocation2 + $0x15]]
    %v587 = vstv %s586
    %v588 = vmul.f32 %v587, %v545
    %v589 = vmul.f32 %v587, %v547
    %v590 = vmul.f32 %v587, %v549
    %v591 = vmul.f32 %v587, %v551
    %s592 = sld [smem:[#allocation2 + $0x16]]
    %v593 = vstv %s592
    %v594 = vmul.f32 %v593, %v540
    %v595 = vmul.f32 %v593, %v541
    %v596 = vmul.f32 %v593, %v542
    %v597 = vmul.f32 %v593, %v543
    %v598 = vadd.f32 %v588, %v594
    %v599 = vadd.f32 %v589, %v595
    %v600 = vadd.f32 %v590, %v596
    %v601 = vadd.f32 %v591, %v597
    %s602 = sld [smem:[#allocation2 + $0x17]]
    %v603 = vstv %s602
    %v604 = vmul.f32 %v603, %v553
    %v605 = vmul.f32 %v603, %v555
    %v606 = vmul.f32 %v603, %v557
    %v607 = vmul.f32 %v603, %v559
    %v608 = vadd.f32 %v598, %v604
    %v609 = vadd.f32 %v599, %v605
    %v610 = vadd.f32 %v600, %v606
    %v611 = vadd.f32 %v601, %v607
    %s612 = sld [smem:[#allocation2 + $0x18]]
    %v613 = vstv %s612
    %v614 = vmul.f32 %v613, %v545
    %v615 = vmul.f32 %v613, %v547
    %v616 = vmul.f32 %v613, %v549
    %v617 = vmul.f32 %v613, %v551
    %s618 = sld [smem:[#allocation2 + $0x19]]
    %v619 = vstv %s618
    %v620 = vmul.f32 %v619, %v540
    %v621 = vmul.f32 %v619, %v541
    %v622 = vmul.f32 %v619, %v542
    %v623 = vmul.f32 %v619, %v543
    %v624 = vadd.f32 %v614, %v620
    %v625 = vadd.f32 %v615, %v621
    %v626 = vadd.f32 %v616, %v622
    %v627 = vadd.f32 %v617, %v623
    %s628 = sld [smem:[#allocation2 + $0x1a]]
    %v629 = vstv %s628
    %v630 = vmul.f32 %v629, %v553
    %v631 = vmul.f32 %v629, %v555
    %v632 = vmul.f32 %v629, %v557
    %v633 = vmul.f32 %v629, %v559
    %v634 = vadd.f32 %v624, %v630
    %v635 = vadd.f32 %v625, %v631
    %v636 = vadd.f32 %v626, %v632
    %v637 = vadd.f32 %v627, %v633
    %638 = vmatpush.msra.mxu0 0.0
    %639 = vmatpush.msra.mxu0 0.0
    %640 = vmatpush.msra.mxu0 0.0
    %641 = vmatpush.msra.mxu0 0.0
    %642 = vmatpush.msra.mxu0 0.0
    %643 = vmatpush.msra.mxu0 0.0
    %644 = vmatpush.msra.mxu0 0.0
    %645 = vmatpush.msra.mxu0 0.0
    %646 = vmatpush.msra.mxu0 0.0
    %647 = vmatpush.msra.mxu0 0.0
    %648 = vmatpush.msra.mxu0 0.0
    %649 = vmatpush.msra.mxu0 0.0
    %650 = vmatpush.msra.mxu0 %v585
    %651 = vmatpush.msra.mxu0 %v584
    %652 = vmatpush.msra.mxu0 %v583
    %653 = vmatpush.msra.mxu0 %v582
    %654 = vmatmul.f32.gmra.mxu0 %v219
    %v655 = vpop.f32.mrf.mxu0
    %v656 = vadd.f32 %v608, %v655
    %657 = vmatmul.f32.gmra.mxu0 %v222
    %v658 = vpop.f32.mrf.mxu0
    %v659 = vadd.f32 %v609, %v658
    %660 = vmatmul.f32.gmra.mxu0 %v225
    %v661 = vpop.f32.mrf.mxu0
    %v662 = vadd.f32 %v610, %v661
    %663 = vmatmul.f32.gmra.mxu0 %v228
    %v664 = vpop.f32.mrf.mxu0
    %v665 = vadd.f32 %v611, %v664
    %666 = vdwg.mxu0
    %667 = vmatpush.msra.mxu0 0.0
    %668 = vmatpush.msra.mxu0 0.0
    %669 = vmatpush.msra.mxu0 0.0
    %670 = vmatpush.msra.mxu0 0.0
    %671 = vmatpush.msra.mxu0 0.0
    %672 = vmatpush.msra.mxu0 0.0
    %673 = vmatpush.msra.mxu0 0.0
    %674 = vmatpush.msra.mxu0 0.0
    %675 = vmatpush.msra.mxu0 0.0
    %676 = vmatpush.msra.mxu0 0.0
    %677 = vmatpush.msra.mxu0 0.0
    %678 = vmatpush.msra.mxu0 0.0
    %679 = vmatpush.msra.mxu0 %v637
    %680 = vmatpush.msra.mxu0 %v636
    %681 = vmatpush.msra.mxu0 %v635
    %682 = vmatpush.msra.mxu0 %v634
    %683 = vmatmul.f32.gmra.mxu0 %v260
    %v684 = vpop.f32.mrf.mxu0
    %v685 = vadd.f32 0.0, %v684
    %686 = vmatmul.f32.gmra.mxu0 %v263
    %v687 = vpop.f32.mrf.mxu0
    %v688 = vadd.f32 0.0, %v687
    %689 = vmatmul.f32.gmra.mxu0 %v266
    %v690 = vpop.f32.mrf.mxu0
    %v691 = vadd.f32 0.0, %v690
    %692 = vmatmul.f32.gmra.mxu0 %v269
    %v693 = vpop.f32.mrf.mxu0
    %v694 = vadd.f32 0.0, %v693
    %695 = vdwg.mxu0
    %v696 = vadd.f32 %v656, %v685
    %v697 = vadd.f32 %v659, %v688
    %v698 = vadd.f32 %v662, %v691
    %v699 = vadd.f32 %v665, %v694
    %v700 = vmul.f32 %v696, %v109
    %v701 = vmul.f32 %v697, %v109
    %v702 = vmul.f32 %v698, %v109
    %v703 = vmul.f32 %v699, %v109
    %v704 = vadd.f32 %v700, %v701
    %v705 = vadd.f32 %v704, %v702
    %v706 = vadd.f32 %v705, %v703
    %707 = vadd.xlane.f32.xlu0 %v706
    %v708 = vpop.xlane.xlu0 %707
    %v709 = vrot.slane %v708, 4
    %v710 = vadd.f32 %v708, %v709
    %v711 = vrot.slane %v710, 2
    %v712 = vadd.f32 %v710, %v711
    %v713 = vrot.slane %v712, 1
    %v714 = vadd.f32 %v712, %v713
    %s715 = vtos %v714
    %v716 = vmul.f32 %v700, %v700
    %v717 = vmul.f32 %v701, %v701
    %v718 = vmul.f32 %v702, %v702
    %v719 = vmul.f32 %v703, %v703
    %v720 = vadd.f32 %v716, %v717
    %v721 = vadd.f32 %v720, %v718
    %v722 = vadd.f32 %v721, %v719
    %723 = vadd.xlane.f32.xlu0 %v722
    %v724 = vpop.xlane.xlu0 %723
    %v725 = vrot.slane %v724, 4
    %v726 = vadd.f32 %v724, %v725
    %v727 = vrot.slane %v726, 2
    %v728 = vadd.f32 %v726, %v727
    %v729 = vrot.slane %v728, 1
    %v730 = vadd.f32 %v728, %v729
    %s731 = vtos %v730
    %s732 = smul.f32 %s715, 0.001953125
    %s733 = smul.f32 %s731, 0.001953125
    %s734 = smul.f32 %s732, %s732
    %s735 = ssub.f32 %s733, %s734
    %s736 = smax.f32 %s735, 0.0
    %s737 = sld [smem:[#allocation9 + $0x1]]
    %s738 = sadd.f32 %s736, 1e-05
    %v739 = vstv %s738
    %v740 = vrsqrt.pop %v739
    %v741 = vmul.f32 %v740, %v739
    %v742 = vmul.f32 %v741, %v740
    %v743 = vmul.f32 0.5, %v742
    %v744 = vsub.f32 1.5, %v743
    %v745 = vmul.f32 %v740, %v744
    %vm746 = vweird.f32 %v739
    %vm747 = vweird.f32 %v740
    %vm748 = vmor %vm746, %vm747
    %v749 = vsel %vm748, %v740, %v745
    %s750 = vtos %v749
    %s751 = smul.f32 %s737, %s750
    %s752 = sld [smem:[#allocation10 + $0x1]]
    %s753 = smul.f32 %s732, %s751
    %s754 = ssub.f32 %s752, %s753
    %v755 = vstv %s751
    %v756 = vmul.f32 %v700, %v755
    %v757 = vmul.f32 %v701, %v755
    %v758 = vmul.f32 %v702, %v755
    %v759 = vmul.f32 %v703, %v755
    %v760 = vstv %s754
    %v761 = vmul.f32 %v760, %v109
    %v762 = vadd.f32 %v756, %v761
    %v763 = vadd.f32 %v757, %v761
    %v764 = vadd.f32 %v758, %v761
    %v765 = vadd.f32 %v759, %v761
    %v766 = vadd.f32 %v314, %v762
    %v767 = vadd.f32 %v315, %v763
    %v768 = vadd.f32 %v316, %v764
    %v769 = vadd.f32 %v317, %v765
    %770 = vrot.lane.b32.xlu0 %v766, 1
    %v771 = vpop.permute.xlu0 %770
    %772 = vrot.lane.b32.xlu0 %v767, 1
    %v773 = vpop.permute.xlu0 %772
    %774 = vrot.lane.b32.xlu0 %v768, 1
    %v775 = vpop.permute.xlu0 %774
    %776 = vrot.lane.b32.xlu0 %v769, 1
    %v777 = vpop.permute.xlu0 %776
    %778 = vrot.lane.b32.xlu0 %v766, 127
    %v779 = vpop.permute.xlu0 %778
    %780 = vrot.lane.b32.xlu0 %v767, 127
    %v781 = vpop.permute.xlu0 %780
    %782 = vrot.lane.b32.xlu0 %v768, 127
    %v783 = vpop.permute.xlu0 %782
    %784 = vrot.lane.b32.xlu0 %v769, 127
    %v785 = vpop.permute.xlu0 %784
    %s786 = sld [smem:[#allocation2 + $0x1b]]
    %v787 = vstv %s786
    %v788 = vmul.f32 %v787, %v771
    %v789 = vmul.f32 %v787, %v773
    %v790 = vmul.f32 %v787, %v775
    %v791 = vmul.f32 %v787, %v777
    %s792 = sld [smem:[#allocation2 + $0x1c]]
    %v793 = vstv %s792
    %v794 = vmul.f32 %v793, %v766
    %v795 = vmul.f32 %v793, %v767
    %v796 = vmul.f32 %v793, %v768
    %v797 = vmul.f32 %v793, %v769
    %v798 = vadd.f32 %v788, %v794
    %v799 = vadd.f32 %v789, %v795
    %v800 = vadd.f32 %v790, %v796
    %v801 = vadd.f32 %v791, %v797
    %s802 = sld [smem:[#allocation2 + $0x1d]]
    %v803 = vstv %s802
    %v804 = vmul.f32 %v803, %v779
    %v805 = vmul.f32 %v803, %v781
    %v806 = vmul.f32 %v803, %v783
    %v807 = vmul.f32 %v803, %v785
    %v808 = vadd.f32 %v798, %v804
    %v809 = vadd.f32 %v799, %v805
    %v810 = vadd.f32 %v800, %v806
    %v811 = vadd.f32 %v801, %v807
    %s812 = sld [smem:[#allocation2 + $0x1e]]
    %v813 = vstv %s812
    %v814 = vmul.f32 %v813, %v771
    %v815 = vmul.f32 %v813, %v773
    %v816 = vmul.f32 %v813, %v775
    %v817 = vmul.f32 %v813, %v777
    %s818 = sld [smem:[#allocation2 + $0x1f]]
    %v819 = vstv %s818
    %v820 = vmul.f32 %v819, %v766
    %v821 = vmul.f32 %v819, %v767
    %v822 = vmul.f32 %v819, %v768
    %v823 = vmul.f32 %v819, %v769
    %v824 = vadd.f32 %v814, %v820
    %v825 = vadd.f32 %v815, %v821
    %v826 = vadd.f32 %v816, %v822
    %v827 = vadd.f32 %v817, %v823
    %s828 = sld [smem:[#allocation2 + $0x20]]
    %v829 = vstv %s828
    %v830 = vmul.f32 %v829, %v779
    %v831 = vmul.f32 %v829, %v781
    %v832 = vmul.f32 %v829, %v783
    %v833 = vmul.f32 %v829, %v785
    %v834 = vadd.f32 %v824, %v830
    %v835 = vadd.f32 %v825, %v831
    %v836 = vadd.f32 %v826, %v832
    %v837 = vadd.f32 %v827, %v833
    %s838 = sld [smem:[#allocation2 + $0x21]]
    %v839 = vstv %s838
    %v840 = vmul.f32 %v839, %v771
    %v841 = vmul.f32 %v839, %v773
    %v842 = vmul.f32 %v839, %v775
    %v843 = vmul.f32 %v839, %v777
    %s844 = sld [smem:[#allocation2 + $0x22]]
    %v845 = vstv %s844
    %v846 = vmul.f32 %v845, %v766
    %v847 = vmul.f32 %v845, %v767
    %v848 = vmul.f32 %v845, %v768
    %v849 = vmul.f32 %v845, %v769
    %v850 = vadd.f32 %v840, %v846
    %v851 = vadd.f32 %v841, %v847
    %v852 = vadd.f32 %v842, %v848
    %v853 = vadd.f32 %v843, %v849
    %s854 = sld [smem:[#allocation2 + $0x23]]
    %v855 = vstv %s854
    %v856 = vmul.f32 %v855, %v779
    %v857 = vmul.f32 %v855, %v781
    %v858 = vmul.f32 %v855, %v783
    %v859 = vmul.f32 %v855, %v785
    %v860 = vadd.f32 %v850, %v856
    %v861 = vadd.f32 %v851, %v857
    %v862 = vadd.f32 %v852, %v858
    %v863 = vadd.f32 %v853, %v859
    %864 = vmatpush.msra.mxu0 0.0
    %865 = vmatpush.msra.mxu0 0.0
    %866 = vmatpush.msra.mxu0 0.0
    %867 = vmatpush.msra.mxu0 0.0
    %868 = vmatpush.msra.mxu0 0.0
    %869 = vmatpush.msra.mxu0 0.0
    %870 = vmatpush.msra.mxu0 0.0
    %871 = vmatpush.msra.mxu0 0.0
    %872 = vmatpush.msra.mxu0 0.0
    %873 = vmatpush.msra.mxu0 0.0
    %874 = vmatpush.msra.mxu0 0.0
    %875 = vmatpush.msra.mxu0 0.0
    %876 = vmatpush.msra.mxu0 %v811
    %877 = vmatpush.msra.mxu0 %v810
    %878 = vmatpush.msra.mxu0 %v809
    %879 = vmatpush.msra.mxu0 %v808
    %880 = vmatmul.f32.gmra.mxu0 %v219
    %v881 = vpop.f32.mrf.mxu0
    %v882 = vadd.f32 %v834, %v881
    %883 = vmatmul.f32.gmra.mxu0 %v222
    %v884 = vpop.f32.mrf.mxu0
    %v885 = vadd.f32 %v835, %v884
    %886 = vmatmul.f32.gmra.mxu0 %v225
    %v887 = vpop.f32.mrf.mxu0
    %v888 = vadd.f32 %v836, %v887
    %889 = vmatmul.f32.gmra.mxu0 %v228
    %v890 = vpop.f32.mrf.mxu0
    %v891 = vadd.f32 %v837, %v890
    %892 = vdwg.mxu0
    %893 = vmatpush.msra.mxu0 0.0
    %894 = vmatpush.msra.mxu0 0.0
    %895 = vmatpush.msra.mxu0 0.0
    %896 = vmatpush.msra.mxu0 0.0
    %897 = vmatpush.msra.mxu0 0.0
    %898 = vmatpush.msra.mxu0 0.0
    %899 = vmatpush.msra.mxu0 0.0
    %900 = vmatpush.msra.mxu0 0.0
    %901 = vmatpush.msra.mxu0 0.0
    %902 = vmatpush.msra.mxu0 0.0
    %903 = vmatpush.msra.mxu0 0.0
    %904 = vmatpush.msra.mxu0 0.0
    %905 = vmatpush.msra.mxu0 %v863
    %906 = vmatpush.msra.mxu0 %v862
    %907 = vmatpush.msra.mxu0 %v861
    %908 = vmatpush.msra.mxu0 %v860
    %909 = vmatmul.f32.gmra.mxu0 %v260
    %v910 = vpop.f32.mrf.mxu0
    %v911 = vadd.f32 0.0, %v910
    %912 = vmatmul.f32.gmra.mxu0 %v263
    %v913 = vpop.f32.mrf.mxu0
    %v914 = vadd.f32 0.0, %v913
    %915 = vmatmul.f32.gmra.mxu0 %v266
    %v916 = vpop.f32.mrf.mxu0
    %v917 = vadd.f32 0.0, %v916
    %918 = vmatmul.f32.gmra.mxu0 %v269
    %v919 = vpop.f32.mrf.mxu0
    %v920 = vadd.f32 0.0, %v919
    %921 = vdwg.mxu0
    %v922 = vadd.f32 %v882, %v911
    %v923 = vadd.f32 %v885, %v914
    %v924 = vadd.f32 %v888, %v917
    %v925 = vadd.f32 %v891, %v920
    %v926 = vmul.f32 %v922, %v109
    %v927 = vmul.f32 %v923, %v109
    %v928 = vmul.f32 %v924, %v109
    %v929 = vmul.f32 %v925, %v109
    %v930 = vadd.f32 %v926, %v927
    %v931 = vadd.f32 %v930, %v928
    %v932 = vadd.f32 %v931, %v929
    %933 = vadd.xlane.f32.xlu0 %v932
    %v934 = vpop.xlane.xlu0 %933
    %v935 = vrot.slane %v934, 4
    %v936 = vadd.f32 %v934, %v935
    %v937 = vrot.slane %v936, 2
    %v938 = vadd.f32 %v936, %v937
    %v939 = vrot.slane %v938, 1
    %v940 = vadd.f32 %v938, %v939
    %s941 = vtos %v940
    %v942 = vmul.f32 %v926, %v926
    %v943 = vmul.f32 %v927, %v927
    %v944 = vmul.f32 %v928, %v928
    %v945 = vmul.f32 %v929, %v929
    %v946 = vadd.f32 %v942, %v943
    %v947 = vadd.f32 %v946, %v944
    %v948 = vadd.f32 %v947, %v945
    %949 = vadd.xlane.f32.xlu0 %v948
    %v950 = vpop.xlane.xlu0 %949
    %v951 = vrot.slane %v950, 4
    %v952 = vadd.f32 %v950, %v951
    %v953 = vrot.slane %v952, 2
    %v954 = vadd.f32 %v952, %v953
    %v955 = vrot.slane %v954, 1
    %v956 = vadd.f32 %v954, %v955
    %s957 = vtos %v956
    %s958 = smul.f32 %s941, 0.001953125
    %s959 = smul.f32 %s957, 0.001953125
    %s960 = smul.f32 %s958, %s958
    %s961 = ssub.f32 %s959, %s960
    %s962 = smax.f32 %s961, 0.0
    %s963 = sld [smem:[#allocation9 + $0x2]]
    %s964 = sadd.f32 %s962, 1e-05
    %v965 = vstv %s964
    %v966 = vrsqrt.pop %v965
    %v967 = vmul.f32 %v966, %v965
    %v968 = vmul.f32 %v967, %v966
    %v969 = vmul.f32 0.5, %v968
    %v970 = vsub.f32 1.5, %v969
    %v971 = vmul.f32 %v966, %v970
    %vm972 = vweird.f32 %v965
    %vm973 = vweird.f32 %v966
    %vm974 = vmor %vm972, %vm973
    %v975 = vsel %vm974, %v966, %v971
    %s976 = vtos %v975
    %s977 = smul.f32 %s963, %s976
    %s978 = sld [smem:[#allocation10 + $0x2]]
    %s979 = smul.f32 %s958, %s977
    %s980 = ssub.f32 %s978, %s979
    %v981 = vstv %s977
    %v982 = vmul.f32 %v926, %v981
    %v983 = vmul.f32 %v927, %v981
    %v984 = vmul.f32 %v928, %v981
    %v985 = vmul.f32 %v929, %v981
    %v986 = vstv %s980
    %v987 = vmul.f32 %v986, %v109
    %v988 = vadd.f32 %v982, %v987
    %v989 = vadd.f32 %v983, %v987
    %v990 = vadd.f32 %v984, %v987
    %v991 = vadd.f32 %v985, %v987
    %v992 = vmax.f32 %v988, 0.0
    %v993 = vmax.f32 %v989, 0.0
    %v994 = vmax.f32 %v990, 0.0
    %v995 = vmax.f32 %v991, 0.0
    %996 = vrot.lane.b32.xlu0 %v992, 1
    %v997 = vpop.permute.xlu0 %996
    %998 = vrot.lane.b32.xlu0 %v993, 1
    %v999 = vpop.permute.xlu0 %998
    %1000 = vrot.lane.b32.xlu0 %v994, 1
    %v1001 = vpop.permute.xlu0 %1000
    %1002 = vrot.lane.b32.xlu0 %v995, 1
    %v1003 = vpop.permute.xlu0 %1002
    %1004 = vrot.lane.b32.xlu0 %v992, 127
    %v1005 = vpop.permute.xlu0 %1004
    %1006 = vrot.lane.b32.xlu0 %v993, 127
    %v1007 = vpop.permute.xlu0 %1006
    %1008 = vrot.lane.b32.xlu0 %v994, 127
    %v1009 = vpop.permute.xlu0 %1008
    %1010 = vrot.lane.b32.xlu0 %v995, 127
    %v1011 = vpop.permute.xlu0 %1010
    %s1012 = sld [smem:[#allocation2 + $0x24]]
    %v1013 = vstv %s1012
    %v1014 = vmul.f32 %v1013, %v997
    %v1015 = vmul.f32 %v1013, %v999
    %v1016 = vmul.f32 %v1013, %v1001
    %v1017 = vmul.f32 %v1013, %v1003
    %s1018 = sld [smem:[#allocation2 + $0x25]]
    %v1019 = vstv %s1018
    %v1020 = vmul.f32 %v1019, %v992
    %v1021 = vmul.f32 %v1019, %v993
    %v1022 = vmul.f32 %v1019, %v994
    %v1023 = vmul.f32 %v1019, %v995
    %v1024 = vadd.f32 %v1014, %v1020
    %v1025 = vadd.f32 %v1015, %v1021
    %v1026 = vadd.f32 %v1016, %v1022
    %v1027 = vadd.f32 %v1017, %v1023
    %s1028 = sld [smem:[#allocation2 + $0x26]]
    %v1029 = vstv %s1028
    %v1030 = vmul.f32 %v1029, %v1005
    %v1031 = vmul.f32 %v1029, %v1007
    %v1032 = vmul.f32 %v1029, %v1009
    %v1033 = vmul.f32 %v1029, %v1011
    %v1034 = vadd.f32 %v1024, %v1030
    %v1035 = vadd.f32 %v1025, %v1031
    %v1036 = vadd.f32 %v1026, %v1032
    %v1037 = vadd.f32 %v1027, %v1033
    %s1038 = sld [smem:[#allocation2 + $0x27]]
    %v1039 = vstv %s1038
    %v1040 = vmul.f32 %v1039, %v997
    %v1041 = vmul.f32 %v1039, %v999
    %v1042 = vmul.f32 %v1039, %v1001
    %v1043 = vmul.f32 %v1039, %v1003
    %s1044 = sld [smem:[#allocation2 + $0x28]]
    %v1045 = vstv %s1044
    %v1046 = vmul.f32 %v1045, %v992
    %v1047 = vmul.f32 %v1045, %v993
    %v1048 = vmul.f32 %v1045, %v994
    %v1049 = vmul.f32 %v1045, %v995
    %v1050 = vadd.f32 %v1040, %v1046
    %v1051 = vadd.f32 %v1041, %v1047
    %v1052 = vadd.f32 %v1042, %v1048
    %v1053 = vadd.f32 %v1043, %v1049
    %s1054 = sld [smem:[#allocation2 + $0x29]]
    %v1055 = vstv %s1054
    %v1056 = vmul.f32 %v1055, %v1005
    %v1057 = vmul.f32 %v1055, %v1007
    %v1058 = vmul.f32 %v1055, %v1009
    %v1059 = vmul.f32 %v1055, %v1011
    %v1060 = vadd.f32 %v1050, %v1056
    %v1061 = vadd.f32 %v1051, %v1057
    %v1062 = vadd.f32 %v1052, %v1058
    %v1063 = vadd.f32 %v1053, %v1059
    %s1064 = sld [smem:[#allocation2 + $0x2a]]
    %v1065 = vstv %s1064
    %v1066 = vmul.f32 %v1065, %v997
    %v1067 = vmul.f32 %v1065, %v999
    %v1068 = vmul.f32 %v1065, %v1001
    %v1069 = vmul.f32 %v1065, %v1003
    %s1070 = sld [smem:[#allocation2 + $0x2b]]
    %v1071 = vstv %s1070
    %v1072 = vmul.f32 %v1071, %v992
    %v1073 = vmul.f32 %v1071, %v993
    %v1074 = vmul.f32 %v1071, %v994
    %v1075 = vmul.f32 %v1071, %v995
    %v1076 = vadd.f32 %v1066, %v1072
    %v1077 = vadd.f32 %v1067, %v1073
    %v1078 = vadd.f32 %v1068, %v1074
    %v1079 = vadd.f32 %v1069, %v1075
    %s1080 = sld [smem:[#allocation2 + $0x2c]]
    %v1081 = vstv %s1080
    %v1082 = vmul.f32 %v1081, %v1005
    %v1083 = vmul.f32 %v1081, %v1007
    %v1084 = vmul.f32 %v1081, %v1009
    %v1085 = vmul.f32 %v1081, %v1011
    %v1086 = vadd.f32 %v1076, %v1082
    %v1087 = vadd.f32 %v1077, %v1083
    %v1088 = vadd.f32 %v1078, %v1084
    %v1089 = vadd.f32 %v1079, %v1085
    %1090 = vmatpush.msra.mxu0 0.0
    %1091 = vmatpush.msra.mxu0 0.0
    %1092 = vmatpush.msra.mxu0 0.0
    %1093 = vmatpush.msra.mxu0 0.0
    %1094 = vmatpush.msra.mxu0 0.0
    %1095 = vmatpush.msra.mxu0 0.0
    %1096 = vmatpush.msra.mxu0 0.0
    %1097 = vmatpush.msra.mxu0 0.0
    %1098 = vmatpush.msra.mxu0 0.0
    %1099 = vmatpush.msra.mxu0 0.0
    %1100 = vmatpush.msra.mxu0 0.0
    %1101 = vmatpush.msra.mxu0 0.0
    %1102 = vmatpush.msra.mxu0 %v1037
    %1103 = vmatpush.msra.mxu0 %v1036
    %1104 = vmatpush.msra.mxu0 %v1035
    %1105 = vmatpush.msra.mxu0 %v1034
    %1106 = vmatmul.f32.gmra.mxu0 %v219
    %v1107 = vpop.f32.mrf.mxu0
    %v1108 = vadd.f32 %v1060, %v1107
    %1109 = vmatmul.f32.gmra.mxu0 %v222
    %v1110 = vpop.f32.mrf.mxu0
    %v1111 = vadd.f32 %v1061, %v1110
    %1112 = vmatmul.f32.gmra.mxu0 %v225
    %v1113 = vpop.f32.mrf.mxu0
    %v1114 = vadd.f32 %v1062, %v1113
    %1115 = vmatmul.f32.gmra.mxu0 %v228
    %v1116 = vpop.f32.mrf.mxu0
    %v1117 = vadd.f32 %v1063, %v1116
    %1118 = vdwg.mxu0
    %1119 = vmatpush.msra.mxu0 0.0
    %1120 = vmatpush.msra.mxu0 0.0
    %1121 = vmatpush.msra.mxu0 0.0
    %1122 = vmatpush.msra.mxu0 0.0
    %1123 = vmatpush.msra.mxu0 0.0
    %1124 = vmatpush.msra.mxu0 0.0
    %1125 = vmatpush.msra.mxu0 0.0
    %1126 = vmatpush.msra.mxu0 0.0
    %1127 = vmatpush.msra.mxu0 0.0
    %1128 = vmatpush.msra.mxu0 0.0
    %1129 = vmatpush.msra.mxu0 0.0
    %1130 = vmatpush.msra.mxu0 0.0
    %1131 = vmatpush.msra.mxu0 %v1089
    %1132 = vmatpush.msra.mxu0 %v1088
    %1133 = vmatpush.msra.mxu0 %v1087
    %1134 = vmatpush.msra.mxu0 %v1086
    %1135 = vmatmul.f32.gmra.mxu0 %v260
    %v1136 = vpop.f32.mrf.mxu0
    %v1137 = vadd.f32 0.0, %v1136
    %1138 = vmatmul.f32.gmra.mxu0 %v263
    %v1139 = vpop.f32.mrf.mxu0
    %v1140 = vadd.f32 0.0, %v1139
    %1141 = vmatmul.f32.gmra.mxu0 %v266
    %v1142 = vpop.f32.mrf.mxu0
    %v1143 = vadd.f32 0.0, %v1142
    %1144 = vmatmul.f32.gmra.mxu0 %v269
    %v1145 = vpop.f32.mrf.mxu0
    %v1146 = vadd.f32 0.0, %v1145
    %1147 = vdwg.mxu0
    %v1148 = vadd.f32 %v1108, %v1137
    %v1149 = vadd.f32 %v1111, %v1140
    %v1150 = vadd.f32 %v1114, %v1143
    %v1151 = vadd.f32 %v1117, %v1146
    %v1152 = vmul.f32 %v1148, %v109
    %v1153 = vmul.f32 %v1149, %v109
    %v1154 = vmul.f32 %v1150, %v109
    %v1155 = vmul.f32 %v1151, %v109
    %v1156 = vadd.f32 %v1152, %v1153
    %v1157 = vadd.f32 %v1156, %v1154
    %v1158 = vadd.f32 %v1157, %v1155
    %1159 = vadd.xlane.f32.xlu0 %v1158
    %v1160 = vpop.xlane.xlu0 %1159
    %v1161 = vrot.slane %v1160, 4
    %v1162 = vadd.f32 %v1160, %v1161
    %v1163 = vrot.slane %v1162, 2
    %v1164 = vadd.f32 %v1162, %v1163
    %v1165 = vrot.slane %v1164, 1
    %v1166 = vadd.f32 %v1164, %v1165
    %s1167 = vtos %v1166
    %v1168 = vmul.f32 %v1152, %v1152
    %v1169 = vmul.f32 %v1153, %v1153
    %v1170 = vmul.f32 %v1154, %v1154
    %v1171 = vmul.f32 %v1155, %v1155
    %v1172 = vadd.f32 %v1168, %v1169
    %v1173 = vadd.f32 %v1172, %v1170
    %v1174 = vadd.f32 %v1173, %v1171
    %1175 = vadd.xlane.f32.xlu0 %v1174
    %v1176 = vpop.xlane.xlu0 %1175
    %v1177 = vrot.slane %v1176, 4
    %v1178 = vadd.f32 %v1176, %v1177
    %v1179 = vrot.slane %v1178, 2
    %v1180 = vadd.f32 %v1178, %v1179
    %v1181 = vrot.slane %v1180, 1
    %v1182 = vadd.f32 %v1180, %v1181
    %s1183 = vtos %v1182
    %s1184 = smul.f32 %s1167, 0.001953125
    %s1185 = smul.f32 %s1183, 0.001953125
    %s1186 = smul.f32 %s1184, %s1184
    %s1187 = ssub.f32 %s1185, %s1186
    %s1188 = smax.f32 %s1187, 0.0
    %s1189 = sld [smem:[#allocation9 + $0x3]]
    %s1190 = sadd.f32 %s1188, 1e-05
    %v1191 = vstv %s1190
    %v1192 = vrsqrt.pop %v1191
    %v1193 = vmul.f32 %v1192, %v1191
    %v1194 = vmul.f32 %v1193, %v1192
    %v1195 = vmul.f32 0.5, %v1194
    %v1196 = vsub.f32 1.5, %v1195
    %v1197 = vmul.f32 %v1192, %v1196
    %vm1198 = vweird.f32 %v1191
    %vm1199 = vweird.f32 %v1192
    %vm1200 = vmor %vm1198, %vm1199
    %v1201 = vsel %vm1200, %v1192, %v1197
    %s1202 = vtos %v1201
    %s1203 = smul.f32 %s1189, %s1202
    %s1204 = sld [smem:[#allocation10 + $0x3]]
    %s1205 = smul.f32 %s1184, %s1203
    %s1206 = ssub.f32 %s1204, %s1205
    %v1207 = vstv %s1203
    %v1208 = vmul.f32 %v1152, %v1207
    %v1209 = vmul.f32 %v1153, %v1207
    %v1210 = vmul.f32 %v1154, %v1207
    %v1211 = vmul.f32 %v1155, %v1207
    %v1212 = vstv %s1206
    %v1213 = vmul.f32 %v1212, %v109
    %v1214 = vadd.f32 %v1208, %v1213
    %v1215 = vadd.f32 %v1209, %v1213
    %v1216 = vadd.f32 %v1210, %v1213
    %v1217 = vadd.f32 %v1211, %v1213
    %v1218 = vadd.f32 %v766, %v1214
    %v1219 = vadd.f32 %v767, %v1215
    %v1220 = vadd.f32 %v768, %v1216
    %v1221 = vadd.f32 %v769, %v1217
    %1222 = vrot.lane.b32.xlu0 %v1218, 1
    %v1223 = vpop.permute.xlu0 %1222
    %1224 = vrot.lane.b32.xlu0 %v1219, 1
    %v1225 = vpop.permute.xlu0 %1224
    %1226 = vrot.lane.b32.xlu0 %v1220, 1
    %v1227 = vpop.permute.xlu0 %1226
    %1228 = vrot.lane.b32.xlu0 %v1221, 1
    %v1229 = vpop.permute.xlu0 %1228
    %1230 = vrot.lane.b32.xlu0 %v1218, 127
    %v1231 = vpop.permute.xlu0 %1230
    %1232 = vrot.lane.b32.xlu0 %v1219, 127
    %v1233 = vpop.permute.xlu0 %1232
    %1234 = vrot.lane.b32.xlu0 %v1220, 127
    %v1235 = vpop.permute.xlu0 %1234
    %1236 = vrot.lane.b32.xlu0 %v1221, 127
    %v1237 = vpop.permute.xlu0 %1236
    %s1238 = sld [smem:[#allocation2 + $0x2d]]
    %v1239 = vstv %s1238
    %v1240 = vmul.f32 %v1239, %v1223
    %v1241 = vmul.f32 %v1239, %v1225
    %v1242 = vmul.f32 %v1239, %v1227
    %v1243 = vmul.f32 %v1239, %v1229
    %s1244 = sld [smem:[#allocation2 + $0x2e]]
    %v1245 = vstv %s1244
    %v1246 = vmul.f32 %v1245, %v1218
    %v1247 = vmul.f32 %v1245, %v1219
    %v1248 = vmul.f32 %v1245, %v1220
    %v1249 = vmul.f32 %v1245, %v1221
    %v1250 = vadd.f32 %v1240, %v1246
    %v1251 = vadd.f32 %v1241, %v1247
    %v1252 = vadd.f32 %v1242, %v1248
    %v1253 = vadd.f32 %v1243, %v1249
    %s1254 = sld [smem:[#allocation2 + $0x2f]]
    %v1255 = vstv %s1254
    %v1256 = vmul.f32 %v1255, %v1231
    %v1257 = vmul.f32 %v1255, %v1233
    %v1258 = vmul.f32 %v1255, %v1235
    %v1259 = vmul.f32 %v1255, %v1237
    %v1260 = vadd.f32 %v1250, %v1256
    %v1261 = vadd.f32 %v1251, %v1257
    %v1262 = vadd.f32 %v1252, %v1258
    %v1263 = vadd.f32 %v1253, %v1259
    %s1264 = sld [smem:[#allocation2 + $0x30]]
    %v1265 = vstv %s1264
    %v1266 = vmul.f32 %v1265, %v1223
    %v1267 = vmul.f32 %v1265, %v1225
    %v1268 = vmul.f32 %v1265, %v1227
    %v1269 = vmul.f32 %v1265, %v1229
    %s1270 = sld [smem:[#allocation2 + $0x31]]
    %v1271 = vstv %s1270
    %v1272 = vmul.f32 %v1271, %v1218
    %v1273 = vmul.f32 %v1271, %v1219
    %v1274 = vmul.f32 %v1271, %v1220
    %v1275 = vmul.f32 %v1271, %v1221
    %v1276 = vadd.f32 %v1266, %v1272
    %v1277 = vadd.f32 %v1267, %v1273
    %v1278 = vadd.f32 %v1268, %v1274
    %v1279 = vadd.f32 %v1269, %v1275
    %s1280 = sld [smem:[#allocation2 + $0x32]]
    %v1281 = vstv %s1280
    %v1282 = vmul.f32 %v1281, %v1231
    %v1283 = vmul.f32 %v1281, %v1233
    %v1284 = vmul.f32 %v1281, %v1235
    %v1285 = vmul.f32 %v1281, %v1237
    %v1286 = vadd.f32 %v1276, %v1282
    %v1287 = vadd.f32 %v1277, %v1283
    %v1288 = vadd.f32 %v1278, %v1284
    %v1289 = vadd.f32 %v1279, %v1285
    %s1290 = sld [smem:[#allocation2 + $0x33]]
    %v1291 = vstv %s1290
    %v1292 = vmul.f32 %v1291, %v1223
    %v1293 = vmul.f32 %v1291, %v1225
    %v1294 = vmul.f32 %v1291, %v1227
    %v1295 = vmul.f32 %v1291, %v1229
    %s1296 = sld [smem:[#allocation2 + $0x34]]
    %v1297 = vstv %s1296
    %v1298 = vmul.f32 %v1297, %v1218
    %v1299 = vmul.f32 %v1297, %v1219
    %v1300 = vmul.f32 %v1297, %v1220
    %v1301 = vmul.f32 %v1297, %v1221
    %v1302 = vadd.f32 %v1292, %v1298
    %v1303 = vadd.f32 %v1293, %v1299
    %v1304 = vadd.f32 %v1294, %v1300
    %v1305 = vadd.f32 %v1295, %v1301
    %s1306 = sld [smem:[#allocation2 + $0x35]]
    %v1307 = vstv %s1306
    %v1308 = vmul.f32 %v1307, %v1231
    %v1309 = vmul.f32 %v1307, %v1233
    %v1310 = vmul.f32 %v1307, %v1235
    %v1311 = vmul.f32 %v1307, %v1237
    %v1312 = vadd.f32 %v1302, %v1308
    %v1313 = vadd.f32 %v1303, %v1309
    %v1314 = vadd.f32 %v1304, %v1310
    %v1315 = vadd.f32 %v1305, %v1311
    %1316 = vmatpush.msra.mxu0 0.0
    %1317 = vmatpush.msra.mxu0 0.0
    %1318 = vmatpush.msra.mxu0 0.0
    %1319 = vmatpush.msra.mxu0 0.0
    %1320 = vmatpush.msra.mxu0 0.0
    %1321 = vmatpush.msra.mxu0 0.0
    %1322 = vmatpush.msra.mxu0 0.0
    %1323 = vmatpush.msra.mxu0 0.0
    %1324 = vmatpush.msra.mxu0 0.0
    %1325 = vmatpush.msra.mxu0 0.0
    %1326 = vmatpush.msra.mxu0 0.0
    %1327 = vmatpush.msra.mxu0 0.0
    %1328 = vmatpush.msra.mxu0 %v1263
    %1329 = vmatpush.msra.mxu0 %v1262
    %1330 = vmatpush.msra.mxu0 %v1261
    %1331 = vmatpush.msra.mxu0 %v1260
    %1332 = vmatmul.f32.gmra.mxu0 %v219
    %v1333 = vpop.f32.mrf.mxu0
    %v1334 = vadd.f32 %v1286, %v1333
    %1335 = vmatmul.f32.gmra.mxu0 %v222
    %v1336 = vpop.f32.mrf.mxu0
    %v1337 = vadd.f32 %v1287, %v1336
    %1338 = vmatmul.f32.gmra.mxu0 %v225
    %v1339 = vpop.f32.mrf.mxu0
    %v1340 = vadd.f32 %v1288, %v1339
    %1341 = vmatmul.f32.gmra.mxu0 %v228
    %v1342 = vpop.f32.mrf.mxu0
    %v1343 = vadd.f32 %v1289, %v1342
    %1344 = vdwg.mxu0
    %1345 = vmatpush.msra.mxu0 0.0
    %1346 = vmatpush.msra.mxu0 0.0
    %1347 = vmatpush.msra.mxu0 0.0
    %1348 = vmatpush.msra.mxu0 0.0
    %1349 = vmatpush.msra.mxu0 0.0
    %1350 = vmatpush.msra.mxu0 0.0
    %1351 = vmatpush.msra.mxu0 0.0
    %1352 = vmatpush.msra.mxu0 0.0
    %1353 = vmatpush.msra.mxu0 0.0
    %1354 = vmatpush.msra.mxu0 0.0
    %1355 = vmatpush.msra.mxu0 0.0
    %1356 = vmatpush.msra.mxu0 0.0
    %1357 = vmatpush.msra.mxu0 %v1315
    %1358 = vmatpush.msra.mxu0 %v1314
    %1359 = vmatpush.msra.mxu0 %v1313
    %1360 = vmatpush.msra.mxu0 %v1312
    %1361 = vmatmul.f32.gmra.mxu0 %v260
    %v1362 = vpop.f32.mrf.mxu0
    %v1363 = vadd.f32 0.0, %v1362
    %1364 = vmatmul.f32.gmra.mxu0 %v263
    %v1365 = vpop.f32.mrf.mxu0
    %v1366 = vadd.f32 0.0, %v1365
    %1367 = vmatmul.f32.gmra.mxu0 %v266
    %v1368 = vpop.f32.mrf.mxu0
    %v1369 = vadd.f32 0.0, %v1368
    %1370 = vmatmul.f32.gmra.mxu0 %v269
    %v1371 = vpop.f32.mrf.mxu0
    %v1372 = vadd.f32 0.0, %v1371
    %1373 = vdwg.mxu0
    %v1374 = vadd.f32 %v1334, %v1363
    %v1375 = vadd.f32 %v1337, %v1366
    %v1376 = vadd.f32 %v1340, %v1369
    %v1377 = vadd.f32 %v1343, %v1372
    %v1378 = vmul.f32 %v1374, %v109
    %v1379 = vmul.f32 %v1375, %v109
    %v1380 = vmul.f32 %v1376, %v109
    %v1381 = vmul.f32 %v1377, %v109
    %v1382 = vadd.f32 %v1378, %v1379
    %v1383 = vadd.f32 %v1382, %v1380
    %v1384 = vadd.f32 %v1383, %v1381
    %1385 = vadd.xlane.f32.xlu0 %v1384
    %v1386 = vpop.xlane.xlu0 %1385
    %v1387 = vrot.slane %v1386, 4
    %v1388 = vadd.f32 %v1386, %v1387
    %v1389 = vrot.slane %v1388, 2
    %v1390 = vadd.f32 %v1388, %v1389
    %v1391 = vrot.slane %v1390, 1
    %v1392 = vadd.f32 %v1390, %v1391
    %s1393 = vtos %v1392
    %v1394 = vmul.f32 %v1378, %v1378
    %v1395 = vmul.f32 %v1379, %v1379
    %v1396 = vmul.f32 %v1380, %v1380
    %v1397 = vmul.f32 %v1381, %v1381
    %v1398 = vadd.f32 %v1394, %v1395
    %v1399 = vadd.f32 %v1398, %v1396
    %v1400 = vadd.f32 %v1399, %v1397
    %1401 = vadd.xlane.f32.xlu0 %v1400
    %v1402 = vpop.xlane.xlu0 %1401
    %v1403 = vrot.slane %v1402, 4
    %v1404 = vadd.f32 %v1402, %v1403
    %v1405 = vrot.slane %v1404, 2
    %v1406 = vadd.f32 %v1404, %v1405
    %v1407 = vrot.slane %v1406, 1
    %v1408 = vadd.f32 %v1406, %v1407
    %s1409 = vtos %v1408
    %s1410 = smul.f32 %s1393, 0.001953125
    %s1411 = smul.f32 %s1409, 0.001953125
    %s1412 = smul.f32 %s1410, %s1410
    %s1413 = ssub.f32 %s1411, %s1412
    %s1414 = smax.f32 %s1413, 0.0
    %s1415 = sld [smem:[#allocation9 + $0x4]]
    %s1416 = sadd.f32 %s1414, 1e-05
    %v1417 = vstv %s1416
    %v1418 = vrsqrt.pop %v1417
    %v1419 = vmul.f32 %v1418, %v1417
    %v1420 = vmul.f32 %v1419, %v1418
    %v1421 = vmul.f32 0.5, %v1420
    %v1422 = vsub.f32 1.5, %v1421
    %v1423 = vmul.f32 %v1418, %v1422
    %vm1424 = vweird.f32 %v1417
    %vm1425 = vweird.f32 %v1418
    %vm1426 = vmor %vm1424, %vm1425
    %v1427 = vsel %vm1426, %v1418, %v1423
    %s1428 = vtos %v1427
    %s1429 = smul.f32 %s1415, %s1428
    %s1430 = sld [smem:[#allocation10 + $0x4]]
    %s1431 = smul.f32 %s1410, %s1429
    %s1432 = ssub.f32 %s1430, %s1431
    %v1433 = vstv %s1429
    %v1434 = vmul.f32 %v1378, %v1433
    %v1435 = vmul.f32 %v1379, %v1433
    %v1436 = vmul.f32 %v1380, %v1433
    %v1437 = vmul.f32 %v1381, %v1433
    %v1438 = vstv %s1432
    %v1439 = vmul.f32 %v1438, %v109
    %v1440 = vadd.f32 %v1434, %v1439
    %v1441 = vadd.f32 %v1435, %v1439
    %v1442 = vadd.f32 %v1436, %v1439
    %v1443 = vadd.f32 %v1437, %v1439
    %v1444 = vmax.f32 %v1440, 0.0
    %v1445 = vmax.f32 %v1441, 0.0
    %v1446 = vmax.f32 %v1442, 0.0
    %v1447 = vmax.f32 %v1443, 0.0
    %1448 = vrot.lane.b32.xlu0 %v1444, 1
    %v1449 = vpop.permute.xlu0 %1448
    %1450 = vrot.lane.b32.xlu0 %v1445, 1
    %v1451 = vpop.permute.xlu0 %1450
    %1452 = vrot.lane.b32.xlu0 %v1446, 1
    %v1453 = vpop.permute.xlu0 %1452
    %1454 = vrot.lane.b32.xlu0 %v1447, 1
    %v1455 = vpop.permute.xlu0 %1454
    %1456 = vrot.lane.b32.xlu0 %v1444, 127
    %v1457 = vpop.permute.xlu0 %1456
    %1458 = vrot.lane.b32.xlu0 %v1445, 127
    %v1459 = vpop.permute.xlu0 %1458
    %1460 = vrot.lane.b32.xlu0 %v1446, 127
    %v1461 = vpop.permute.xlu0 %1460
    %1462 = vrot.lane.b32.xlu0 %v1447, 127
    %v1463 = vpop.permute.xlu0 %1462
    %s1464 = sld [smem:[#allocation2 + $0x36]]
    %v1465 = vstv %s1464
    %v1466 = vmul.f32 %v1465, %v1449
    %v1467 = vmul.f32 %v1465, %v1451
    %v1468 = vmul.f32 %v1465, %v1453
    %v1469 = vmul.f32 %v1465, %v1455
    %s1470 = sld [smem:[#allocation2 + $0x37]]
    %v1471 = vstv %s1470
    %v1472 = vmul.f32 %v1471, %v1444
    %v1473 = vmul.f32 %v1471, %v1445
    %v1474 = vmul.f32 %v1471, %v1446
    %v1475 = vmul.f32 %v1471, %v1447
    %v1476 = vadd.f32 %v1466, %v1472
    %v1477 = vadd.f32 %v1467, %v1473
    %v1478 = vadd.f32 %v1468, %v1474
    %v1479 = vadd.f32 %v1469, %v1475
    %s1480 = sld [smem:[#allocation2 + $0x38]]
    %v1481 = vstv %s1480
    %v1482 = vmul.f32 %v1481, %v1457
    %v1483 = vmul.f32 %v1481, %v1459
    %v1484 = vmul.f32 %v1481, %v1461
    %v1485 = vmul.f32 %v1481, %v1463
    %v1486 = vadd.f32 %v1476, %v1482
    %v1487 = vadd.f32 %v1477, %v1483
    %v1488 = vadd.f32 %v1478, %v1484
    %v1489 = vadd.f32 %v1479, %v1485
    %s1490 = sld [smem:[#allocation2 + $0x39]]
    %v1491 = vstv %s1490
    %v1492 = vmul.f32 %v1491, %v1449
    %v1493 = vmul.f32 %v1491, %v1451
    %v1494 = vmul.f32 %v1491, %v1453
    %v1495 = vmul.f32 %v1491, %v1455
    %s1496 = sld [smem:[#allocation2 + $0x3a]]
    %v1497 = vstv %s1496
    %v1498 = vmul.f32 %v1497, %v1444
    %v1499 = vmul.f32 %v1497, %v1445
    %v1500 = vmul.f32 %v1497, %v1446
    %v1501 = vmul.f32 %v1497, %v1447
    %v1502 = vadd.f32 %v1492, %v1498
    %v1503 = vadd.f32 %v1493, %v1499
    %v1504 = vadd.f32 %v1494, %v1500
    %v1505 = vadd.f32 %v1495, %v1501
    %s1506 = sld [smem:[#allocation2 + $0x3b]]
    %v1507 = vstv %s1506
    %v1508 = vmul.f32 %v1507, %v1457
    %v1509 = vmul.f32 %v1507, %v1459
    %v1510 = vmul.f32 %v1507, %v1461
    %v1511 = vmul.f32 %v1507, %v1463
    %v1512 = vadd.f32 %v1502, %v1508
    %v1513 = vadd.f32 %v1503, %v1509
    %v1514 = vadd.f32 %v1504, %v1510
    %v1515 = vadd.f32 %v1505, %v1511
    %s1516 = sld [smem:[#allocation2 + $0x3c]]
    %v1517 = vstv %s1516
    %v1518 = vmul.f32 %v1517, %v1449
    %v1519 = vmul.f32 %v1517, %v1451
    %v1520 = vmul.f32 %v1517, %v1453
    %v1521 = vmul.f32 %v1517, %v1455
    %s1522 = sld [smem:[#allocation2 + $0x3d]]
    %v1523 = vstv %s1522
    %v1524 = vmul.f32 %v1523, %v1444
    %v1525 = vmul.f32 %v1523, %v1445
    %v1526 = vmul.f32 %v1523, %v1446
    %v1527 = vmul.f32 %v1523, %v1447
    %v1528 = vadd.f32 %v1518, %v1524
    %v1529 = vadd.f32 %v1519, %v1525
    %v1530 = vadd.f32 %v1520, %v1526
    %v1531 = vadd.f32 %v1521, %v1527
    %s1532 = sld [smem:[#allocation2 + $0x3e]]
    %v1533 = vstv %s1532
    %v1534 = vmul.f32 %v1533, %v1457
    %v1535 = vmul.f32 %v1533, %v1459
    %v1536 = vmul.f32 %v1533, %v1461
    %v1537 = vmul.f32 %v1533, %v1463
    %v1538 = vadd.f32 %v1528, %v1534
    %v1539 = vadd.f32 %v1529, %v1535
    %v1540 = vadd.f32 %v1530, %v1536
    %v1541 = vadd.f32 %v1531, %v1537
    %1542 = vmatpush.msra.mxu0 0.0
    %1543 = vmatpush.msra.mxu0 0.0
    %1544 = vmatpush.msra.mxu0 0.0
    %1545 = vmatpush.msra.mxu0 0.0
    %1546 = vmatpush.msra.mxu0 0.0
    %1547 = vmatpush.msra.mxu0 0.0
    %1548 = vmatpush.msra.mxu0 0.0
    %1549 = vmatpush.msra.mxu0 0.0
    %1550 = vmatpush.msra.mxu0 0.0
    %1551 = vmatpush.msra.mxu0 0.0
    %1552 = vmatpush.msra.mxu0 0.0
    %1553 = vmatpush.msra.mxu0 0.0
    %1554 = vmatpush.msra.mxu0 %v1489
    %1555 = vmatpush.msra.mxu0 %v1488
    %1556 = vmatpush.msra.mxu0 %v1487
    %1557 = vmatpush.msra.mxu0 %v1486
    %1558 = vmatmul.f32.gmra.mxu0 %v219
    %v1559 = vpop.f32.mrf.mxu0
    %v1560 = vadd.f32 %v1512, %v1559
    %1561 = vmatmul.f32.gmra.mxu0 %v222
    %v1562 = vpop.f32.mrf.mxu0
    %v1563 = vadd.f32 %v1513, %v1562
    %1564 = vmatmul.f32.gmra.mxu0 %v225
    %v1565 = vpop.f32.mrf.mxu0
    %v1566 = vadd.f32 %v1514, %v1565
    %1567 = vmatmul.f32.gmra.mxu0 %v228
    %v1568 = vpop.f32.mrf.mxu0
    %v1569 = vadd.f32 %v1515, %v1568
    %1570 = vdwg.mxu0
    %1571 = vmatpush.msra.mxu0 0.0
    %1572 = vmatpush.msra.mxu0 0.0
    %1573 = vmatpush.msra.mxu0 0.0
    %1574 = vmatpush.msra.mxu0 0.0
    %1575 = vmatpush.msra.mxu0 0.0
    %1576 = vmatpush.msra.mxu0 0.0
    %1577 = vmatpush.msra.mxu0 0.0
    %1578 = vmatpush.msra.mxu0 0.0
    %1579 = vmatpush.msra.mxu0 0.0
    %1580 = vmatpush.msra.mxu0 0.0
    %1581 = vmatpush.msra.mxu0 0.0
    %1582 = vmatpush.msra.mxu0 0.0
    %1583 = vmatpush.msra.mxu0 %v1541
    %1584 = vmatpush.msra.mxu0 %v1540
    %1585 = vmatpush.msra.mxu0 %v1539
    %1586 = vmatpush.msra.mxu0 %v1538
    %1587 = vmatmul.f32.gmra.mxu0 %v260
    %v1588 = vpop.f32.mrf.mxu0
    %v1589 = vadd.f32 0.0, %v1588
    %1590 = vmatmul.f32.gmra.mxu0 %v263
    %v1591 = vpop.f32.mrf.mxu0
    %v1592 = vadd.f32 0.0, %v1591
    %1593 = vmatmul.f32.gmra.mxu0 %v266
    %v1594 = vpop.f32.mrf.mxu0
    %v1595 = vadd.f32 0.0, %v1594
    %1596 = vmatmul.f32.gmra.mxu0 %v269
    %v1597 = vpop.f32.mrf.mxu0
    %v1598 = vadd.f32 0.0, %v1597
    %1599 = vdwg.mxu0
    %v1600 = vadd.f32 %v1560, %v1589
    %v1601 = vadd.f32 %v1563, %v1592
    %v1602 = vadd.f32 %v1566, %v1595
    %v1603 = vadd.f32 %v1569, %v1598
    %v1604 = vmul.f32 %v1600, %v109
    %v1605 = vmul.f32 %v1601, %v109
    %v1606 = vmul.f32 %v1602, %v109
    %v1607 = vmul.f32 %v1603, %v109
    %v1608 = vadd.f32 %v1604, %v1605
    %v1609 = vadd.f32 %v1608, %v1606
    %v1610 = vadd.f32 %v1609, %v1607
    %1611 = vadd.xlane.f32.xlu0 %v1610
    %v1612 = vpop.xlane.xlu0 %1611
    %v1613 = vrot.slane %v1612, 4
    %v1614 = vadd.f32 %v1612, %v1613
    %v1615 = vrot.slane %v1614, 2
    %v1616 = vadd.f32 %v1614, %v1615
    %v1617 = vrot.slane %v1616, 1
    %v1618 = vadd.f32 %v1616, %v1617
    %s1619 = vtos %v1618
    %v1620 = vmul.f32 %v1604, %v1604
    %v1621 = vmul.f32 %v1605, %v1605
    %v1622 = vmul.f32 %v1606, %v1606
    %v1623 = vmul.f32 %v1607, %v1607
    %v1624 = vadd.f32 %v1620, %v1621
    %v1625 = vadd.f32 %v1624, %v1622
    %v1626 = vadd.f32 %v1625, %v1623
    %1627 = vadd.xlane.f32.xlu0 %v1626
    %v1628 = vpop.xlane.xlu0 %1627
    %v1629 = vrot.slane %v1628, 4
    %v1630 = vadd.f32 %v1628, %v1629
    %v1631 = vrot.slane %v1630, 2
    %v1632 = vadd.f32 %v1630, %v1631
    %v1633 = vrot.slane %v1632, 1
    %v1634 = vadd.f32 %v1632, %v1633
    %s1635 = vtos %v1634
    %s1636 = smul.f32 %s1619, 0.001953125
    %s1637 = smul.f32 %s1635, 0.001953125
    %s1638 = smul.f32 %s1636, %s1636
    %s1639 = ssub.f32 %s1637, %s1638
    %s1640 = smax.f32 %s1639, 0.0
    %s1641 = sld [smem:[#allocation9 + $0x5]]
    %s1642 = sadd.f32 %s1640, 1e-05
    %v1643 = vstv %s1642
    %v1644 = vrsqrt.pop %v1643
    %v1645 = vmul.f32 %v1644, %v1643
    %v1646 = vmul.f32 %v1645, %v1644
    %v1647 = vmul.f32 0.5, %v1646
    %v1648 = vsub.f32 1.5, %v1647
    %v1649 = vmul.f32 %v1644, %v1648
    %vm1650 = vweird.f32 %v1643
    %vm1651 = vweird.f32 %v1644
    %vm1652 = vmor %vm1650, %vm1651
    %v1653 = vsel %vm1652, %v1644, %v1649
    %s1654 = vtos %v1653
    %s1655 = smul.f32 %s1641, %s1654
    %s1656 = sld [smem:[#allocation10 + $0x5]]
    %s1657 = smul.f32 %s1636, %s1655
    %s1658 = ssub.f32 %s1656, %s1657
    %v1659 = vstv %s1655
    %v1660 = vmul.f32 %v1604, %v1659
    %v1661 = vmul.f32 %v1605, %v1659
    %v1662 = vmul.f32 %v1606, %v1659
    %v1663 = vmul.f32 %v1607, %v1659
    %v1664 = vstv %s1658
    %v1665 = vmul.f32 %v1664, %v109
    %v1666 = vadd.f32 %v1660, %v1665
    %v1667 = vadd.f32 %v1661, %v1665
    %v1668 = vadd.f32 %v1662, %v1665
    %v1669 = vadd.f32 %v1663, %v1665
    %v1670 = vadd.f32 %v1218, %v1666
    %v1671 = vadd.f32 %v1219, %v1667
    %v1672 = vadd.f32 %v1220, %v1668
    %v1673 = vadd.f32 %v1221, %v1669
    %1674 = vrot.lane.b32.xlu0 %v1670, 1
    %v1675 = vpop.permute.xlu0 %1674
    %1676 = vrot.lane.b32.xlu0 %v1671, 1
    %v1677 = vpop.permute.xlu0 %1676
    %1678 = vrot.lane.b32.xlu0 %v1672, 1
    %v1679 = vpop.permute.xlu0 %1678
    %1680 = vrot.lane.b32.xlu0 %v1673, 1
    %v1681 = vpop.permute.xlu0 %1680
    %1682 = vrot.lane.b32.xlu0 %v1670, 127
    %v1683 = vpop.permute.xlu0 %1682
    %1684 = vrot.lane.b32.xlu0 %v1671, 127
    %v1685 = vpop.permute.xlu0 %1684
    %1686 = vrot.lane.b32.xlu0 %v1672, 127
    %v1687 = vpop.permute.xlu0 %1686
    %1688 = vrot.lane.b32.xlu0 %v1673, 127
    %v1689 = vpop.permute.xlu0 %1688
    %s1690 = sld [smem:[#allocation2 + $0x3f]]
    %v1691 = vstv %s1690
    %v1692 = vmul.f32 %v1691, %v1675
    %v1693 = vmul.f32 %v1691, %v1677
    %v1694 = vmul.f32 %v1691, %v1679
    %v1695 = vmul.f32 %v1691, %v1681
    %s1696 = sld [smem:[#allocation2 + $0x40]]
    %v1697 = vstv %s1696
    %v1698 = vmul.f32 %v1697, %v1670
    %v1699 = vmul.f32 %v1697, %v1671
    %v1700 = vmul.f32 %v1697, %v1672
    %v1701 = vmul.f32 %v1697, %v1673
    %v1702 = vadd.f32 %v1692, %v1698
    %v1703 = vadd.f32 %v1693, %v1699
    %v1704 = vadd.f32 %v1694, %v1700
    %v1705 = vadd.f32 %v1695, %v1701
    %s1706 = sld [smem:[#allocation2 + $0x41]]
    %v1707 = vstv %s1706
    %v1708 = vmul.f32 %v1707, %v1683
    %v1709 = vmul.f32 %v1707, %v1685
    %v1710 = vmul.f32 %v1707, %v1687
    %v1711 = vmul.f32 %v1707, %v1689
    %v1712 = vadd.f32 %v1702, %v1708
    %v1713 = vadd.f32 %v1703, %v1709
    %v1714 = vadd.f32 %v1704, %v1710
    %v1715 = vadd.f32 %v1705, %v1711
    %s1716 = sld [smem:[#allocation2 + $0x42]]
    %v1717 = vstv %s1716
    %v1718 = vmul.f32 %v1717, %v1675
    %v1719 = vmul.f32 %v1717, %v1677
    %v1720 = vmul.f32 %v1717, %v1679
    %v1721 = vmul.f32 %v1717, %v1681
    %s1722 = sld [smem:[#allocation2 + $0x43]]
    %v1723 = vstv %s1722
    %v1724 = vmul.f32 %v1723, %v1670
    %v1725 = vmul.f32 %v1723, %v1671
    %v1726 = vmul.f32 %v1723, %v1672
    %v1727 = vmul.f32 %v1723, %v1673
    %v1728 = vadd.f32 %v1718, %v1724
    %v1729 = vadd.f32 %v1719, %v1725
    %v1730 = vadd.f32 %v1720, %v1726
    %v1731 = vadd.f32 %v1721, %v1727
    %s1732 = sld [smem:[#allocation2 + $0x44]]
    %v1733 = vstv %s1732
    %v1734 = vmul.f32 %v1733, %v1683
    %v1735 = vmul.f32 %v1733, %v1685
    %v1736 = vmul.f32 %v1733, %v1687
    %v1737 = vmul.f32 %v1733, %v1689
    %v1738 = vadd.f32 %v1728, %v1734
    %v1739 = vadd.f32 %v1729, %v1735
    %v1740 = vadd.f32 %v1730, %v1736
    %v1741 = vadd.f32 %v1731, %v1737
    %s1742 = sld [smem:[#allocation2 + $0x45]]
    %v1743 = vstv %s1742
    %v1744 = vmul.f32 %v1743, %v1675
    %v1745 = vmul.f32 %v1743, %v1677
    %v1746 = vmul.f32 %v1743, %v1679
    %v1747 = vmul.f32 %v1743, %v1681
    %s1748 = sld [smem:[#allocation2 + $0x46]]
    %v1749 = vstv %s1748
    %v1750 = vmul.f32 %v1749, %v1670
    %v1751 = vmul.f32 %v1749, %v1671
    %v1752 = vmul.f32 %v1749, %v1672
    %v1753 = vmul.f32 %v1749, %v1673
    %v1754 = vadd.f32 %v1744, %v1750
    %v1755 = vadd.f32 %v1745, %v1751
    %v1756 = vadd.f32 %v1746, %v1752
    %v1757 = vadd.f32 %v1747, %v1753
    %s1758 = sld [smem:[#allocation2 + $0x47]]
    %v1759 = vstv %s1758
    %v1760 = vmul.f32 %v1759, %v1683
    %v1761 = vmul.f32 %v1759, %v1685
    %v1762 = vmul.f32 %v1759, %v1687
    %v1763 = vmul.f32 %v1759, %v1689
    %v1764 = vadd.f32 %v1754, %v1760
    %v1765 = vadd.f32 %v1755, %v1761
    %v1766 = vadd.f32 %v1756, %v1762
    %v1767 = vadd.f32 %v1757, %v1763
    %1768 = vmatpush.msra.mxu0 0.0
    %1769 = vmatpush.msra.mxu0 0.0
    %1770 = vmatpush.msra.mxu0 0.0
    %1771 = vmatpush.msra.mxu0 0.0
    %1772 = vmatpush.msra.mxu0 0.0
    %1773 = vmatpush.msra.mxu0 0.0
    %1774 = vmatpush.msra.mxu0 0.0
    %1775 = vmatpush.msra.mxu0 0.0
    %1776 = vmatpush.msra.mxu0 0.0
    %1777 = vmatpush.msra.mxu0 0.0
    %1778 = vmatpush.msra.mxu0 0.0
    %1779 = vmatpush.msra.mxu0 0.0
    %1780 = vmatpush.msra.mxu0 %v1715
    %1781 = vmatpush.msra.mxu0 %v1714
    %1782 = vmatpush.msra.mxu0 %v1713
    %1783 = vmatpush.msra.mxu0 %v1712
    %1784 = vmatmul.f32.gmra.mxu0 %v219
    %v1785 = vpop.f32.mrf.mxu0
    %v1786 = vadd.f32 %v1738, %v1785
    %1787 = vmatmul.f32.gmra.mxu0 %v222
    %v1788 = vpop.f32.mrf.mxu0
    %v1789 = vadd.f32 %v1739, %v1788
    %1790 = vmatmul.f32.gmra.mxu0 %v225
    %v1791 = vpop.f32.mrf.mxu0
    %v1792 = vadd.f32 %v1740, %v1791
    %1793 = vmatmul.f32.gmra.mxu0 %v228
    %v1794 = vpop.f32.mrf.mxu0
    %v1795 = vadd.f32 %v1741, %v1794
    %1796 = vdwg.mxu0
    %1797 = vmatpush.msra.mxu0 0.0
    %1798 = vmatpush.msra.mxu0 0.0
    %1799 = vmatpush.msra.mxu0 0.0
    %1800 = vmatpush.msra.mxu0 0.0
    %1801 = vmatpush.msra.mxu0 0.0
    %1802 = vmatpush.msra.mxu0 0.0
    %1803 = vmatpush.msra.mxu0 0.0
    %1804 = vmatpush.msra.mxu0 0.0
    %1805 = vmatpush.msra.mxu0 0.0
    %1806 = vmatpush.msra.mxu0 0.0
    %1807 = vmatpush.msra.mxu0 0.0
    %1808 = vmatpush.msra.mxu0 0.0
    %1809 = vmatpush.msra.mxu0 %v1767
    %1810 = vmatpush.msra.mxu0 %v1766
    %1811 = vmatpush.msra.mxu0 %v1765
    %1812 = vmatpush.msra.mxu0 %v1764
    %1813 = vmatmul.f32.gmra.mxu0 %v260
    %v1814 = vpop.f32.mrf.mxu0
    %v1815 = vadd.f32 0.0, %v1814
    %1816 = vmatmul.f32.gmra.mxu0 %v263
    %v1817 = vpop.f32.mrf.mxu0
    %v1818 = vadd.f32 0.0, %v1817
    %1819 = vmatmul.f32.gmra.mxu0 %v266
    %v1820 = vpop.f32.mrf.mxu0
    %v1821 = vadd.f32 0.0, %v1820
    %1822 = vmatmul.f32.gmra.mxu0 %v269
    %v1823 = vpop.f32.mrf.mxu0
    %v1824 = vadd.f32 0.0, %v1823
    %1825 = vdwg.mxu0
    %v1826 = vadd.f32 %v1786, %v1815
    %v1827 = vadd.f32 %v1789, %v1818
    %v1828 = vadd.f32 %v1792, %v1821
    %v1829 = vadd.f32 %v1795, %v1824
    %v1830 = vmul.f32 %v1826, %v109
    %v1831 = vmul.f32 %v1827, %v109
    %v1832 = vmul.f32 %v1828, %v109
    %v1833 = vmul.f32 %v1829, %v109
    %v1834 = vadd.f32 %v1830, %v1831
    %v1835 = vadd.f32 %v1834, %v1832
    %v1836 = vadd.f32 %v1835, %v1833
    %1837 = vadd.xlane.f32.xlu0 %v1836
    %v1838 = vpop.xlane.xlu0 %1837
    %v1839 = vrot.slane %v1838, 4
    %v1840 = vadd.f32 %v1838, %v1839
    %v1841 = vrot.slane %v1840, 2
    %v1842 = vadd.f32 %v1840, %v1841
    %v1843 = vrot.slane %v1842, 1
    %v1844 = vadd.f32 %v1842, %v1843
    %s1845 = vtos %v1844
    %v1846 = vmul.f32 %v1830, %v1830
    %v1847 = vmul.f32 %v1831, %v1831
    %v1848 = vmul.f32 %v1832, %v1832
    %v1849 = vmul.f32 %v1833, %v1833
    %v1850 = vadd.f32 %v1846, %v1847
    %v1851 = vadd.f32 %v1850, %v1848
    %v1852 = vadd.f32 %v1851, %v1849
    %1853 = vadd.xlane.f32.xlu0 %v1852
    %v1854 = vpop.xlane.xlu0 %1853
    %v1855 = vrot.slane %v1854, 4
    %v1856 = vadd.f32 %v1854, %v1855
    %v1857 = vrot.slane %v1856, 2
    %v1858 = vadd.f32 %v1856, %v1857
    %v1859 = vrot.slane %v1858, 1
    %v1860 = vadd.f32 %v1858, %v1859
    %s1861 = vtos %v1860
    %s1862 = smul.f32 %s1845, 0.001953125
    %s1863 = smul.f32 %s1861, 0.001953125
    %s1864 = smul.f32 %s1862, %s1862
    %s1865 = ssub.f32 %s1863, %s1864
    %s1866 = smax.f32 %s1865, 0.0
    %s1867 = sld [smem:[#allocation9 + $0x6]]
    %s1868 = sadd.f32 %s1866, 1e-05
    %v1869 = vstv %s1868
    %v1870 = vrsqrt.pop %v1869
    %v1871 = vmul.f32 %v1870, %v1869
    %v1872 = vmul.f32 %v1871, %v1870
    %v1873 = vmul.f32 0.5, %v1872
    %v1874 = vsub.f32 1.5, %v1873
    %v1875 = vmul.f32 %v1870, %v1874
    %vm1876 = vweird.f32 %v1869
    %vm1877 = vweird.f32 %v1870
    %vm1878 = vmor %vm1876, %vm1877
    %v1879 = vsel %vm1878, %v1870, %v1875
    %s1880 = vtos %v1879
    %s1881 = smul.f32 %s1867, %s1880
    %s1882 = sld [smem:[#allocation10 + $0x6]]
    %s1883 = smul.f32 %s1862, %s1881
    %s1884 = ssub.f32 %s1882, %s1883
    %v1885 = vstv %s1881
    %v1886 = vmul.f32 %v1830, %v1885
    %v1887 = vmul.f32 %v1831, %v1885
    %v1888 = vmul.f32 %v1832, %v1885
    %v1889 = vmul.f32 %v1833, %v1885
    %v1890 = vstv %s1884
    %v1891 = vmul.f32 %v1890, %v109
    %v1892 = vadd.f32 %v1886, %v1891
    %v1893 = vadd.f32 %v1887, %v1891
    %v1894 = vadd.f32 %v1888, %v1891
    %v1895 = vadd.f32 %v1889, %v1891
    %v1896 = vmax.f32 %v1892, 0.0
    %v1897 = vmax.f32 %v1893, 0.0
    %v1898 = vmax.f32 %v1894, 0.0
    %v1899 = vmax.f32 %v1895, 0.0
    %1900 = vrot.lane.b32.xlu0 %v1896, 1
    %v1901 = vpop.permute.xlu0 %1900
    %1902 = vrot.lane.b32.xlu0 %v1897, 1
    %v1903 = vpop.permute.xlu0 %1902
    %1904 = vrot.lane.b32.xlu0 %v1898, 1
    %v1905 = vpop.permute.xlu0 %1904
    %1906 = vrot.lane.b32.xlu0 %v1899, 1
    %v1907 = vpop.permute.xlu0 %1906
    %1908 = vrot.lane.b32.xlu0 %v1896, 127
    %v1909 = vpop.permute.xlu0 %1908
    %1910 = vrot.lane.b32.xlu0 %v1897, 127
    %v1911 = vpop.permute.xlu0 %1910
    %1912 = vrot.lane.b32.xlu0 %v1898, 127
    %v1913 = vpop.permute.xlu0 %1912
    %1914 = vrot.lane.b32.xlu0 %v1899, 127
    %v1915 = vpop.permute.xlu0 %1914
    %s1916 = sld [smem:[#allocation2 + $0x48]]
    %v1917 = vstv %s1916
    %v1918 = vmul.f32 %v1917, %v1901
    %v1919 = vmul.f32 %v1917, %v1903
    %v1920 = vmul.f32 %v1917, %v1905
    %v1921 = vmul.f32 %v1917, %v1907
    %s1922 = sld [smem:[#allocation2 + $0x49]]
    %v1923 = vstv %s1922
    %v1924 = vmul.f32 %v1923, %v1896
    %v1925 = vmul.f32 %v1923, %v1897
    %v1926 = vmul.f32 %v1923, %v1898
    %v1927 = vmul.f32 %v1923, %v1899
    %v1928 = vadd.f32 %v1918, %v1924
    %v1929 = vadd.f32 %v1919, %v1925
    %v1930 = vadd.f32 %v1920, %v1926
    %v1931 = vadd.f32 %v1921, %v1927
    %s1932 = sld [smem:[#allocation2 + $0x4a]]
    %v1933 = vstv %s1932
    %v1934 = vmul.f32 %v1933, %v1909
    %v1935 = vmul.f32 %v1933, %v1911
    %v1936 = vmul.f32 %v1933, %v1913
    %v1937 = vmul.f32 %v1933, %v1915
    %v1938 = vadd.f32 %v1928, %v1934
    %v1939 = vadd.f32 %v1929, %v1935
    %v1940 = vadd.f32 %v1930, %v1936
    %v1941 = vadd.f32 %v1931, %v1937
    %s1942 = sld [smem:[#allocation2 + $0x4b]]
    %v1943 = vstv %s1942
    %v1944 = vmul.f32 %v1943, %v1901
    %v1945 = vmul.f32 %v1943, %v1903
    %v1946 = vmul.f32 %v1943, %v1905
    %v1947 = vmul.f32 %v1943, %v1907
    %s1948 = sld [smem:[#allocation2 + $0x4c]]
    %v1949 = vstv %s1948
    %v1950 = vmul.f32 %v1949, %v1896
    %v1951 = vmul.f32 %v1949, %v1897
    %v1952 = vmul.f32 %v1949, %v1898
    %v1953 = vmul.f32 %v1949, %v1899
    %v1954 = vadd.f32 %v1944, %v1950
    %v1955 = vadd.f32 %v1945, %v1951
    %v1956 = vadd.f32 %v1946, %v1952
    %v1957 = vadd.f32 %v1947, %v1953
    %s1958 = sld [smem:[#allocation2 + $0x4d]]
    %v1959 = vstv %s1958
    %v1960 = vmul.f32 %v1959, %v1909
    %v1961 = vmul.f32 %v1959, %v1911
    %v1962 = vmul.f32 %v1959, %v1913
    %v1963 = vmul.f32 %v1959, %v1915
    %v1964 = vadd.f32 %v1954, %v1960
    %v1965 = vadd.f32 %v1955, %v1961
    %v1966 = vadd.f32 %v1956, %v1962
    %v1967 = vadd.f32 %v1957, %v1963
    %s1968 = sld [smem:[#allocation2 + $0x4e]]
    %v1969 = vstv %s1968
    %v1970 = vmul.f32 %v1969, %v1901
    %v1971 = vmul.f32 %v1969, %v1903
    %v1972 = vmul.f32 %v1969, %v1905
    %v1973 = vmul.f32 %v1969, %v1907
    %s1974 = sld [smem:[#allocation2 + $0x4f]]
    %v1975 = vstv %s1974
    %v1976 = vmul.f32 %v1975, %v1896
    %v1977 = vmul.f32 %v1975, %v1897
    %v1978 = vmul.f32 %v1975, %v1898
    %v1979 = vmul.f32 %v1975, %v1899
    %v1980 = vadd.f32 %v1970, %v1976
    %v1981 = vadd.f32 %v1971, %v1977
    %v1982 = vadd.f32 %v1972, %v1978
    %v1983 = vadd.f32 %v1973, %v1979
    %s1984 = sld [smem:[#allocation2 + $0x50]]
    %v1985 = vstv %s1984
    %v1986 = vmul.f32 %v1985, %v1909
    %v1987 = vmul.f32 %v1985, %v1911
    %v1988 = vmul.f32 %v1985, %v1913
    %v1989 = vmul.f32 %v1985, %v1915
    %v1990 = vadd.f32 %v1980, %v1986
    %v1991 = vadd.f32 %v1981, %v1987
    %v1992 = vadd.f32 %v1982, %v1988
    %v1993 = vadd.f32 %v1983, %v1989
    %1994 = vmatpush.msra.mxu0 0.0
    %1995 = vmatpush.msra.mxu0 0.0
    %1996 = vmatpush.msra.mxu0 0.0
    %1997 = vmatpush.msra.mxu0 0.0
    %1998 = vmatpush.msra.mxu0 0.0
    %1999 = vmatpush.msra.mxu0 0.0
    %2000 = vmatpush.msra.mxu0 0.0
    %2001 = vmatpush.msra.mxu0 0.0
    %2002 = vmatpush.msra.mxu0 0.0
    %2003 = vmatpush.msra.mxu0 0.0
    %2004 = vmatpush.msra.mxu0 0.0
    %2005 = vmatpush.msra.mxu0 0.0
    %2006 = vmatpush.msra.mxu0 %v1941
    %2007 = vmatpush.msra.mxu0 %v1940
    %2008 = vmatpush.msra.mxu0 %v1939
    %2009 = vmatpush.msra.mxu0 %v1938
    %2010 = vmatmul.f32.gmra.mxu0 %v219
    %v2011 = vpop.f32.mrf.mxu0
    %v2012 = vadd.f32 %v1964, %v2011
    %2013 = vmatmul.f32.gmra.mxu0 %v222
    %v2014 = vpop.f32.mrf.mxu0
    %v2015 = vadd.f32 %v1965, %v2014
    %2016 = vmatmul.f32.gmra.mxu0 %v225
    %v2017 = vpop.f32.mrf.mxu0
    %v2018 = vadd.f32 %v1966, %v2017
    %2019 = vmatmul.f32.gmra.mxu0 %v228
    %v2020 = vpop.f32.mrf.mxu0
    %v2021 = vadd.f32 %v1967, %v2020
    %2022 = vdwg.mxu0
    %2023 = vmatpush.msra.mxu0 0.0
    %2024 = vmatpush.msra.mxu0 0.0
    %2025 = vmatpush.msra.mxu0 0.0
    %2026 = vmatpush.msra.mxu0 0.0
    %2027 = vmatpush.msra.mxu0 0.0
    %2028 = vmatpush.msra.mxu0 0.0
    %2029 = vmatpush.msra.mxu0 0.0
    %2030 = vmatpush.msra.mxu0 0.0
    %2031 = vmatpush.msra.mxu0 0.0
    %2032 = vmatpush.msra.mxu0 0.0
    %2033 = vmatpush.msra.mxu0 0.0
    %2034 = vmatpush.msra.mxu0 0.0
    %2035 = vmatpush.msra.mxu0 %v1993
    %2036 = vmatpush.msra.mxu0 %v1992
    %2037 = vmatpush.msra.mxu0 %v1991
    %2038 = vmatpush.msra.mxu0 %v1990
    %2039 = vmatmul.f32.gmra.mxu0 %v260
    %v2040 = vpop.f32.mrf.mxu0
    %v2041 = vadd.f32 0.0, %v2040
    %2042 = vmatmul.f32.gmra.mxu0 %v263
    %v2043 = vpop.f32.mrf.mxu0
    %v2044 = vadd.f32 0.0, %v2043
    %2045 = vmatmul.f32.gmra.mxu0 %v266
    %v2046 = vpop.f32.mrf.mxu0
    %v2047 = vadd.f32 0.0, %v2046
    %2048 = vmatmul.f32.gmra.mxu0 %v269
    %v2049 = vpop.f32.mrf.mxu0
    %v2050 = vadd.f32 0.0, %v2049
    %2051 = vdwg.mxu0
    %v2052 = vadd.f32 %v2012, %v2041
    %v2053 = vadd.f32 %v2015, %v2044
    %v2054 = vadd.f32 %v2018, %v2047
    %v2055 = vadd.f32 %v2021, %v2050
    %v2056 = vmul.f32 %v2052, %v109
    %v2057 = vmul.f32 %v2053, %v109
    %v2058 = vmul.f32 %v2054, %v109
    %v2059 = vmul.f32 %v2055, %v109
    %v2060 = vadd.f32 %v2056, %v2057
    %v2061 = vadd.f32 %v2060, %v2058
    %v2062 = vadd.f32 %v2061, %v2059
    %2063 = vadd.xlane.f32.xlu0 %v2062
    %v2064 = vpop.xlane.xlu0 %2063
    %v2065 = vrot.slane %v2064, 4
    %v2066 = vadd.f32 %v2064, %v2065
    %v2067 = vrot.slane %v2066, 2
    %v2068 = vadd.f32 %v2066, %v2067
    %v2069 = vrot.slane %v2068, 1
    %v2070 = vadd.f32 %v2068, %v2069
    %s2071 = vtos %v2070
    %v2072 = vmul.f32 %v2056, %v2056
    %v2073 = vmul.f32 %v2057, %v2057
    %v2074 = vmul.f32 %v2058, %v2058
    %v2075 = vmul.f32 %v2059, %v2059
    %v2076 = vadd.f32 %v2072, %v2073
    %v2077 = vadd.f32 %v2076, %v2074
    %v2078 = vadd.f32 %v2077, %v2075
    %2079 = vadd.xlane.f32.xlu0 %v2078
    %v2080 = vpop.xlane.xlu0 %2079
    %v2081 = vrot.slane %v2080, 4
    %v2082 = vadd.f32 %v2080, %v2081
    %v2083 = vrot.slane %v2082, 2
    %v2084 = vadd.f32 %v2082, %v2083
    %v2085 = vrot.slane %v2084, 1
    %v2086 = vadd.f32 %v2084, %v2085
    %s2087 = vtos %v2086
    %s2088 = smul.f32 %s2071, 0.001953125
    %s2089 = smul.f32 %s2087, 0.001953125
    %s2090 = smul.f32 %s2088, %s2088
    %s2091 = ssub.f32 %s2089, %s2090
    %s2092 = smax.f32 %s2091, 0.0
    %s2093 = sld [smem:[#allocation9 + $0x7]]
    %s2094 = sadd.f32 %s2092, 1e-05
    %v2095 = vstv %s2094
    %v2096 = vrsqrt.pop %v2095
    %v2097 = vmul.f32 %v2096, %v2095
    %v2098 = vmul.f32 %v2097, %v2096
    %v2099 = vmul.f32 0.5, %v2098
    %v2100 = vsub.f32 1.5, %v2099
    %v2101 = vmul.f32 %v2096, %v2100
    %vm2102 = vweird.f32 %v2095
    %vm2103 = vweird.f32 %v2096
    %vm2104 = vmor %vm2102, %vm2103
    %v2105 = vsel %vm2104, %v2096, %v2101
    %s2106 = vtos %v2105
    %s2107 = smul.f32 %s2093, %s2106
    %s2108 = sld [smem:[#allocation10 + $0x7]]
    %s2109 = smul.f32 %s2088, %s2107
    %s2110 = ssub.f32 %s2108, %s2109
    %v2111 = vstv %s2107
    %v2112 = vmul.f32 %v2056, %v2111
    %v2113 = vmul.f32 %v2057, %v2111
    %v2114 = vmul.f32 %v2058, %v2111
    %v2115 = vmul.f32 %v2059, %v2111
    %v2116 = vstv %s2110
    %v2117 = vmul.f32 %v2116, %v109
    %v2118 = vadd.f32 %v2112, %v2117
    %v2119 = vadd.f32 %v2113, %v2117
    %v2120 = vadd.f32 %v2114, %v2117
    %v2121 = vadd.f32 %v2115, %v2117
    %v2122 = vadd.f32 %v1670, %v2118
    %v2123 = vadd.f32 %v1671, %v2119
    %v2124 = vadd.f32 %v1672, %v2120
    %v2125 = vadd.f32 %v1673, %v2121
    %2126 = vrot.lane.b32.xlu0 %v2122, 1
    %v2127 = vpop.permute.xlu0 %2126
    %2128 = vrot.lane.b32.xlu0 %v2123, 1
    %v2129 = vpop.permute.xlu0 %2128
    %2130 = vrot.lane.b32.xlu0 %v2124, 1
    %v2131 = vpop.permute.xlu0 %2130
    %2132 = vrot.lane.b32.xlu0 %v2125, 1
    %v2133 = vpop.permute.xlu0 %2132
    %2134 = vrot.lane.b32.xlu0 %v2122, 127
    %v2135 = vpop.permute.xlu0 %2134
    %2136 = vrot.lane.b32.xlu0 %v2123, 127
    %v2137 = vpop.permute.xlu0 %2136
    %2138 = vrot.lane.b32.xlu0 %v2124, 127
    %v2139 = vpop.permute.xlu0 %2138
    %2140 = vrot.lane.b32.xlu0 %v2125, 127
    %v2141 = vpop.permute.xlu0 %2140
    %s2142 = sld [smem:[#allocation2 + $0x51]]
    %v2143 = vstv %s2142
    %v2144 = vmul.f32 %v2143, %v2127
    %v2145 = vmul.f32 %v2143, %v2129
    %v2146 = vmul.f32 %v2143, %v2131
    %v2147 = vmul.f32 %v2143, %v2133
    %s2148 = sld [smem:[#allocation2 + $0x52]]
    %v2149 = vstv %s2148
    %v2150 = vmul.f32 %v2149, %v2122
    %v2151 = vmul.f32 %v2149, %v2123
    %v2152 = vmul.f32 %v2149, %v2124
    %v2153 = vmul.f32 %v2149, %v2125
    %v2154 = vadd.f32 %v2144, %v2150
    %v2155 = vadd.f32 %v2145, %v2151
    %v2156 = vadd.f32 %v2146, %v2152
    %v2157 = vadd.f32 %v2147, %v2153
    %s2158 = sld [smem:[#allocation2 + $0x53]]
    %v2159 = vstv %s2158
    %v2160 = vmul.f32 %v2159, %v2135
    %v2161 = vmul.f32 %v2159, %v2137
    %v2162 = vmul.f32 %v2159, %v2139
    %v2163 = vmul.f32 %v2159, %v2141
    %v2164 = vadd.f32 %v2154, %v2160
    %v2165 = vadd.f32 %v2155, %v2161
    %v2166 = vadd.f32 %v2156, %v2162
    %v2167 = vadd.f32 %v2157, %v2163
    %s2168 = sld [smem:[#allocation2 + $0x54]]
    %v2169 = vstv %s2168
    %v2170 = vmul.f32 %v2169, %v2127
    %v2171 = vmul.f32 %v2169, %v2129
    %v2172 = vmul.f32 %v2169, %v2131
    %v2173 = vmul.f32 %v2169, %v2133
    %s2174 = sld [smem:[#allocation2 + $0x55]]
    %v2175 = vstv %s2174
    %v2176 = vmul.f32 %v2175, %v2122
    %v2177 = vmul.f32 %v2175, %v2123
    %v2178 = vmul.f32 %v2175, %v2124
    %v2179 = vmul.f32 %v2175, %v2125
    %v2180 = vadd.f32 %v2170, %v2176
    %v2181 = vadd.f32 %v2171, %v2177
    %v2182 = vadd.f32 %v2172, %v2178
    %v2183 = vadd.f32 %v2173, %v2179
    %s2184 = sld [smem:[#allocation2 + $0x56]]
    %v2185 = vstv %s2184
    %v2186 = vmul.f32 %v2185, %v2135
    %v2187 = vmul.f32 %v2185, %v2137
    %v2188 = vmul.f32 %v2185, %v2139
    %v2189 = vmul.f32 %v2185, %v2141
    %v2190 = vadd.f32 %v2180, %v2186
    %v2191 = vadd.f32 %v2181, %v2187
    %v2192 = vadd.f32 %v2182, %v2188
    %v2193 = vadd.f32 %v2183, %v2189
    %s2194 = sld [smem:[#allocation2 + $0x57]]
    %v2195 = vstv %s2194
    %v2196 = vmul.f32 %v2195, %v2127
    %v2197 = vmul.f32 %v2195, %v2129
    %v2198 = vmul.f32 %v2195, %v2131
    %v2199 = vmul.f32 %v2195, %v2133
    %s2200 = sld [smem:[#allocation2 + $0x58]]
    %v2201 = vstv %s2200
    %v2202 = vmul.f32 %v2201, %v2122
    %v2203 = vmul.f32 %v2201, %v2123
    %v2204 = vmul.f32 %v2201, %v2124
    %v2205 = vmul.f32 %v2201, %v2125
    %v2206 = vadd.f32 %v2196, %v2202
    %v2207 = vadd.f32 %v2197, %v2203
    %v2208 = vadd.f32 %v2198, %v2204
    %v2209 = vadd.f32 %v2199, %v2205
    %s2210 = sld [smem:[#allocation2 + $0x59]]
    %v2211 = vstv %s2210
    %v2212 = vmul.f32 %v2211, %v2135
    %v2213 = vmul.f32 %v2211, %v2137
    %v2214 = vmul.f32 %v2211, %v2139
    %v2215 = vmul.f32 %v2211, %v2141
    %v2216 = vadd.f32 %v2206, %v2212
    %v2217 = vadd.f32 %v2207, %v2213
    %v2218 = vadd.f32 %v2208, %v2214
    %v2219 = vadd.f32 %v2209, %v2215
    %2220 = vmatpush.msra.mxu0 0.0
    %2221 = vmatpush.msra.mxu0 0.0
    %2222 = vmatpush.msra.mxu0 0.0
    %2223 = vmatpush.msra.mxu0 0.0
    %2224 = vmatpush.msra.mxu0 0.0
    %2225 = vmatpush.msra.mxu0 0.0
    %2226 = vmatpush.msra.mxu0 0.0
    %2227 = vmatpush.msra.mxu0 0.0
    %2228 = vmatpush.msra.mxu0 0.0
    %2229 = vmatpush.msra.mxu0 0.0
    %2230 = vmatpush.msra.mxu0 0.0
    %2231 = vmatpush.msra.mxu0 0.0
    %2232 = vmatpush.msra.mxu0 %v2167
    %2233 = vmatpush.msra.mxu0 %v2166
    %2234 = vmatpush.msra.mxu0 %v2165
    %2235 = vmatpush.msra.mxu0 %v2164
    %2236 = vmatmul.f32.gmra.mxu0 %v219
    %v2237 = vpop.f32.mrf.mxu0
    %v2238 = vadd.f32 %v2190, %v2237
    %2239 = vmatmul.f32.gmra.mxu0 %v222
    %v2240 = vpop.f32.mrf.mxu0
    %v2241 = vadd.f32 %v2191, %v2240
    %2242 = vmatmul.f32.gmra.mxu0 %v225
    %v2243 = vpop.f32.mrf.mxu0
    %v2244 = vadd.f32 %v2192, %v2243
    %2245 = vmatmul.f32.gmra.mxu0 %v228
    %v2246 = vpop.f32.mrf.mxu0
    %v2247 = vadd.f32 %v2193, %v2246
    %2248 = vdwg.mxu0
    %2249 = vmatpush.msra.mxu0 0.0
    %2250 = vmatpush.msra.mxu0 0.0
    %2251 = vmatpush.msra.mxu0 0.0
    %2252 = vmatpush.msra.mxu0 0.0
    %2253 = vmatpush.msra.mxu0 0.0
    %2254 = vmatpush.msra.mxu0 0.0
    %2255 = vmatpush.msra.mxu0 0.0
    %2256 = vmatpush.msra.mxu0 0.0
    %2257 = vmatpush.msra.mxu0 0.0
    %2258 = vmatpush.msra.mxu0 0.0
    %2259 = vmatpush.msra.mxu0 0.0
    %2260 = vmatpush.msra.mxu0 0.0
    %2261 = vmatpush.msra.mxu0 %v2219
    %2262 = vmatpush.msra.mxu0 %v2218
    %2263 = vmatpush.msra.mxu0 %v2217
    %2264 = vmatpush.msra.mxu0 %v2216
    %2265 = vmatmul.f32.gmra.mxu0 %v260
    %v2266 = vpop.f32.mrf.mxu0
    %v2267 = vadd.f32 0.0, %v2266
    %2268 = vmatmul.f32.gmra.mxu0 %v263
    %v2269 = vpop.f32.mrf.mxu0
    %v2270 = vadd.f32 0.0, %v2269
    %2271 = vmatmul.f32.gmra.mxu0 %v266
    %v2272 = vpop.f32.mrf.mxu0
    %v2273 = vadd.f32 0.0, %v2272
    %2274 = vmatmul.f32.gmra.mxu0 %v269
    %v2275 = vpop.f32.mrf.mxu0
    %v2276 = vadd.f32 0.0, %v2275
    %2277 = vdwg.mxu0
    %v2278 = vadd.f32 %v2238, %v2267
    %v2279 = vadd.f32 %v2241, %v2270
    %v2280 = vadd.f32 %v2244, %v2273
    %v2281 = vadd.f32 %v2247, %v2276
    %v2282 = vmul.f32 %v2278, %v109
    %v2283 = vmul.f32 %v2279, %v109
    %v2284 = vmul.f32 %v2280, %v109
    %v2285 = vmul.f32 %v2281, %v109
    %v2286 = vadd.f32 %v2282, %v2283
    %v2287 = vadd.f32 %v2286, %v2284
    %v2288 = vadd.f32 %v2287, %v2285
    %2289 = vadd.xlane.f32.xlu0 %v2288
    %v2290 = vpop.xlane.xlu0 %2289
    %v2291 = vrot.slane %v2290, 4
    %v2292 = vadd.f32 %v2290, %v2291
    %v2293 = vrot.slane %v2292, 2
    %v2294 = vadd.f32 %v2292, %v2293
    %v2295 = vrot.slane %v2294, 1
    %v2296 = vadd.f32 %v2294, %v2295
    %s2297 = vtos %v2296
    %v2298 = vmul.f32 %v2282, %v2282
    %v2299 = vmul.f32 %v2283, %v2283
    %v2300 = vmul.f32 %v2284, %v2284
    %v2301 = vmul.f32 %v2285, %v2285
    %v2302 = vadd.f32 %v2298, %v2299
    %v2303 = vadd.f32 %v2302, %v2300
    %v2304 = vadd.f32 %v2303, %v2301
    %2305 = vadd.xlane.f32.xlu0 %v2304
    %v2306 = vpop.xlane.xlu0 %2305
    %v2307 = vrot.slane %v2306, 4
    %v2308 = vadd.f32 %v2306, %v2307
    %v2309 = vrot.slane %v2308, 2
    %v2310 = vadd.f32 %v2308, %v2309
    %v2311 = vrot.slane %v2310, 1
    %v2312 = vadd.f32 %v2310, %v2311
    %s2313 = vtos %v2312
    %s2314 = smul.f32 %s2297, 0.001953125
    %s2315 = smul.f32 %s2313, 0.001953125
    %s2316 = smul.f32 %s2314, %s2314
    %s2317 = ssub.f32 %s2315, %s2316
    %s2318 = smax.f32 %s2317, 0.0
    %s2319 = sld [smem:[#allocation9 + $0x8]]
    %s2320 = sadd.f32 %s2318, 1e-05
    %v2321 = vstv %s2320
    %v2322 = vrsqrt.pop %v2321
    %v2323 = vmul.f32 %v2322, %v2321
    %v2324 = vmul.f32 %v2323, %v2322
    %v2325 = vmul.f32 0.5, %v2324
    %v2326 = vsub.f32 1.5, %v2325
    %v2327 = vmul.f32 %v2322, %v2326
    %vm2328 = vweird.f32 %v2321
    %vm2329 = vweird.f32 %v2322
    %vm2330 = vmor %vm2328, %vm2329
    %v2331 = vsel %vm2330, %v2322, %v2327
    %s2332 = vtos %v2331
    %s2333 = smul.f32 %s2319, %s2332
    %s2334 = sld [smem:[#allocation10 + $0x8]]
    %s2335 = smul.f32 %s2314, %s2333
    %s2336 = ssub.f32 %s2334, %s2335
    %v2337 = vstv %s2333
    %v2338 = vmul.f32 %v2282, %v2337
    %v2339 = vmul.f32 %v2283, %v2337
    %v2340 = vmul.f32 %v2284, %v2337
    %v2341 = vmul.f32 %v2285, %v2337
    %v2342 = vstv %s2336
    %v2343 = vmul.f32 %v2342, %v109
    %v2344 = vadd.f32 %v2338, %v2343
    %v2345 = vadd.f32 %v2339, %v2343
    %v2346 = vadd.f32 %v2340, %v2343
    %v2347 = vadd.f32 %v2341, %v2343
    %v2348 = vmax.f32 %v2344, 0.0
    %v2349 = vmax.f32 %v2345, 0.0
    %v2350 = vmax.f32 %v2346, 0.0
    %v2351 = vmax.f32 %v2347, 0.0
    %2352 = vrot.lane.b32.xlu0 %v2348, 1
    %v2353 = vpop.permute.xlu0 %2352
    %2354 = vrot.lane.b32.xlu0 %v2349, 1
    %v2355 = vpop.permute.xlu0 %2354
    %2356 = vrot.lane.b32.xlu0 %v2350, 1
    %v2357 = vpop.permute.xlu0 %2356
    %2358 = vrot.lane.b32.xlu0 %v2351, 1
    %v2359 = vpop.permute.xlu0 %2358
    %2360 = vrot.lane.b32.xlu0 %v2348, 127
    %v2361 = vpop.permute.xlu0 %2360
    %2362 = vrot.lane.b32.xlu0 %v2349, 127
    %v2363 = vpop.permute.xlu0 %2362
    %2364 = vrot.lane.b32.xlu0 %v2350, 127
    %v2365 = vpop.permute.xlu0 %2364
    %2366 = vrot.lane.b32.xlu0 %v2351, 127
    %v2367 = vpop.permute.xlu0 %2366
    %s2368 = sld [smem:[#allocation2 + $0x5a]]
    %v2369 = vstv %s2368
    %v2370 = vmul.f32 %v2369, %v2353
    %v2371 = vmul.f32 %v2369, %v2355
    %v2372 = vmul.f32 %v2369, %v2357
    %v2373 = vmul.f32 %v2369, %v2359
    %s2374 = sld [smem:[#allocation2 + $0x5b]]
    %v2375 = vstv %s2374
    %v2376 = vmul.f32 %v2375, %v2348
    %v2377 = vmul.f32 %v2375, %v2349
    %v2378 = vmul.f32 %v2375, %v2350
    %v2379 = vmul.f32 %v2375, %v2351
    %v2380 = vadd.f32 %v2370, %v2376
    %v2381 = vadd.f32 %v2371, %v2377
    %v2382 = vadd.f32 %v2372, %v2378
    %v2383 = vadd.f32 %v2373, %v2379
    %s2384 = sld [smem:[#allocation2 + $0x5c]]
    %v2385 = vstv %s2384
    %v2386 = vmul.f32 %v2385, %v2361
    %v2387 = vmul.f32 %v2385, %v2363
    %v2388 = vmul.f32 %v2385, %v2365
    %v2389 = vmul.f32 %v2385, %v2367
    %v2390 = vadd.f32 %v2380, %v2386
    %v2391 = vadd.f32 %v2381, %v2387
    %v2392 = vadd.f32 %v2382, %v2388
    %v2393 = vadd.f32 %v2383, %v2389
    %s2394 = sld [smem:[#allocation2 + $0x5d]]
    %v2395 = vstv %s2394
    %v2396 = vmul.f32 %v2395, %v2353
    %v2397 = vmul.f32 %v2395, %v2355
    %v2398 = vmul.f32 %v2395, %v2357
    %v2399 = vmul.f32 %v2395, %v2359
    %s2400 = sld [smem:[#allocation2 + $0x5e]]
    %v2401 = vstv %s2400
    %v2402 = vmul.f32 %v2401, %v2348
    %v2403 = vmul.f32 %v2401, %v2349
    %v2404 = vmul.f32 %v2401, %v2350
    %v2405 = vmul.f32 %v2401, %v2351
    %v2406 = vadd.f32 %v2396, %v2402
    %v2407 = vadd.f32 %v2397, %v2403
    %v2408 = vadd.f32 %v2398, %v2404
    %v2409 = vadd.f32 %v2399, %v2405
    %s2410 = sld [smem:[#allocation2 + $0x5f]]
    %v2411 = vstv %s2410
    %v2412 = vmul.f32 %v2411, %v2361
    %v2413 = vmul.f32 %v2411, %v2363
    %v2414 = vmul.f32 %v2411, %v2365
    %v2415 = vmul.f32 %v2411, %v2367
    %v2416 = vadd.f32 %v2406, %v2412
    %v2417 = vadd.f32 %v2407, %v2413
    %v2418 = vadd.f32 %v2408, %v2414
    %v2419 = vadd.f32 %v2409, %v2415
    %s2420 = sld [smem:[#allocation2 + $0x60]]
    %v2421 = vstv %s2420
    %v2422 = vmul.f32 %v2421, %v2353
    %v2423 = vmul.f32 %v2421, %v2355
    %v2424 = vmul.f32 %v2421, %v2357
    %v2425 = vmul.f32 %v2421, %v2359
    %s2426 = sld [smem:[#allocation2 + $0x61]]
    %v2427 = vstv %s2426
    %v2428 = vmul.f32 %v2427, %v2348
    %v2429 = vmul.f32 %v2427, %v2349
    %v2430 = vmul.f32 %v2427, %v2350
    %v2431 = vmul.f32 %v2427, %v2351
    %v2432 = vadd.f32 %v2422, %v2428
    %v2433 = vadd.f32 %v2423, %v2429
    %v2434 = vadd.f32 %v2424, %v2430
    %v2435 = vadd.f32 %v2425, %v2431
    %s2436 = sld [smem:[#allocation2 + $0x62]]
    %v2437 = vstv %s2436
    %v2438 = vmul.f32 %v2437, %v2361
    %v2439 = vmul.f32 %v2437, %v2363
    %v2440 = vmul.f32 %v2437, %v2365
    %v2441 = vmul.f32 %v2437, %v2367
    %v2442 = vadd.f32 %v2432, %v2438
    %v2443 = vadd.f32 %v2433, %v2439
    %v2444 = vadd.f32 %v2434, %v2440
    %v2445 = vadd.f32 %v2435, %v2441
    %2446 = vmatpush.msra.mxu0 0.0
    %2447 = vmatpush.msra.mxu0 0.0
    %2448 = vmatpush.msra.mxu0 0.0
    %2449 = vmatpush.msra.mxu0 0.0
    %2450 = vmatpush.msra.mxu0 0.0
    %2451 = vmatpush.msra.mxu0 0.0
    %2452 = vmatpush.msra.mxu0 0.0
    %2453 = vmatpush.msra.mxu0 0.0
    %2454 = vmatpush.msra.mxu0 0.0
    %2455 = vmatpush.msra.mxu0 0.0
    %2456 = vmatpush.msra.mxu0 0.0
    %2457 = vmatpush.msra.mxu0 0.0
    %2458 = vmatpush.msra.mxu0 %v2393
    %2459 = vmatpush.msra.mxu0 %v2392
    %2460 = vmatpush.msra.mxu0 %v2391
    %2461 = vmatpush.msra.mxu0 %v2390
    %2462 = vmatmul.f32.gmra.mxu0 %v219
    %v2463 = vpop.f32.mrf.mxu0
    %v2464 = vadd.f32 %v2416, %v2463
    %2465 = vmatmul.f32.gmra.mxu0 %v222
    %v2466 = vpop.f32.mrf.mxu0
    %v2467 = vadd.f32 %v2417, %v2466
    %2468 = vmatmul.f32.gmra.mxu0 %v225
    %v2469 = vpop.f32.mrf.mxu0
    %v2470 = vadd.f32 %v2418, %v2469
    %2471 = vmatmul.f32.gmra.mxu0 %v228
    %v2472 = vpop.f32.mrf.mxu0
    %v2473 = vadd.f32 %v2419, %v2472
    %2474 = vdwg.mxu0
    %2475 = vmatpush.msra.mxu0 0.0
    %2476 = vmatpush.msra.mxu0 0.0
    %2477 = vmatpush.msra.mxu0 0.0
    %2478 = vmatpush.msra.mxu0 0.0
    %2479 = vmatpush.msra.mxu0 0.0
    %2480 = vmatpush.msra.mxu0 0.0
    %2481 = vmatpush.msra.mxu0 0.0
    %2482 = vmatpush.msra.mxu0 0.0
    %2483 = vmatpush.msra.mxu0 0.0
    %2484 = vmatpush.msra.mxu0 0.0
    %2485 = vmatpush.msra.mxu0 0.0
    %2486 = vmatpush.msra.mxu0 0.0
    %2487 = vmatpush.msra.mxu0 %v2445
    %2488 = vmatpush.msra.mxu0 %v2444
    %2489 = vmatpush.msra.mxu0 %v2443
    %2490 = vmatpush.msra.mxu0 %v2442
    %2491 = vmatmul.f32.gmra.mxu0 %v260
    %v2492 = vpop.f32.mrf.mxu0
    %v2493 = vadd.f32 0.0, %v2492
    %2494 = vmatmul.f32.gmra.mxu0 %v263
    %v2495 = vpop.f32.mrf.mxu0
    %v2496 = vadd.f32 0.0, %v2495
    %2497 = vmatmul.f32.gmra.mxu0 %v266
    %v2498 = vpop.f32.mrf.mxu0
    %v2499 = vadd.f32 0.0, %v2498
    %2500 = vmatmul.f32.gmra.mxu0 %v269
    %v2501 = vpop.f32.mrf.mxu0
    %v2502 = vadd.f32 0.0, %v2501
    %2503 = vdwg.mxu0
    %v2504 = vadd.f32 %v2464, %v2493
    %v2505 = vadd.f32 %v2467, %v2496
    %v2506 = vadd.f32 %v2470, %v2499
    %v2507 = vadd.f32 %v2473, %v2502
    %v2508 = vmul.f32 %v2504, %v109
    %v2509 = vmul.f32 %v2505, %v109
    %v2510 = vmul.f32 %v2506, %v109
    %v2511 = vmul.f32 %v2507, %v109
    %v2512 = vadd.f32 %v2508, %v2509
    %v2513 = vadd.f32 %v2512, %v2510
    %v2514 = vadd.f32 %v2513, %v2511
    %2515 = vadd.xlane.f32.xlu0 %v2514
    %v2516 = vpop.xlane.xlu0 %2515
    %v2517 = vrot.slane %v2516, 4
    %v2518 = vadd.f32 %v2516, %v2517
    %v2519 = vrot.slane %v2518, 2
    %v2520 = vadd.f32 %v2518, %v2519
    %v2521 = vrot.slane %v2520, 1
    %v2522 = vadd.f32 %v2520, %v2521
    %s2523 = vtos %v2522
    %v2524 = vmul.f32 %v2508, %v2508
    %v2525 = vmul.f32 %v2509, %v2509
    %v2526 = vmul.f32 %v2510, %v2510
    %v2527 = vmul.f32 %v2511, %v2511
    %v2528 = vadd.f32 %v2524, %v2525
    %v2529 = vadd.f32 %v2528, %v2526
    %v2530 = vadd.f32 %v2529, %v2527
    %2531 = vadd.xlane.f32.xlu0 %v2530
    %v2532 = vpop.xlane.xlu0 %2531
    %v2533 = vrot.slane %v2532, 4
    %v2534 = vadd.f32 %v2532, %v2533
    %v2535 = vrot.slane %v2534, 2
    %v2536 = vadd.f32 %v2534, %v2535
    %v2537 = vrot.slane %v2536, 1
    %v2538 = vadd.f32 %v2536, %v2537
    %s2539 = vtos %v2538
    %s2540 = smul.f32 %s2523, 0.001953125
    %s2541 = smul.f32 %s2539, 0.001953125
    %s2542 = smul.f32 %s2540, %s2540
    %s2543 = ssub.f32 %s2541, %s2542
    %s2544 = smax.f32 %s2543, 0.0
    %s2545 = sld [smem:[#allocation9 + $0x9]]
    %s2546 = sadd.f32 %s2544, 1e-05
    %v2547 = vstv %s2546
    %v2548 = vrsqrt.pop %v2547
    %v2549 = vmul.f32 %v2548, %v2547
    %v2550 = vmul.f32 %v2549, %v2548
    %v2551 = vmul.f32 0.5, %v2550
    %v2552 = vsub.f32 1.5, %v2551
    %v2553 = vmul.f32 %v2548, %v2552
    %vm2554 = vweird.f32 %v2547
    %vm2555 = vweird.f32 %v2548
    %vm2556 = vmor %vm2554, %vm2555
    %v2557 = vsel %vm2556, %v2548, %v2553
    %s2558 = vtos %v2557
    %s2559 = smul.f32 %s2545, %s2558
    %s2560 = sld [smem:[#allocation10 + $0x9]]
    %s2561 = smul.f32 %s2540, %s2559
    %s2562 = ssub.f32 %s2560, %s2561
    %v2563 = vstv %s2559
    %v2564 = vmul.f32 %v2508, %v2563
    %v2565 = vmul.f32 %v2509, %v2563
    %v2566 = vmul.f32 %v2510, %v2563
    %v2567 = vmul.f32 %v2511, %v2563
    %v2568 = vstv %s2562
    %v2569 = vmul.f32 %v2568, %v109
    %v2570 = vadd.f32 %v2564, %v2569
    %v2571 = vadd.f32 %v2565, %v2569
    %v2572 = vadd.f32 %v2566, %v2569
    %v2573 = vadd.f32 %v2567, %v2569
    %v2574 = vadd.f32 %v2122, %v2570
    %v2575 = vadd.f32 %v2123, %v2571
    %v2576 = vadd.f32 %v2124, %v2572
    %v2577 = vadd.f32 %v2125, %v2573
    %2578 = vrot.lane.b32.xlu0 %v2574, 1
    %v2579 = vpop.permute.xlu0 %2578
    %2580 = vrot.lane.b32.xlu0 %v2575, 1
    %v2581 = vpop.permute.xlu0 %2580
    %2582 = vrot.lane.b32.xlu0 %v2576, 1
    %v2583 = vpop.permute.xlu0 %2582
    %2584 = vrot.lane.b32.xlu0 %v2577, 1
    %v2585 = vpop.permute.xlu0 %2584
    %2586 = vrot.lane.b32.xlu0 %v2574, 127
    %v2587 = vpop.permute.xlu0 %2586
    %2588 = vrot.lane.b32.xlu0 %v2575, 127
    %v2589 = vpop.permute.xlu0 %2588
    %2590 = vrot.lane.b32.xlu0 %v2576, 127
    %v2591 = vpop.permute.xlu0 %2590
    %2592 = vrot.lane.b32.xlu0 %v2577, 127
    %v2593 = vpop.permute.xlu0 %2592
    %s2594 = sld [smem:[#allocation2 + $0x63]]
    %v2595 = vstv %s2594
    %v2596 = vmul.f32 %v2595, %v2579
    %v2597 = vmul.f32 %v2595, %v2581
    %v2598 = vmul.f32 %v2595, %v2583
    %v2599 = vmul.f32 %v2595, %v2585
    %s2600 = sld [smem:[#allocation2 + $0x64]]
    %v2601 = vstv %s2600
    %v2602 = vmul.f32 %v2601, %v2574
    %v2603 = vmul.f32 %v2601, %v2575
    %v2604 = vmul.f32 %v2601, %v2576
    %v2605 = vmul.f32 %v2601, %v2577
    %v2606 = vadd.f32 %v2596, %v2602
    %v2607 = vadd.f32 %v2597, %v2603
    %v2608 = vadd.f32 %v2598, %v2604
    %v2609 = vadd.f32 %v2599, %v2605
    %s2610 = sld [smem:[#allocation2 + $0x65]]
    %v2611 = vstv %s2610
    %v2612 = vmul.f32 %v2611, %v2587
    %v2613 = vmul.f32 %v2611, %v2589
    %v2614 = vmul.f32 %v2611, %v2591
    %v2615 = vmul.f32 %v2611, %v2593
    %v2616 = vadd.f32 %v2606, %v2612
    %v2617 = vadd.f32 %v2607, %v2613
    %v2618 = vadd.f32 %v2608, %v2614
    %v2619 = vadd.f32 %v2609, %v2615
    %s2620 = sld [smem:[#allocation2 + $0x66]]
    %v2621 = vstv %s2620
    %v2622 = vmul.f32 %v2621, %v2579
    %v2623 = vmul.f32 %v2621, %v2581
    %v2624 = vmul.f32 %v2621, %v2583
    %v2625 = vmul.f32 %v2621, %v2585
    %s2626 = sld [smem:[#allocation2 + $0x67]]
    %v2627 = vstv %s2626
    %v2628 = vmul.f32 %v2627, %v2574
    %v2629 = vmul.f32 %v2627, %v2575
    %v2630 = vmul.f32 %v2627, %v2576
    %v2631 = vmul.f32 %v2627, %v2577
    %v2632 = vadd.f32 %v2622, %v2628
    %v2633 = vadd.f32 %v2623, %v2629
    %v2634 = vadd.f32 %v2624, %v2630
    %v2635 = vadd.f32 %v2625, %v2631
    %s2636 = sld [smem:[#allocation2 + $0x68]]
    %v2637 = vstv %s2636
    %v2638 = vmul.f32 %v2637, %v2587
    %v2639 = vmul.f32 %v2637, %v2589
    %v2640 = vmul.f32 %v2637, %v2591
    %v2641 = vmul.f32 %v2637, %v2593
    %v2642 = vadd.f32 %v2632, %v2638
    %v2643 = vadd.f32 %v2633, %v2639
    %v2644 = vadd.f32 %v2634, %v2640
    %v2645 = vadd.f32 %v2635, %v2641
    %s2646 = sld [smem:[#allocation2 + $0x69]]
    %v2647 = vstv %s2646
    %v2648 = vmul.f32 %v2647, %v2579
    %v2649 = vmul.f32 %v2647, %v2581
    %v2650 = vmul.f32 %v2647, %v2583
    %v2651 = vmul.f32 %v2647, %v2585
    %s2652 = sld [smem:[#allocation2 + $0x6a]]
    %v2653 = vstv %s2652
    %v2654 = vmul.f32 %v2653, %v2574
    %v2655 = vmul.f32 %v2653, %v2575
    %v2656 = vmul.f32 %v2653, %v2576
    %v2657 = vmul.f32 %v2653, %v2577
    %v2658 = vadd.f32 %v2648, %v2654
    %v2659 = vadd.f32 %v2649, %v2655
    %v2660 = vadd.f32 %v2650, %v2656
    %v2661 = vadd.f32 %v2651, %v2657
    %s2662 = sld [smem:[#allocation2 + $0x6b]]
    %v2663 = vstv %s2662
    %v2664 = vmul.f32 %v2663, %v2587
    %v2665 = vmul.f32 %v2663, %v2589
    %v2666 = vmul.f32 %v2663, %v2591
    %v2667 = vmul.f32 %v2663, %v2593
    %v2668 = vadd.f32 %v2658, %v2664
    %v2669 = vadd.f32 %v2659, %v2665
    %v2670 = vadd.f32 %v2660, %v2666
    %v2671 = vadd.f32 %v2661, %v2667
    %2672 = vmatpush.msra.mxu0 0.0
    %2673 = vmatpush.msra.mxu0 0.0
    %2674 = vmatpush.msra.mxu0 0.0
    %2675 = vmatpush.msra.mxu0 0.0
    %2676 = vmatpush.msra.mxu0 0.0
    %2677 = vmatpush.msra.mxu0 0.0
    %2678 = vmatpush.msra.mxu0 0.0
    %2679 = vmatpush.msra.mxu0 0.0
    %2680 = vmatpush.msra.mxu0 0.0
    %2681 = vmatpush.msra.mxu0 0.0
    %2682 = vmatpush.msra.mxu0 0.0
    %2683 = vmatpush.msra.mxu0 0.0
    %2684 = vmatpush.msra.mxu0 %v2619
    %2685 = vmatpush.msra.mxu0 %v2618
    %2686 = vmatpush.msra.mxu0 %v2617
    %2687 = vmatpush.msra.mxu0 %v2616
    %2688 = vmatmul.f32.gmra.mxu0 %v219
    %v2689 = vpop.f32.mrf.mxu0
    %v2690 = vadd.f32 %v2642, %v2689
    %2691 = vmatmul.f32.gmra.mxu0 %v222
    %v2692 = vpop.f32.mrf.mxu0
    %v2693 = vadd.f32 %v2643, %v2692
    %2694 = vmatmul.f32.gmra.mxu0 %v225
    %v2695 = vpop.f32.mrf.mxu0
    %v2696 = vadd.f32 %v2644, %v2695
    %2697 = vmatmul.f32.gmra.mxu0 %v228
    %v2698 = vpop.f32.mrf.mxu0
    %v2699 = vadd.f32 %v2645, %v2698
    %2700 = vdwg.mxu0
    %2701 = vmatpush.msra.mxu0 0.0
    %2702 = vmatpush.msra.mxu0 0.0
    %2703 = vmatpush.msra.mxu0 0.0
    %2704 = vmatpush.msra.mxu0 0.0
    %2705 = vmatpush.msra.mxu0 0.0
    %2706 = vmatpush.msra.mxu0 0.0
    %2707 = vmatpush.msra.mxu0 0.0
    %2708 = vmatpush.msra.mxu0 0.0
    %2709 = vmatpush.msra.mxu0 0.0
    %2710 = vmatpush.msra.mxu0 0.0
    %2711 = vmatpush.msra.mxu0 0.0
    %2712 = vmatpush.msra.mxu0 0.0
    %2713 = vmatpush.msra.mxu0 %v2671
    %2714 = vmatpush.msra.mxu0 %v2670
    %2715 = vmatpush.msra.mxu0 %v2669
    %2716 = vmatpush.msra.mxu0 %v2668
    %2717 = vmatmul.f32.gmra.mxu0 %v260
    %v2718 = vpop.f32.mrf.mxu0
    %v2719 = vadd.f32 0.0, %v2718
    %2720 = vmatmul.f32.gmra.mxu0 %v263
    %v2721 = vpop.f32.mrf.mxu0
    %v2722 = vadd.f32 0.0, %v2721
    %2723 = vmatmul.f32.gmra.mxu0 %v266
    %v2724 = vpop.f32.mrf.mxu0
    %v2725 = vadd.f32 0.0, %v2724
    %2726 = vmatmul.f32.gmra.mxu0 %v269
    %v2727 = vpop.f32.mrf.mxu0
    %v2728 = vadd.f32 0.0, %v2727
    %2729 = vdwg.mxu0
    %v2730 = vadd.f32 %v2690, %v2719
    %v2731 = vadd.f32 %v2693, %v2722
    %v2732 = vadd.f32 %v2696, %v2725
    %v2733 = vadd.f32 %v2699, %v2728
    %v2734 = vmul.f32 %v2730, %v109
    %v2735 = vmul.f32 %v2731, %v109
    %v2736 = vmul.f32 %v2732, %v109
    %v2737 = vmul.f32 %v2733, %v109
    %v2738 = vadd.f32 %v2734, %v2735
    %v2739 = vadd.f32 %v2738, %v2736
    %v2740 = vadd.f32 %v2739, %v2737
    %2741 = vadd.xlane.f32.xlu0 %v2740
    %v2742 = vpop.xlane.xlu0 %2741
    %v2743 = vrot.slane %v2742, 4
    %v2744 = vadd.f32 %v2742, %v2743
    %v2745 = vrot.slane %v2744, 2
    %v2746 = vadd.f32 %v2744, %v2745
    %v2747 = vrot.slane %v2746, 1
    %v2748 = vadd.f32 %v2746, %v2747
    %s2749 = vtos %v2748
    %v2750 = vmul.f32 %v2734, %v2734
    %v2751 = vmul.f32 %v2735, %v2735
    %v2752 = vmul.f32 %v2736, %v2736
    %v2753 = vmul.f32 %v2737, %v2737
    %v2754 = vadd.f32 %v2750, %v2751
    %v2755 = vadd.f32 %v2754, %v2752
    %v2756 = vadd.f32 %v2755, %v2753
    %2757 = vadd.xlane.f32.xlu0 %v2756
    %v2758 = vpop.xlane.xlu0 %2757
    %v2759 = vrot.slane %v2758, 4
    %v2760 = vadd.f32 %v2758, %v2759
    %v2761 = vrot.slane %v2760, 2
    %v2762 = vadd.f32 %v2760, %v2761
    %v2763 = vrot.slane %v2762, 1
    %v2764 = vadd.f32 %v2762, %v2763
    %s2765 = vtos %v2764
    %s2766 = smul.f32 %s2749, 0.001953125
    %s2767 = smul.f32 %s2765, 0.001953125
    %s2768 = smul.f32 %s2766, %s2766
    %s2769 = ssub.f32 %s2767, %s2768
    %s2770 = smax.f32 %s2769, 0.0
    %s2771 = sld [smem:[#allocation9 + $0xa]]
    %s2772 = sadd.f32 %s2770, 1e-05
    %v2773 = vstv %s2772
    %v2774 = vrsqrt.pop %v2773
    %v2775 = vmul.f32 %v2774, %v2773
    %v2776 = vmul.f32 %v2775, %v2774
    %v2777 = vmul.f32 0.5, %v2776
    %v2778 = vsub.f32 1.5, %v2777
    %v2779 = vmul.f32 %v2774, %v2778
    %vm2780 = vweird.f32 %v2773
    %vm2781 = vweird.f32 %v2774
    %vm2782 = vmor %vm2780, %vm2781
    %v2783 = vsel %vm2782, %v2774, %v2779
    %s2784 = vtos %v2783
    %s2785 = smul.f32 %s2771, %s2784
    %s2786 = sld [smem:[#allocation10 + $0xa]]
    %s2787 = smul.f32 %s2766, %s2785
    %s2788 = ssub.f32 %s2786, %s2787
    %v2789 = vstv %s2785
    %v2790 = vmul.f32 %v2734, %v2789
    %v2791 = vmul.f32 %v2735, %v2789
    %v2792 = vmul.f32 %v2736, %v2789
    %v2793 = vmul.f32 %v2737, %v2789
    %v2794 = vstv %s2788
    %v2795 = vmul.f32 %v2794, %v109
    %v2796 = vadd.f32 %v2790, %v2795
    %v2797 = vadd.f32 %v2791, %v2795
    %v2798 = vadd.f32 %v2792, %v2795
    %v2799 = vadd.f32 %v2793, %v2795
    %v2800 = vmax.f32 %v2796, 0.0
    %v2801 = vmax.f32 %v2797, 0.0
    %v2802 = vmax.f32 %v2798, 0.0
    %v2803 = vmax.f32 %v2799, 0.0
    %2804 = vrot.lane.b32.xlu0 %v2800, 1
    %v2805 = vpop.permute.xlu0 %2804
    %2806 = vrot.lane.b32.xlu0 %v2801, 1
    %v2807 = vpop.permute.xlu0 %2806
    %2808 = vrot.lane.b32.xlu0 %v2802, 1
    %v2809 = vpop.permute.xlu0 %2808
    %2810 = vrot.lane.b32.xlu0 %v2803, 1
    %v2811 = vpop.permute.xlu0 %2810
    %2812 = vrot.lane.b32.xlu0 %v2800, 127
    %v2813 = vpop.permute.xlu0 %2812
    %2814 = vrot.lane.b32.xlu0 %v2801, 127
    %v2815 = vpop.permute.xlu0 %2814
    %2816 = vrot.lane.b32.xlu0 %v2802, 127
    %v2817 = vpop.permute.xlu0 %2816
    %2818 = vrot.lane.b32.xlu0 %v2803, 127
    %v2819 = vpop.permute.xlu0 %2818
    %s2820 = sld [smem:[#allocation2 + $0x6c]]
    %v2821 = vstv %s2820
    %v2822 = vmul.f32 %v2821, %v2805
    %v2823 = vmul.f32 %v2821, %v2807
    %v2824 = vmul.f32 %v2821, %v2809
    %v2825 = vmul.f32 %v2821, %v2811
    %s2826 = sld [smem:[#allocation2 + $0x6d]]
    %v2827 = vstv %s2826
    %v2828 = vmul.f32 %v2827, %v2800
    %v2829 = vmul.f32 %v2827, %v2801
    %v2830 = vmul.f32 %v2827, %v2802
    %v2831 = vmul.f32 %v2827, %v2803
    %v2832 = vadd.f32 %v2822, %v2828
    %v2833 = vadd.f32 %v2823, %v2829
    %v2834 = vadd.f32 %v2824, %v2830
    %v2835 = vadd.f32 %v2825, %v2831
    %s2836 = sld [smem:[#allocation2 + $0x6e]]
    %v2837 = vstv %s2836
    %v2838 = vmul.f32 %v2837, %v2813
    %v2839 = vmul.f32 %v2837, %v2815
    %v2840 = vmul.f32 %v2837, %v2817
    %v2841 = vmul.f32 %v2837, %v2819
    %v2842 = vadd.f32 %v2832, %v2838
    %v2843 = vadd.f32 %v2833, %v2839
    %v2844 = vadd.f32 %v2834, %v2840
    %v2845 = vadd.f32 %v2835, %v2841
    %s2846 = sld [smem:[#allocation2 + $0x6f]]
    %v2847 = vstv %s2846
    %v2848 = vmul.f32 %v2847, %v2805
    %v2849 = vmul.f32 %v2847, %v2807
    %v2850 = vmul.f32 %v2847, %v2809
    %v2851 = vmul.f32 %v2847, %v2811
    %s2852 = sld [smem:[#allocation2 + $0x70]]
    %v2853 = vstv %s2852
    %v2854 = vmul.f32 %v2853, %v2800
    %v2855 = vmul.f32 %v2853, %v2801
    %v2856 = vmul.f32 %v2853, %v2802
    %v2857 = vmul.f32 %v2853, %v2803
    %v2858 = vadd.f32 %v2848, %v2854
    %v2859 = vadd.f32 %v2849, %v2855
    %v2860 = vadd.f32 %v2850, %v2856
    %v2861 = vadd.f32 %v2851, %v2857
    %s2862 = sld [smem:[#allocation2 + $0x71]]
    %v2863 = vstv %s2862
    %v2864 = vmul.f32 %v2863, %v2813
    %v2865 = vmul.f32 %v2863, %v2815
    %v2866 = vmul.f32 %v2863, %v2817
    %v2867 = vmul.f32 %v2863, %v2819
    %v2868 = vadd.f32 %v2858, %v2864
    %v2869 = vadd.f32 %v2859, %v2865
    %v2870 = vadd.f32 %v2860, %v2866
    %v2871 = vadd.f32 %v2861, %v2867
    %s2872 = sld [smem:[#allocation2 + $0x72]]
    %v2873 = vstv %s2872
    %v2874 = vmul.f32 %v2873, %v2805
    %v2875 = vmul.f32 %v2873, %v2807
    %v2876 = vmul.f32 %v2873, %v2809
    %v2877 = vmul.f32 %v2873, %v2811
    %s2878 = sld [smem:[#allocation2 + $0x73]]
    %v2879 = vstv %s2878
    %v2880 = vmul.f32 %v2879, %v2800
    %v2881 = vmul.f32 %v2879, %v2801
    %v2882 = vmul.f32 %v2879, %v2802
    %v2883 = vmul.f32 %v2879, %v2803
    %v2884 = vadd.f32 %v2874, %v2880
    %v2885 = vadd.f32 %v2875, %v2881
    %v2886 = vadd.f32 %v2876, %v2882
    %v2887 = vadd.f32 %v2877, %v2883
    %s2888 = sld [smem:[#allocation2 + $0x74]]
    %v2889 = vstv %s2888
    %v2890 = vmul.f32 %v2889, %v2813
    %v2891 = vmul.f32 %v2889, %v2815
    %v2892 = vmul.f32 %v2889, %v2817
    %v2893 = vmul.f32 %v2889, %v2819
    %v2894 = vadd.f32 %v2884, %v2890
    %v2895 = vadd.f32 %v2885, %v2891
    %v2896 = vadd.f32 %v2886, %v2892
    %v2897 = vadd.f32 %v2887, %v2893
    %2898 = vmatpush.msra.mxu0 0.0
    %2899 = vmatpush.msra.mxu0 0.0
    %2900 = vmatpush.msra.mxu0 0.0
    %2901 = vmatpush.msra.mxu0 0.0
    %2902 = vmatpush.msra.mxu0 0.0
    %2903 = vmatpush.msra.mxu0 0.0
    %2904 = vmatpush.msra.mxu0 0.0
    %2905 = vmatpush.msra.mxu0 0.0
    %2906 = vmatpush.msra.mxu0 0.0
    %2907 = vmatpush.msra.mxu0 0.0
    %2908 = vmatpush.msra.mxu0 0.0
    %2909 = vmatpush.msra.mxu0 0.0
    %2910 = vmatpush.msra.mxu0 %v2845
    %2911 = vmatpush.msra.mxu0 %v2844
    %2912 = vmatpush.msra.mxu0 %v2843
    %2913 = vmatpush.msra.mxu0 %v2842
    %2914 = vmatmul.f32.gmra.mxu0 %v219
    %v2915 = vpop.f32.mrf.mxu0
    %v2916 = vadd.f32 %v2868, %v2915
    %2917 = vmatmul.f32.gmra.mxu0 %v222
    %v2918 = vpop.f32.mrf.mxu0
    %v2919 = vadd.f32 %v2869, %v2918
    %2920 = vmatmul.f32.gmra.mxu0 %v225
    %v2921 = vpop.f32.mrf.mxu0
    %v2922 = vadd.f32 %v2870, %v2921
    %2923 = vmatmul.f32.gmra.mxu0 %v228
    %v2924 = vpop.f32.mrf.mxu0
    %v2925 = vadd.f32 %v2871, %v2924
    %2926 = vdwg.mxu0
    %2927 = vmatpush.msra.mxu0 0.0
    %2928 = vmatpush.msra.mxu0 0.0
    %2929 = vmatpush.msra.mxu0 0.0
    %2930 = vmatpush.msra.mxu0 0.0
    %2931 = vmatpush.msra.mxu0 0.0
    %2932 = vmatpush.msra.mxu0 0.0
    %2933 = vmatpush.msra.mxu0 0.0
    %2934 = vmatpush.msra.mxu0 0.0
    %2935 = vmatpush.msra.mxu0 0.0
    %2936 = vmatpush.msra.mxu0 0.0
    %2937 = vmatpush.msra.mxu0 0.0
    %2938 = vmatpush.msra.mxu0 0.0
    %2939 = vmatpush.msra.mxu0 %v2897
    %2940 = vmatpush.msra.mxu0 %v2896
    %2941 = vmatpush.msra.mxu0 %v2895
    %2942 = vmatpush.msra.mxu0 %v2894
    %2943 = vmatmul.f32.gmra.mxu0 %v260
    %v2944 = vpop.f32.mrf.mxu0
    %v2945 = vadd.f32 0.0, %v2944
    %2946 = vmatmul.f32.gmra.mxu0 %v263
    %v2947 = vpop.f32.mrf.mxu0
    %v2948 = vadd.f32 0.0, %v2947
    %2949 = vmatmul.f32.gmra.mxu0 %v266
    %v2950 = vpop.f32.mrf.mxu0
    %v2951 = vadd.f32 0.0, %v2950
    %2952 = vmatmul.f32.gmra.mxu0 %v269
    %v2953 = vpop.f32.mrf.mxu0
    %v2954 = vadd.f32 0.0, %v2953
    %2955 = vdwg.mxu0
    %v2956 = vadd.f32 %v2916, %v2945
    %v2957 = vadd.f32 %v2919, %v2948
    %v2958 = vadd.f32 %v2922, %v2951
    %v2959 = vadd.f32 %v2925, %v2954
    %v2960 = vmul.f32 %v2956, %v109
    %v2961 = vmul.f32 %v2957, %v109
    %v2962 = vmul.f32 %v2958, %v109
    %v2963 = vmul.f32 %v2959, %v109
    %v2964 = vadd.f32 %v2960, %v2961
    %v2965 = vadd.f32 %v2964, %v2962
    %v2966 = vadd.f32 %v2965, %v2963
    %2967 = vadd.xlane.f32.xlu0 %v2966
    %v2968 = vpop.xlane.xlu0 %2967
    %v2969 = vrot.slane %v2968, 4
    %v2970 = vadd.f32 %v2968, %v2969
    %v2971 = vrot.slane %v2970, 2
    %v2972 = vadd.f32 %v2970, %v2971
    %v2973 = vrot.slane %v2972, 1
    %v2974 = vadd.f32 %v2972, %v2973
    %s2975 = vtos %v2974
    %v2976 = vmul.f32 %v2960, %v2960
    %v2977 = vmul.f32 %v2961, %v2961
    %v2978 = vmul.f32 %v2962, %v2962
    %v2979 = vmul.f32 %v2963, %v2963
    %v2980 = vadd.f32 %v2976, %v2977
    %v2981 = vadd.f32 %v2980, %v2978
    %v2982 = vadd.f32 %v2981, %v2979
    %2983 = vadd.xlane.f32.xlu0 %v2982
    %v2984 = vpop.xlane.xlu0 %2983
    %v2985 = vrot.slane %v2984, 4
    %v2986 = vadd.f32 %v2984, %v2985
    %v2987 = vrot.slane %v2986, 2
    %v2988 = vadd.f32 %v2986, %v2987
    %v2989 = vrot.slane %v2988, 1
    %v2990 = vadd.f32 %v2988, %v2989
    %s2991 = vtos %v2990
    %s2992 = smul.f32 %s2975, 0.001953125
    %s2993 = smul.f32 %s2991, 0.001953125
    %s2994 = smul.f32 %s2992, %s2992
    %s2995 = ssub.f32 %s2993, %s2994
    %s2996 = smax.f32 %s2995, 0.0
    %s2997 = sld [smem:[#allocation9 + $0xb]]
    %s2998 = sadd.f32 %s2996, 1e-05
    %v2999 = vstv %s2998
    %v3000 = vrsqrt.pop %v2999
    %v3001 = vmul.f32 %v3000, %v2999
    %v3002 = vmul.f32 %v3001, %v3000
    %v3003 = vmul.f32 0.5, %v3002
    %v3004 = vsub.f32 1.5, %v3003
    %v3005 = vmul.f32 %v3000, %v3004
    %vm3006 = vweird.f32 %v2999
    %vm3007 = vweird.f32 %v3000
    %vm3008 = vmor %vm3006, %vm3007
    %v3009 = vsel %vm3008, %v3000, %v3005
    %s3010 = vtos %v3009
    %s3011 = smul.f32 %s2997, %s3010
    %s3012 = sld [smem:[#allocation10 + $0xb]]
    %s3013 = smul.f32 %s2992, %s3011
    %s3014 = ssub.f32 %s3012, %s3013
    %v3015 = vstv %s3011
    %v3016 = vmul.f32 %v2960, %v3015
    %v3017 = vmul.f32 %v2961, %v3015
    %v3018 = vmul.f32 %v2962, %v3015
    %v3019 = vmul.f32 %v2963, %v3015
    %v3020 = vstv %s3014
    %v3021 = vmul.f32 %v3020, %v109
    %v3022 = vadd.f32 %v3016, %v3021
    %v3023 = vadd.f32 %v3017, %v3021
    %v3024 = vadd.f32 %v3018, %v3021
    %v3025 = vadd.f32 %v3019, %v3021
    %v3026 = vadd.f32 %v2574, %v3022
    %v3027 = vadd.f32 %v2575, %v3023
    %v3028 = vadd.f32 %v2576, %v3024
    %v3029 = vadd.f32 %v2577, %v3025
    %3030 = vrot.lane.b32.xlu0 %v3026, 1
    %v3031 = vpop.permute.xlu0 %3030
    %3032 = vrot.lane.b32.xlu0 %v3027, 1
    %v3033 = vpop.permute.xlu0 %3032
    %3034 = vrot.lane.b32.xlu0 %v3028, 1
    %v3035 = vpop.permute.xlu0 %3034
    %3036 = vrot.lane.b32.xlu0 %v3029, 1
    %v3037 = vpop.permute.xlu0 %3036
    %3038 = vrot.lane.b32.xlu0 %v3026, 127
    %v3039 = vpop.permute.xlu0 %3038
    %3040 = vrot.lane.b32.xlu0 %v3027, 127
    %v3041 = vpop.permute.xlu0 %3040
    %3042 = vrot.lane.b32.xlu0 %v3028, 127
    %v3043 = vpop.permute.xlu0 %3042
    %3044 = vrot.lane.b32.xlu0 %v3029, 127
    %v3045 = vpop.permute.xlu0 %3044
    %s3046 = sld [smem:[#allocation2 + $0x75]]
    %v3047 = vstv %s3046
    %v3048 = vmul.f32 %v3047, %v3031
    %v3049 = vmul.f32 %v3047, %v3033
    %v3050 = vmul.f32 %v3047, %v3035
    %v3051 = vmul.f32 %v3047, %v3037
    %s3052 = sld [smem:[#allocation2 + $0x76]]
    %v3053 = vstv %s3052
    %v3054 = vmul.f32 %v3053, %v3026
    %v3055 = vmul.f32 %v3053, %v3027
    %v3056 = vmul.f32 %v3053, %v3028
    %v3057 = vmul.f32 %v3053, %v3029
    %v3058 = vadd.f32 %v3048, %v3054
    %v3059 = vadd.f32 %v3049, %v3055
    %v3060 = vadd.f32 %v3050, %v3056
    %v3061 = vadd.f32 %v3051, %v3057
    %s3062 = sld [smem:[#allocation2 + $0x77]]
    %v3063 = vstv %s3062
    %v3064 = vmul.f32 %v3063, %v3039
    %v3065 = vmul.f32 %v3063, %v3041
    %v3066 = vmul.f32 %v3063, %v3043
    %v3067 = vmul.f32 %v3063, %v3045
    %v3068 = vadd.f32 %v3058, %v3064
    %v3069 = vadd.f32 %v3059, %v3065
    %v3070 = vadd.f32 %v3060, %v3066
    %v3071 = vadd.f32 %v3061, %v3067
    %s3072 = sld [smem:[#allocation2 + $0x78]]
    %v3073 = vstv %s3072
    %v3074 = vmul.f32 %v3073, %v3031
    %v3075 = vmul.f32 %v3073, %v3033
    %v3076 = vmul.f32 %v3073, %v3035
    %v3077 = vmul.f32 %v3073, %v3037
    %s3078 = sld [smem:[#allocation2 + $0x79]]
    %v3079 = vstv %s3078
    %v3080 = vmul.f32 %v3079, %v3026
    %v3081 = vmul.f32 %v3079, %v3027
    %v3082 = vmul.f32 %v3079, %v3028
    %v3083 = vmul.f32 %v3079, %v3029
    %v3084 = vadd.f32 %v3074, %v3080
    %v3085 = vadd.f32 %v3075, %v3081
    %v3086 = vadd.f32 %v3076, %v3082
    %v3087 = vadd.f32 %v3077, %v3083
    %s3088 = sld [smem:[#allocation2 + $0x7a]]
    %v3089 = vstv %s3088
    %v3090 = vmul.f32 %v3089, %v3039
    %v3091 = vmul.f32 %v3089, %v3041
    %v3092 = vmul.f32 %v3089, %v3043
    %v3093 = vmul.f32 %v3089, %v3045
    %v3094 = vadd.f32 %v3084, %v3090
    %v3095 = vadd.f32 %v3085, %v3091
    %v3096 = vadd.f32 %v3086, %v3092
    %v3097 = vadd.f32 %v3087, %v3093
    %s3098 = sld [smem:[#allocation2 + $0x7b]]
    %v3099 = vstv %s3098
    %v3100 = vmul.f32 %v3099, %v3031
    %v3101 = vmul.f32 %v3099, %v3033
    %v3102 = vmul.f32 %v3099, %v3035
    %v3103 = vmul.f32 %v3099, %v3037
    %s3104 = sld [smem:[#allocation2 + $0x7c]]
    %v3105 = vstv %s3104
    %v3106 = vmul.f32 %v3105, %v3026
    %v3107 = vmul.f32 %v3105, %v3027
    %v3108 = vmul.f32 %v3105, %v3028
    %v3109 = vmul.f32 %v3105, %v3029
    %v3110 = vadd.f32 %v3100, %v3106
    %v3111 = vadd.f32 %v3101, %v3107
    %v3112 = vadd.f32 %v3102, %v3108
    %v3113 = vadd.f32 %v3103, %v3109
    %s3114 = sld [smem:[#allocation2 + $0x7d]]
    %v3115 = vstv %s3114
    %v3116 = vmul.f32 %v3115, %v3039
    %v3117 = vmul.f32 %v3115, %v3041
    %v3118 = vmul.f32 %v3115, %v3043
    %v3119 = vmul.f32 %v3115, %v3045
    %v3120 = vadd.f32 %v3110, %v3116
    %v3121 = vadd.f32 %v3111, %v3117
    %v3122 = vadd.f32 %v3112, %v3118
    %v3123 = vadd.f32 %v3113, %v3119
    %3124 = vmatpush.msra.mxu0 0.0
    %3125 = vmatpush.msra.mxu0 0.0
    %3126 = vmatpush.msra.mxu0 0.0
    %3127 = vmatpush.msra.mxu0 0.0
    %3128 = vmatpush.msra.mxu0 0.0
    %3129 = vmatpush.msra.mxu0 0.0
    %3130 = vmatpush.msra.mxu0 0.0
    %3131 = vmatpush.msra.mxu0 0.0
    %3132 = vmatpush.msra.mxu0 0.0
    %3133 = vmatpush.msra.mxu0 0.0
    %3134 = vmatpush.msra.mxu0 0.0
    %3135 = vmatpush.msra.mxu0 0.0
    %3136 = vmatpush.msra.mxu0 %v3071
    %3137 = vmatpush.msra.mxu0 %v3070
    %3138 = vmatpush.msra.mxu0 %v3069
    %3139 = vmatpush.msra.mxu0 %v3068
    %3140 = vmatmul.f32.gmra.mxu0 %v219
    %v3141 = vpop.f32.mrf.mxu0
    %v3142 = vadd.f32 %v3094, %v3141
    %3143 = vmatmul.f32.gmra.mxu0 %v222
    %v3144 = vpop.f32.mrf.mxu0
    %v3145 = vadd.f32 %v3095, %v3144
    %3146 = vmatmul.f32.gmra.mxu0 %v225
    %v3147 = vpop.f32.mrf.mxu0
    %v3148 = vadd.f32 %v3096, %v3147
    %3149 = vmatmul.f32.gmra.mxu0 %v228
    %v3150 = vpop.f32.mrf.mxu0
    %v3151 = vadd.f32 %v3097, %v3150
    %3152 = vdwg.mxu0
    %3153 = vmatpush.msra.mxu0 0.0
    %3154 = vmatpush.msra.mxu0 0.0
    %3155 = vmatpush.msra.mxu0 0.0
    %3156 = vmatpush.msra.mxu0 0.0
    %3157 = vmatpush.msra.mxu0 0.0
    %3158 = vmatpush.msra.mxu0 0.0
    %3159 = vmatpush.msra.mxu0 0.0
    %3160 = vmatpush.msra.mxu0 0.0
    %3161 = vmatpush.msra.mxu0 0.0
    %3162 = vmatpush.msra.mxu0 0.0
    %3163 = vmatpush.msra.mxu0 0.0
    %3164 = vmatpush.msra.mxu0 0.0
    %3165 = vmatpush.msra.mxu0 %v3123
    %3166 = vmatpush.msra.mxu0 %v3122
    %3167 = vmatpush.msra.mxu0 %v3121
    %3168 = vmatpush.msra.mxu0 %v3120
    %3169 = vmatmul.f32.gmra.mxu0 %v260
    %v3170 = vpop.f32.mrf.mxu0
    %v3171 = vadd.f32 0.0, %v3170
    %3172 = vmatmul.f32.gmra.mxu0 %v263
    %v3173 = vpop.f32.mrf.mxu0
    %v3174 = vadd.f32 0.0, %v3173
    %3175 = vmatmul.f32.gmra.mxu0 %v266
    %v3176 = vpop.f32.mrf.mxu0
    %v3177 = vadd.f32 0.0, %v3176
    %3178 = vmatmul.f32.gmra.mxu0 %v269
    %v3179 = vpop.f32.mrf.mxu0
    %v3180 = vadd.f32 0.0, %v3179
    %3181 = vdwg.mxu0
    %v3182 = vadd.f32 %v3142, %v3171
    %v3183 = vadd.f32 %v3145, %v3174
    %v3184 = vadd.f32 %v3148, %v3177
    %v3185 = vadd.f32 %v3151, %v3180
    %v3186 = vmul.f32 %v3182, %v109
    %v3187 = vmul.f32 %v3183, %v109
    %v3188 = vmul.f32 %v3184, %v109
    %v3189 = vmul.f32 %v3185, %v109
    %v3190 = vadd.f32 %v3186, %v3187
    %v3191 = vadd.f32 %v3190, %v3188
    %v3192 = vadd.f32 %v3191, %v3189
    %3193 = vadd.xlane.f32.xlu0 %v3192
    %v3194 = vpop.xlane.xlu0 %3193
    %v3195 = vrot.slane %v3194, 4
    %v3196 = vadd.f32 %v3194, %v3195
    %v3197 = vrot.slane %v3196, 2
    %v3198 = vadd.f32 %v3196, %v3197
    %v3199 = vrot.slane %v3198, 1
    %v3200 = vadd.f32 %v3198, %v3199
    %s3201 = vtos %v3200
    %v3202 = vmul.f32 %v3186, %v3186
    %v3203 = vmul.f32 %v3187, %v3187
    %v3204 = vmul.f32 %v3188, %v3188
    %v3205 = vmul.f32 %v3189, %v3189
    %v3206 = vadd.f32 %v3202, %v3203
    %v3207 = vadd.f32 %v3206, %v3204
    %v3208 = vadd.f32 %v3207, %v3205
    %3209 = vadd.xlane.f32.xlu0 %v3208
    %v3210 = vpop.xlane.xlu0 %3209
    %v3211 = vrot.slane %v3210, 4
    %v3212 = vadd.f32 %v3210, %v3211
    %v3213 = vrot.slane %v3212, 2
    %v3214 = vadd.f32 %v3212, %v3213
    %v3215 = vrot.slane %v3214, 1
    %v3216 = vadd.f32 %v3214, %v3215
    %s3217 = vtos %v3216
    %s3218 = smul.f32 %s3201, 0.001953125
    %s3219 = smul.f32 %s3217, 0.001953125
    %s3220 = smul.f32 %s3218, %s3218
    %s3221 = ssub.f32 %s3219, %s3220
    %s3222 = smax.f32 %s3221, 0.0
    %s3223 = sld [smem:[#allocation9 + $0xc]]
    %s3224 = sadd.f32 %s3222, 1e-05
    %v3225 = vstv %s3224
    %v3226 = vrsqrt.pop %v3225
    %v3227 = vmul.f32 %v3226, %v3225
    %v3228 = vmul.f32 %v3227, %v3226
    %v3229 = vmul.f32 0.5, %v3228
    %v3230 = vsub.f32 1.5, %v3229
    %v3231 = vmul.f32 %v3226, %v3230
    %vm3232 = vweird.f32 %v3225
    %vm3233 = vweird.f32 %v3226
    %vm3234 = vmor %vm3232, %vm3233
    %v3235 = vsel %vm3234, %v3226, %v3231
    %s3236 = vtos %v3235
    %s3237 = smul.f32 %s3223, %s3236
    %s3238 = sld [smem:[#allocation10 + $0xc]]
    %s3239 = smul.f32 %s3218, %s3237
    %s3240 = ssub.f32 %s3238, %s3239
    %v3241 = vstv %s3237
    %v3242 = vmul.f32 %v3186, %v3241
    %v3243 = vmul.f32 %v3187, %v3241
    %v3244 = vmul.f32 %v3188, %v3241
    %v3245 = vmul.f32 %v3189, %v3241
    %v3246 = vstv %s3240
    %v3247 = vmul.f32 %v3246, %v109
    %v3248 = vadd.f32 %v3242, %v3247
    %v3249 = vadd.f32 %v3243, %v3247
    %v3250 = vadd.f32 %v3244, %v3247
    %v3251 = vadd.f32 %v3245, %v3247
    %v3252 = vmax.f32 %v3248, 0.0
    %v3253 = vmax.f32 %v3249, 0.0
    %v3254 = vmax.f32 %v3250, 0.0
    %v3255 = vmax.f32 %v3251, 0.0
    %3256 = vrot.lane.b32.xlu0 %v3252, 1
    %v3257 = vpop.permute.xlu0 %3256
    %3258 = vrot.lane.b32.xlu0 %v3253, 1
    %v3259 = vpop.permute.xlu0 %3258
    %3260 = vrot.lane.b32.xlu0 %v3254, 1
    %v3261 = vpop.permute.xlu0 %3260
    %3262 = vrot.lane.b32.xlu0 %v3255, 1
    %v3263 = vpop.permute.xlu0 %3262
    %3264 = vrot.lane.b32.xlu0 %v3252, 127
    %v3265 = vpop.permute.xlu0 %3264
    %3266 = vrot.lane.b32.xlu0 %v3253, 127
    %v3267 = vpop.permute.xlu0 %3266
    %3268 = vrot.lane.b32.xlu0 %v3254, 127
    %v3269 = vpop.permute.xlu0 %3268
    %3270 = vrot.lane.b32.xlu0 %v3255, 127
    %v3271 = vpop.permute.xlu0 %3270
    %s3272 = sld [smem:[#allocation2 + $0x7e]]
    %v3273 = vstv %s3272
    %v3274 = vmul.f32 %v3273, %v3257
    %v3275 = vmul.f32 %v3273, %v3259
    %v3276 = vmul.f32 %v3273, %v3261
    %v3277 = vmul.f32 %v3273, %v3263
    %s3278 = sld [smem:[#allocation2 + $0x7f]]
    %v3279 = vstv %s3278
    %v3280 = vmul.f32 %v3279, %v3252
    %v3281 = vmul.f32 %v3279, %v3253
    %v3282 = vmul.f32 %v3279, %v3254
    %v3283 = vmul.f32 %v3279, %v3255
    %v3284 = vadd.f32 %v3274, %v3280
    %v3285 = vadd.f32 %v3275, %v3281
    %v3286 = vadd.f32 %v3276, %v3282
    %v3287 = vadd.f32 %v3277, %v3283
    %s3288 = sld [smem:[#allocation2 + $0x80]]
    %v3289 = vstv %s3288
    %v3290 = vmul.f32 %v3289, %v3265
    %v3291 = vmul.f32 %v3289, %v3267
    %v3292 = vmul.f32 %v3289, %v3269
    %v3293 = vmul.f32 %v3289, %v3271
    %v3294 = vadd.f32 %v3284, %v3290
    %v3295 = vadd.f32 %v3285, %v3291
    %v3296 = vadd.f32 %v3286, %v3292
    %v3297 = vadd.f32 %v3287, %v3293
    %s3298 = sld [smem:[#allocation2 + $0x81]]
    %v3299 = vstv %s3298
    %v3300 = vmul.f32 %v3299, %v3257
    %v3301 = vmul.f32 %v3299, %v3259
    %v3302 = vmul.f32 %v3299, %v3261
    %v3303 = vmul.f32 %v3299, %v3263
    %s3304 = sld [smem:[#allocation2 + $0x82]]
    %v3305 = vstv %s3304
    %v3306 = vmul.f32 %v3305, %v3252
    %v3307 = vmul.f32 %v3305, %v3253
    %v3308 = vmul.f32 %v3305, %v3254
    %v3309 = vmul.f32 %v3305, %v3255
    %v3310 = vadd.f32 %v3300, %v3306
    %v3311 = vadd.f32 %v3301, %v3307
    %v3312 = vadd.f32 %v3302, %v3308
    %v3313 = vadd.f32 %v3303, %v3309
    %s3314 = sld [smem:[#allocation2 + $0x83]]
    %v3315 = vstv %s3314
    %v3316 = vmul.f32 %v3315, %v3265
    %v3317 = vmul.f32 %v3315, %v3267
    %v3318 = vmul.f32 %v3315, %v3269
    %v3319 = vmul.f32 %v3315, %v3271
    %v3320 = vadd.f32 %v3310, %v3316
    %v3321 = vadd.f32 %v3311, %v3317
    %v3322 = vadd.f32 %v3312, %v3318
    %v3323 = vadd.f32 %v3313, %v3319
    %s3324 = sld [smem:[#allocation2 + $0x84]]
    %v3325 = vstv %s3324
    %v3326 = vmul.f32 %v3325, %v3257
    %v3327 = vmul.f32 %v3325, %v3259
    %v3328 = vmul.f32 %v3325, %v3261
    %v3329 = vmul.f32 %v3325, %v3263
    %s3330 = sld [smem:[#allocation2 + $0x85]]
    %v3331 = vstv %s3330
    %v3332 = vmul.f32 %v3331, %v3252
    %v3333 = vmul.f32 %v3331, %v3253
    %v3334 = vmul.f32 %v3331, %v3254
    %v3335 = vmul.f32 %v3331, %v3255
    %v3336 = vadd.f32 %v3326, %v3332
    %v3337 = vadd.f32 %v3327, %v3333
    %v3338 = vadd.f32 %v3328, %v3334
    %v3339 = vadd.f32 %v3329, %v3335
    %s3340 = sld [smem:[#allocation2 + $0x86]]
    %v3341 = vstv %s3340
    %v3342 = vmul.f32 %v3341, %v3265
    %v3343 = vmul.f32 %v3341, %v3267
    %v3344 = vmul.f32 %v3341, %v3269
    %v3345 = vmul.f32 %v3341, %v3271
    %v3346 = vadd.f32 %v3336, %v3342
    %v3347 = vadd.f32 %v3337, %v3343
    %v3348 = vadd.f32 %v3338, %v3344
    %v3349 = vadd.f32 %v3339, %v3345
    %3350 = vmatpush.msra.mxu0 0.0
    %3351 = vmatpush.msra.mxu0 0.0
    %3352 = vmatpush.msra.mxu0 0.0
    %3353 = vmatpush.msra.mxu0 0.0
    %3354 = vmatpush.msra.mxu0 0.0
    %3355 = vmatpush.msra.mxu0 0.0
    %3356 = vmatpush.msra.mxu0 0.0
    %3357 = vmatpush.msra.mxu0 0.0
    %3358 = vmatpush.msra.mxu0 0.0
    %3359 = vmatpush.msra.mxu0 0.0
    %3360 = vmatpush.msra.mxu0 0.0
    %3361 = vmatpush.msra.mxu0 0.0
    %3362 = vmatpush.msra.mxu0 %v3297
    %3363 = vmatpush.msra.mxu0 %v3296
    %3364 = vmatpush.msra.mxu0 %v3295
    %3365 = vmatpush.msra.mxu0 %v3294
    %3366 = vmatmul.f32.gmra.mxu0 %v219
    %v3367 = vpop.f32.mrf.mxu0
    %v3368 = vadd.f32 %v3320, %v3367
    %3369 = vmatmul.f32.gmra.mxu0 %v222
    %v3370 = vpop.f32.mrf.mxu0
    %v3371 = vadd.f32 %v3321, %v3370
    %3372 = vmatmul.f32.gmra.mxu0 %v225
    %v3373 = vpop.f32.mrf.mxu0
    %v3374 = vadd.f32 %v3322, %v3373
    %3375 = vmatmul.f32.gmra.mxu0 %v228
    %v3376 = vpop.f32.mrf.mxu0
    %v3377 = vadd.f32 %v3323, %v3376
    %3378 = vdwg.mxu0
    %3379 = vmatpush.msra.mxu0 0.0
    %3380 = vmatpush.msra.mxu0 0.0
    %3381 = vmatpush.msra.mxu0 0.0
    %3382 = vmatpush.msra.mxu0 0.0
    %3383 = vmatpush.msra.mxu0 0.0
    %3384 = vmatpush.msra.mxu0 0.0
    %3385 = vmatpush.msra.mxu0 0.0
    %3386 = vmatpush.msra.mxu0 0.0
    %3387 = vmatpush.msra.mxu0 0.0
    %3388 = vmatpush.msra.mxu0 0.0
    %3389 = vmatpush.msra.mxu0 0.0
    %3390 = vmatpush.msra.mxu0 0.0
    %3391 = vmatpush.msra.mxu0 %v3349
    %3392 = vmatpush.msra.mxu0 %v3348
    %3393 = vmatpush.msra.mxu0 %v3347
    %3394 = vmatpush.msra.mxu0 %v3346
    %3395 = vmatmul.f32.gmra.mxu0 %v260
    %v3396 = vpop.f32.mrf.mxu0
    %v3397 = vadd.f32 0.0, %v3396
    %3398 = vmatmul.f32.gmra.mxu0 %v263
    %v3399 = vpop.f32.mrf.mxu0
    %v3400 = vadd.f32 0.0, %v3399
    %3401 = vmatmul.f32.gmra.mxu0 %v266
    %v3402 = vpop.f32.mrf.mxu0
    %v3403 = vadd.f32 0.0, %v3402
    %3404 = vmatmul.f32.gmra.mxu0 %v269
    %v3405 = vpop.f32.mrf.mxu0
    %v3406 = vadd.f32 0.0, %v3405
    %3407 = vdwg.mxu0
    %v3408 = vadd.f32 %v3368, %v3397
    %v3409 = vadd.f32 %v3371, %v3400
    %v3410 = vadd.f32 %v3374, %v3403
    %v3411 = vadd.f32 %v3377, %v3406
    %v3412 = vmul.f32 %v3408, %v109
    %v3413 = vmul.f32 %v3409, %v109
    %v3414 = vmul.f32 %v3410, %v109
    %v3415 = vmul.f32 %v3411, %v109
    %v3416 = vadd.f32 %v3412, %v3413
    %v3417 = vadd.f32 %v3416, %v3414
    %v3418 = vadd.f32 %v3417, %v3415
    %3419 = vadd.xlane.f32.xlu0 %v3418
    %v3420 = vpop.xlane.xlu0 %3419
    %v3421 = vrot.slane %v3420, 4
    %v3422 = vadd.f32 %v3420, %v3421
    %v3423 = vrot.slane %v3422, 2
    %v3424 = vadd.f32 %v3422, %v3423
    %v3425 = vrot.slane %v3424, 1
    %v3426 = vadd.f32 %v3424, %v3425
    %s3427 = vtos %v3426
    %v3428 = vmul.f32 %v3412, %v3412
    %v3429 = vmul.f32 %v3413, %v3413
    %v3430 = vmul.f32 %v3414, %v3414
    %v3431 = vmul.f32 %v3415, %v3415
    %v3432 = vadd.f32 %v3428, %v3429
    %v3433 = vadd.f32 %v3432, %v3430
    %v3434 = vadd.f32 %v3433, %v3431
    %3435 = vadd.xlane.f32.xlu0 %v3434
    %v3436 = vpop.xlane.xlu0 %3435
    %v3437 = vrot.slane %v3436, 4
    %v3438 = vadd.f32 %v3436, %v3437
    %v3439 = vrot.slane %v3438, 2
    %v3440 = vadd.f32 %v3438, %v3439
    %v3441 = vrot.slane %v3440, 1
    %v3442 = vadd.f32 %v3440, %v3441
    %s3443 = vtos %v3442
    %s3444 = smul.f32 %s3427, 0.001953125
    %s3445 = smul.f32 %s3443, 0.001953125
    %s3446 = smul.f32 %s3444, %s3444
    %s3447 = ssub.f32 %s3445, %s3446
    %s3448 = smax.f32 %s3447, 0.0
    %s3449 = sld [smem:[#allocation9 + $0xd]]
    %s3450 = sadd.f32 %s3448, 1e-05
    %v3451 = vstv %s3450
    %v3452 = vrsqrt.pop %v3451
    %v3453 = vmul.f32 %v3452, %v3451
    %v3454 = vmul.f32 %v3453, %v3452
    %v3455 = vmul.f32 0.5, %v3454
    %v3456 = vsub.f32 1.5, %v3455
    %v3457 = vmul.f32 %v3452, %v3456
    %vm3458 = vweird.f32 %v3451
    %vm3459 = vweird.f32 %v3452
    %vm3460 = vmor %vm3458, %vm3459
    %v3461 = vsel %vm3460, %v3452, %v3457
    %s3462 = vtos %v3461
    %s3463 = smul.f32 %s3449, %s3462
    %s3464 = sld [smem:[#allocation10 + $0xd]]
    %s3465 = smul.f32 %s3444, %s3463
    %s3466 = ssub.f32 %s3464, %s3465
    %v3467 = vstv %s3463
    %v3468 = vmul.f32 %v3412, %v3467
    %v3469 = vmul.f32 %v3413, %v3467
    %v3470 = vmul.f32 %v3414, %v3467
    %v3471 = vmul.f32 %v3415, %v3467
    %v3472 = vstv %s3466
    %v3473 = vmul.f32 %v3472, %v109
    %v3474 = vadd.f32 %v3468, %v3473
    %v3475 = vadd.f32 %v3469, %v3473
    %v3476 = vadd.f32 %v3470, %v3473
    %v3477 = vadd.f32 %v3471, %v3473
    %v3478 = vadd.f32 %v3026, %v3474
    %v3479 = vadd.f32 %v3027, %v3475
    %v3480 = vadd.f32 %v3028, %v3476
    %v3481 = vadd.f32 %v3029, %v3477
    %3482 = vrot.lane.b32.xlu0 %v3478, 1
    %v3483 = vpop.permute.xlu0 %3482
    %3484 = vrot.lane.b32.xlu0 %v3479, 1
    %v3485 = vpop.permute.xlu0 %3484
    %3486 = vrot.lane.b32.xlu0 %v3480, 1
    %v3487 = vpop.permute.xlu0 %3486
    %3488 = vrot.lane.b32.xlu0 %v3481, 1
    %v3489 = vpop.permute.xlu0 %3488
    %3490 = vrot.lane.b32.xlu0 %v3478, 127
    %v3491 = vpop.permute.xlu0 %3490
    %3492 = vrot.lane.b32.xlu0 %v3479, 127
    %v3493 = vpop.permute.xlu0 %3492
    %3494 = vrot.lane.b32.xlu0 %v3480, 127
    %v3495 = vpop.permute.xlu0 %3494
    %3496 = vrot.lane.b32.xlu0 %v3481, 127
    %v3497 = vpop.permute.xlu0 %3496
    %s3498 = sld [smem:[#allocation2 + $0x87]]
    %v3499 = vstv %s3498
    %v3500 = vmul.f32 %v3499, %v3483
    %v3501 = vmul.f32 %v3499, %v3485
    %v3502 = vmul.f32 %v3499, %v3487
    %v3503 = vmul.f32 %v3499, %v3489
    %s3504 = sld [smem:[#allocation2 + $0x88]]
    %v3505 = vstv %s3504
    %v3506 = vmul.f32 %v3505, %v3478
    %v3507 = vmul.f32 %v3505, %v3479
    %v3508 = vmul.f32 %v3505, %v3480
    %v3509 = vmul.f32 %v3505, %v3481
    %v3510 = vadd.f32 %v3500, %v3506
    %v3511 = vadd.f32 %v3501, %v3507
    %v3512 = vadd.f32 %v3502, %v3508
    %v3513 = vadd.f32 %v3503, %v3509
    %s3514 = sld [smem:[#allocation2 + $0x89]]
    %v3515 = vstv %s3514
    %v3516 = vmul.f32 %v3515, %v3491
    %v3517 = vmul.f32 %v3515, %v3493
    %v3518 = vmul.f32 %v3515, %v3495
    %v3519 = vmul.f32 %v3515, %v3497
    %v3520 = vadd.f32 %v3510, %v3516
    %v3521 = vadd.f32 %v3511, %v3517
    %v3522 = vadd.f32 %v3512, %v3518
    %v3523 = vadd.f32 %v3513, %v3519
    %s3524 = sld [smem:[#allocation2 + $0x8a]]
    %v3525 = vstv %s3524
    %v3526 = vmul.f32 %v3525, %v3483
    %v3527 = vmul.f32 %v3525, %v3485
    %v3528 = vmul.f32 %v3525, %v3487
    %v3529 = vmul.f32 %v3525, %v3489
    %s3530 = sld [smem:[#allocation2 + $0x8b]]
    %v3531 = vstv %s3530
    %v3532 = vmul.f32 %v3531, %v3478
    %v3533 = vmul.f32 %v3531, %v3479
    %v3534 = vmul.f32 %v3531, %v3480
    %v3535 = vmul.f32 %v3531, %v3481
    %v3536 = vadd.f32 %v3526, %v3532
    %v3537 = vadd.f32 %v3527, %v3533
    %v3538 = vadd.f32 %v3528, %v3534
    %v3539 = vadd.f32 %v3529, %v3535
    %s3540 = sld [smem:[#allocation2 + $0x8c]]
    %v3541 = vstv %s3540
    %v3542 = vmul.f32 %v3541, %v3491
    %v3543 = vmul.f32 %v3541, %v3493
    %v3544 = vmul.f32 %v3541, %v3495
    %v3545 = vmul.f32 %v3541, %v3497
    %v3546 = vadd.f32 %v3536, %v3542
    %v3547 = vadd.f32 %v3537, %v3543
    %v3548 = vadd.f32 %v3538, %v3544
    %v3549 = vadd.f32 %v3539, %v3545
    %s3550 = sld [smem:[#allocation2 + $0x8d]]
    %v3551 = vstv %s3550
    %v3552 = vmul.f32 %v3551, %v3483
    %v3553 = vmul.f32 %v3551, %v3485
    %v3554 = vmul.f32 %v3551, %v3487
    %v3555 = vmul.f32 %v3551, %v3489
    %s3556 = sld [smem:[#allocation2 + $0x8e]]
    %v3557 = vstv %s3556
    %v3558 = vmul.f32 %v3557, %v3478
    %v3559 = vmul.f32 %v3557, %v3479
    %v3560 = vmul.f32 %v3557, %v3480
    %v3561 = vmul.f32 %v3557, %v3481
    %v3562 = vadd.f32 %v3552, %v3558
    %v3563 = vadd.f32 %v3553, %v3559
    %v3564 = vadd.f32 %v3554, %v3560
    %v3565 = vadd.f32 %v3555, %v3561
    %s3566 = sld [smem:[#allocation2 + $0x8f]]
    %v3567 = vstv %s3566
    %v3568 = vmul.f32 %v3567, %v3491
    %v3569 = vmul.f32 %v3567, %v3493
    %v3570 = vmul.f32 %v3567, %v3495
    %v3571 = vmul.f32 %v3567, %v3497
    %v3572 = vadd.f32 %v3562, %v3568
    %v3573 = vadd.f32 %v3563, %v3569
    %v3574 = vadd.f32 %v3564, %v3570
    %v3575 = vadd.f32 %v3565, %v3571
    %3576 = vmatpush.msra.mxu0 0.0
    %3577 = vmatpush.msra.mxu0 0.0
    %3578 = vmatpush.msra.mxu0 0.0
    %3579 = vmatpush.msra.mxu0 0.0
    %3580 = vmatpush.msra.mxu0 0.0
    %3581 = vmatpush.msra.mxu0 0.0
    %3582 = vmatpush.msra.mxu0 0.0
    %3583 = vmatpush.msra.mxu0 0.0
    %3584 = vmatpush.msra.mxu0 0.0
    %3585 = vmatpush.msra.mxu0 0.0
    %3586 = vmatpush.msra.mxu0 0.0
    %3587 = vmatpush.msra.mxu0 0.0
    %3588 = vmatpush.msra.mxu0 %v3523
    %3589 = vmatpush.msra.mxu0 %v3522
    %3590 = vmatpush.msra.mxu0 %v3521
    %3591 = vmatpush.msra.mxu0 %v3520
    %3592 = vmatmul.f32.gmra.mxu0 %v219
    %v3593 = vpop.f32.mrf.mxu0
    %v3594 = vadd.f32 %v3546, %v3593
    %3595 = vmatmul.f32.gmra.mxu0 %v222
    %v3596 = vpop.f32.mrf.mxu0
    %v3597 = vadd.f32 %v3547, %v3596
    %3598 = vmatmul.f32.gmra.mxu0 %v225
    %v3599 = vpop.f32.mrf.mxu0
    %v3600 = vadd.f32 %v3548, %v3599
    %3601 = vmatmul.f32.gmra.mxu0 %v228
    %v3602 = vpop.f32.mrf.mxu0
    %v3603 = vadd.f32 %v3549, %v3602
    %3604 = vdwg.mxu0
    %3605 = vmatpush.msra.mxu0 0.0
    %3606 = vmatpush.msra.mxu0 0.0
    %3607 = vmatpush.msra.mxu0 0.0
    %3608 = vmatpush.msra.mxu0 0.0
    %3609 = vmatpush.msra.mxu0 0.0
    %3610 = vmatpush.msra.mxu0 0.0
    %3611 = vmatpush.msra.mxu0 0.0
    %3612 = vmatpush.msra.mxu0 0.0
    %3613 = vmatpush.msra.mxu0 0.0
    %3614 = vmatpush.msra.mxu0 0.0
    %3615 = vmatpush.msra.mxu0 0.0
    %3616 = vmatpush.msra.mxu0 0.0
    %3617 = vmatpush.msra.mxu0 %v3575
    %3618 = vmatpush.msra.mxu0 %v3574
    %3619 = vmatpush.msra.mxu0 %v3573
    %3620 = vmatpush.msra.mxu0 %v3572
    %3621 = vmatmul.f32.gmra.mxu0 %v260
    %v3622 = vpop.f32.mrf.mxu0
    %v3623 = vadd.f32 0.0, %v3622
    %3624 = vmatmul.f32.gmra.mxu0 %v263
    %v3625 = vpop.f32.mrf.mxu0
    %v3626 = vadd.f32 0.0, %v3625
    %3627 = vmatmul.f32.gmra.mxu0 %v266
    %v3628 = vpop.f32.mrf.mxu0
    %v3629 = vadd.f32 0.0, %v3628
    %3630 = vmatmul.f32.gmra.mxu0 %v269
    %v3631 = vpop.f32.mrf.mxu0
    %v3632 = vadd.f32 0.0, %v3631
    %3633 = vdwg.mxu0
    %v3634 = vadd.f32 %v3594, %v3623
    %v3635 = vadd.f32 %v3597, %v3626
    %v3636 = vadd.f32 %v3600, %v3629
    %v3637 = vadd.f32 %v3603, %v3632
    %v3638 = vmul.f32 %v3634, %v109
    %v3639 = vmul.f32 %v3635, %v109
    %v3640 = vmul.f32 %v3636, %v109
    %v3641 = vmul.f32 %v3637, %v109
    %v3642 = vadd.f32 %v3638, %v3639
    %v3643 = vadd.f32 %v3642, %v3640
    %v3644 = vadd.f32 %v3643, %v3641
    %3645 = vadd.xlane.f32.xlu0 %v3644
    %v3646 = vpop.xlane.xlu0 %3645
    %v3647 = vrot.slane %v3646, 4
    %v3648 = vadd.f32 %v3646, %v3647
    %v3649 = vrot.slane %v3648, 2
    %v3650 = vadd.f32 %v3648, %v3649
    %v3651 = vrot.slane %v3650, 1
    %v3652 = vadd.f32 %v3650, %v3651
    %s3653 = vtos %v3652
    %v3654 = vmul.f32 %v3638, %v3638
    %v3655 = vmul.f32 %v3639, %v3639
    %v3656 = vmul.f32 %v3640, %v3640
    %v3657 = vmul.f32 %v3641, %v3641
    %v3658 = vadd.f32 %v3654, %v3655
    %v3659 = vadd.f32 %v3658, %v3656
    %v3660 = vadd.f32 %v3659, %v3657
    %3661 = vadd.xlane.f32.xlu0 %v3660
    %v3662 = vpop.xlane.xlu0 %3661
    %v3663 = vrot.slane %v3662, 4
    %v3664 = vadd.f32 %v3662, %v3663
    %v3665 = vrot.slane %v3664, 2
    %v3666 = vadd.f32 %v3664, %v3665
    %v3667 = vrot.slane %v3666, 1
    %v3668 = vadd.f32 %v3666, %v3667
    %s3669 = vtos %v3668
    %s3670 = smul.f32 %s3653, 0.001953125
    %s3671 = smul.f32 %s3669, 0.001953125
    %s3672 = smul.f32 %s3670, %s3670
    %s3673 = ssub.f32 %s3671, %s3672
    %s3674 = smax.f32 %s3673, 0.0
    %s3675 = sld [smem:[#allocation9 + $0xe]]
    %s3676 = sadd.f32 %s3674, 1e-05
    %v3677 = vstv %s3676
    %v3678 = vrsqrt.pop %v3677
    %v3679 = vmul.f32 %v3678, %v3677
    %v3680 = vmul.f32 %v3679, %v3678
    %v3681 = vmul.f32 0.5, %v3680
    %v3682 = vsub.f32 1.5, %v3681
    %v3683 = vmul.f32 %v3678, %v3682
    %vm3684 = vweird.f32 %v3677
    %vm3685 = vweird.f32 %v3678
    %vm3686 = vmor %vm3684, %vm3685
    %v3687 = vsel %vm3686, %v3678, %v3683
    %s3688 = vtos %v3687
    %s3689 = smul.f32 %s3675, %s3688
    %s3690 = sld [smem:[#allocation10 + $0xe]]
    %s3691 = smul.f32 %s3670, %s3689
    %s3692 = ssub.f32 %s3690, %s3691
    %v3693 = vstv %s3689
    %v3694 = vmul.f32 %v3638, %v3693
    %v3695 = vmul.f32 %v3639, %v3693
    %v3696 = vmul.f32 %v3640, %v3693
    %v3697 = vmul.f32 %v3641, %v3693
    %v3698 = vstv %s3692
    %v3699 = vmul.f32 %v3698, %v109
    %v3700 = vadd.f32 %v3694, %v3699
    %v3701 = vadd.f32 %v3695, %v3699
    %v3702 = vadd.f32 %v3696, %v3699
    %v3703 = vadd.f32 %v3697, %v3699
    %v3704 = vmax.f32 %v3700, 0.0
    %v3705 = vmax.f32 %v3701, 0.0
    %v3706 = vmax.f32 %v3702, 0.0
    %v3707 = vmax.f32 %v3703, 0.0
    %3708 = vrot.lane.b32.xlu0 %v3704, 1
    %v3709 = vpop.permute.xlu0 %3708
    %3710 = vrot.lane.b32.xlu0 %v3705, 1
    %v3711 = vpop.permute.xlu0 %3710
    %3712 = vrot.lane.b32.xlu0 %v3706, 1
    %v3713 = vpop.permute.xlu0 %3712
    %3714 = vrot.lane.b32.xlu0 %v3707, 1
    %v3715 = vpop.permute.xlu0 %3714
    %3716 = vrot.lane.b32.xlu0 %v3704, 127
    %v3717 = vpop.permute.xlu0 %3716
    %3718 = vrot.lane.b32.xlu0 %v3705, 127
    %v3719 = vpop.permute.xlu0 %3718
    %3720 = vrot.lane.b32.xlu0 %v3706, 127
    %v3721 = vpop.permute.xlu0 %3720
    %3722 = vrot.lane.b32.xlu0 %v3707, 127
    %v3723 = vpop.permute.xlu0 %3722
    %s3724 = sld [smem:[#allocation2 + $0x90]]
    %v3725 = vstv %s3724
    %v3726 = vmul.f32 %v3725, %v3709
    %v3727 = vmul.f32 %v3725, %v3711
    %v3728 = vmul.f32 %v3725, %v3713
    %v3729 = vmul.f32 %v3725, %v3715
    %s3730 = sld [smem:[#allocation2 + $0x91]]
    %v3731 = vstv %s3730
    %v3732 = vmul.f32 %v3731, %v3704
    %v3733 = vmul.f32 %v3731, %v3705
    %v3734 = vmul.f32 %v3731, %v3706
    %v3735 = vmul.f32 %v3731, %v3707
    %v3736 = vadd.f32 %v3726, %v3732
    %v3737 = vadd.f32 %v3727, %v3733
    %v3738 = vadd.f32 %v3728, %v3734
    %v3739 = vadd.f32 %v3729, %v3735
    %s3740 = sld [smem:[#allocation2 + $0x92]]
    %v3741 = vstv %s3740
    %v3742 = vmul.f32 %v3741, %v3717
    %v3743 = vmul.f32 %v3741, %v3719
    %v3744 = vmul.f32 %v3741, %v3721
    %v3745 = vmul.f32 %v3741, %v3723
    %v3746 = vadd.f32 %v3736, %v3742
    %v3747 = vadd.f32 %v3737, %v3743
    %v3748 = vadd.f32 %v3738, %v3744
    %v3749 = vadd.f32 %v3739, %v3745
    %s3750 = sld [smem:[#allocation2 + $0x93]]
    %v3751 = vstv %s3750
    %v3752 = vmul.f32 %v3751, %v3709
    %v3753 = vmul.f32 %v3751, %v3711
    %v3754 = vmul.f32 %v3751, %v3713
    %v3755 = vmul.f32 %v3751, %v3715
    %s3756 = sld [smem:[#allocation2 + $0x94]]
    %v3757 = vstv %s3756
    %v3758 = vmul.f32 %v3757, %v3704
    %v3759 = vmul.f32 %v3757, %v3705
    %v3760 = vmul.f32 %v3757, %v3706
    %v3761 = vmul.f32 %v3757, %v3707
    %v3762 = vadd.f32 %v3752, %v3758
    %v3763 = vadd.f32 %v3753, %v3759
    %v3764 = vadd.f32 %v3754, %v3760
    %v3765 = vadd.f32 %v3755, %v3761
    %s3766 = sld [smem:[#allocation2 + $0x95]]
    %v3767 = vstv %s3766
    %v3768 = vmul.f32 %v3767, %v3717
    %v3769 = vmul.f32 %v3767, %v3719
    %v3770 = vmul.f32 %v3767, %v3721
    %v3771 = vmul.f32 %v3767, %v3723
    %v3772 = vadd.f32 %v3762, %v3768
    %v3773 = vadd.f32 %v3763, %v3769
    %v3774 = vadd.f32 %v3764, %v3770
    %v3775 = vadd.f32 %v3765, %v3771
    %s3776 = sld [smem:[#allocation2 + $0x96]]
    %v3777 = vstv %s3776
    %v3778 = vmul.f32 %v3777, %v3709
    %v3779 = vmul.f32 %v3777, %v3711
    %v3780 = vmul.f32 %v3777, %v3713
    %v3781 = vmul.f32 %v3777, %v3715
    %s3782 = sld [smem:[#allocation2 + $0x97]]
    %v3783 = vstv %s3782
    %v3784 = vmul.f32 %v3783, %v3704
    %v3785 = vmul.f32 %v3783, %v3705
    %v3786 = vmul.f32 %v3783, %v3706
    %v3787 = vmul.f32 %v3783, %v3707
    %v3788 = vadd.f32 %v3778, %v3784
    %v3789 = vadd.f32 %v3779, %v3785
    %v3790 = vadd.f32 %v3780, %v3786
    %v3791 = vadd.f32 %v3781, %v3787
    %s3792 = sld [smem:[#allocation2 + $0x98]]
    %v3793 = vstv %s3792
    %v3794 = vmul.f32 %v3793, %v3717
    %v3795 = vmul.f32 %v3793, %v3719
    %v3796 = vmul.f32 %v3793, %v3721
    %v3797 = vmul.f32 %v3793, %v3723
    %v3798 = vadd.f32 %v3788, %v3794
    %v3799 = vadd.f32 %v3789, %v3795
    %v3800 = vadd.f32 %v3790, %v3796
    %v3801 = vadd.f32 %v3791, %v3797
    %3802 = vmatpush.msra.mxu0 0.0
    %3803 = vmatpush.msra.mxu0 0.0
    %3804 = vmatpush.msra.mxu0 0.0
    %3805 = vmatpush.msra.mxu0 0.0
    %3806 = vmatpush.msra.mxu0 0.0
    %3807 = vmatpush.msra.mxu0 0.0
    %3808 = vmatpush.msra.mxu0 0.0
    %3809 = vmatpush.msra.mxu0 0.0
    %3810 = vmatpush.msra.mxu0 0.0
    %3811 = vmatpush.msra.mxu0 0.0
    %3812 = vmatpush.msra.mxu0 0.0
    %3813 = vmatpush.msra.mxu0 0.0
    %3814 = vmatpush.msra.mxu0 %v3749
    %3815 = vmatpush.msra.mxu0 %v3748
    %3816 = vmatpush.msra.mxu0 %v3747
    %3817 = vmatpush.msra.mxu0 %v3746
    %3818 = vmatmul.f32.gmra.mxu0 %v219
    %v3819 = vpop.f32.mrf.mxu0
    %v3820 = vadd.f32 %v3772, %v3819
    %3821 = vmatmul.f32.gmra.mxu0 %v222
    %v3822 = vpop.f32.mrf.mxu0
    %v3823 = vadd.f32 %v3773, %v3822
    %3824 = vmatmul.f32.gmra.mxu0 %v225
    %v3825 = vpop.f32.mrf.mxu0
    %v3826 = vadd.f32 %v3774, %v3825
    %3827 = vmatmul.f32.gmra.mxu0 %v228
    %v3828 = vpop.f32.mrf.mxu0
    %v3829 = vadd.f32 %v3775, %v3828
    %3830 = vdwg.mxu0
    %3831 = vmatpush.msra.mxu0 0.0
    %3832 = vmatpush.msra.mxu0 0.0
    %3833 = vmatpush.msra.mxu0 0.0
    %3834 = vmatpush.msra.mxu0 0.0
    %3835 = vmatpush.msra.mxu0 0.0
    %3836 = vmatpush.msra.mxu0 0.0
    %3837 = vmatpush.msra.mxu0 0.0
    %3838 = vmatpush.msra.mxu0 0.0
    %3839 = vmatpush.msra.mxu0 0.0
    %3840 = vmatpush.msra.mxu0 0.0
    %3841 = vmatpush.msra.mxu0 0.0
    %3842 = vmatpush.msra.mxu0 0.0
    %3843 = vmatpush.msra.mxu0 %v3801
    %3844 = vmatpush.msra.mxu0 %v3800
    %3845 = vmatpush.msra.mxu0 %v3799
    %3846 = vmatpush.msra.mxu0 %v3798
    %3847 = vmatmul.f32.gmra.mxu0 %v260
    %v3848 = vpop.f32.mrf.mxu0
    %v3849 = vadd.f32 0.0, %v3848
    %3850 = vmatmul.f32.gmra.mxu0 %v263
    %v3851 = vpop.f32.mrf.mxu0
    %v3852 = vadd.f32 0.0, %v3851
    %3853 = vmatmul.f32.gmra.mxu0 %v266
    %v3854 = vpop.f32.mrf.mxu0
    %v3855 = vadd.f32 0.0, %v3854
    %3856 = vmatmul.f32.gmra.mxu0 %v269
    %v3857 = vpop.f32.mrf.mxu0
    %v3858 = vadd.f32 0.0, %v3857
    %3859 = vdwg.mxu0
    %v3860 = vadd.f32 %v3820, %v3849
    %v3861 = vadd.f32 %v3823, %v3852
    %v3862 = vadd.f32 %v3826, %v3855
    %v3863 = vadd.f32 %v3829, %v3858
    %v3864 = vmul.f32 %v3860, %v109
    %v3865 = vmul.f32 %v3861, %v109
    %v3866 = vmul.f32 %v3862, %v109
    %v3867 = vmul.f32 %v3863, %v109
    %v3868 = vadd.f32 %v3864, %v3865
    %v3869 = vadd.f32 %v3868, %v3866
    %v3870 = vadd.f32 %v3869, %v3867
    %3871 = vadd.xlane.f32.xlu0 %v3870
    %v3872 = vpop.xlane.xlu0 %3871
    %v3873 = vrot.slane %v3872, 4
    %v3874 = vadd.f32 %v3872, %v3873
    %v3875 = vrot.slane %v3874, 2
    %v3876 = vadd.f32 %v3874, %v3875
    %v3877 = vrot.slane %v3876, 1
    %v3878 = vadd.f32 %v3876, %v3877
    %s3879 = vtos %v3878
    %v3880 = vmul.f32 %v3864, %v3864
    %v3881 = vmul.f32 %v3865, %v3865
    %v3882 = vmul.f32 %v3866, %v3866
    %v3883 = vmul.f32 %v3867, %v3867
    %v3884 = vadd.f32 %v3880, %v3881
    %v3885 = vadd.f32 %v3884, %v3882
    %v3886 = vadd.f32 %v3885, %v3883
    %3887 = vadd.xlane.f32.xlu0 %v3886
    %v3888 = vpop.xlane.xlu0 %3887
    %v3889 = vrot.slane %v3888, 4
    %v3890 = vadd.f32 %v3888, %v3889
    %v3891 = vrot.slane %v3890, 2
    %v3892 = vadd.f32 %v3890, %v3891
    %v3893 = vrot.slane %v3892, 1
    %v3894 = vadd.f32 %v3892, %v3893
    %s3895 = vtos %v3894
    %s3896 = smul.f32 %s3879, 0.001953125
    %s3897 = smul.f32 %s3895, 0.001953125
    %s3898 = smul.f32 %s3896, %s3896
    %s3899 = ssub.f32 %s3897, %s3898
    %s3900 = smax.f32 %s3899, 0.0
    %s3901 = sld [smem:[#allocation9 + $0xf]]
    %s3902 = sadd.f32 %s3900, 1e-05
    %v3903 = vstv %s3902
    %v3904 = vrsqrt.pop %v3903
    %v3905 = vmul.f32 %v3904, %v3903
    %v3906 = vmul.f32 %v3905, %v3904
    %v3907 = vmul.f32 0.5, %v3906
    %v3908 = vsub.f32 1.5, %v3907
    %v3909 = vmul.f32 %v3904, %v3908
    %vm3910 = vweird.f32 %v3903
    %vm3911 = vweird.f32 %v3904
    %vm3912 = vmor %vm3910, %vm3911
    %v3913 = vsel %vm3912, %v3904, %v3909
    %s3914 = vtos %v3913
    %s3915 = smul.f32 %s3901, %s3914
    %s3916 = sld [smem:[#allocation10 + $0xf]]
    %s3917 = smul.f32 %s3896, %s3915
    %s3918 = ssub.f32 %s3916, %s3917
    %v3919 = vstv %s3915
    %v3920 = vmul.f32 %v3864, %v3919
    %v3921 = vmul.f32 %v3865, %v3919
    %v3922 = vmul.f32 %v3866, %v3919
    %v3923 = vmul.f32 %v3867, %v3919
    %v3924 = vstv %s3918
    %v3925 = vmul.f32 %v3924, %v109
    %v3926 = vadd.f32 %v3920, %v3925
    %v3927 = vadd.f32 %v3921, %v3925
    %v3928 = vadd.f32 %v3922, %v3925
    %v3929 = vadd.f32 %v3923, %v3925
    %v3930 = vadd.f32 %v3478, %v3926
    %v3931 = vadd.f32 %v3479, %v3927
    %v3932 = vadd.f32 %v3480, %v3928
    %v3933 = vadd.f32 %v3481, %v3929
    %3934 = vrot.lane.b32.xlu0 %v3930, 1
    %v3935 = vpop.permute.xlu0 %3934
    %3936 = vrot.lane.b32.xlu0 %v3931, 1
    %v3937 = vpop.permute.xlu0 %3936
    %3938 = vrot.lane.b32.xlu0 %v3932, 1
    %v3939 = vpop.permute.xlu0 %3938
    %3940 = vrot.lane.b32.xlu0 %v3933, 1
    %v3941 = vpop.permute.xlu0 %3940
    %3942 = vrot.lane.b32.xlu0 %v3930, 127
    %v3943 = vpop.permute.xlu0 %3942
    %3944 = vrot.lane.b32.xlu0 %v3931, 127
    %v3945 = vpop.permute.xlu0 %3944
    %3946 = vrot.lane.b32.xlu0 %v3932, 127
    %v3947 = vpop.permute.xlu0 %3946
    %3948 = vrot.lane.b32.xlu0 %v3933, 127
    %v3949 = vpop.permute.xlu0 %3948
    %s3950 = sld [smem:[#allocation2 + $0x99]]
    %v3951 = vstv %s3950
    %v3952 = vmul.f32 %v3951, %v3935
    %v3953 = vmul.f32 %v3951, %v3937
    %v3954 = vmul.f32 %v3951, %v3939
    %v3955 = vmul.f32 %v3951, %v3941
    %s3956 = sld [smem:[#allocation2 + $0x9a]]
    %v3957 = vstv %s3956
    %v3958 = vmul.f32 %v3957, %v3930
    %v3959 = vmul.f32 %v3957, %v3931
    %v3960 = vmul.f32 %v3957, %v3932
    %v3961 = vmul.f32 %v3957, %v3933
    %v3962 = vadd.f32 %v3952, %v3958
    %v3963 = vadd.f32 %v3953, %v3959
    %v3964 = vadd.f32 %v3954, %v3960
    %v3965 = vadd.f32 %v3955, %v3961
    %s3966 = sld [smem:[#allocation2 + $0x9b]]
    %v3967 = vstv %s3966
    %v3968 = vmul.f32 %v3967, %v3943
    %v3969 = vmul.f32 %v3967, %v3945
    %v3970 = vmul.f32 %v3967, %v3947
    %v3971 = vmul.f32 %v3967, %v3949
    %v3972 = vadd.f32 %v3962, %v3968
    %v3973 = vadd.f32 %v3963, %v3969
    %v3974 = vadd.f32 %v3964, %v3970
    %v3975 = vadd.f32 %v3965, %v3971
    %s3976 = sld [smem:[#allocation2 + $0x9c]]
    %v3977 = vstv %s3976
    %v3978 = vmul.f32 %v3977, %v3935
    %v3979 = vmul.f32 %v3977, %v3937
    %v3980 = vmul.f32 %v3977, %v3939
    %v3981 = vmul.f32 %v3977, %v3941
    %s3982 = sld [smem:[#allocation2 + $0x9d]]
    %v3983 = vstv %s3982
    %v3984 = vmul.f32 %v3983, %v3930
    %v3985 = vmul.f32 %v3983, %v3931
    %v3986 = vmul.f32 %v3983, %v3932
    %v3987 = vmul.f32 %v3983, %v3933
    %v3988 = vadd.f32 %v3978, %v3984
    %v3989 = vadd.f32 %v3979, %v3985
    %v3990 = vadd.f32 %v3980, %v3986
    %v3991 = vadd.f32 %v3981, %v3987
    %s3992 = sld [smem:[#allocation2 + $0x9e]]
    %v3993 = vstv %s3992
    %v3994 = vmul.f32 %v3993, %v3943
    %v3995 = vmul.f32 %v3993, %v3945
    %v3996 = vmul.f32 %v3993, %v3947
    %v3997 = vmul.f32 %v3993, %v3949
    %v3998 = vadd.f32 %v3988, %v3994
    %v3999 = vadd.f32 %v3989, %v3995
    %v4000 = vadd.f32 %v3990, %v3996
    %v4001 = vadd.f32 %v3991, %v3997
    %s4002 = sld [smem:[#allocation2 + $0x9f]]
    %v4003 = vstv %s4002
    %v4004 = vmul.f32 %v4003, %v3935
    %v4005 = vmul.f32 %v4003, %v3937
    %v4006 = vmul.f32 %v4003, %v3939
    %v4007 = vmul.f32 %v4003, %v3941
    %s4008 = sld [smem:[#allocation2 + $0xa0]]
    %v4009 = vstv %s4008
    %v4010 = vmul.f32 %v4009, %v3930
    %v4011 = vmul.f32 %v4009, %v3931
    %v4012 = vmul.f32 %v4009, %v3932
    %v4013 = vmul.f32 %v4009, %v3933
    %v4014 = vadd.f32 %v4004, %v4010
    %v4015 = vadd.f32 %v4005, %v4011
    %v4016 = vadd.f32 %v4006, %v4012
    %v4017 = vadd.f32 %v4007, %v4013
    %s4018 = sld [smem:[#allocation2 + $0xa1]]
    %v4019 = vstv %s4018
    %v4020 = vmul.f32 %v4019, %v3943
    %v4021 = vmul.f32 %v4019, %v3945
    %v4022 = vmul.f32 %v4019, %v3947
    %v4023 = vmul.f32 %v4019, %v3949
    %v4024 = vadd.f32 %v4014, %v4020
    %v4025 = vadd.f32 %v4015, %v4021
    %v4026 = vadd.f32 %v4016, %v4022
    %v4027 = vadd.f32 %v4017, %v4023
    %4028 = vmatpush.msra.mxu0 0.0
    %4029 = vmatpush.msra.mxu0 0.0
    %4030 = vmatpush.msra.mxu0 0.0
    %4031 = vmatpush.msra.mxu0 0.0
    %4032 = vmatpush.msra.mxu0 0.0
    %4033 = vmatpush.msra.mxu0 0.0
    %4034 = vmatpush.msra.mxu0 0.0
    %4035 = vmatpush.msra.mxu0 0.0
    %4036 = vmatpush.msra.mxu0 0.0
    %4037 = vmatpush.msra.mxu0 0.0
    %4038 = vmatpush.msra.mxu0 0.0
    %4039 = vmatpush.msra.mxu0 0.0
    %4040 = vmatpush.msra.mxu0 %v3975
    %4041 = vmatpush.msra.mxu0 %v3974
    %4042 = vmatpush.msra.mxu0 %v3973
    %4043 = vmatpush.msra.mxu0 %v3972
    %4044 = vmatmul.f32.gmra.mxu0 %v219
    %v4045 = vpop.f32.mrf.mxu0
    %v4046 = vadd.f32 %v3998, %v4045
    %4047 = vmatmul.f32.gmra.mxu0 %v222
    %v4048 = vpop.f32.mrf.mxu0
    %v4049 = vadd.f32 %v3999, %v4048
    %4050 = vmatmul.f32.gmra.mxu0 %v225
    %v4051 = vpop.f32.mrf.mxu0
    %v4052 = vadd.f32 %v4000, %v4051
    %4053 = vmatmul.f32.gmra.mxu0 %v228
    %v4054 = vpop.f32.mrf.mxu0
    %v4055 = vadd.f32 %v4001, %v4054
    %4056 = vdwg.mxu0
    %4057 = vmatpush.msra.mxu0 0.0
    %4058 = vmatpush.msra.mxu0 0.0
    %4059 = vmatpush.msra.mxu0 0.0
    %4060 = vmatpush.msra.mxu0 0.0
    %4061 = vmatpush.msra.mxu0 0.0
    %4062 = vmatpush.msra.mxu0 0.0
    %4063 = vmatpush.msra.mxu0 0.0
    %4064 = vmatpush.msra.mxu0 0.0
    %4065 = vmatpush.msra.mxu0 0.0
    %4066 = vmatpush.msra.mxu0 0.0
    %4067 = vmatpush.msra.mxu0 0.0
    %4068 = vmatpush.msra.mxu0 0.0
    %4069 = vmatpush.msra.mxu0 %v4027
    %4070 = vmatpush.msra.mxu0 %v4026
    %4071 = vmatpush.msra.mxu0 %v4025
    %4072 = vmatpush.msra.mxu0 %v4024
    %4073 = vmatmul.f32.gmra.mxu0 %v260
    %v4074 = vpop.f32.mrf.mxu0
    %v4075 = vadd.f32 0.0, %v4074
    %4076 = vmatmul.f32.gmra.mxu0 %v263
    %v4077 = vpop.f32.mrf.mxu0
    %v4078 = vadd.f32 0.0, %v4077
    %4079 = vmatmul.f32.gmra.mxu0 %v266
    %v4080 = vpop.f32.mrf.mxu0
    %v4081 = vadd.f32 0.0, %v4080
    %4082 = vmatmul.f32.gmra.mxu0 %v269
    %v4083 = vpop.f32.mrf.mxu0
    %v4084 = vadd.f32 0.0, %v4083
    %4085 = vdwg.mxu0
    %v4086 = vadd.f32 %v4046, %v4075
    %v4087 = vadd.f32 %v4049, %v4078
    %v4088 = vadd.f32 %v4052, %v4081
    %v4089 = vadd.f32 %v4055, %v4084
    %v4090 = vmul.f32 %v4086, %v109
    %v4091 = vmul.f32 %v4087, %v109
    %v4092 = vmul.f32 %v4088, %v109
    %v4093 = vmul.f32 %v4089, %v109
    %v4094 = vadd.f32 %v4090, %v4091
    %v4095 = vadd.f32 %v4094, %v4092
    %v4096 = vadd.f32 %v4095, %v4093
    %4097 = vadd.xlane.f32.xlu0 %v4096
    %v4098 = vpop.xlane.xlu0 %4097
    %v4099 = vrot.slane %v4098, 4
    %v4100 = vadd.f32 %v4098, %v4099
    %v4101 = vrot.slane %v4100, 2
    %v4102 = vadd.f32 %v4100, %v4101
    %v4103 = vrot.slane %v4102, 1
    %v4104 = vadd.f32 %v4102, %v4103
    %s4105 = vtos %v4104
    %v4106 = vmul.f32 %v4090, %v4090
    %v4107 = vmul.f32 %v4091, %v4091
    %v4108 = vmul.f32 %v4092, %v4092
    %v4109 = vmul.f32 %v4093, %v4093
    %v4110 = vadd.f32 %v4106, %v4107
    %v4111 = vadd.f32 %v4110, %v4108
    %v4112 = vadd.f32 %v4111, %v4109
    %4113 = vadd.xlane.f32.xlu0 %v4112
    %v4114 = vpop.xlane.xlu0 %4113
    %v4115 = vrot.slane %v4114, 4
    %v4116 = vadd.f32 %v4114, %v4115
    %v4117 = vrot.slane %v4116, 2
    %v4118 = vadd.f32 %v4116, %v4117
    %v4119 = vrot.slane %v4118, 1
    %v4120 = vadd.f32 %v4118, %v4119
    %s4121 = vtos %v4120
    %s4122 = smul.f32 %s4105, 0.001953125
    %s4123 = smul.f32 %s4121, 0.001953125
    %s4124 = smul.f32 %s4122, %s4122
    %s4125 = ssub.f32 %s4123, %s4124
    %s4126 = smax.f32 %s4125, 0.0
    %s4127 = sld [smem:[#allocation9 + $0x10]]
    %s4128 = sadd.f32 %s4126, 1e-05
    %v4129 = vstv %s4128
    %v4130 = vrsqrt.pop %v4129
    %v4131 = vmul.f32 %v4130, %v4129
    %v4132 = vmul.f32 %v4131, %v4130
    %v4133 = vmul.f32 0.5, %v4132
    %v4134 = vsub.f32 1.5, %v4133
    %v4135 = vmul.f32 %v4130, %v4134
    %vm4136 = vweird.f32 %v4129
    %vm4137 = vweird.f32 %v4130
    %vm4138 = vmor %vm4136, %vm4137
    %v4139 = vsel %vm4138, %v4130, %v4135
    %s4140 = vtos %v4139
    %s4141 = smul.f32 %s4127, %s4140
    %s4142 = sld [smem:[#allocation10 + $0x10]]
    %s4143 = smul.f32 %s4122, %s4141
    %s4144 = ssub.f32 %s4142, %s4143
    %v4145 = vstv %s4141
    %v4146 = vmul.f32 %v4090, %v4145
    %v4147 = vmul.f32 %v4091, %v4145
    %v4148 = vmul.f32 %v4092, %v4145
    %v4149 = vmul.f32 %v4093, %v4145
    %v4150 = vstv %s4144
    %v4151 = vmul.f32 %v4150, %v109
    %v4152 = vadd.f32 %v4146, %v4151
    %v4153 = vadd.f32 %v4147, %v4151
    %v4154 = vadd.f32 %v4148, %v4151
    %v4155 = vadd.f32 %v4149, %v4151
    %v4156 = vmax.f32 %v4152, 0.0
    %v4157 = vmax.f32 %v4153, 0.0
    %v4158 = vmax.f32 %v4154, 0.0
    %v4159 = vmax.f32 %v4155, 0.0
    %4160 = vrot.lane.b32.xlu0 %v4156, 1
    %v4161 = vpop.permute.xlu0 %4160
    %4162 = vrot.lane.b32.xlu0 %v4157, 1
    %v4163 = vpop.permute.xlu0 %4162
    %4164 = vrot.lane.b32.xlu0 %v4158, 1
    %v4165 = vpop.permute.xlu0 %4164
    %4166 = vrot.lane.b32.xlu0 %v4159, 1
    %v4167 = vpop.permute.xlu0 %4166
    %4168 = vrot.lane.b32.xlu0 %v4156, 127
    %v4169 = vpop.permute.xlu0 %4168
    %4170 = vrot.lane.b32.xlu0 %v4157, 127
    %v4171 = vpop.permute.xlu0 %4170
    %4172 = vrot.lane.b32.xlu0 %v4158, 127
    %v4173 = vpop.permute.xlu0 %4172
    %4174 = vrot.lane.b32.xlu0 %v4159, 127
    %v4175 = vpop.permute.xlu0 %4174
    %s4176 = sld [smem:[#allocation2 + $0xa2]]
    %v4177 = vstv %s4176
    %v4178 = vmul.f32 %v4177, %v4161
    %v4179 = vmul.f32 %v4177, %v4163
    %v4180 = vmul.f32 %v4177, %v4165
    %v4181 = vmul.f32 %v4177, %v4167
    %s4182 = sld [smem:[#allocation2 + $0xa3]]
    %v4183 = vstv %s4182
    %v4184 = vmul.f32 %v4183, %v4156
    %v4185 = vmul.f32 %v4183, %v4157
    %v4186 = vmul.f32 %v4183, %v4158
    %v4187 = vmul.f32 %v4183, %v4159
    %v4188 = vadd.f32 %v4178, %v4184
    %v4189 = vadd.f32 %v4179, %v4185
    %v4190 = vadd.f32 %v4180, %v4186
    %v4191 = vadd.f32 %v4181, %v4187
    %s4192 = sld [smem:[#allocation2 + $0xa4]]
    %v4193 = vstv %s4192
    %v4194 = vmul.f32 %v4193, %v4169
    %v4195 = vmul.f32 %v4193, %v4171
    %v4196 = vmul.f32 %v4193, %v4173
    %v4197 = vmul.f32 %v4193, %v4175
    %v4198 = vadd.f32 %v4188, %v4194
    %v4199 = vadd.f32 %v4189, %v4195
    %v4200 = vadd.f32 %v4190, %v4196
    %v4201 = vadd.f32 %v4191, %v4197
    %s4202 = sld [smem:[#allocation2 + $0xa5]]
    %v4203 = vstv %s4202
    %v4204 = vmul.f32 %v4203, %v4161
    %v4205 = vmul.f32 %v4203, %v4163
    %v4206 = vmul.f32 %v4203, %v4165
    %v4207 = vmul.f32 %v4203, %v4167
    %s4208 = sld [smem:[#allocation2 + $0xa6]]
    %v4209 = vstv %s4208
    %v4210 = vmul.f32 %v4209, %v4156
    %v4211 = vmul.f32 %v4209, %v4157
    %v4212 = vmul.f32 %v4209, %v4158
    %v4213 = vmul.f32 %v4209, %v4159
    %v4214 = vadd.f32 %v4204, %v4210
    %v4215 = vadd.f32 %v4205, %v4211
    %v4216 = vadd.f32 %v4206, %v4212
    %v4217 = vadd.f32 %v4207, %v4213
    %s4218 = sld [smem:[#allocation2 + $0xa7]]
    %v4219 = vstv %s4218
    %v4220 = vmul.f32 %v4219, %v4169
    %v4221 = vmul.f32 %v4219, %v4171
    %v4222 = vmul.f32 %v4219, %v4173
    %v4223 = vmul.f32 %v4219, %v4175
    %v4224 = vadd.f32 %v4214, %v4220
    %v4225 = vadd.f32 %v4215, %v4221
    %v4226 = vadd.f32 %v4216, %v4222
    %v4227 = vadd.f32 %v4217, %v4223
    %s4228 = sld [smem:[#allocation2 + $0xa8]]
    %v4229 = vstv %s4228
    %v4230 = vmul.f32 %v4229, %v4161
    %v4231 = vmul.f32 %v4229, %v4163
    %v4232 = vmul.f32 %v4229, %v4165
    %v4233 = vmul.f32 %v4229, %v4167
    %s4234 = sld [smem:[#allocation2 + $0xa9]]
    %v4235 = vstv %s4234
    %v4236 = vmul.f32 %v4235, %v4156
    %v4237 = vmul.f32 %v4235, %v4157
    %v4238 = vmul.f32 %v4235, %v4158
    %v4239 = vmul.f32 %v4235, %v4159
    %v4240 = vadd.f32 %v4230, %v4236
    %v4241 = vadd.f32 %v4231, %v4237
    %v4242 = vadd.f32 %v4232, %v4238
    %v4243 = vadd.f32 %v4233, %v4239
    %s4244 = sld [smem:[#allocation2 + $0xaa]]
    %v4245 = vstv %s4244
    %v4246 = vmul.f32 %v4245, %v4169
    %v4247 = vmul.f32 %v4245, %v4171
    %v4248 = vmul.f32 %v4245, %v4173
    %v4249 = vmul.f32 %v4245, %v4175
    %v4250 = vadd.f32 %v4240, %v4246
    %v4251 = vadd.f32 %v4241, %v4247
    %v4252 = vadd.f32 %v4242, %v4248
    %v4253 = vadd.f32 %v4243, %v4249
    %4254 = vmatpush.msra.mxu0 0.0
    %4255 = vmatpush.msra.mxu0 0.0
    %4256 = vmatpush.msra.mxu0 0.0
    %4257 = vmatpush.msra.mxu0 0.0
    %4258 = vmatpush.msra.mxu0 0.0
    %4259 = vmatpush.msra.mxu0 0.0
    %4260 = vmatpush.msra.mxu0 0.0
    %4261 = vmatpush.msra.mxu0 0.0
    %4262 = vmatpush.msra.mxu0 0.0
    %4263 = vmatpush.msra.mxu0 0.0
    %4264 = vmatpush.msra.mxu0 0.0
    %4265 = vmatpush.msra.mxu0 0.0
    %4266 = vmatpush.msra.mxu0 %v4201
    %4267 = vmatpush.msra.mxu0 %v4200
    %4268 = vmatpush.msra.mxu0 %v4199
    %4269 = vmatpush.msra.mxu0 %v4198
    %4270 = vmatmul.f32.gmra.mxu0 %v219
    %v4271 = vpop.f32.mrf.mxu0
    %v4272 = vadd.f32 %v4224, %v4271
    %4273 = vmatmul.f32.gmra.mxu0 %v222
    %v4274 = vpop.f32.mrf.mxu0
    %v4275 = vadd.f32 %v4225, %v4274
    %4276 = vmatmul.f32.gmra.mxu0 %v225
    %v4277 = vpop.f32.mrf.mxu0
    %v4278 = vadd.f32 %v4226, %v4277
    %4279 = vmatmul.f32.gmra.mxu0 %v228
    %v4280 = vpop.f32.mrf.mxu0
    %v4281 = vadd.f32 %v4227, %v4280
    %4282 = vdwg.mxu0
    %4283 = vmatpush.msra.mxu0 0.0
    %4284 = vmatpush.msra.mxu0 0.0
    %4285 = vmatpush.msra.mxu0 0.0
    %4286 = vmatpush.msra.mxu0 0.0
    %4287 = vmatpush.msra.mxu0 0.0
    %4288 = vmatpush.msra.mxu0 0.0
    %4289 = vmatpush.msra.mxu0 0.0
    %4290 = vmatpush.msra.mxu0 0.0
    %4291 = vmatpush.msra.mxu0 0.0
    %4292 = vmatpush.msra.mxu0 0.0
    %4293 = vmatpush.msra.mxu0 0.0
    %4294 = vmatpush.msra.mxu0 0.0
    %4295 = vmatpush.msra.mxu0 %v4253
    %4296 = vmatpush.msra.mxu0 %v4252
    %4297 = vmatpush.msra.mxu0 %v4251
    %4298 = vmatpush.msra.mxu0 %v4250
    %4299 = vmatmul.f32.gmra.mxu0 %v260
    %v4300 = vpop.f32.mrf.mxu0
    %v4301 = vadd.f32 0.0, %v4300
    %4302 = vmatmul.f32.gmra.mxu0 %v263
    %v4303 = vpop.f32.mrf.mxu0
    %v4304 = vadd.f32 0.0, %v4303
    %4305 = vmatmul.f32.gmra.mxu0 %v266
    %v4306 = vpop.f32.mrf.mxu0
    %v4307 = vadd.f32 0.0, %v4306
    %4308 = vmatmul.f32.gmra.mxu0 %v269
    %v4309 = vpop.f32.mrf.mxu0
    %v4310 = vadd.f32 0.0, %v4309
    %4311 = vdwg.mxu0
    %v4312 = vadd.f32 %v4272, %v4301
    %v4313 = vadd.f32 %v4275, %v4304
    %v4314 = vadd.f32 %v4278, %v4307
    %v4315 = vadd.f32 %v4281, %v4310
    %v4316 = vmul.f32 %v4312, %v109
    %v4317 = vmul.f32 %v4313, %v109
    %v4318 = vmul.f32 %v4314, %v109
    %v4319 = vmul.f32 %v4315, %v109
    %v4320 = vadd.f32 %v4316, %v4317
    %v4321 = vadd.f32 %v4320, %v4318
    %v4322 = vadd.f32 %v4321, %v4319
    %4323 = vadd.xlane.f32.xlu0 %v4322
    %v4324 = vpop.xlane.xlu0 %4323
    %v4325 = vrot.slane %v4324, 4
    %v4326 = vadd.f32 %v4324, %v4325
    %v4327 = vrot.slane %v4326, 2
    %v4328 = vadd.f32 %v4326, %v4327
    %v4329 = vrot.slane %v4328, 1
    %v4330 = vadd.f32 %v4328, %v4329
    %s4331 = vtos %v4330
    %v4332 = vmul.f32 %v4316, %v4316
    %v4333 = vmul.f32 %v4317, %v4317
    %v4334 = vmul.f32 %v4318, %v4318
    %v4335 = vmul.f32 %v4319, %v4319
    %v4336 = vadd.f32 %v4332, %v4333
    %v4337 = vadd.f32 %v4336, %v4334
    %v4338 = vadd.f32 %v4337, %v4335
    %4339 = vadd.xlane.f32.xlu0 %v4338
    %v4340 = vpop.xlane.xlu0 %4339
    %v4341 = vrot.slane %v4340, 4
    %v4342 = vadd.f32 %v4340, %v4341
    %v4343 = vrot.slane %v4342, 2
    %v4344 = vadd.f32 %v4342, %v4343
    %v4345 = vrot.slane %v4344, 1
    %v4346 = vadd.f32 %v4344, %v4345
    %s4347 = vtos %v4346
    %s4348 = smul.f32 %s4331, 0.001953125
    %s4349 = smul.f32 %s4347, 0.001953125
    %s4350 = smul.f32 %s4348, %s4348
    %s4351 = ssub.f32 %s4349, %s4350
    %s4352 = smax.f32 %s4351, 0.0
    %s4353 = sld [smem:[#allocation9 + $0x11]]
    %s4354 = sadd.f32 %s4352, 1e-05
    %v4355 = vstv %s4354
    %v4356 = vrsqrt.pop %v4355
    %v4357 = vmul.f32 %v4356, %v4355
    %v4358 = vmul.f32 %v4357, %v4356
    %v4359 = vmul.f32 0.5, %v4358
    %v4360 = vsub.f32 1.5, %v4359
    %v4361 = vmul.f32 %v4356, %v4360
    %vm4362 = vweird.f32 %v4355
    %vm4363 = vweird.f32 %v4356
    %vm4364 = vmor %vm4362, %vm4363
    %v4365 = vsel %vm4364, %v4356, %v4361
    %s4366 = vtos %v4365
    %s4367 = smul.f32 %s4353, %s4366
    %s4368 = sld [smem:[#allocation10 + $0x11]]
    %s4369 = smul.f32 %s4348, %s4367
    %s4370 = ssub.f32 %s4368, %s4369
    %v4371 = vstv %s4367
    %v4372 = vmul.f32 %v4316, %v4371
    %v4373 = vmul.f32 %v4317, %v4371
    %v4374 = vmul.f32 %v4318, %v4371
    %v4375 = vmul.f32 %v4319, %v4371
    %v4376 = vstv %s4370
    %v4377 = vmul.f32 %v4376, %v109
    %v4378 = vadd.f32 %v4372, %v4377
    %v4379 = vadd.f32 %v4373, %v4377
    %v4380 = vadd.f32 %v4374, %v4377
    %v4381 = vadd.f32 %v4375, %v4377
    %v4382 = vadd.f32 %v3930, %v4378
    %v4383 = vadd.f32 %v3931, %v4379
    %v4384 = vadd.f32 %v3932, %v4380
    %v4385 = vadd.f32 %v3933, %v4381
    %4386 = vrot.lane.b32.xlu0 %v4382, 1
    %v4387 = vpop.permute.xlu0 %4386
    %4388 = vrot.lane.b32.xlu0 %v4383, 1
    %v4389 = vpop.permute.xlu0 %4388
    %4390 = vrot.lane.b32.xlu0 %v4384, 1
    %v4391 = vpop.permute.xlu0 %4390
    %4392 = vrot.lane.b32.xlu0 %v4385, 1
    %v4393 = vpop.permute.xlu0 %4392
    %4394 = vrot.lane.b32.xlu0 %v4382, 127
    %v4395 = vpop.permute.xlu0 %4394
    %4396 = vrot.lane.b32.xlu0 %v4383, 127
    %v4397 = vpop.permute.xlu0 %4396
    %4398 = vrot.lane.b32.xlu0 %v4384, 127
    %v4399 = vpop.permute.xlu0 %4398
    %4400 = vrot.lane.b32.xlu0 %v4385, 127
    %v4401 = vpop.permute.xlu0 %4400
    %s4402 = sld [smem:[#allocation2 + $0xab]]
    %v4403 = vstv %s4402
    %v4404 = vmul.f32 %v4403, %v4387
    %v4405 = vmul.f32 %v4403, %v4389
    %v4406 = vmul.f32 %v4403, %v4391
    %v4407 = vmul.f32 %v4403, %v4393
    %s4408 = sld [smem:[#allocation2 + $0xac]]
    %v4409 = vstv %s4408
    %v4410 = vmul.f32 %v4409, %v4382
    %v4411 = vmul.f32 %v4409, %v4383
    %v4412 = vmul.f32 %v4409, %v4384
    %v4413 = vmul.f32 %v4409, %v4385
    %v4414 = vadd.f32 %v4404, %v4410
    %v4415 = vadd.f32 %v4405, %v4411
    %v4416 = vadd.f32 %v4406, %v4412
    %v4417 = vadd.f32 %v4407, %v4413
    %s4418 = sld [smem:[#allocation2 + $0xad]]
    %v4419 = vstv %s4418
    %v4420 = vmul.f32 %v4419, %v4395
    %v4421 = vmul.f32 %v4419, %v4397
    %v4422 = vmul.f32 %v4419, %v4399
    %v4423 = vmul.f32 %v4419, %v4401
    %v4424 = vadd.f32 %v4414, %v4420
    %v4425 = vadd.f32 %v4415, %v4421
    %v4426 = vadd.f32 %v4416, %v4422
    %v4427 = vadd.f32 %v4417, %v4423
    %s4428 = sld [smem:[#allocation2 + $0xae]]
    %v4429 = vstv %s4428
    %v4430 = vmul.f32 %v4429, %v4387
    %v4431 = vmul.f32 %v4429, %v4389
    %v4432 = vmul.f32 %v4429, %v4391
    %v4433 = vmul.f32 %v4429, %v4393
    %s4434 = sld [smem:[#allocation2 + $0xaf]]
    %v4435 = vstv %s4434
    %v4436 = vmul.f32 %v4435, %v4382
    %v4437 = vmul.f32 %v4435, %v4383
    %v4438 = vmul.f32 %v4435, %v4384
    %v4439 = vmul.f32 %v4435, %v4385
    %v4440 = vadd.f32 %v4430, %v4436
    %v4441 = vadd.f32 %v4431, %v4437
    %v4442 = vadd.f32 %v4432, %v4438
    %v4443 = vadd.f32 %v4433, %v4439
    %s4444 = sld [smem:[#allocation2 + $0xb0]]
    %v4445 = vstv %s4444
    %v4446 = vmul.f32 %v4445, %v4395
    %v4447 = vmul.f32 %v4445, %v4397
    %v4448 = vmul.f32 %v4445, %v4399
    %v4449 = vmul.f32 %v4445, %v4401
    %v4450 = vadd.f32 %v4440, %v4446
    %v4451 = vadd.f32 %v4441, %v4447
    %v4452 = vadd.f32 %v4442, %v4448
    %v4453 = vadd.f32 %v4443, %v4449
    %s4454 = sld [smem:[#allocation2 + $0xb1]]
    %v4455 = vstv %s4454
    %v4456 = vmul.f32 %v4455, %v4387
    %v4457 = vmul.f32 %v4455, %v4389
    %v4458 = vmul.f32 %v4455, %v4391
    %v4459 = vmul.f32 %v4455, %v4393
    %s4460 = sld [smem:[#allocation2 + $0xb2]]
    %v4461 = vstv %s4460
    %v4462 = vmul.f32 %v4461, %v4382
    %v4463 = vmul.f32 %v4461, %v4383
    %v4464 = vmul.f32 %v4461, %v4384
    %v4465 = vmul.f32 %v4461, %v4385
    %v4466 = vadd.f32 %v4456, %v4462
    %v4467 = vadd.f32 %v4457, %v4463
    %v4468 = vadd.f32 %v4458, %v4464
    %v4469 = vadd.f32 %v4459, %v4465
    %s4470 = sld [smem:[#allocation2 + $0xb3]]
    %v4471 = vstv %s4470
    %v4472 = vmul.f32 %v4471, %v4395
    %v4473 = vmul.f32 %v4471, %v4397
    %v4474 = vmul.f32 %v4471, %v4399
    %v4475 = vmul.f32 %v4471, %v4401
    %v4476 = vadd.f32 %v4466, %v4472
    %v4477 = vadd.f32 %v4467, %v4473
    %v4478 = vadd.f32 %v4468, %v4474
    %v4479 = vadd.f32 %v4469, %v4475
    %4480 = vmatpush.msra.mxu0 0.0
    %4481 = vmatpush.msra.mxu0 0.0
    %4482 = vmatpush.msra.mxu0 0.0
    %4483 = vmatpush.msra.mxu0 0.0
    %4484 = vmatpush.msra.mxu0 0.0
    %4485 = vmatpush.msra.mxu0 0.0
    %4486 = vmatpush.msra.mxu0 0.0
    %4487 = vmatpush.msra.mxu0 0.0
    %4488 = vmatpush.msra.mxu0 0.0
    %4489 = vmatpush.msra.mxu0 0.0
    %4490 = vmatpush.msra.mxu0 0.0
    %4491 = vmatpush.msra.mxu0 0.0
    %4492 = vmatpush.msra.mxu0 %v4427
    %4493 = vmatpush.msra.mxu0 %v4426
    %4494 = vmatpush.msra.mxu0 %v4425
    %4495 = vmatpush.msra.mxu0 %v4424
    %4496 = vmatmul.f32.gmra.mxu0 %v219
    %v4497 = vpop.f32.mrf.mxu0
    %v4498 = vadd.f32 %v4450, %v4497
    %4499 = vmatmul.f32.gmra.mxu0 %v222
    %v4500 = vpop.f32.mrf.mxu0
    %v4501 = vadd.f32 %v4451, %v4500
    %4502 = vmatmul.f32.gmra.mxu0 %v225
    %v4503 = vpop.f32.mrf.mxu0
    %v4504 = vadd.f32 %v4452, %v4503
    %4505 = vmatmul.f32.gmra.mxu0 %v228
    %v4506 = vpop.f32.mrf.mxu0
    %v4507 = vadd.f32 %v4453, %v4506
    %4508 = vdwg.mxu0
    %4509 = vmatpush.msra.mxu0 0.0
    %4510 = vmatpush.msra.mxu0 0.0
    %4511 = vmatpush.msra.mxu0 0.0
    %4512 = vmatpush.msra.mxu0 0.0
    %4513 = vmatpush.msra.mxu0 0.0
    %4514 = vmatpush.msra.mxu0 0.0
    %4515 = vmatpush.msra.mxu0 0.0
    %4516 = vmatpush.msra.mxu0 0.0
    %4517 = vmatpush.msra.mxu0 0.0
    %4518 = vmatpush.msra.mxu0 0.0
    %4519 = vmatpush.msra.mxu0 0.0
    %4520 = vmatpush.msra.mxu0 0.0
    %4521 = vmatpush.msra.mxu0 %v4479
    %4522 = vmatpush.msra.mxu0 %v4478
    %4523 = vmatpush.msra.mxu0 %v4477
    %4524 = vmatpush.msra.mxu0 %v4476
    %4525 = vmatmul.f32.gmra.mxu0 %v260
    %v4526 = vpop.f32.mrf.mxu0
    %v4527 = vadd.f32 0.0, %v4526
    %4528 = vmatmul.f32.gmra.mxu0 %v263
    %v4529 = vpop.f32.mrf.mxu0
    %v4530 = vadd.f32 0.0, %v4529
    %4531 = vmatmul.f32.gmra.mxu0 %v266
    %v4532 = vpop.f32.mrf.mxu0
    %v4533 = vadd.f32 0.0, %v4532
    %4534 = vmatmul.f32.gmra.mxu0 %v269
    %v4535 = vpop.f32.mrf.mxu0
    %v4536 = vadd.f32 0.0, %v4535
    %4537 = vdwg.mxu0
    %v4538 = vadd.f32 %v4498, %v4527
    %v4539 = vadd.f32 %v4501, %v4530
    %v4540 = vadd.f32 %v4504, %v4533
    %v4541 = vadd.f32 %v4507, %v4536
    %v4542 = vmul.f32 %v4538, %v109
    %v4543 = vmul.f32 %v4539, %v109
    %v4544 = vmul.f32 %v4540, %v109
    %v4545 = vmul.f32 %v4541, %v109
    %v4546 = vadd.f32 %v4542, %v4543
    %v4547 = vadd.f32 %v4546, %v4544
    %v4548 = vadd.f32 %v4547, %v4545
    %4549 = vadd.xlane.f32.xlu0 %v4548
    %v4550 = vpop.xlane.xlu0 %4549
    %v4551 = vrot.slane %v4550, 4
    %v4552 = vadd.f32 %v4550, %v4551
    %v4553 = vrot.slane %v4552, 2
    %v4554 = vadd.f32 %v4552, %v4553
    %v4555 = vrot.slane %v4554, 1
    %v4556 = vadd.f32 %v4554, %v4555
    %s4557 = vtos %v4556
    %v4558 = vmul.f32 %v4542, %v4542
    %v4559 = vmul.f32 %v4543, %v4543
    %v4560 = vmul.f32 %v4544, %v4544
    %v4561 = vmul.f32 %v4545, %v4545
    %v4562 = vadd.f32 %v4558, %v4559
    %v4563 = vadd.f32 %v4562, %v4560
    %v4564 = vadd.f32 %v4563, %v4561
    %4565 = vadd.xlane.f32.xlu0 %v4564
    %v4566 = vpop.xlane.xlu0 %4565
    %v4567 = vrot.slane %v4566, 4
    %v4568 = vadd.f32 %v4566, %v4567
    %v4569 = vrot.slane %v4568, 2
    %v4570 = vadd.f32 %v4568, %v4569
    %v4571 = vrot.slane %v4570, 1
    %v4572 = vadd.f32 %v4570, %v4571
    %s4573 = vtos %v4572
    %s4574 = smul.f32 %s4557, 0.001953125
    %s4575 = smul.f32 %s4573, 0.001953125
    %s4576 = smul.f32 %s4574, %s4574
    %s4577 = ssub.f32 %s4575, %s4576
    %s4578 = smax.f32 %s4577, 0.0
    %s4579 = sld [smem:[#allocation9 + $0x12]]
    %s4580 = sadd.f32 %s4578, 1e-05
    %v4581 = vstv %s4580
    %v4582 = vrsqrt.pop %v4581
    %v4583 = vmul.f32 %v4582, %v4581
    %v4584 = vmul.f32 %v4583, %v4582
    %v4585 = vmul.f32 0.5, %v4584
    %v4586 = vsub.f32 1.5, %v4585
    %v4587 = vmul.f32 %v4582, %v4586
    %vm4588 = vweird.f32 %v4581
    %vm4589 = vweird.f32 %v4582
    %vm4590 = vmor %vm4588, %vm4589
    %v4591 = vsel %vm4590, %v4582, %v4587
    %s4592 = vtos %v4591
    %s4593 = smul.f32 %s4579, %s4592
    %s4594 = sld [smem:[#allocation10 + $0x12]]
    %s4595 = smul.f32 %s4574, %s4593
    %s4596 = ssub.f32 %s4594, %s4595
    %v4597 = vstv %s4593
    %v4598 = vmul.f32 %v4542, %v4597
    %v4599 = vmul.f32 %v4543, %v4597
    %v4600 = vmul.f32 %v4544, %v4597
    %v4601 = vmul.f32 %v4545, %v4597
    %v4602 = vstv %s4596
    %v4603 = vmul.f32 %v4602, %v109
    %v4604 = vadd.f32 %v4598, %v4603
    %v4605 = vadd.f32 %v4599, %v4603
    %v4606 = vadd.f32 %v4600, %v4603
    %v4607 = vadd.f32 %v4601, %v4603
    %v4608 = vmax.f32 %v4604, 0.0
    %v4609 = vmax.f32 %v4605, 0.0
    %v4610 = vmax.f32 %v4606, 0.0
    %v4611 = vmax.f32 %v4607, 0.0
    %4612 = vrot.lane.b32.xlu0 %v4608, 1
    %v4613 = vpop.permute.xlu0 %4612
    %4614 = vrot.lane.b32.xlu0 %v4609, 1
    %v4615 = vpop.permute.xlu0 %4614
    %4616 = vrot.lane.b32.xlu0 %v4610, 1
    %v4617 = vpop.permute.xlu0 %4616
    %4618 = vrot.lane.b32.xlu0 %v4611, 1
    %v4619 = vpop.permute.xlu0 %4618
    %4620 = vrot.lane.b32.xlu0 %v4608, 127
    %v4621 = vpop.permute.xlu0 %4620
    %4622 = vrot.lane.b32.xlu0 %v4609, 127
    %v4623 = vpop.permute.xlu0 %4622
    %4624 = vrot.lane.b32.xlu0 %v4610, 127
    %v4625 = vpop.permute.xlu0 %4624
    %4626 = vrot.lane.b32.xlu0 %v4611, 127
    %v4627 = vpop.permute.xlu0 %4626
    %s4628 = sld [smem:[#allocation2 + $0xb4]]
    %v4629 = vstv %s4628
    %v4630 = vmul.f32 %v4629, %v4613
    %v4631 = vmul.f32 %v4629, %v4615
    %v4632 = vmul.f32 %v4629, %v4617
    %v4633 = vmul.f32 %v4629, %v4619
    %s4634 = sld [smem:[#allocation2 + $0xb5]]
    %v4635 = vstv %s4634
    %v4636 = vmul.f32 %v4635, %v4608
    %v4637 = vmul.f32 %v4635, %v4609
    %v4638 = vmul.f32 %v4635, %v4610
    %v4639 = vmul.f32 %v4635, %v4611
    %v4640 = vadd.f32 %v4630, %v4636
    %v4641 = vadd.f32 %v4631, %v4637
    %v4642 = vadd.f32 %v4632, %v4638
    %v4643 = vadd.f32 %v4633, %v4639
    %s4644 = sld [smem:[#allocation2 + $0xb6]]
    %v4645 = vstv %s4644
    %v4646 = vmul.f32 %v4645, %v4621
    %v4647 = vmul.f32 %v4645, %v4623
    %v4648 = vmul.f32 %v4645, %v4625
    %v4649 = vmul.f32 %v4645, %v4627
    %v4650 = vadd.f32 %v4640, %v4646
    %v4651 = vadd.f32 %v4641, %v4647
    %v4652 = vadd.f32 %v4642, %v4648
    %v4653 = vadd.f32 %v4643, %v4649
    %s4654 = sld [smem:[#allocation2 + $0xb7]]
    %v4655 = vstv %s4654
    %v4656 = vmul.f32 %v4655, %v4613
    %v4657 = vmul.f32 %v4655, %v4615
    %v4658 = vmul.f32 %v4655, %v4617
    %v4659 = vmul.f32 %v4655, %v4619
    %s4660 = sld [smem:[#allocation2 + $0xb8]]
    %v4661 = vstv %s4660
    %v4662 = vmul.f32 %v4661, %v4608
    %v4663 = vmul.f32 %v4661, %v4609
    %v4664 = vmul.f32 %v4661, %v4610
    %v4665 = vmul.f32 %v4661, %v4611
    %v4666 = vadd.f32 %v4656, %v4662
    %v4667 = vadd.f32 %v4657, %v4663
    %v4668 = vadd.f32 %v4658, %v4664
    %v4669 = vadd.f32 %v4659, %v4665
    %s4670 = sld [smem:[#allocation2 + $0xb9]]
    %v4671 = vstv %s4670
    %v4672 = vmul.f32 %v4671, %v4621
    %v4673 = vmul.f32 %v4671, %v4623
    %v4674 = vmul.f32 %v4671, %v4625
    %v4675 = vmul.f32 %v4671, %v4627
    %v4676 = vadd.f32 %v4666, %v4672
    %v4677 = vadd.f32 %v4667, %v4673
    %v4678 = vadd.f32 %v4668, %v4674
    %v4679 = vadd.f32 %v4669, %v4675
    %s4680 = sld [smem:[#allocation2 + $0xba]]
    %v4681 = vstv %s4680
    %v4682 = vmul.f32 %v4681, %v4613
    %v4683 = vmul.f32 %v4681, %v4615
    %v4684 = vmul.f32 %v4681, %v4617
    %v4685 = vmul.f32 %v4681, %v4619
    %s4686 = sld [smem:[#allocation2 + $0xbb]]
    %v4687 = vstv %s4686
    %v4688 = vmul.f32 %v4687, %v4608
    %v4689 = vmul.f32 %v4687, %v4609
    %v4690 = vmul.f32 %v4687, %v4610
    %v4691 = vmul.f32 %v4687, %v4611
    %v4692 = vadd.f32 %v4682, %v4688
    %v4693 = vadd.f32 %v4683, %v4689
    %v4694 = vadd.f32 %v4684, %v4690
    %v4695 = vadd.f32 %v4685, %v4691
    %s4696 = sld [smem:[#allocation2 + $0xbc]]
    %v4697 = vstv %s4696
    %v4698 = vmul.f32 %v4697, %v4621
    %v4699 = vmul.f32 %v4697, %v4623
    %v4700 = vmul.f32 %v4697, %v4625
    %v4701 = vmul.f32 %v4697, %v4627
    %v4702 = vadd.f32 %v4692, %v4698
    %v4703 = vadd.f32 %v4693, %v4699
    %v4704 = vadd.f32 %v4694, %v4700
    %v4705 = vadd.f32 %v4695, %v4701
    %4706 = vmatpush.msra.mxu0 0.0
    %4707 = vmatpush.msra.mxu0 0.0
    %4708 = vmatpush.msra.mxu0 0.0
    %4709 = vmatpush.msra.mxu0 0.0
    %4710 = vmatpush.msra.mxu0 0.0
    %4711 = vmatpush.msra.mxu0 0.0
    %4712 = vmatpush.msra.mxu0 0.0
    %4713 = vmatpush.msra.mxu0 0.0
    %4714 = vmatpush.msra.mxu0 0.0
    %4715 = vmatpush.msra.mxu0 0.0
    %4716 = vmatpush.msra.mxu0 0.0
    %4717 = vmatpush.msra.mxu0 0.0
    %4718 = vmatpush.msra.mxu0 %v4653
    %4719 = vmatpush.msra.mxu0 %v4652
    %4720 = vmatpush.msra.mxu0 %v4651
    %4721 = vmatpush.msra.mxu0 %v4650
    %4722 = vmatmul.f32.gmra.mxu0 %v219
    %v4723 = vpop.f32.mrf.mxu0
    %v4724 = vadd.f32 %v4676, %v4723
    %4725 = vmatmul.f32.gmra.mxu0 %v222
    %v4726 = vpop.f32.mrf.mxu0
    %v4727 = vadd.f32 %v4677, %v4726
    %4728 = vmatmul.f32.gmra.mxu0 %v225
    %v4729 = vpop.f32.mrf.mxu0
    %v4730 = vadd.f32 %v4678, %v4729
    %4731 = vmatmul.f32.gmra.mxu0 %v228
    %v4732 = vpop.f32.mrf.mxu0
    %v4733 = vadd.f32 %v4679, %v4732
    %4734 = vdwg.mxu0
    %4735 = vmatpush.msra.mxu0 0.0
    %4736 = vmatpush.msra.mxu0 0.0
    %4737 = vmatpush.msra.mxu0 0.0
    %4738 = vmatpush.msra.mxu0 0.0
    %4739 = vmatpush.msra.mxu0 0.0
    %4740 = vmatpush.msra.mxu0 0.0
    %4741 = vmatpush.msra.mxu0 0.0
    %4742 = vmatpush.msra.mxu0 0.0
    %4743 = vmatpush.msra.mxu0 0.0
    %4744 = vmatpush.msra.mxu0 0.0
    %4745 = vmatpush.msra.mxu0 0.0
    %4746 = vmatpush.msra.mxu0 0.0
    %4747 = vmatpush.msra.mxu0 %v4705
    %4748 = vmatpush.msra.mxu0 %v4704
    %4749 = vmatpush.msra.mxu0 %v4703
    %4750 = vmatpush.msra.mxu0 %v4702
    %4751 = vmatmul.f32.gmra.mxu0 %v260
    %v4752 = vpop.f32.mrf.mxu0
    %v4753 = vadd.f32 0.0, %v4752
    %4754 = vmatmul.f32.gmra.mxu0 %v263
    %v4755 = vpop.f32.mrf.mxu0
    %v4756 = vadd.f32 0.0, %v4755
    %4757 = vmatmul.f32.gmra.mxu0 %v266
    %v4758 = vpop.f32.mrf.mxu0
    %v4759 = vadd.f32 0.0, %v4758
    %4760 = vmatmul.f32.gmra.mxu0 %v269
    %v4761 = vpop.f32.mrf.mxu0
    %v4762 = vadd.f32 0.0, %v4761
    %4763 = vdwg.mxu0
    %v4764 = vadd.f32 %v4724, %v4753
    %v4765 = vadd.f32 %v4727, %v4756
    %v4766 = vadd.f32 %v4730, %v4759
    %v4767 = vadd.f32 %v4733, %v4762
    %v4768 = vmul.f32 %v4764, %v109
    %v4769 = vmul.f32 %v4765, %v109
    %v4770 = vmul.f32 %v4766, %v109
    %v4771 = vmul.f32 %v4767, %v109
    %v4772 = vadd.f32 %v4768, %v4769
    %v4773 = vadd.f32 %v4772, %v4770
    %v4774 = vadd.f32 %v4773, %v4771
    %4775 = vadd.xlane.f32.xlu0 %v4774
    %v4776 = vpop.xlane.xlu0 %4775
    %v4777 = vrot.slane %v4776, 4
    %v4778 = vadd.f32 %v4776, %v4777
    %v4779 = vrot.slane %v4778, 2
    %v4780 = vadd.f32 %v4778, %v4779
    %v4781 = vrot.slane %v4780, 1
    %v4782 = vadd.f32 %v4780, %v4781
    %s4783 = vtos %v4782
    %v4784 = vmul.f32 %v4768, %v4768
    %v4785 = vmul.f32 %v4769, %v4769
    %v4786 = vmul.f32 %v4770, %v4770
    %v4787 = vmul.f32 %v4771, %v4771
    %v4788 = vadd.f32 %v4784, %v4785
    %v4789 = vadd.f32 %v4788, %v4786
    %v4790 = vadd.f32 %v4789, %v4787
    %4791 = vadd.xlane.f32.xlu0 %v4790
    %v4792 = vpop.xlane.xlu0 %4791
    %v4793 = vrot.slane %v4792, 4
    %v4794 = vadd.f32 %v4792, %v4793
    %v4795 = vrot.slane %v4794, 2
    %v4796 = vadd.f32 %v4794, %v4795
    %v4797 = vrot.slane %v4796, 1
    %v4798 = vadd.f32 %v4796, %v4797
    %s4799 = vtos %v4798
    %s4800 = smul.f32 %s4783, 0.001953125
    %s4801 = smul.f32 %s4799, 0.001953125
    %s4802 = smul.f32 %s4800, %s4800
    %s4803 = ssub.f32 %s4801, %s4802
    %s4804 = smax.f32 %s4803, 0.0
    %s4805 = sld [smem:[#allocation9 + $0x13]]
    %s4806 = sadd.f32 %s4804, 1e-05
    %v4807 = vstv %s4806
    %v4808 = vrsqrt.pop %v4807
    %v4809 = vmul.f32 %v4808, %v4807
    %v4810 = vmul.f32 %v4809, %v4808
    %v4811 = vmul.f32 0.5, %v4810
    %v4812 = vsub.f32 1.5, %v4811
    %v4813 = vmul.f32 %v4808, %v4812
    %vm4814 = vweird.f32 %v4807
    %vm4815 = vweird.f32 %v4808
    %vm4816 = vmor %vm4814, %vm4815
    %v4817 = vsel %vm4816, %v4808, %v4813
    %s4818 = vtos %v4817
    %s4819 = smul.f32 %s4805, %s4818
    %s4820 = sld [smem:[#allocation10 + $0x13]]
    %s4821 = smul.f32 %s4800, %s4819
    %s4822 = ssub.f32 %s4820, %s4821
    %v4823 = vstv %s4819
    %v4824 = vmul.f32 %v4768, %v4823
    %v4825 = vmul.f32 %v4769, %v4823
    %v4826 = vmul.f32 %v4770, %v4823
    %v4827 = vmul.f32 %v4771, %v4823
    %v4828 = vstv %s4822
    %v4829 = vmul.f32 %v4828, %v109
    %v4830 = vadd.f32 %v4824, %v4829
    %v4831 = vadd.f32 %v4825, %v4829
    %v4832 = vadd.f32 %v4826, %v4829
    %v4833 = vadd.f32 %v4827, %v4829
    %v4834 = vadd.f32 %v4382, %v4830
    %v4835 = vadd.f32 %v4383, %v4831
    %v4836 = vadd.f32 %v4384, %v4832
    %v4837 = vadd.f32 %v4385, %v4833
    %4838 = vrot.lane.b32.xlu0 %v4834, 1
    %v4839 = vpop.permute.xlu0 %4838
    %4840 = vrot.lane.b32.xlu0 %v4835, 1
    %v4841 = vpop.permute.xlu0 %4840
    %4842 = vrot.lane.b32.xlu0 %v4836, 1
    %v4843 = vpop.permute.xlu0 %4842
    %4844 = vrot.lane.b32.xlu0 %v4837, 1
    %v4845 = vpop.permute.xlu0 %4844
    %4846 = vrot.lane.b32.xlu0 %v4834, 127
    %v4847 = vpop.permute.xlu0 %4846
    %4848 = vrot.lane.b32.xlu0 %v4835, 127
    %v4849 = vpop.permute.xlu0 %4848
    %4850 = vrot.lane.b32.xlu0 %v4836, 127
    %v4851 = vpop.permute.xlu0 %4850
    %4852 = vrot.lane.b32.xlu0 %v4837, 127
    %v4853 = vpop.permute.xlu0 %4852
    %s4854 = sld [smem:[#allocation2 + $0xbd]]
    %v4855 = vstv %s4854
    %v4856 = vmul.f32 %v4855, %v4839
    %v4857 = vmul.f32 %v4855, %v4841
    %v4858 = vmul.f32 %v4855, %v4843
    %v4859 = vmul.f32 %v4855, %v4845
    %s4860 = sld [smem:[#allocation2 + $0xbe]]
    %v4861 = vstv %s4860
    %v4862 = vmul.f32 %v4861, %v4834
    %v4863 = vmul.f32 %v4861, %v4835
    %v4864 = vmul.f32 %v4861, %v4836
    %v4865 = vmul.f32 %v4861, %v4837
    %v4866 = vadd.f32 %v4856, %v4862
    %v4867 = vadd.f32 %v4857, %v4863
    %v4868 = vadd.f32 %v4858, %v4864
    %v4869 = vadd.f32 %v4859, %v4865
    %s4870 = sld [smem:[#allocation2 + $0xbf]]
    %v4871 = vstv %s4870
    %v4872 = vmul.f32 %v4871, %v4847
    %v4873 = vmul.f32 %v4871, %v4849
    %v4874 = vmul.f32 %v4871, %v4851
    %v4875 = vmul.f32 %v4871, %v4853
    %v4876 = vadd.f32 %v4866, %v4872
    %v4877 = vadd.f32 %v4867, %v4873
    %v4878 = vadd.f32 %v4868, %v4874
    %v4879 = vadd.f32 %v4869, %v4875
    %s4880 = sld [smem:[#allocation2 + $0xc0]]
    %v4881 = vstv %s4880
    %v4882 = vmul.f32 %v4881, %v4839
    %v4883 = vmul.f32 %v4881, %v4841
    %v4884 = vmul.f32 %v4881, %v4843
    %v4885 = vmul.f32 %v4881, %v4845
    %s4886 = sld [smem:[#allocation2 + $0xc1]]
    %v4887 = vstv %s4886
    %v4888 = vmul.f32 %v4887, %v4834
    %v4889 = vmul.f32 %v4887, %v4835
    %v4890 = vmul.f32 %v4887, %v4836
    %v4891 = vmul.f32 %v4887, %v4837
    %v4892 = vadd.f32 %v4882, %v4888
    %v4893 = vadd.f32 %v4883, %v4889
    %v4894 = vadd.f32 %v4884, %v4890
    %v4895 = vadd.f32 %v4885, %v4891
    %s4896 = sld [smem:[#allocation2 + $0xc2]]
    %v4897 = vstv %s4896
    %v4898 = vmul.f32 %v4897, %v4847
    %v4899 = vmul.f32 %v4897, %v4849
    %v4900 = vmul.f32 %v4897, %v4851
    %v4901 = vmul.f32 %v4897, %v4853
    %v4902 = vadd.f32 %v4892, %v4898
    %v4903 = vadd.f32 %v4893, %v4899
    %v4904 = vadd.f32 %v4894, %v4900
    %v4905 = vadd.f32 %v4895, %v4901
    %s4906 = sld [smem:[#allocation2 + $0xc3]]
    %v4907 = vstv %s4906
    %v4908 = vmul.f32 %v4907, %v4839
    %v4909 = vmul.f32 %v4907, %v4841
    %v4910 = vmul.f32 %v4907, %v4843
    %v4911 = vmul.f32 %v4907, %v4845
    %s4912 = sld [smem:[#allocation2 + $0xc4]]
    %v4913 = vstv %s4912
    %v4914 = vmul.f32 %v4913, %v4834
    %v4915 = vmul.f32 %v4913, %v4835
    %v4916 = vmul.f32 %v4913, %v4836
    %v4917 = vmul.f32 %v4913, %v4837
    %v4918 = vadd.f32 %v4908, %v4914
    %v4919 = vadd.f32 %v4909, %v4915
    %v4920 = vadd.f32 %v4910, %v4916
    %v4921 = vadd.f32 %v4911, %v4917
    %s4922 = sld [smem:[#allocation2 + $0xc5]]
    %v4923 = vstv %s4922
    %v4924 = vmul.f32 %v4923, %v4847
    %v4925 = vmul.f32 %v4923, %v4849
    %v4926 = vmul.f32 %v4923, %v4851
    %v4927 = vmul.f32 %v4923, %v4853
    %v4928 = vadd.f32 %v4918, %v4924
    %v4929 = vadd.f32 %v4919, %v4925
    %v4930 = vadd.f32 %v4920, %v4926
    %v4931 = vadd.f32 %v4921, %v4927
    %4932 = vmatpush.msra.mxu0 0.0
    %4933 = vmatpush.msra.mxu0 0.0
    %4934 = vmatpush.msra.mxu0 0.0
    %4935 = vmatpush.msra.mxu0 0.0
    %4936 = vmatpush.msra.mxu0 0.0
    %4937 = vmatpush.msra.mxu0 0.0
    %4938 = vmatpush.msra.mxu0 0.0
    %4939 = vmatpush.msra.mxu0 0.0
    %4940 = vmatpush.msra.mxu0 0.0
    %4941 = vmatpush.msra.mxu0 0.0
    %4942 = vmatpush.msra.mxu0 0.0
    %4943 = vmatpush.msra.mxu0 0.0
    %4944 = vmatpush.msra.mxu0 %v4879
    %4945 = vmatpush.msra.mxu0 %v4878
    %4946 = vmatpush.msra.mxu0 %v4877
    %4947 = vmatpush.msra.mxu0 %v4876
    %4948 = vmatmul.f32.gmra.mxu0 %v219
    %v4949 = vpop.f32.mrf.mxu0
    %v4950 = vadd.f32 %v4902, %v4949
    %4951 = vmatmul.f32.gmra.mxu0 %v222
    %v4952 = vpop.f32.mrf.mxu0
    %v4953 = vadd.f32 %v4903, %v4952
    %4954 = vmatmul.f32.gmra.mxu0 %v225
    %v4955 = vpop.f32.mrf.mxu0
    %v4956 = vadd.f32 %v4904, %v4955
    %4957 = vmatmul.f32.gmra.mxu0 %v228
    %v4958 = vpop.f32.mrf.mxu0
    %v4959 = vadd.f32 %v4905, %v4958
    %4960 = vdwg.mxu0
    %4961 = vmatpush.msra.mxu0 0.0
    %4962 = vmatpush.msra.mxu0 0.0
    %4963 = vmatpush.msra.mxu0 0.0
    %4964 = vmatpush.msra.mxu0 0.0
    %4965 = vmatpush.msra.mxu0 0.0
    %4966 = vmatpush.msra.mxu0 0.0
    %4967 = vmatpush.msra.mxu0 0.0
    %4968 = vmatpush.msra.mxu0 0.0
    %4969 = vmatpush.msra.mxu0 0.0
    %4970 = vmatpush.msra.mxu0 0.0
    %4971 = vmatpush.msra.mxu0 0.0
    %4972 = vmatpush.msra.mxu0 0.0
    %4973 = vmatpush.msra.mxu0 %v4931
    %4974 = vmatpush.msra.mxu0 %v4930
    %4975 = vmatpush.msra.mxu0 %v4929
    %4976 = vmatpush.msra.mxu0 %v4928
    %4977 = vmatmul.f32.gmra.mxu0 %v260
    %v4978 = vpop.f32.mrf.mxu0
    %v4979 = vadd.f32 0.0, %v4978
    %4980 = vmatmul.f32.gmra.mxu0 %v263
    %v4981 = vpop.f32.mrf.mxu0
    %v4982 = vadd.f32 0.0, %v4981
    %4983 = vmatmul.f32.gmra.mxu0 %v266
    %v4984 = vpop.f32.mrf.mxu0
    %v4985 = vadd.f32 0.0, %v4984
    %4986 = vmatmul.f32.gmra.mxu0 %v269
    %v4987 = vpop.f32.mrf.mxu0
    %v4988 = vadd.f32 0.0, %v4987
    %4989 = vdwg.mxu0
    %v4990 = vadd.f32 %v4950, %v4979
    %v4991 = vadd.f32 %v4953, %v4982
    %v4992 = vadd.f32 %v4956, %v4985
    %v4993 = vadd.f32 %v4959, %v4988
    %v4994 = vmul.f32 %v4990, %v109
    %v4995 = vmul.f32 %v4991, %v109
    %v4996 = vmul.f32 %v4992, %v109
    %v4997 = vmul.f32 %v4993, %v109
    %v4998 = vadd.f32 %v4994, %v4995
    %v4999 = vadd.f32 %v4998, %v4996
    %v5000 = vadd.f32 %v4999, %v4997
    %5001 = vadd.xlane.f32.xlu0 %v5000
    %v5002 = vpop.xlane.xlu0 %5001
    %v5003 = vrot.slane %v5002, 4
    %v5004 = vadd.f32 %v5002, %v5003
    %v5005 = vrot.slane %v5004, 2
    %v5006 = vadd.f32 %v5004, %v5005
    %v5007 = vrot.slane %v5006, 1
    %v5008 = vadd.f32 %v5006, %v5007
    %s5009 = vtos %v5008
    %v5010 = vmul.f32 %v4994, %v4994
    %v5011 = vmul.f32 %v4995, %v4995
    %v5012 = vmul.f32 %v4996, %v4996
    %v5013 = vmul.f32 %v4997, %v4997
    %v5014 = vadd.f32 %v5010, %v5011
    %v5015 = vadd.f32 %v5014, %v5012
    %v5016 = vadd.f32 %v5015, %v5013
    %5017 = vadd.xlane.f32.xlu0 %v5016
    %v5018 = vpop.xlane.xlu0 %5017
    %v5019 = vrot.slane %v5018, 4
    %v5020 = vadd.f32 %v5018, %v5019
    %v5021 = vrot.slane %v5020, 2
    %v5022 = vadd.f32 %v5020, %v5021
    %v5023 = vrot.slane %v5022, 1
    %v5024 = vadd.f32 %v5022, %v5023
    %s5025 = vtos %v5024
    %s5026 = smul.f32 %s5009, 0.001953125
    %s5027 = smul.f32 %s5025, 0.001953125
    %s5028 = smul.f32 %s5026, %s5026
    %s5029 = ssub.f32 %s5027, %s5028
    %s5030 = smax.f32 %s5029, 0.0
    %s5031 = sld [smem:[#allocation9 + $0x14]]
    %s5032 = sadd.f32 %s5030, 1e-05
    %v5033 = vstv %s5032
    %v5034 = vrsqrt.pop %v5033
    %v5035 = vmul.f32 %v5034, %v5033
    %v5036 = vmul.f32 %v5035, %v5034
    %v5037 = vmul.f32 0.5, %v5036
    %v5038 = vsub.f32 1.5, %v5037
    %v5039 = vmul.f32 %v5034, %v5038
    %vm5040 = vweird.f32 %v5033
    %vm5041 = vweird.f32 %v5034
    %vm5042 = vmor %vm5040, %vm5041
    %v5043 = vsel %vm5042, %v5034, %v5039
    %s5044 = vtos %v5043
    %s5045 = smul.f32 %s5031, %s5044
    %s5046 = sld [smem:[#allocation10 + $0x14]]
    %s5047 = smul.f32 %s5026, %s5045
    %s5048 = ssub.f32 %s5046, %s5047
    %v5049 = vstv %s5045
    %v5050 = vmul.f32 %v4994, %v5049
    %v5051 = vmul.f32 %v4995, %v5049
    %v5052 = vmul.f32 %v4996, %v5049
    %v5053 = vmul.f32 %v4997, %v5049
    %v5054 = vstv %s5048
    %v5055 = vmul.f32 %v5054, %v109
    %v5056 = vadd.f32 %v5050, %v5055
    %v5057 = vadd.f32 %v5051, %v5055
    %v5058 = vadd.f32 %v5052, %v5055
    %v5059 = vadd.f32 %v5053, %v5055
    %v5060 = vmax.f32 %v5056, 0.0
    %v5061 = vmax.f32 %v5057, 0.0
    %v5062 = vmax.f32 %v5058, 0.0
    %v5063 = vmax.f32 %v5059, 0.0
    %5064 = vrot.lane.b32.xlu0 %v5060, 1
    %v5065 = vpop.permute.xlu0 %5064
    %5066 = vrot.lane.b32.xlu0 %v5061, 1
    %v5067 = vpop.permute.xlu0 %5066
    %5068 = vrot.lane.b32.xlu0 %v5062, 1
    %v5069 = vpop.permute.xlu0 %5068
    %5070 = vrot.lane.b32.xlu0 %v5063, 1
    %v5071 = vpop.permute.xlu0 %5070
    %5072 = vrot.lane.b32.xlu0 %v5060, 127
    %v5073 = vpop.permute.xlu0 %5072
    %5074 = vrot.lane.b32.xlu0 %v5061, 127
    %v5075 = vpop.permute.xlu0 %5074
    %5076 = vrot.lane.b32.xlu0 %v5062, 127
    %v5077 = vpop.permute.xlu0 %5076
    %5078 = vrot.lane.b32.xlu0 %v5063, 127
    %v5079 = vpop.permute.xlu0 %5078
    %s5080 = sld [smem:[#allocation2 + $0xc6]]
    %v5081 = vstv %s5080
    %v5082 = vmul.f32 %v5081, %v5065
    %v5083 = vmul.f32 %v5081, %v5067
    %v5084 = vmul.f32 %v5081, %v5069
    %v5085 = vmul.f32 %v5081, %v5071
    %s5086 = sld [smem:[#allocation2 + $0xc7]]
    %v5087 = vstv %s5086
    %v5088 = vmul.f32 %v5087, %v5060
    %v5089 = vmul.f32 %v5087, %v5061
    %v5090 = vmul.f32 %v5087, %v5062
    %v5091 = vmul.f32 %v5087, %v5063
    %v5092 = vadd.f32 %v5082, %v5088
    %v5093 = vadd.f32 %v5083, %v5089
    %v5094 = vadd.f32 %v5084, %v5090
    %v5095 = vadd.f32 %v5085, %v5091
    %s5096 = sld [smem:[#allocation2 + $0xc8]]
    %v5097 = vstv %s5096
    %v5098 = vmul.f32 %v5097, %v5073
    %v5099 = vmul.f32 %v5097, %v5075
    %v5100 = vmul.f32 %v5097, %v5077
    %v5101 = vmul.f32 %v5097, %v5079
    %v5102 = vadd.f32 %v5092, %v5098
    %v5103 = vadd.f32 %v5093, %v5099
    %v5104 = vadd.f32 %v5094, %v5100
    %v5105 = vadd.f32 %v5095, %v5101
    %s5106 = sld [smem:[#allocation2 + $0xc9]]
    %v5107 = vstv %s5106
    %v5108 = vmul.f32 %v5107, %v5065
    %v5109 = vmul.f32 %v5107, %v5067
    %v5110 = vmul.f32 %v5107, %v5069
    %v5111 = vmul.f32 %v5107, %v5071
    %s5112 = sld [smem:[#allocation2 + $0xca]]
    %v5113 = vstv %s5112
    %v5114 = vmul.f32 %v5113, %v5060
    %v5115 = vmul.f32 %v5113, %v5061
    %v5116 = vmul.f32 %v5113, %v5062
    %v5117 = vmul.f32 %v5113, %v5063
    %v5118 = vadd.f32 %v5108, %v5114
    %v5119 = vadd.f32 %v5109, %v5115
    %v5120 = vadd.f32 %v5110, %v5116
    %v5121 = vadd.f32 %v5111, %v5117
    %s5122 = sld [smem:[#allocation2 + $0xcb]]
    %v5123 = vstv %s5122
    %v5124 = vmul.f32 %v5123, %v5073
    %v5125 = vmul.f32 %v5123, %v5075
    %v5126 = vmul.f32 %v5123, %v5077
    %v5127 = vmul.f32 %v5123, %v5079
    %v5128 = vadd.f32 %v5118, %v5124
    %v5129 = vadd.f32 %v5119, %v5125
    %v5130 = vadd.f32 %v5120, %v5126
    %v5131 = vadd.f32 %v5121, %v5127
    %s5132 = sld [smem:[#allocation2 + $0xcc]]
    %v5133 = vstv %s5132
    %v5134 = vmul.f32 %v5133, %v5065
    %v5135 = vmul.f32 %v5133, %v5067
    %v5136 = vmul.f32 %v5133, %v5069
    %v5137 = vmul.f32 %v5133, %v5071
    %s5138 = sld [smem:[#allocation2 + $0xcd]]
    %v5139 = vstv %s5138
    %v5140 = vmul.f32 %v5139, %v5060
    %v5141 = vmul.f32 %v5139, %v5061
    %v5142 = vmul.f32 %v5139, %v5062
    %v5143 = vmul.f32 %v5139, %v5063
    %v5144 = vadd.f32 %v5134, %v5140
    %v5145 = vadd.f32 %v5135, %v5141
    %v5146 = vadd.f32 %v5136, %v5142
    %v5147 = vadd.f32 %v5137, %v5143
    %s5148 = sld [smem:[#allocation2 + $0xce]]
    %v5149 = vstv %s5148
    %v5150 = vmul.f32 %v5149, %v5073
    %v5151 = vmul.f32 %v5149, %v5075
    %v5152 = vmul.f32 %v5149, %v5077
    %v5153 = vmul.f32 %v5149, %v5079
    %v5154 = vadd.f32 %v5144, %v5150
    %v5155 = vadd.f32 %v5145, %v5151
    %v5156 = vadd.f32 %v5146, %v5152
    %v5157 = vadd.f32 %v5147, %v5153
    %5158 = vmatpush.msra.mxu0 0.0
    %5159 = vmatpush.msra.mxu0 0.0
    %5160 = vmatpush.msra.mxu0 0.0
    %5161 = vmatpush.msra.mxu0 0.0
    %5162 = vmatpush.msra.mxu0 0.0
    %5163 = vmatpush.msra.mxu0 0.0
    %5164 = vmatpush.msra.mxu0 0.0
    %5165 = vmatpush.msra.mxu0 0.0
    %5166 = vmatpush.msra.mxu0 0.0
    %5167 = vmatpush.msra.mxu0 0.0
    %5168 = vmatpush.msra.mxu0 0.0
    %5169 = vmatpush.msra.mxu0 0.0
    %5170 = vmatpush.msra.mxu0 %v5105
    %5171 = vmatpush.msra.mxu0 %v5104
    %5172 = vmatpush.msra.mxu0 %v5103
    %5173 = vmatpush.msra.mxu0 %v5102
    %5174 = vmatmul.f32.gmra.mxu0 %v219
    %v5175 = vpop.f32.mrf.mxu0
    %v5176 = vadd.f32 %v5128, %v5175
    %5177 = vmatmul.f32.gmra.mxu0 %v222
    %v5178 = vpop.f32.mrf.mxu0
    %v5179 = vadd.f32 %v5129, %v5178
    %5180 = vmatmul.f32.gmra.mxu0 %v225
    %v5181 = vpop.f32.mrf.mxu0
    %v5182 = vadd.f32 %v5130, %v5181
    %5183 = vmatmul.f32.gmra.mxu0 %v228
    %v5184 = vpop.f32.mrf.mxu0
    %v5185 = vadd.f32 %v5131, %v5184
    %5186 = vdwg.mxu0
    %5187 = vmatpush.msra.mxu0 0.0
    %5188 = vmatpush.msra.mxu0 0.0
    %5189 = vmatpush.msra.mxu0 0.0
    %5190 = vmatpush.msra.mxu0 0.0
    %5191 = vmatpush.msra.mxu0 0.0
    %5192 = vmatpush.msra.mxu0 0.0
    %5193 = vmatpush.msra.mxu0 0.0
    %5194 = vmatpush.msra.mxu0 0.0
    %5195 = vmatpush.msra.mxu0 0.0
    %5196 = vmatpush.msra.mxu0 0.0
    %5197 = vmatpush.msra.mxu0 0.0
    %5198 = vmatpush.msra.mxu0 0.0
    %5199 = vmatpush.msra.mxu0 %v5157
    %5200 = vmatpush.msra.mxu0 %v5156
    %5201 = vmatpush.msra.mxu0 %v5155
    %5202 = vmatpush.msra.mxu0 %v5154
    %5203 = vmatmul.f32.gmra.mxu0 %v260
    %v5204 = vpop.f32.mrf.mxu0
    %v5205 = vadd.f32 0.0, %v5204
    %5206 = vmatmul.f32.gmra.mxu0 %v263
    %v5207 = vpop.f32.mrf.mxu0
    %v5208 = vadd.f32 0.0, %v5207
    %5209 = vmatmul.f32.gmra.mxu0 %v266
    %v5210 = vpop.f32.mrf.mxu0
    %v5211 = vadd.f32 0.0, %v5210
    %5212 = vmatmul.f32.gmra.mxu0 %v269
    %v5213 = vpop.f32.mrf.mxu0
    %v5214 = vadd.f32 0.0, %v5213
    %5215 = vdwg.mxu0
    %v5216 = vadd.f32 %v5176, %v5205
    %v5217 = vadd.f32 %v5179, %v5208
    %v5218 = vadd.f32 %v5182, %v5211
    %v5219 = vadd.f32 %v5185, %v5214
    %v5220 = vmul.f32 %v5216, %v109
    %v5221 = vmul.f32 %v5217, %v109
    %v5222 = vmul.f32 %v5218, %v109
    %v5223 = vmul.f32 %v5219, %v109
    %v5224 = vadd.f32 %v5220, %v5221
    %v5225 = vadd.f32 %v5224, %v5222
    %v5226 = vadd.f32 %v5225, %v5223
    %5227 = vadd.xlane.f32.xlu0 %v5226
    %v5228 = vpop.xlane.xlu0 %5227
    %v5229 = vrot.slane %v5228, 4
    %v5230 = vadd.f32 %v5228, %v5229
    %v5231 = vrot.slane %v5230, 2
    %v5232 = vadd.f32 %v5230, %v5231
    %v5233 = vrot.slane %v5232, 1
    %v5234 = vadd.f32 %v5232, %v5233
    %s5235 = vtos %v5234
    %v5236 = vmul.f32 %v5220, %v5220
    %v5237 = vmul.f32 %v5221, %v5221
    %v5238 = vmul.f32 %v5222, %v5222
    %v5239 = vmul.f32 %v5223, %v5223
    %v5240 = vadd.f32 %v5236, %v5237
    %v5241 = vadd.f32 %v5240, %v5238
    %v5242 = vadd.f32 %v5241, %v5239
    %5243 = vadd.xlane.f32.xlu0 %v5242
    %v5244 = vpop.xlane.xlu0 %5243
    %v5245 = vrot.slane %v5244, 4
    %v5246 = vadd.f32 %v5244, %v5245
    %v5247 = vrot.slane %v5246, 2
    %v5248 = vadd.f32 %v5246, %v5247
    %v5249 = vrot.slane %v5248, 1
    %v5250 = vadd.f32 %v5248, %v5249
    %s5251 = vtos %v5250
    %s5252 = smul.f32 %s5235, 0.001953125
    %s5253 = smul.f32 %s5251, 0.001953125
    %s5254 = smul.f32 %s5252, %s5252
    %s5255 = ssub.f32 %s5253, %s5254
    %s5256 = smax.f32 %s5255, 0.0
    %s5257 = sld [smem:[#allocation9 + $0x15]]
    %s5258 = sadd.f32 %s5256, 1e-05
    %v5259 = vstv %s5258
    %v5260 = vrsqrt.pop %v5259
    %v5261 = vmul.f32 %v5260, %v5259
    %v5262 = vmul.f32 %v5261, %v5260
    %v5263 = vmul.f32 0.5, %v5262
    %v5264 = vsub.f32 1.5, %v5263
    %v5265 = vmul.f32 %v5260, %v5264
    %vm5266 = vweird.f32 %v5259
    %vm5267 = vweird.f32 %v5260
    %vm5268 = vmor %vm5266, %vm5267
    %v5269 = vsel %vm5268, %v5260, %v5265
    %s5270 = vtos %v5269
    %s5271 = smul.f32 %s5257, %s5270
    %s5272 = sld [smem:[#allocation10 + $0x15]]
    %s5273 = smul.f32 %s5252, %s5271
    %s5274 = ssub.f32 %s5272, %s5273
    %v5275 = vstv %s5271
    %v5276 = vmul.f32 %v5220, %v5275
    %v5277 = vmul.f32 %v5221, %v5275
    %v5278 = vmul.f32 %v5222, %v5275
    %v5279 = vmul.f32 %v5223, %v5275
    %v5280 = vstv %s5274
    %v5281 = vmul.f32 %v5280, %v109
    %v5282 = vadd.f32 %v5276, %v5281
    %v5283 = vadd.f32 %v5277, %v5281
    %v5284 = vadd.f32 %v5278, %v5281
    %v5285 = vadd.f32 %v5279, %v5281
    %v5286 = vadd.f32 %v4834, %v5282
    %v5287 = vadd.f32 %v4835, %v5283
    %v5288 = vadd.f32 %v4836, %v5284
    %v5289 = vadd.f32 %v4837, %v5285
    %5290 = vrot.lane.b32.xlu0 %v5286, 1
    %v5291 = vpop.permute.xlu0 %5290
    %5292 = vrot.lane.b32.xlu0 %v5287, 1
    %v5293 = vpop.permute.xlu0 %5292
    %5294 = vrot.lane.b32.xlu0 %v5288, 1
    %v5295 = vpop.permute.xlu0 %5294
    %5296 = vrot.lane.b32.xlu0 %v5289, 1
    %v5297 = vpop.permute.xlu0 %5296
    %5298 = vrot.lane.b32.xlu0 %v5286, 127
    %v5299 = vpop.permute.xlu0 %5298
    %5300 = vrot.lane.b32.xlu0 %v5287, 127
    %v5301 = vpop.permute.xlu0 %5300
    %5302 = vrot.lane.b32.xlu0 %v5288, 127
    %v5303 = vpop.permute.xlu0 %5302
    %5304 = vrot.lane.b32.xlu0 %v5289, 127
    %v5305 = vpop.permute.xlu0 %5304
    %s5306 = sld [smem:[#allocation2 + $0xcf]]
    %v5307 = vstv %s5306
    %v5308 = vmul.f32 %v5307, %v5291
    %v5309 = vmul.f32 %v5307, %v5293
    %v5310 = vmul.f32 %v5307, %v5295
    %v5311 = vmul.f32 %v5307, %v5297
    %s5312 = sld [smem:[#allocation2 + $0xd0]]
    %v5313 = vstv %s5312
    %v5314 = vmul.f32 %v5313, %v5286
    %v5315 = vmul.f32 %v5313, %v5287
    %v5316 = vmul.f32 %v5313, %v5288
    %v5317 = vmul.f32 %v5313, %v5289
    %v5318 = vadd.f32 %v5308, %v5314
    %v5319 = vadd.f32 %v5309, %v5315
    %v5320 = vadd.f32 %v5310, %v5316
    %v5321 = vadd.f32 %v5311, %v5317
    %s5322 = sld [smem:[#allocation2 + $0xd1]]
    %v5323 = vstv %s5322
    %v5324 = vmul.f32 %v5323, %v5299
    %v5325 = vmul.f32 %v5323, %v5301
    %v5326 = vmul.f32 %v5323, %v5303
    %v5327 = vmul.f32 %v5323, %v5305
    %v5328 = vadd.f32 %v5318, %v5324
    %v5329 = vadd.f32 %v5319, %v5325
    %v5330 = vadd.f32 %v5320, %v5326
    %v5331 = vadd.f32 %v5321, %v5327
    %s5332 = sld [smem:[#allocation2 + $0xd2]]
    %v5333 = vstv %s5332
    %v5334 = vmul.f32 %v5333, %v5291
    %v5335 = vmul.f32 %v5333, %v5293
    %v5336 = vmul.f32 %v5333, %v5295
    %v5337 = vmul.f32 %v5333, %v5297
    %s5338 = sld [smem:[#allocation2 + $0xd3]]
    %v5339 = vstv %s5338
    %v5340 = vmul.f32 %v5339, %v5286
    %v5341 = vmul.f32 %v5339, %v5287
    %v5342 = vmul.f32 %v5339, %v5288
    %v5343 = vmul.f32 %v5339, %v5289
    %v5344 = vadd.f32 %v5334, %v5340
    %v5345 = vadd.f32 %v5335, %v5341
    %v5346 = vadd.f32 %v5336, %v5342
    %v5347 = vadd.f32 %v5337, %v5343
    %s5348 = sld [smem:[#allocation2 + $0xd4]]
    %v5349 = vstv %s5348
    %v5350 = vmul.f32 %v5349, %v5299
    %v5351 = vmul.f32 %v5349, %v5301
    %v5352 = vmul.f32 %v5349, %v5303
    %v5353 = vmul.f32 %v5349, %v5305
    %v5354 = vadd.f32 %v5344, %v5350
    %v5355 = vadd.f32 %v5345, %v5351
    %v5356 = vadd.f32 %v5346, %v5352
    %v5357 = vadd.f32 %v5347, %v5353
    %s5358 = sld [smem:[#allocation2 + $0xd5]]
    %v5359 = vstv %s5358
    %v5360 = vmul.f32 %v5359, %v5291
    %v5361 = vmul.f32 %v5359, %v5293
    %v5362 = vmul.f32 %v5359, %v5295
    %v5363 = vmul.f32 %v5359, %v5297
    %s5364 = sld [smem:[#allocation2 + $0xd6]]
    %v5365 = vstv %s5364
    %v5366 = vmul.f32 %v5365, %v5286
    %v5367 = vmul.f32 %v5365, %v5287
    %v5368 = vmul.f32 %v5365, %v5288
    %v5369 = vmul.f32 %v5365, %v5289
    %v5370 = vadd.f32 %v5360, %v5366
    %v5371 = vadd.f32 %v5361, %v5367
    %v5372 = vadd.f32 %v5362, %v5368
    %v5373 = vadd.f32 %v5363, %v5369
    %s5374 = sld [smem:[#allocation2 + $0xd7]]
    %v5375 = vstv %s5374
    %v5376 = vmul.f32 %v5375, %v5299
    %v5377 = vmul.f32 %v5375, %v5301
    %v5378 = vmul.f32 %v5375, %v5303
    %v5379 = vmul.f32 %v5375, %v5305
    %v5380 = vadd.f32 %v5370, %v5376
    %v5381 = vadd.f32 %v5371, %v5377
    %v5382 = vadd.f32 %v5372, %v5378
    %v5383 = vadd.f32 %v5373, %v5379
    %5384 = vmatpush.msra.mxu0 0.0
    %5385 = vmatpush.msra.mxu0 0.0
    %5386 = vmatpush.msra.mxu0 0.0
    %5387 = vmatpush.msra.mxu0 0.0
    %5388 = vmatpush.msra.mxu0 0.0
    %5389 = vmatpush.msra.mxu0 0.0
    %5390 = vmatpush.msra.mxu0 0.0
    %5391 = vmatpush.msra.mxu0 0.0
    %5392 = vmatpush.msra.mxu0 0.0
    %5393 = vmatpush.msra.mxu0 0.0
    %5394 = vmatpush.msra.mxu0 0.0
    %5395 = vmatpush.msra.mxu0 0.0
    %5396 = vmatpush.msra.mxu0 %v5331
    %5397 = vmatpush.msra.mxu0 %v5330
    %5398 = vmatpush.msra.mxu0 %v5329
    %5399 = vmatpush.msra.mxu0 %v5328
    %5400 = vmatmul.f32.gmra.mxu0 %v219
    %v5401 = vpop.f32.mrf.mxu0
    %v5402 = vadd.f32 %v5354, %v5401
    %5403 = vmatmul.f32.gmra.mxu0 %v222
    %v5404 = vpop.f32.mrf.mxu0
    %v5405 = vadd.f32 %v5355, %v5404
    %5406 = vmatmul.f32.gmra.mxu0 %v225
    %v5407 = vpop.f32.mrf.mxu0
    %v5408 = vadd.f32 %v5356, %v5407
    %5409 = vmatmul.f32.gmra.mxu0 %v228
    %v5410 = vpop.f32.mrf.mxu0
    %v5411 = vadd.f32 %v5357, %v5410
    %5412 = vdwg.mxu0
    %5413 = vmatpush.msra.mxu0 0.0
    %5414 = vmatpush.msra.mxu0 0.0
    %5415 = vmatpush.msra.mxu0 0.0
    %5416 = vmatpush.msra.mxu0 0.0
    %5417 = vmatpush.msra.mxu0 0.0
    %5418 = vmatpush.msra.mxu0 0.0
    %5419 = vmatpush.msra.mxu0 0.0
    %5420 = vmatpush.msra.mxu0 0.0
    %5421 = vmatpush.msra.mxu0 0.0
    %5422 = vmatpush.msra.mxu0 0.0
    %5423 = vmatpush.msra.mxu0 0.0
    %5424 = vmatpush.msra.mxu0 0.0
    %5425 = vmatpush.msra.mxu0 %v5383
    %5426 = vmatpush.msra.mxu0 %v5382
    %5427 = vmatpush.msra.mxu0 %v5381
    %5428 = vmatpush.msra.mxu0 %v5380
    %5429 = vmatmul.f32.gmra.mxu0 %v260
    %v5430 = vpop.f32.mrf.mxu0
    %v5431 = vadd.f32 0.0, %v5430
    %5432 = vmatmul.f32.gmra.mxu0 %v263
    %v5433 = vpop.f32.mrf.mxu0
    %v5434 = vadd.f32 0.0, %v5433
    %5435 = vmatmul.f32.gmra.mxu0 %v266
    %v5436 = vpop.f32.mrf.mxu0
    %v5437 = vadd.f32 0.0, %v5436
    %5438 = vmatmul.f32.gmra.mxu0 %v269
    %v5439 = vpop.f32.mrf.mxu0
    %v5440 = vadd.f32 0.0, %v5439
    %5441 = vdwg.mxu0
    %v5442 = vadd.f32 %v5402, %v5431
    %v5443 = vadd.f32 %v5405, %v5434
    %v5444 = vadd.f32 %v5408, %v5437
    %v5445 = vadd.f32 %v5411, %v5440
    %v5446 = vmul.f32 %v5442, %v109
    %v5447 = vmul.f32 %v5443, %v109
    %v5448 = vmul.f32 %v5444, %v109
    %v5449 = vmul.f32 %v5445, %v109
    %v5450 = vadd.f32 %v5446, %v5447
    %v5451 = vadd.f32 %v5450, %v5448
    %v5452 = vadd.f32 %v5451, %v5449
    %5453 = vadd.xlane.f32.xlu0 %v5452
    %v5454 = vpop.xlane.xlu0 %5453
    %v5455 = vrot.slane %v5454, 4
    %v5456 = vadd.f32 %v5454, %v5455
    %v5457 = vrot.slane %v5456, 2
    %v5458 = vadd.f32 %v5456, %v5457
    %v5459 = vrot.slane %v5458, 1
    %v5460 = vadd.f32 %v5458, %v5459
    %s5461 = vtos %v5460
    %v5462 = vmul.f32 %v5446, %v5446
    %v5463 = vmul.f32 %v5447, %v5447
    %v5464 = vmul.f32 %v5448, %v5448
    %v5465 = vmul.f32 %v5449, %v5449
    %v5466 = vadd.f32 %v5462, %v5463
    %v5467 = vadd.f32 %v5466, %v5464
    %v5468 = vadd.f32 %v5467, %v5465
    %5469 = vadd.xlane.f32.xlu0 %v5468
    %v5470 = vpop.xlane.xlu0 %5469
    %v5471 = vrot.slane %v5470, 4
    %v5472 = vadd.f32 %v5470, %v5471
    %v5473 = vrot.slane %v5472, 2
    %v5474 = vadd.f32 %v5472, %v5473
    %v5475 = vrot.slane %v5474, 1
    %v5476 = vadd.f32 %v5474, %v5475
    %s5477 = vtos %v5476
    %s5478 = smul.f32 %s5461, 0.001953125
    %s5479 = smul.f32 %s5477, 0.001953125
    %s5480 = smul.f32 %s5478, %s5478
    %s5481 = ssub.f32 %s5479, %s5480
    %s5482 = smax.f32 %s5481, 0.0
    %s5483 = sld [smem:[#allocation9 + $0x16]]
    %s5484 = sadd.f32 %s5482, 1e-05
    %v5485 = vstv %s5484
    %v5486 = vrsqrt.pop %v5485
    %v5487 = vmul.f32 %v5486, %v5485
    %v5488 = vmul.f32 %v5487, %v5486
    %v5489 = vmul.f32 0.5, %v5488
    %v5490 = vsub.f32 1.5, %v5489
    %v5491 = vmul.f32 %v5486, %v5490
    %vm5492 = vweird.f32 %v5485
    %vm5493 = vweird.f32 %v5486
    %vm5494 = vmor %vm5492, %vm5493
    %v5495 = vsel %vm5494, %v5486, %v5491
    %s5496 = vtos %v5495
    %s5497 = smul.f32 %s5483, %s5496
    %s5498 = sld [smem:[#allocation10 + $0x16]]
    %s5499 = smul.f32 %s5478, %s5497
    %s5500 = ssub.f32 %s5498, %s5499
    %v5501 = vstv %s5497
    %v5502 = vmul.f32 %v5446, %v5501
    %v5503 = vmul.f32 %v5447, %v5501
    %v5504 = vmul.f32 %v5448, %v5501
    %v5505 = vmul.f32 %v5449, %v5501
    %v5506 = vstv %s5500
    %v5507 = vmul.f32 %v5506, %v109
    %v5508 = vadd.f32 %v5502, %v5507
    %v5509 = vadd.f32 %v5503, %v5507
    %v5510 = vadd.f32 %v5504, %v5507
    %v5511 = vadd.f32 %v5505, %v5507
    %v5512 = vmax.f32 %v5508, 0.0
    %v5513 = vmax.f32 %v5509, 0.0
    %v5514 = vmax.f32 %v5510, 0.0
    %v5515 = vmax.f32 %v5511, 0.0
    %5516 = vrot.lane.b32.xlu0 %v5512, 1
    %v5517 = vpop.permute.xlu0 %5516
    %5518 = vrot.lane.b32.xlu0 %v5513, 1
    %v5519 = vpop.permute.xlu0 %5518
    %5520 = vrot.lane.b32.xlu0 %v5514, 1
    %v5521 = vpop.permute.xlu0 %5520
    %5522 = vrot.lane.b32.xlu0 %v5515, 1
    %v5523 = vpop.permute.xlu0 %5522
    %5524 = vrot.lane.b32.xlu0 %v5512, 127
    %v5525 = vpop.permute.xlu0 %5524
    %5526 = vrot.lane.b32.xlu0 %v5513, 127
    %v5527 = vpop.permute.xlu0 %5526
    %5528 = vrot.lane.b32.xlu0 %v5514, 127
    %v5529 = vpop.permute.xlu0 %5528
    %5530 = vrot.lane.b32.xlu0 %v5515, 127
    %v5531 = vpop.permute.xlu0 %5530
    %s5532 = sld [smem:[#allocation2 + $0xd8]]
    %v5533 = vstv %s5532
    %v5534 = vmul.f32 %v5533, %v5517
    %v5535 = vmul.f32 %v5533, %v5519
    %v5536 = vmul.f32 %v5533, %v5521
    %v5537 = vmul.f32 %v5533, %v5523
    %s5538 = sld [smem:[#allocation2 + $0xd9]]
    %v5539 = vstv %s5538
    %v5540 = vmul.f32 %v5539, %v5512
    %v5541 = vmul.f32 %v5539, %v5513
    %v5542 = vmul.f32 %v5539, %v5514
    %v5543 = vmul.f32 %v5539, %v5515
    %v5544 = vadd.f32 %v5534, %v5540
    %v5545 = vadd.f32 %v5535, %v5541
    %v5546 = vadd.f32 %v5536, %v5542
    %v5547 = vadd.f32 %v5537, %v5543
    %s5548 = sld [smem:[#allocation2 + $0xda]]
    %v5549 = vstv %s5548
    %v5550 = vmul.f32 %v5549, %v5525
    %v5551 = vmul.f32 %v5549, %v5527
    %v5552 = vmul.f32 %v5549, %v5529
    %v5553 = vmul.f32 %v5549, %v5531
    %v5554 = vadd.f32 %v5544, %v5550
    %v5555 = vadd.f32 %v5545, %v5551
    %v5556 = vadd.f32 %v5546, %v5552
    %v5557 = vadd.f32 %v5547, %v5553
    %s5558 = sld [smem:[#allocation2 + $0xdb]]
    %v5559 = vstv %s5558
    %v5560 = vmul.f32 %v5559, %v5517
    %v5561 = vmul.f32 %v5559, %v5519
    %v5562 = vmul.f32 %v5559, %v5521
    %v5563 = vmul.f32 %v5559, %v5523
    %s5564 = sld [smem:[#allocation2 + $0xdc]]
    %v5565 = vstv %s5564
    %v5566 = vmul.f32 %v5565, %v5512
    %v5567 = vmul.f32 %v5565, %v5513
    %v5568 = vmul.f32 %v5565, %v5514
    %v5569 = vmul.f32 %v5565, %v5515
    %v5570 = vadd.f32 %v5560, %v5566
    %v5571 = vadd.f32 %v5561, %v5567
    %v5572 = vadd.f32 %v5562, %v5568
    %v5573 = vadd.f32 %v5563, %v5569
    %s5574 = sld [smem:[#allocation2 + $0xdd]]
    %v5575 = vstv %s5574
    %v5576 = vmul.f32 %v5575, %v5525
    %v5577 = vmul.f32 %v5575, %v5527
    %v5578 = vmul.f32 %v5575, %v5529
    %v5579 = vmul.f32 %v5575, %v5531
    %v5580 = vadd.f32 %v5570, %v5576
    %v5581 = vadd.f32 %v5571, %v5577
    %v5582 = vadd.f32 %v5572, %v5578
    %v5583 = vadd.f32 %v5573, %v5579
    %s5584 = sld [smem:[#allocation2 + $0xde]]
    %v5585 = vstv %s5584
    %v5586 = vmul.f32 %v5585, %v5517
    %v5587 = vmul.f32 %v5585, %v5519
    %v5588 = vmul.f32 %v5585, %v5521
    %v5589 = vmul.f32 %v5585, %v5523
    %s5590 = sld [smem:[#allocation2 + $0xdf]]
    %v5591 = vstv %s5590
    %v5592 = vmul.f32 %v5591, %v5512
    %v5593 = vmul.f32 %v5591, %v5513
    %v5594 = vmul.f32 %v5591, %v5514
    %v5595 = vmul.f32 %v5591, %v5515
    %v5596 = vadd.f32 %v5586, %v5592
    %v5597 = vadd.f32 %v5587, %v5593
    %v5598 = vadd.f32 %v5588, %v5594
    %v5599 = vadd.f32 %v5589, %v5595
    %s5600 = sld [smem:[#allocation2 + $0xe0]]
    %v5601 = vstv %s5600
    %v5602 = vmul.f32 %v5601, %v5525
    %v5603 = vmul.f32 %v5601, %v5527
    %v5604 = vmul.f32 %v5601, %v5529
    %v5605 = vmul.f32 %v5601, %v5531
    %v5606 = vadd.f32 %v5596, %v5602
    %v5607 = vadd.f32 %v5597, %v5603
    %v5608 = vadd.f32 %v5598, %v5604
    %v5609 = vadd.f32 %v5599, %v5605
    %5610 = vmatpush.msra.mxu0 0.0
    %5611 = vmatpush.msra.mxu0 0.0
    %5612 = vmatpush.msra.mxu0 0.0
    %5613 = vmatpush.msra.mxu0 0.0
    %5614 = vmatpush.msra.mxu0 0.0
    %5615 = vmatpush.msra.mxu0 0.0
    %5616 = vmatpush.msra.mxu0 0.0
    %5617 = vmatpush.msra.mxu0 0.0
    %5618 = vmatpush.msra.mxu0 0.0
    %5619 = vmatpush.msra.mxu0 0.0
    %5620 = vmatpush.msra.mxu0 0.0
    %5621 = vmatpush.msra.mxu0 0.0
    %5622 = vmatpush.msra.mxu0 %v5557
    %5623 = vmatpush.msra.mxu0 %v5556
    %5624 = vmatpush.msra.mxu0 %v5555
    %5625 = vmatpush.msra.mxu0 %v5554
    %5626 = vmatmul.f32.gmra.mxu0 %v219
    %v5627 = vpop.f32.mrf.mxu0
    %v5628 = vadd.f32 %v5580, %v5627
    %5629 = vmatmul.f32.gmra.mxu0 %v222
    %v5630 = vpop.f32.mrf.mxu0
    %v5631 = vadd.f32 %v5581, %v5630
    %5632 = vmatmul.f32.gmra.mxu0 %v225
    %v5633 = vpop.f32.mrf.mxu0
    %v5634 = vadd.f32 %v5582, %v5633
    %5635 = vmatmul.f32.gmra.mxu0 %v228
    %v5636 = vpop.f32.mrf.mxu0
    %v5637 = vadd.f32 %v5583, %v5636
    %5638 = vdwg.mxu0
    %5639 = vmatpush.msra.mxu0 0.0
    %5640 = vmatpush.msra.mxu0 0.0
    %5641 = vmatpush.msra.mxu0 0.0
    %5642 = vmatpush.msra.mxu0 0.0
    %5643 = vmatpush.msra.mxu0 0.0
    %5644 = vmatpush.msra.mxu0 0.0
    %5645 = vmatpush.msra.mxu0 0.0
    %5646 = vmatpush.msra.mxu0 0.0
    %5647 = vmatpush.msra.mxu0 0.0
    %5648 = vmatpush.msra.mxu0 0.0
    %5649 = vmatpush.msra.mxu0 0.0
    %5650 = vmatpush.msra.mxu0 0.0
    %5651 = vmatpush.msra.mxu0 %v5609
    %5652 = vmatpush.msra.mxu0 %v5608
    %5653 = vmatpush.msra.mxu0 %v5607
    %5654 = vmatpush.msra.mxu0 %v5606
    %5655 = vmatmul.f32.gmra.mxu0 %v260
    %v5656 = vpop.f32.mrf.mxu0
    %v5657 = vadd.f32 0.0, %v5656
    %5658 = vmatmul.f32.gmra.mxu0 %v263
    %v5659 = vpop.f32.mrf.mxu0
    %v5660 = vadd.f32 0.0, %v5659
    %5661 = vmatmul.f32.gmra.mxu0 %v266
    %v5662 = vpop.f32.mrf.mxu0
    %v5663 = vadd.f32 0.0, %v5662
    %5664 = vmatmul.f32.gmra.mxu0 %v269
    %v5665 = vpop.f32.mrf.mxu0
    %v5666 = vadd.f32 0.0, %v5665
    %5667 = vdwg.mxu0
    %v5668 = vadd.f32 %v5628, %v5657
    %v5669 = vadd.f32 %v5631, %v5660
    %v5670 = vadd.f32 %v5634, %v5663
    %v5671 = vadd.f32 %v5637, %v5666
    %v5672 = vmul.f32 %v5668, %v109
    %v5673 = vmul.f32 %v5669, %v109
    %v5674 = vmul.f32 %v5670, %v109
    %v5675 = vmul.f32 %v5671, %v109
    %v5676 = vadd.f32 %v5672, %v5673
    %v5677 = vadd.f32 %v5676, %v5674
    %v5678 = vadd.f32 %v5677, %v5675
    %5679 = vadd.xlane.f32.xlu0 %v5678
    %v5680 = vpop.xlane.xlu0 %5679
    %v5681 = vrot.slane %v5680, 4
    %v5682 = vadd.f32 %v5680, %v5681
    %v5683 = vrot.slane %v5682, 2
    %v5684 = vadd.f32 %v5682, %v5683
    %v5685 = vrot.slane %v5684, 1
    %v5686 = vadd.f32 %v5684, %v5685
    %s5687 = vtos %v5686
    %v5688 = vmul.f32 %v5672, %v5672
    %v5689 = vmul.f32 %v5673, %v5673
    %v5690 = vmul.f32 %v5674, %v5674
    %v5691 = vmul.f32 %v5675, %v5675
    %v5692 = vadd.f32 %v5688, %v5689
    %v5693 = vadd.f32 %v5692, %v5690
    %v5694 = vadd.f32 %v5693, %v5691
    %5695 = vadd.xlane.f32.xlu0 %v5694
    %v5696 = vpop.xlane.xlu0 %5695
    %v5697 = vrot.slane %v5696, 4
    %v5698 = vadd.f32 %v5696, %v5697
    %v5699 = vrot.slane %v5698, 2
    %v5700 = vadd.f32 %v5698, %v5699
    %v5701 = vrot.slane %v5700, 1
    %v5702 = vadd.f32 %v5700, %v5701
    %s5703 = vtos %v5702
    %s5704 = smul.f32 %s5687, 0.001953125
    %s5705 = smul.f32 %s5703, 0.001953125
    %s5706 = smul.f32 %s5704, %s5704
    %s5707 = ssub.f32 %s5705, %s5706
    %s5708 = smax.f32 %s5707, 0.0
    %s5709 = sld [smem:[#allocation9 + $0x17]]
    %s5710 = sadd.f32 %s5708, 1e-05
    %v5711 = vstv %s5710
    %v5712 = vrsqrt.pop %v5711
    %v5713 = vmul.f32 %v5712, %v5711
    %v5714 = vmul.f32 %v5713, %v5712
    %v5715 = vmul.f32 0.5, %v5714
    %v5716 = vsub.f32 1.5, %v5715
    %v5717 = vmul.f32 %v5712, %v5716
    %vm5718 = vweird.f32 %v5711
    %vm5719 = vweird.f32 %v5712
    %vm5720 = vmor %vm5718, %vm5719
    %v5721 = vsel %vm5720, %v5712, %v5717
    %s5722 = vtos %v5721
    %s5723 = smul.f32 %s5709, %s5722
    %s5724 = sld [smem:[#allocation10 + $0x17]]
    %s5725 = smul.f32 %s5704, %s5723
    %s5726 = ssub.f32 %s5724, %s5725
    %v5727 = vstv %s5723
    %v5728 = vmul.f32 %v5672, %v5727
    %v5729 = vmul.f32 %v5673, %v5727
    %v5730 = vmul.f32 %v5674, %v5727
    %v5731 = vmul.f32 %v5675, %v5727
    %v5732 = vstv %s5726
    %v5733 = vmul.f32 %v5732, %v109
    %v5734 = vadd.f32 %v5728, %v5733
    %v5735 = vadd.f32 %v5729, %v5733
    %v5736 = vadd.f32 %v5730, %v5733
    %v5737 = vadd.f32 %v5731, %v5733
    %v5738 = vadd.f32 %v5286, %v5734
    %v5739 = vadd.f32 %v5287, %v5735
    %v5740 = vadd.f32 %v5288, %v5736
    %v5741 = vadd.f32 %v5289, %v5737
    %5742 = vrot.lane.b32.xlu0 %v5738, 1
    %v5743 = vpop.permute.xlu0 %5742
    %5744 = vrot.lane.b32.xlu0 %v5739, 1
    %v5745 = vpop.permute.xlu0 %5744
    %5746 = vrot.lane.b32.xlu0 %v5740, 1
    %v5747 = vpop.permute.xlu0 %5746
    %5748 = vrot.lane.b32.xlu0 %v5741, 1
    %v5749 = vpop.permute.xlu0 %5748
    %5750 = vrot.lane.b32.xlu0 %v5738, 127
    %v5751 = vpop.permute.xlu0 %5750
    %5752 = vrot.lane.b32.xlu0 %v5739, 127
    %v5753 = vpop.permute.xlu0 %5752
    %5754 = vrot.lane.b32.xlu0 %v5740, 127
    %v5755 = vpop.permute.xlu0 %5754
    %5756 = vrot.lane.b32.xlu0 %v5741, 127
    %v5757 = vpop.permute.xlu0 %5756
    %s5758 = sld [smem:[#allocation2 + $0xe1]]
    %v5759 = vstv %s5758
    %v5760 = vmul.f32 %v5759, %v5743
    %v5761 = vmul.f32 %v5759, %v5745
    %v5762 = vmul.f32 %v5759, %v5747
    %v5763 = vmul.f32 %v5759, %v5749
    %s5764 = sld [smem:[#allocation2 + $0xe2]]
    %v5765 = vstv %s5764
    %v5766 = vmul.f32 %v5765, %v5738
    %v5767 = vmul.f32 %v5765, %v5739
    %v5768 = vmul.f32 %v5765, %v5740
    %v5769 = vmul.f32 %v5765, %v5741
    %v5770 = vadd.f32 %v5760, %v5766
    %v5771 = vadd.f32 %v5761, %v5767
    %v5772 = vadd.f32 %v5762, %v5768
    %v5773 = vadd.f32 %v5763, %v5769
    %s5774 = sld [smem:[#allocation2 + $0xe3]]
    %v5775 = vstv %s5774
    %v5776 = vmul.f32 %v5775, %v5751
    %v5777 = vmul.f32 %v5775, %v5753
    %v5778 = vmul.f32 %v5775, %v5755
    %v5779 = vmul.f32 %v5775, %v5757
    %v5780 = vadd.f32 %v5770, %v5776
    %v5781 = vadd.f32 %v5771, %v5777
    %v5782 = vadd.f32 %v5772, %v5778
    %v5783 = vadd.f32 %v5773, %v5779
    %s5784 = sld [smem:[#allocation2 + $0xe4]]
    %v5785 = vstv %s5784
    %v5786 = vmul.f32 %v5785, %v5743
    %v5787 = vmul.f32 %v5785, %v5745
    %v5788 = vmul.f32 %v5785, %v5747
    %v5789 = vmul.f32 %v5785, %v5749
    %s5790 = sld [smem:[#allocation2 + $0xe5]]
    %v5791 = vstv %s5790
    %v5792 = vmul.f32 %v5791, %v5738
    %v5793 = vmul.f32 %v5791, %v5739
    %v5794 = vmul.f32 %v5791, %v5740
    %v5795 = vmul.f32 %v5791, %v5741
    %v5796 = vadd.f32 %v5786, %v5792
    %v5797 = vadd.f32 %v5787, %v5793
    %v5798 = vadd.f32 %v5788, %v5794
    %v5799 = vadd.f32 %v5789, %v5795
    %s5800 = sld [smem:[#allocation2 + $0xe6]]
    %v5801 = vstv %s5800
    %v5802 = vmul.f32 %v5801, %v5751
    %v5803 = vmul.f32 %v5801, %v5753
    %v5804 = vmul.f32 %v5801, %v5755
    %v5805 = vmul.f32 %v5801, %v5757
    %v5806 = vadd.f32 %v5796, %v5802
    %v5807 = vadd.f32 %v5797, %v5803
    %v5808 = vadd.f32 %v5798, %v5804
    %v5809 = vadd.f32 %v5799, %v5805
    %s5810 = sld [smem:[#allocation2 + $0xe7]]
    %v5811 = vstv %s5810
    %v5812 = vmul.f32 %v5811, %v5743
    %v5813 = vmul.f32 %v5811, %v5745
    %v5814 = vmul.f32 %v5811, %v5747
    %v5815 = vmul.f32 %v5811, %v5749
    %s5816 = sld [smem:[#allocation2 + $0xe8]]
    %v5817 = vstv %s5816
    %v5818 = vmul.f32 %v5817, %v5738
    %v5819 = vmul.f32 %v5817, %v5739
    %v5820 = vmul.f32 %v5817, %v5740
    %v5821 = vmul.f32 %v5817, %v5741
    %v5822 = vadd.f32 %v5812, %v5818
    %v5823 = vadd.f32 %v5813, %v5819
    %v5824 = vadd.f32 %v5814, %v5820
    %v5825 = vadd.f32 %v5815, %v5821
    %s5826 = sld [smem:[#allocation2 + $0xe9]]
    %v5827 = vstv %s5826
    %v5828 = vmul.f32 %v5827, %v5751
    %v5829 = vmul.f32 %v5827, %v5753
    %v5830 = vmul.f32 %v5827, %v5755
    %v5831 = vmul.f32 %v5827, %v5757
    %v5832 = vadd.f32 %v5822, %v5828
    %v5833 = vadd.f32 %v5823, %v5829
    %v5834 = vadd.f32 %v5824, %v5830
    %v5835 = vadd.f32 %v5825, %v5831
    %5836 = vmatpush.msra.mxu0 0.0
    %5837 = vmatpush.msra.mxu0 0.0
    %5838 = vmatpush.msra.mxu0 0.0
    %5839 = vmatpush.msra.mxu0 0.0
    %5840 = vmatpush.msra.mxu0 0.0
    %5841 = vmatpush.msra.mxu0 0.0
    %5842 = vmatpush.msra.mxu0 0.0
    %5843 = vmatpush.msra.mxu0 0.0
    %5844 = vmatpush.msra.mxu0 0.0
    %5845 = vmatpush.msra.mxu0 0.0
    %5846 = vmatpush.msra.mxu0 0.0
    %5847 = vmatpush.msra.mxu0 0.0
    %5848 = vmatpush.msra.mxu0 %v5783
    %5849 = vmatpush.msra.mxu0 %v5782
    %5850 = vmatpush.msra.mxu0 %v5781
    %5851 = vmatpush.msra.mxu0 %v5780
    %5852 = vmatmul.f32.gmra.mxu0 %v219
    %v5853 = vpop.f32.mrf.mxu0
    %v5854 = vadd.f32 %v5806, %v5853
    %5855 = vmatmul.f32.gmra.mxu0 %v222
    %v5856 = vpop.f32.mrf.mxu0
    %v5857 = vadd.f32 %v5807, %v5856
    %5858 = vmatmul.f32.gmra.mxu0 %v225
    %v5859 = vpop.f32.mrf.mxu0
    %v5860 = vadd.f32 %v5808, %v5859
    %5861 = vmatmul.f32.gmra.mxu0 %v228
    %v5862 = vpop.f32.mrf.mxu0
    %v5863 = vadd.f32 %v5809, %v5862
    %5864 = vdwg.mxu0
    %5865 = vmatpush.msra.mxu0 0.0
    %5866 = vmatpush.msra.mxu0 0.0
    %5867 = vmatpush.msra.mxu0 0.0
    %5868 = vmatpush.msra.mxu0 0.0
    %5869 = vmatpush.msra.mxu0 0.0
    %5870 = vmatpush.msra.mxu0 0.0
    %5871 = vmatpush.msra.mxu0 0.0
    %5872 = vmatpush.msra.mxu0 0.0
    %5873 = vmatpush.msra.mxu0 0.0
    %5874 = vmatpush.msra.mxu0 0.0
    %5875 = vmatpush.msra.mxu0 0.0
    %5876 = vmatpush.msra.mxu0 0.0
    %5877 = vmatpush.msra.mxu0 %v5835
    %5878 = vmatpush.msra.mxu0 %v5834
    %5879 = vmatpush.msra.mxu0 %v5833
    %5880 = vmatpush.msra.mxu0 %v5832
    %5881 = vmatmul.f32.gmra.mxu0 %v260
    %v5882 = vpop.f32.mrf.mxu0
    %v5883 = vadd.f32 0.0, %v5882
    %5884 = vmatmul.f32.gmra.mxu0 %v263
    %v5885 = vpop.f32.mrf.mxu0
    %v5886 = vadd.f32 0.0, %v5885
    %5887 = vmatmul.f32.gmra.mxu0 %v266
    %v5888 = vpop.f32.mrf.mxu0
    %v5889 = vadd.f32 0.0, %v5888
    %5890 = vmatmul.f32.gmra.mxu0 %v269
    %v5891 = vpop.f32.mrf.mxu0
    %v5892 = vadd.f32 0.0, %v5891
    %5893 = vdwg.mxu0
    %v5894 = vadd.f32 %v5854, %v5883
    %v5895 = vadd.f32 %v5857, %v5886
    %v5896 = vadd.f32 %v5860, %v5889
    %v5897 = vadd.f32 %v5863, %v5892
    %v5898 = vmul.f32 %v5894, %v109
    %v5899 = vmul.f32 %v5895, %v109
    %v5900 = vmul.f32 %v5896, %v109
    %v5901 = vmul.f32 %v5897, %v109
    %v5902 = vadd.f32 %v5898, %v5899
    %v5903 = vadd.f32 %v5902, %v5900
    %v5904 = vadd.f32 %v5903, %v5901
    %5905 = vadd.xlane.f32.xlu0 %v5904
    %v5906 = vpop.xlane.xlu0 %5905
    %v5907 = vrot.slane %v5906, 4
    %v5908 = vadd.f32 %v5906, %v5907
    %v5909 = vrot.slane %v5908, 2
    %v5910 = vadd.f32 %v5908, %v5909
    %v5911 = vrot.slane %v5910, 1
    %v5912 = vadd.f32 %v5910, %v5911
    %s5913 = vtos %v5912
    %v5914 = vmul.f32 %v5898, %v5898
    %v5915 = vmul.f32 %v5899, %v5899
    %v5916 = vmul.f32 %v5900, %v5900
    %v5917 = vmul.f32 %v5901, %v5901
    %v5918 = vadd.f32 %v5914, %v5915
    %v5919 = vadd.f32 %v5918, %v5916
    %v5920 = vadd.f32 %v5919, %v5917
    %5921 = vadd.xlane.f32.xlu0 %v5920
    %v5922 = vpop.xlane.xlu0 %5921
    %v5923 = vrot.slane %v5922, 4
    %v5924 = vadd.f32 %v5922, %v5923
    %v5925 = vrot.slane %v5924, 2
    %v5926 = vadd.f32 %v5924, %v5925
    %v5927 = vrot.slane %v5926, 1
    %v5928 = vadd.f32 %v5926, %v5927
    %s5929 = vtos %v5928
    %s5930 = smul.f32 %s5913, 0.001953125
    %s5931 = smul.f32 %s5929, 0.001953125
    %s5932 = smul.f32 %s5930, %s5930
    %s5933 = ssub.f32 %s5931, %s5932
    %s5934 = smax.f32 %s5933, 0.0
    %s5935 = sld [smem:[#allocation9 + $0x18]]
    %s5936 = sadd.f32 %s5934, 1e-05
    %v5937 = vstv %s5936
    %v5938 = vrsqrt.pop %v5937
    %v5939 = vmul.f32 %v5938, %v5937
    %v5940 = vmul.f32 %v5939, %v5938
    %v5941 = vmul.f32 0.5, %v5940
    %v5942 = vsub.f32 1.5, %v5941
    %v5943 = vmul.f32 %v5938, %v5942
    %vm5944 = vweird.f32 %v5937
    %vm5945 = vweird.f32 %v5938
    %vm5946 = vmor %vm5944, %vm5945
    %v5947 = vsel %vm5946, %v5938, %v5943
    %s5948 = vtos %v5947
    %s5949 = smul.f32 %s5935, %s5948
    %s5950 = sld [smem:[#allocation10 + $0x18]]
    %s5951 = smul.f32 %s5930, %s5949
    %s5952 = ssub.f32 %s5950, %s5951
    %v5953 = vstv %s5949
    %v5954 = vmul.f32 %v5898, %v5953
    %v5955 = vmul.f32 %v5899, %v5953
    %v5956 = vmul.f32 %v5900, %v5953
    %v5957 = vmul.f32 %v5901, %v5953
    %v5958 = vstv %s5952
    %v5959 = vmul.f32 %v5958, %v109
    %v5960 = vadd.f32 %v5954, %v5959
    %v5961 = vadd.f32 %v5955, %v5959
    %v5962 = vadd.f32 %v5956, %v5959
    %v5963 = vadd.f32 %v5957, %v5959
    %v5964 = vmax.f32 %v5960, 0.0
    %v5965 = vmax.f32 %v5961, 0.0
    %v5966 = vmax.f32 %v5962, 0.0
    %v5967 = vmax.f32 %v5963, 0.0
    %5968 = vrot.lane.b32.xlu0 %v5964, 1
    %v5969 = vpop.permute.xlu0 %5968
    %5970 = vrot.lane.b32.xlu0 %v5965, 1
    %v5971 = vpop.permute.xlu0 %5970
    %5972 = vrot.lane.b32.xlu0 %v5966, 1
    %v5973 = vpop.permute.xlu0 %5972
    %5974 = vrot.lane.b32.xlu0 %v5967, 1
    %v5975 = vpop.permute.xlu0 %5974
    %5976 = vrot.lane.b32.xlu0 %v5964, 127
    %v5977 = vpop.permute.xlu0 %5976
    %5978 = vrot.lane.b32.xlu0 %v5965, 127
    %v5979 = vpop.permute.xlu0 %5978
    %5980 = vrot.lane.b32.xlu0 %v5966, 127
    %v5981 = vpop.permute.xlu0 %5980
    %5982 = vrot.lane.b32.xlu0 %v5967, 127
    %v5983 = vpop.permute.xlu0 %5982
    %s5984 = sld [smem:[#allocation2 + $0xea]]
    %v5985 = vstv %s5984
    %v5986 = vmul.f32 %v5985, %v5969
    %v5987 = vmul.f32 %v5985, %v5971
    %v5988 = vmul.f32 %v5985, %v5973
    %v5989 = vmul.f32 %v5985, %v5975
    %s5990 = sld [smem:[#allocation2 + $0xeb]]
    %v5991 = vstv %s5990
    %v5992 = vmul.f32 %v5991, %v5964
    %v5993 = vmul.f32 %v5991, %v5965
    %v5994 = vmul.f32 %v5991, %v5966
    %v5995 = vmul.f32 %v5991, %v5967
    %v5996 = vadd.f32 %v5986, %v5992
    %v5997 = vadd.f32 %v5987, %v5993
    %v5998 = vadd.f32 %v5988, %v5994
    %v5999 = vadd.f32 %v5989, %v5995
    %s6000 = sld [smem:[#allocation2 + $0xec]]
    %v6001 = vstv %s6000
    %v6002 = vmul.f32 %v6001, %v5977
    %v6003 = vmul.f32 %v6001, %v5979
    %v6004 = vmul.f32 %v6001, %v5981
    %v6005 = vmul.f32 %v6001, %v5983
    %v6006 = vadd.f32 %v5996, %v6002
    %v6007 = vadd.f32 %v5997, %v6003
    %v6008 = vadd.f32 %v5998, %v6004
    %v6009 = vadd.f32 %v5999, %v6005
    %s6010 = sld [smem:[#allocation2 + $0xed]]
    %v6011 = vstv %s6010
    %v6012 = vmul.f32 %v6011, %v5969
    %v6013 = vmul.f32 %v6011, %v5971
    %v6014 = vmul.f32 %v6011, %v5973
    %v6015 = vmul.f32 %v6011, %v5975
    %s6016 = sld [smem:[#allocation2 + $0xee]]
    %v6017 = vstv %s6016
    %v6018 = vmul.f32 %v6017, %v5964
    %v6019 = vmul.f32 %v6017, %v5965
    %v6020 = vmul.f32 %v6017, %v5966
    %v6021 = vmul.f32 %v6017, %v5967
    %v6022 = vadd.f32 %v6012, %v6018
    %v6023 = vadd.f32 %v6013, %v6019
    %v6024 = vadd.f32 %v6014, %v6020
    %v6025 = vadd.f32 %v6015, %v6021
    %s6026 = sld [smem:[#allocation2 + $0xef]]
    %v6027 = vstv %s6026
    %v6028 = vmul.f32 %v6027, %v5977
    %v6029 = vmul.f32 %v6027, %v5979
    %v6030 = vmul.f32 %v6027, %v5981
    %v6031 = vmul.f32 %v6027, %v5983
    %v6032 = vadd.f32 %v6022, %v6028
    %v6033 = vadd.f32 %v6023, %v6029
    %v6034 = vadd.f32 %v6024, %v6030
    %v6035 = vadd.f32 %v6025, %v6031
    %s6036 = sld [smem:[#allocation2 + $0xf0]]
    %v6037 = vstv %s6036
    %v6038 = vmul.f32 %v6037, %v5969
    %v6039 = vmul.f32 %v6037, %v5971
    %v6040 = vmul.f32 %v6037, %v5973
    %v6041 = vmul.f32 %v6037, %v5975
    %s6042 = sld [smem:[#allocation2 + $0xf1]]
    %v6043 = vstv %s6042
    %v6044 = vmul.f32 %v6043, %v5964
    %v6045 = vmul.f32 %v6043, %v5965
    %v6046 = vmul.f32 %v6043, %v5966
    %v6047 = vmul.f32 %v6043, %v5967
    %v6048 = vadd.f32 %v6038, %v6044
    %v6049 = vadd.f32 %v6039, %v6045
    %v6050 = vadd.f32 %v6040, %v6046
    %v6051 = vadd.f32 %v6041, %v6047
    %s6052 = sld [smem:[#allocation2 + $0xf2]]
    %v6053 = vstv %s6052
    %v6054 = vmul.f32 %v6053, %v5977
    %v6055 = vmul.f32 %v6053, %v5979
    %v6056 = vmul.f32 %v6053, %v5981
    %v6057 = vmul.f32 %v6053, %v5983
    %v6058 = vadd.f32 %v6048, %v6054
    %v6059 = vadd.f32 %v6049, %v6055
    %v6060 = vadd.f32 %v6050, %v6056
    %v6061 = vadd.f32 %v6051, %v6057
    %6062 = vmatpush.msra.mxu0 0.0
    %6063 = vmatpush.msra.mxu0 0.0
    %6064 = vmatpush.msra.mxu0 0.0
    %6065 = vmatpush.msra.mxu0 0.0
    %6066 = vmatpush.msra.mxu0 0.0
    %6067 = vmatpush.msra.mxu0 0.0
    %6068 = vmatpush.msra.mxu0 0.0
    %6069 = vmatpush.msra.mxu0 0.0
    %6070 = vmatpush.msra.mxu0 0.0
    %6071 = vmatpush.msra.mxu0 0.0
    %6072 = vmatpush.msra.mxu0 0.0
    %6073 = vmatpush.msra.mxu0 0.0
    %6074 = vmatpush.msra.mxu0 %v6009
    %6075 = vmatpush.msra.mxu0 %v6008
    %6076 = vmatpush.msra.mxu0 %v6007
    %6077 = vmatpush.msra.mxu0 %v6006
    %6078 = vmatmul.f32.gmra.mxu0 %v219
    %v6079 = vpop.f32.mrf.mxu0
    %v6080 = vadd.f32 %v6032, %v6079
    %6081 = vmatmul.f32.gmra.mxu0 %v222
    %v6082 = vpop.f32.mrf.mxu0
    %v6083 = vadd.f32 %v6033, %v6082
    %6084 = vmatmul.f32.gmra.mxu0 %v225
    %v6085 = vpop.f32.mrf.mxu0
    %v6086 = vadd.f32 %v6034, %v6085
    %6087 = vmatmul.f32.gmra.mxu0 %v228
    %v6088 = vpop.f32.mrf.mxu0
    %v6089 = vadd.f32 %v6035, %v6088
    %6090 = vdwg.mxu0
    %6091 = vmatpush.msra.mxu0 0.0
    %6092 = vmatpush.msra.mxu0 0.0
    %6093 = vmatpush.msra.mxu0 0.0
    %6094 = vmatpush.msra.mxu0 0.0
    %6095 = vmatpush.msra.mxu0 0.0
    %6096 = vmatpush.msra.mxu0 0.0
    %6097 = vmatpush.msra.mxu0 0.0
    %6098 = vmatpush.msra.mxu0 0.0
    %6099 = vmatpush.msra.mxu0 0.0
    %6100 = vmatpush.msra.mxu0 0.0
    %6101 = vmatpush.msra.mxu0 0.0
    %6102 = vmatpush.msra.mxu0 0.0
    %6103 = vmatpush.msra.mxu0 %v6061
    %6104 = vmatpush.msra.mxu0 %v6060
    %6105 = vmatpush.msra.mxu0 %v6059
    %6106 = vmatpush.msra.mxu0 %v6058
    %6107 = vmatmul.f32.gmra.mxu0 %v260
    %v6108 = vpop.f32.mrf.mxu0
    %v6109 = vadd.f32 0.0, %v6108
    %6110 = vmatmul.f32.gmra.mxu0 %v263
    %v6111 = vpop.f32.mrf.mxu0
    %v6112 = vadd.f32 0.0, %v6111
    %6113 = vmatmul.f32.gmra.mxu0 %v266
    %v6114 = vpop.f32.mrf.mxu0
    %v6115 = vadd.f32 0.0, %v6114
    %6116 = vmatmul.f32.gmra.mxu0 %v269
    %v6117 = vpop.f32.mrf.mxu0
    %v6118 = vadd.f32 0.0, %v6117
    %6119 = vdwg.mxu0
    %v6120 = vadd.f32 %v6080, %v6109
    %v6121 = vadd.f32 %v6083, %v6112
    %v6122 = vadd.f32 %v6086, %v6115
    %v6123 = vadd.f32 %v6089, %v6118
    %v6124 = vmul.f32 %v6120, %v109
    %v6125 = vmul.f32 %v6121, %v109
    %v6126 = vmul.f32 %v6122, %v109
    %v6127 = vmul.f32 %v6123, %v109
    %v6128 = vadd.f32 %v6124, %v6125
    %v6129 = vadd.f32 %v6128, %v6126
    %v6130 = vadd.f32 %v6129, %v6127
    %6131 = vadd.xlane.f32.xlu0 %v6130
    %v6132 = vpop.xlane.xlu0 %6131
    %v6133 = vrot.slane %v6132, 4
    %v6134 = vadd.f32 %v6132, %v6133
    %v6135 = vrot.slane %v6134, 2
    %v6136 = vadd.f32 %v6134, %v6135
    %v6137 = vrot.slane %v6136, 1
    %v6138 = vadd.f32 %v6136, %v6137
    %s6139 = vtos %v6138
    %v6140 = vmul.f32 %v6124, %v6124
    %v6141 = vmul.f32 %v6125, %v6125
    %v6142 = vmul.f32 %v6126, %v6126
    %v6143 = vmul.f32 %v6127, %v6127
    %v6144 = vadd.f32 %v6140, %v6141
    %v6145 = vadd.f32 %v6144, %v6142
    %v6146 = vadd.f32 %v6145, %v6143
    %6147 = vadd.xlane.f32.xlu0 %v6146
    %v6148 = vpop.xlane.xlu0 %6147
    %v6149 = vrot.slane %v6148, 4
    %v6150 = vadd.f32 %v6148, %v6149
    %v6151 = vrot.slane %v6150, 2
    %v6152 = vadd.f32 %v6150, %v6151
    %v6153 = vrot.slane %v6152, 1
    %v6154 = vadd.f32 %v6152, %v6153
    %s6155 = vtos %v6154
    %s6156 = smul.f32 %s6139, 0.001953125
    %s6157 = smul.f32 %s6155, 0.001953125
    %s6158 = smul.f32 %s6156, %s6156
    %s6159 = ssub.f32 %s6157, %s6158
    %s6160 = smax.f32 %s6159, 0.0
    %s6161 = sld [smem:[#allocation9 + $0x19]]
    %s6162 = sadd.f32 %s6160, 1e-05
    %v6163 = vstv %s6162
    %v6164 = vrsqrt.pop %v6163
    %v6165 = vmul.f32 %v6164, %v6163
    %v6166 = vmul.f32 %v6165, %v6164
    %v6167 = vmul.f32 0.5, %v6166
    %v6168 = vsub.f32 1.5, %v6167
    %v6169 = vmul.f32 %v6164, %v6168
    %vm6170 = vweird.f32 %v6163
    %vm6171 = vweird.f32 %v6164
    %vm6172 = vmor %vm6170, %vm6171
    %v6173 = vsel %vm6172, %v6164, %v6169
    %s6174 = vtos %v6173
    %s6175 = smul.f32 %s6161, %s6174
    %s6176 = sld [smem:[#allocation10 + $0x19]]
    %s6177 = smul.f32 %s6156, %s6175
    %s6178 = ssub.f32 %s6176, %s6177
    %v6179 = vstv %s6175
    %v6180 = vmul.f32 %v6124, %v6179
    %v6181 = vmul.f32 %v6125, %v6179
    %v6182 = vmul.f32 %v6126, %v6179
    %v6183 = vmul.f32 %v6127, %v6179
    %v6184 = vstv %s6178
    %v6185 = vmul.f32 %v6184, %v109
    %v6186 = vadd.f32 %v6180, %v6185
    %v6187 = vadd.f32 %v6181, %v6185
    %v6188 = vadd.f32 %v6182, %v6185
    %v6189 = vadd.f32 %v6183, %v6185
    %v6190 = vadd.f32 %v5738, %v6186
    %v6191 = vadd.f32 %v5739, %v6187
    %v6192 = vadd.f32 %v5740, %v6188
    %v6193 = vadd.f32 %v5741, %v6189
    %6194 = vrot.lane.b32.xlu0 %v6190, 1
    %v6195 = vpop.permute.xlu0 %6194
    %6196 = vrot.lane.b32.xlu0 %v6191, 1
    %v6197 = vpop.permute.xlu0 %6196
    %6198 = vrot.lane.b32.xlu0 %v6192, 1
    %v6199 = vpop.permute.xlu0 %6198
    %6200 = vrot.lane.b32.xlu0 %v6193, 1
    %v6201 = vpop.permute.xlu0 %6200
    %6202 = vrot.lane.b32.xlu0 %v6190, 127
    %v6203 = vpop.permute.xlu0 %6202
    %6204 = vrot.lane.b32.xlu0 %v6191, 127
    %v6205 = vpop.permute.xlu0 %6204
    %6206 = vrot.lane.b32.xlu0 %v6192, 127
    %v6207 = vpop.permute.xlu0 %6206
    %6208 = vrot.lane.b32.xlu0 %v6193, 127
    %v6209 = vpop.permute.xlu0 %6208
    %s6210 = sld [smem:[#allocation2 + $0xf3]]
    %v6211 = vstv %s6210
    %v6212 = vmul.f32 %v6211, %v6195
    %v6213 = vmul.f32 %v6211, %v6197
    %v6214 = vmul.f32 %v6211, %v6199
    %v6215 = vmul.f32 %v6211, %v6201
    %s6216 = sld [smem:[#allocation2 + $0xf4]]
    %v6217 = vstv %s6216
    %v6218 = vmul.f32 %v6217, %v6190
    %v6219 = vmul.f32 %v6217, %v6191
    %v6220 = vmul.f32 %v6217, %v6192
    %v6221 = vmul.f32 %v6217, %v6193
    %v6222 = vadd.f32 %v6212, %v6218
    %v6223 = vadd.f32 %v6213, %v6219
    %v6224 = vadd.f32 %v6214, %v6220
    %v6225 = vadd.f32 %v6215, %v6221
    %s6226 = sld [smem:[#allocation2 + $0xf5]]
    %v6227 = vstv %s6226
    %v6228 = vmul.f32 %v6227, %v6203
    %v6229 = vmul.f32 %v6227, %v6205
    %v6230 = vmul.f32 %v6227, %v6207
    %v6231 = vmul.f32 %v6227, %v6209
    %v6232 = vadd.f32 %v6222, %v6228
    %v6233 = vadd.f32 %v6223, %v6229
    %v6234 = vadd.f32 %v6224, %v6230
    %v6235 = vadd.f32 %v6225, %v6231
    %s6236 = sld [smem:[#allocation2 + $0xf6]]
    %v6237 = vstv %s6236
    %v6238 = vmul.f32 %v6237, %v6195
    %v6239 = vmul.f32 %v6237, %v6197
    %v6240 = vmul.f32 %v6237, %v6199
    %v6241 = vmul.f32 %v6237, %v6201
    %s6242 = sld [smem:[#allocation2 + $0xf7]]
    %v6243 = vstv %s6242
    %v6244 = vmul.f32 %v6243, %v6190
    %v6245 = vmul.f32 %v6243, %v6191
    %v6246 = vmul.f32 %v6243, %v6192
    %v6247 = vmul.f32 %v6243, %v6193
    %v6248 = vadd.f32 %v6238, %v6244
    %v6249 = vadd.f32 %v6239, %v6245
    %v6250 = vadd.f32 %v6240, %v6246
    %v6251 = vadd.f32 %v6241, %v6247
    %s6252 = sld [smem:[#allocation2 + $0xf8]]
    %v6253 = vstv %s6252
    %v6254 = vmul.f32 %v6253, %v6203
    %v6255 = vmul.f32 %v6253, %v6205
    %v6256 = vmul.f32 %v6253, %v6207
    %v6257 = vmul.f32 %v6253, %v6209
    %v6258 = vadd.f32 %v6248, %v6254
    %v6259 = vadd.f32 %v6249, %v6255
    %v6260 = vadd.f32 %v6250, %v6256
    %v6261 = vadd.f32 %v6251, %v6257
    %s6262 = sld [smem:[#allocation2 + $0xf9]]
    %v6263 = vstv %s6262
    %v6264 = vmul.f32 %v6263, %v6195
    %v6265 = vmul.f32 %v6263, %v6197
    %v6266 = vmul.f32 %v6263, %v6199
    %v6267 = vmul.f32 %v6263, %v6201
    %s6268 = sld [smem:[#allocation2 + $0xfa]]
    %v6269 = vstv %s6268
    %v6270 = vmul.f32 %v6269, %v6190
    %v6271 = vmul.f32 %v6269, %v6191
    %v6272 = vmul.f32 %v6269, %v6192
    %v6273 = vmul.f32 %v6269, %v6193
    %v6274 = vadd.f32 %v6264, %v6270
    %v6275 = vadd.f32 %v6265, %v6271
    %v6276 = vadd.f32 %v6266, %v6272
    %v6277 = vadd.f32 %v6267, %v6273
    %s6278 = sld [smem:[#allocation2 + $0xfb]]
    %v6279 = vstv %s6278
    %v6280 = vmul.f32 %v6279, %v6203
    %v6281 = vmul.f32 %v6279, %v6205
    %v6282 = vmul.f32 %v6279, %v6207
    %v6283 = vmul.f32 %v6279, %v6209
    %v6284 = vadd.f32 %v6274, %v6280
    %v6285 = vadd.f32 %v6275, %v6281
    %v6286 = vadd.f32 %v6276, %v6282
    %v6287 = vadd.f32 %v6277, %v6283
    %6288 = vmatpush.msra.mxu0 0.0
    %6289 = vmatpush.msra.mxu0 0.0
    %6290 = vmatpush.msra.mxu0 0.0
    %6291 = vmatpush.msra.mxu0 0.0
    %6292 = vmatpush.msra.mxu0 0.0
    %6293 = vmatpush.msra.mxu0 0.0
    %6294 = vmatpush.msra.mxu0 0.0
    %6295 = vmatpush.msra.mxu0 0.0
    %6296 = vmatpush.msra.mxu0 0.0
    %6297 = vmatpush.msra.mxu0 0.0
    %6298 = vmatpush.msra.mxu0 0.0
    %6299 = vmatpush.msra.mxu0 0.0
    %6300 = vmatpush.msra.mxu0 %v6235
    %6301 = vmatpush.msra.mxu0 %v6234
    %6302 = vmatpush.msra.mxu0 %v6233
    %6303 = vmatpush.msra.mxu0 %v6232
    %6304 = vmatmul.f32.gmra.mxu0 %v219
    %v6305 = vpop.f32.mrf.mxu0
    %v6306 = vadd.f32 %v6258, %v6305
    %6307 = vmatmul.f32.gmra.mxu0 %v222
    %v6308 = vpop.f32.mrf.mxu0
    %v6309 = vadd.f32 %v6259, %v6308
    %6310 = vmatmul.f32.gmra.mxu0 %v225
    %v6311 = vpop.f32.mrf.mxu0
    %v6312 = vadd.f32 %v6260, %v6311
    %6313 = vmatmul.f32.gmra.mxu0 %v228
    %v6314 = vpop.f32.mrf.mxu0
    %v6315 = vadd.f32 %v6261, %v6314
    %6316 = vdwg.mxu0
    %6317 = vmatpush.msra.mxu0 0.0
    %6318 = vmatpush.msra.mxu0 0.0
    %6319 = vmatpush.msra.mxu0 0.0
    %6320 = vmatpush.msra.mxu0 0.0
    %6321 = vmatpush.msra.mxu0 0.0
    %6322 = vmatpush.msra.mxu0 0.0
    %6323 = vmatpush.msra.mxu0 0.0
    %6324 = vmatpush.msra.mxu0 0.0
    %6325 = vmatpush.msra.mxu0 0.0
    %6326 = vmatpush.msra.mxu0 0.0
    %6327 = vmatpush.msra.mxu0 0.0
    %6328 = vmatpush.msra.mxu0 0.0
    %6329 = vmatpush.msra.mxu0 %v6287
    %6330 = vmatpush.msra.mxu0 %v6286
    %6331 = vmatpush.msra.mxu0 %v6285
    %6332 = vmatpush.msra.mxu0 %v6284
    %6333 = vmatmul.f32.gmra.mxu0 %v260
    %v6334 = vpop.f32.mrf.mxu0
    %v6335 = vadd.f32 0.0, %v6334
    %6336 = vmatmul.f32.gmra.mxu0 %v263
    %v6337 = vpop.f32.mrf.mxu0
    %v6338 = vadd.f32 0.0, %v6337
    %6339 = vmatmul.f32.gmra.mxu0 %v266
    %v6340 = vpop.f32.mrf.mxu0
    %v6341 = vadd.f32 0.0, %v6340
    %6342 = vmatmul.f32.gmra.mxu0 %v269
    %v6343 = vpop.f32.mrf.mxu0
    %v6344 = vadd.f32 0.0, %v6343
    %6345 = vdwg.mxu0
    %v6346 = vadd.f32 %v6306, %v6335
    %v6347 = vadd.f32 %v6309, %v6338
    %v6348 = vadd.f32 %v6312, %v6341
    %v6349 = vadd.f32 %v6315, %v6344
    %v6350 = vmul.f32 %v6346, %v109
    %v6351 = vmul.f32 %v6347, %v109
    %v6352 = vmul.f32 %v6348, %v109
    %v6353 = vmul.f32 %v6349, %v109
    %v6354 = vadd.f32 %v6350, %v6351
    %v6355 = vadd.f32 %v6354, %v6352
    %v6356 = vadd.f32 %v6355, %v6353
    %6357 = vadd.xlane.f32.xlu0 %v6356
    %v6358 = vpop.xlane.xlu0 %6357
    %v6359 = vrot.slane %v6358, 4
    %v6360 = vadd.f32 %v6358, %v6359
    %v6361 = vrot.slane %v6360, 2
    %v6362 = vadd.f32 %v6360, %v6361
    %v6363 = vrot.slane %v6362, 1
    %v6364 = vadd.f32 %v6362, %v6363
    %s6365 = vtos %v6364
    %v6366 = vmul.f32 %v6350, %v6350
    %v6367 = vmul.f32 %v6351, %v6351
    %v6368 = vmul.f32 %v6352, %v6352
    %v6369 = vmul.f32 %v6353, %v6353
    %v6370 = vadd.f32 %v6366, %v6367
    %v6371 = vadd.f32 %v6370, %v6368
    %v6372 = vadd.f32 %v6371, %v6369
    %6373 = vadd.xlane.f32.xlu0 %v6372
    %v6374 = vpop.xlane.xlu0 %6373
    %v6375 = vrot.slane %v6374, 4
    %v6376 = vadd.f32 %v6374, %v6375
    %v6377 = vrot.slane %v6376, 2
    %v6378 = vadd.f32 %v6376, %v6377
    %v6379 = vrot.slane %v6378, 1
    %v6380 = vadd.f32 %v6378, %v6379
    %s6381 = vtos %v6380
    %s6382 = smul.f32 %s6365, 0.001953125
    %s6383 = smul.f32 %s6381, 0.001953125
    %s6384 = smul.f32 %s6382, %s6382
    %s6385 = ssub.f32 %s6383, %s6384
    %s6386 = smax.f32 %s6385, 0.0
    %s6387 = sld [smem:[#allocation9 + $0x1a]]
    %s6388 = sadd.f32 %s6386, 1e-05
    %v6389 = vstv %s6388
    %v6390 = vrsqrt.pop %v6389
    %v6391 = vmul.f32 %v6390, %v6389
    %v6392 = vmul.f32 %v6391, %v6390
    %v6393 = vmul.f32 0.5, %v6392
    %v6394 = vsub.f32 1.5, %v6393
    %v6395 = vmul.f32 %v6390, %v6394
    %vm6396 = vweird.f32 %v6389
    %vm6397 = vweird.f32 %v6390
    %vm6398 = vmor %vm6396, %vm6397
    %v6399 = vsel %vm6398, %v6390, %v6395
    %s6400 = vtos %v6399
    %s6401 = smul.f32 %s6387, %s6400
    %s6402 = sld [smem:[#allocation10 + $0x1a]]
    %s6403 = smul.f32 %s6382, %s6401
    %s6404 = ssub.f32 %s6402, %s6403
    %v6405 = vstv %s6401
    %v6406 = vmul.f32 %v6350, %v6405
    %v6407 = vmul.f32 %v6351, %v6405
    %v6408 = vmul.f32 %v6352, %v6405
    %v6409 = vmul.f32 %v6353, %v6405
    %v6410 = vstv %s6404
    %v6411 = vmul.f32 %v6410, %v109
    %v6412 = vadd.f32 %v6406, %v6411
    %v6413 = vadd.f32 %v6407, %v6411
    %v6414 = vadd.f32 %v6408, %v6411
    %v6415 = vadd.f32 %v6409, %v6411
    %v6416 = vmax.f32 %v6412, 0.0
    %v6417 = vmax.f32 %v6413, 0.0
    %v6418 = vmax.f32 %v6414, 0.0
    %v6419 = vmax.f32 %v6415, 0.0
    %6420 = vrot.lane.b32.xlu0 %v6416, 1
    %v6421 = vpop.permute.xlu0 %6420
    %6422 = vrot.lane.b32.xlu0 %v6417, 1
    %v6423 = vpop.permute.xlu0 %6422
    %6424 = vrot.lane.b32.xlu0 %v6418, 1
    %v6425 = vpop.permute.xlu0 %6424
    %6426 = vrot.lane.b32.xlu0 %v6419, 1
    %v6427 = vpop.permute.xlu0 %6426
    %6428 = vrot.lane.b32.xlu0 %v6416, 127
    %v6429 = vpop.permute.xlu0 %6428
    %6430 = vrot.lane.b32.xlu0 %v6417, 127
    %v6431 = vpop.permute.xlu0 %6430
    %6432 = vrot.lane.b32.xlu0 %v6418, 127
    %v6433 = vpop.permute.xlu0 %6432
    %6434 = vrot.lane.b32.xlu0 %v6419, 127
    %v6435 = vpop.permute.xlu0 %6434
    %s6436 = sld [smem:[#allocation2 + $0xfc]]
    %v6437 = vstv %s6436
    %v6438 = vmul.f32 %v6437, %v6421
    %v6439 = vmul.f32 %v6437, %v6423
    %v6440 = vmul.f32 %v6437, %v6425
    %v6441 = vmul.f32 %v6437, %v6427
    %s6442 = sld [smem:[#allocation2 + $0xfd]]
    %v6443 = vstv %s6442
    %v6444 = vmul.f32 %v6443, %v6416
    %v6445 = vmul.f32 %v6443, %v6417
    %v6446 = vmul.f32 %v6443, %v6418
    %v6447 = vmul.f32 %v6443, %v6419
    %v6448 = vadd.f32 %v6438, %v6444
    %v6449 = vadd.f32 %v6439, %v6445
    %v6450 = vadd.f32 %v6440, %v6446
    %v6451 = vadd.f32 %v6441, %v6447
    %s6452 = sld [smem:[#allocation2 + $0xfe]]
    %v6453 = vstv %s6452
    %v6454 = vmul.f32 %v6453, %v6429
    %v6455 = vmul.f32 %v6453, %v6431
    %v6456 = vmul.f32 %v6453, %v6433
    %v6457 = vmul.f32 %v6453, %v6435
    %v6458 = vadd.f32 %v6448, %v6454
    %v6459 = vadd.f32 %v6449, %v6455
    %v6460 = vadd.f32 %v6450, %v6456
    %v6461 = vadd.f32 %v6451, %v6457
    %s6462 = sld [smem:[#allocation2 + $0xff]]
    %v6463 = vstv %s6462
    %v6464 = vmul.f32 %v6463, %v6421
    %v6465 = vmul.f32 %v6463, %v6423
    %v6466 = vmul.f32 %v6463, %v6425
    %v6467 = vmul.f32 %v6463, %v6427
    %s6468 = sld [smem:[#allocation2 + $0x100]]
    %v6469 = vstv %s6468
    %v6470 = vmul.f32 %v6469, %v6416
    %v6471 = vmul.f32 %v6469, %v6417
    %v6472 = vmul.f32 %v6469, %v6418
    %v6473 = vmul.f32 %v6469, %v6419
    %v6474 = vadd.f32 %v6464, %v6470
    %v6475 = vadd.f32 %v6465, %v6471
    %v6476 = vadd.f32 %v6466, %v6472
    %v6477 = vadd.f32 %v6467, %v6473
    %s6478 = sld [smem:[#allocation2 + $0x101]]
    %v6479 = vstv %s6478
    %v6480 = vmul.f32 %v6479, %v6429
    %v6481 = vmul.f32 %v6479, %v6431
    %v6482 = vmul.f32 %v6479, %v6433
    %v6483 = vmul.f32 %v6479, %v6435
    %v6484 = vadd.f32 %v6474, %v6480
    %v6485 = vadd.f32 %v6475, %v6481
    %v6486 = vadd.f32 %v6476, %v6482
    %v6487 = vadd.f32 %v6477, %v6483
    %s6488 = sld [smem:[#allocation2 + $0x102]]
    %v6489 = vstv %s6488
    %v6490 = vmul.f32 %v6489, %v6421
    %v6491 = vmul.f32 %v6489, %v6423
    %v6492 = vmul.f32 %v6489, %v6425
    %v6493 = vmul.f32 %v6489, %v6427
    %s6494 = sld [smem:[#allocation2 + $0x103]]
    %v6495 = vstv %s6494
    %v6496 = vmul.f32 %v6495, %v6416
    %v6497 = vmul.f32 %v6495, %v6417
    %v6498 = vmul.f32 %v6495, %v6418
    %v6499 = vmul.f32 %v6495, %v6419
    %v6500 = vadd.f32 %v6490, %v6496
    %v6501 = vadd.f32 %v6491, %v6497
    %v6502 = vadd.f32 %v6492, %v6498
    %v6503 = vadd.f32 %v6493, %v6499
    %s6504 = sld [smem:[#allocation2 + $0x104]]
    %v6505 = vstv %s6504
    %v6506 = vmul.f32 %v6505, %v6429
    %v6507 = vmul.f32 %v6505, %v6431
    %v6508 = vmul.f32 %v6505, %v6433
    %v6509 = vmul.f32 %v6505, %v6435
    %v6510 = vadd.f32 %v6500, %v6506
    %v6511 = vadd.f32 %v6501, %v6507
    %v6512 = vadd.f32 %v6502, %v6508
    %v6513 = vadd.f32 %v6503, %v6509
    %6514 = vmatpush.msra.mxu0 0.0
    %6515 = vmatpush.msra.mxu0 0.0
    %6516 = vmatpush.msra.mxu0 0.0
    %6517 = vmatpush.msra.mxu0 0.0
    %6518 = vmatpush.msra.mxu0 0.0
    %6519 = vmatpush.msra.mxu0 0.0
    %6520 = vmatpush.msra.mxu0 0.0
    %6521 = vmatpush.msra.mxu0 0.0
    %6522 = vmatpush.msra.mxu0 0.0
    %6523 = vmatpush.msra.mxu0 0.0
    %6524 = vmatpush.msra.mxu0 0.0
    %6525 = vmatpush.msra.mxu0 0.0
    %6526 = vmatpush.msra.mxu0 %v6461
    %6527 = vmatpush.msra.mxu0 %v6460
    %6528 = vmatpush.msra.mxu0 %v6459
    %6529 = vmatpush.msra.mxu0 %v6458
    %6530 = vmatmul.f32.gmra.mxu0 %v219
    %v6531 = vpop.f32.mrf.mxu0
    %v6532 = vadd.f32 %v6484, %v6531
    %6533 = vmatmul.f32.gmra.mxu0 %v222
    %v6534 = vpop.f32.mrf.mxu0
    %v6535 = vadd.f32 %v6485, %v6534
    %6536 = vmatmul.f32.gmra.mxu0 %v225
    %v6537 = vpop.f32.mrf.mxu0
    %v6538 = vadd.f32 %v6486, %v6537
    %6539 = vmatmul.f32.gmra.mxu0 %v228
    %v6540 = vpop.f32.mrf.mxu0
    %v6541 = vadd.f32 %v6487, %v6540
    %6542 = vdwg.mxu0
    %6543 = vmatpush.msra.mxu0 0.0
    %6544 = vmatpush.msra.mxu0 0.0
    %6545 = vmatpush.msra.mxu0 0.0
    %6546 = vmatpush.msra.mxu0 0.0
    %6547 = vmatpush.msra.mxu0 0.0
    %6548 = vmatpush.msra.mxu0 0.0
    %6549 = vmatpush.msra.mxu0 0.0
    %6550 = vmatpush.msra.mxu0 0.0
    %6551 = vmatpush.msra.mxu0 0.0
    %6552 = vmatpush.msra.mxu0 0.0
    %6553 = vmatpush.msra.mxu0 0.0
    %6554 = vmatpush.msra.mxu0 0.0
    %6555 = vmatpush.msra.mxu0 %v6513
    %6556 = vmatpush.msra.mxu0 %v6512
    %6557 = vmatpush.msra.mxu0 %v6511
    %6558 = vmatpush.msra.mxu0 %v6510
    %6559 = vmatmul.f32.gmra.mxu0 %v260
    %v6560 = vpop.f32.mrf.mxu0
    %v6561 = vadd.f32 0.0, %v6560
    %6562 = vmatmul.f32.gmra.mxu0 %v263
    %v6563 = vpop.f32.mrf.mxu0
    %v6564 = vadd.f32 0.0, %v6563
    %6565 = vmatmul.f32.gmra.mxu0 %v266
    %v6566 = vpop.f32.mrf.mxu0
    %v6567 = vadd.f32 0.0, %v6566
    %6568 = vmatmul.f32.gmra.mxu0 %v269
    %v6569 = vpop.f32.mrf.mxu0
    %v6570 = vadd.f32 0.0, %v6569
    %6571 = vdwg.mxu0
    %v6572 = vadd.f32 %v6532, %v6561
    %v6573 = vadd.f32 %v6535, %v6564
    %v6574 = vadd.f32 %v6538, %v6567
    %v6575 = vadd.f32 %v6541, %v6570
    %v6576 = vmul.f32 %v6572, %v109
    %v6577 = vmul.f32 %v6573, %v109
    %v6578 = vmul.f32 %v6574, %v109
    %v6579 = vmul.f32 %v6575, %v109
    %v6580 = vadd.f32 %v6576, %v6577
    %v6581 = vadd.f32 %v6580, %v6578
    %v6582 = vadd.f32 %v6581, %v6579
    %6583 = vadd.xlane.f32.xlu0 %v6582
    %v6584 = vpop.xlane.xlu0 %6583
    %v6585 = vrot.slane %v6584, 4
    %v6586 = vadd.f32 %v6584, %v6585
    %v6587 = vrot.slane %v6586, 2
    %v6588 = vadd.f32 %v6586, %v6587
    %v6589 = vrot.slane %v6588, 1
    %v6590 = vadd.f32 %v6588, %v6589
    %s6591 = vtos %v6590
    %v6592 = vmul.f32 %v6576, %v6576
    %v6593 = vmul.f32 %v6577, %v6577
    %v6594 = vmul.f32 %v6578, %v6578
    %v6595 = vmul.f32 %v6579, %v6579
    %v6596 = vadd.f32 %v6592, %v6593
    %v6597 = vadd.f32 %v6596, %v6594
    %v6598 = vadd.f32 %v6597, %v6595
    %6599 = vadd.xlane.f32.xlu0 %v6598
    %v6600 = vpop.xlane.xlu0 %6599
    %v6601 = vrot.slane %v6600, 4
    %v6602 = vadd.f32 %v6600, %v6601
    %v6603 = vrot.slane %v6602, 2
    %v6604 = vadd.f32 %v6602, %v6603
    %v6605 = vrot.slane %v6604, 1
    %v6606 = vadd.f32 %v6604, %v6605
    %s6607 = vtos %v6606
    %s6608 = smul.f32 %s6591, 0.001953125
    %s6609 = smul.f32 %s6607, 0.001953125
    %s6610 = smul.f32 %s6608, %s6608
    %s6611 = ssub.f32 %s6609, %s6610
    %s6612 = smax.f32 %s6611, 0.0
    %s6613 = sld [smem:[#allocation9 + $0x1b]]
    %s6614 = sadd.f32 %s6612, 1e-05
    %v6615 = vstv %s6614
    %v6616 = vrsqrt.pop %v6615
    %v6617 = vmul.f32 %v6616, %v6615
    %v6618 = vmul.f32 %v6617, %v6616
    %v6619 = vmul.f32 0.5, %v6618
    %v6620 = vsub.f32 1.5, %v6619
    %v6621 = vmul.f32 %v6616, %v6620
    %vm6622 = vweird.f32 %v6615
    %vm6623 = vweird.f32 %v6616
    %vm6624 = vmor %vm6622, %vm6623
    %v6625 = vsel %vm6624, %v6616, %v6621
    %s6626 = vtos %v6625
    %s6627 = smul.f32 %s6613, %s6626
    %s6628 = sld [smem:[#allocation10 + $0x1b]]
    %s6629 = smul.f32 %s6608, %s6627
    %s6630 = ssub.f32 %s6628, %s6629
    %v6631 = vstv %s6627
    %v6632 = vmul.f32 %v6576, %v6631
    %v6633 = vmul.f32 %v6577, %v6631
    %v6634 = vmul.f32 %v6578, %v6631
    %v6635 = vmul.f32 %v6579, %v6631
    %v6636 = vstv %s6630
    %v6637 = vmul.f32 %v6636, %v109
    %v6638 = vadd.f32 %v6632, %v6637
    %v6639 = vadd.f32 %v6633, %v6637
    %v6640 = vadd.f32 %v6634, %v6637
    %v6641 = vadd.f32 %v6635, %v6637
    %v6642 = vadd.f32 %v6190, %v6638
    %v6643 = vadd.f32 %v6191, %v6639
    %v6644 = vadd.f32 %v6192, %v6640
    %v6645 = vadd.f32 %v6193, %v6641
    %6646 = vrot.lane.b32.xlu0 %v6642, 1
    %v6647 = vpop.permute.xlu0 %6646
    %6648 = vrot.lane.b32.xlu0 %v6643, 1
    %v6649 = vpop.permute.xlu0 %6648
    %6650 = vrot.lane.b32.xlu0 %v6644, 1
    %v6651 = vpop.permute.xlu0 %6650
    %6652 = vrot.lane.b32.xlu0 %v6645, 1
    %v6653 = vpop.permute.xlu0 %6652
    %6654 = vrot.lane.b32.xlu0 %v6642, 127
    %v6655 = vpop.permute.xlu0 %6654
    %6656 = vrot.lane.b32.xlu0 %v6643, 127
    %v6657 = vpop.permute.xlu0 %6656
    %6658 = vrot.lane.b32.xlu0 %v6644, 127
    %v6659 = vpop.permute.xlu0 %6658
    %6660 = vrot.lane.b32.xlu0 %v6645, 127
    %v6661 = vpop.permute.xlu0 %6660
    %s6662 = sld [smem:[#allocation2 + $0x105]]
    %v6663 = vstv %s6662
    %v6664 = vmul.f32 %v6663, %v6647
    %v6665 = vmul.f32 %v6663, %v6649
    %v6666 = vmul.f32 %v6663, %v6651
    %v6667 = vmul.f32 %v6663, %v6653
    %s6668 = sld [smem:[#allocation2 + $0x106]]
    %v6669 = vstv %s6668
    %v6670 = vmul.f32 %v6669, %v6642
    %v6671 = vmul.f32 %v6669, %v6643
    %v6672 = vmul.f32 %v6669, %v6644
    %v6673 = vmul.f32 %v6669, %v6645
    %v6674 = vadd.f32 %v6664, %v6670
    %v6675 = vadd.f32 %v6665, %v6671
    %v6676 = vadd.f32 %v6666, %v6672
    %v6677 = vadd.f32 %v6667, %v6673
    %s6678 = sld [smem:[#allocation2 + $0x107]]
    %v6679 = vstv %s6678
    %v6680 = vmul.f32 %v6679, %v6655
    %v6681 = vmul.f32 %v6679, %v6657
    %v6682 = vmul.f32 %v6679, %v6659
    %v6683 = vmul.f32 %v6679, %v6661
    %v6684 = vadd.f32 %v6674, %v6680
    %v6685 = vadd.f32 %v6675, %v6681
    %v6686 = vadd.f32 %v6676, %v6682
    %v6687 = vadd.f32 %v6677, %v6683
    %s6688 = sld [smem:[#allocation2 + $0x108]]
    %v6689 = vstv %s6688
    %v6690 = vmul.f32 %v6689, %v6647
    %v6691 = vmul.f32 %v6689, %v6649
    %v6692 = vmul.f32 %v6689, %v6651
    %v6693 = vmul.f32 %v6689, %v6653
    %s6694 = sld [smem:[#allocation2 + $0x109]]
    %v6695 = vstv %s6694
    %v6696 = vmul.f32 %v6695, %v6642
    %v6697 = vmul.f32 %v6695, %v6643
    %v6698 = vmul.f32 %v6695, %v6644
    %v6699 = vmul.f32 %v6695, %v6645
    %v6700 = vadd.f32 %v6690, %v6696
    %v6701 = vadd.f32 %v6691, %v6697
    %v6702 = vadd.f32 %v6692, %v6698
    %v6703 = vadd.f32 %v6693, %v6699
    %s6704 = sld [smem:[#allocation2 + $0x10a]]
    %v6705 = vstv %s6704
    %v6706 = vmul.f32 %v6705, %v6655
    %v6707 = vmul.f32 %v6705, %v6657
    %v6708 = vmul.f32 %v6705, %v6659
    %v6709 = vmul.f32 %v6705, %v6661
    %v6710 = vadd.f32 %v6700, %v6706
    %v6711 = vadd.f32 %v6701, %v6707
    %v6712 = vadd.f32 %v6702, %v6708
    %v6713 = vadd.f32 %v6703, %v6709
    %s6714 = sld [smem:[#allocation2 + $0x10b]]
    %v6715 = vstv %s6714
    %v6716 = vmul.f32 %v6715, %v6647
    %v6717 = vmul.f32 %v6715, %v6649
    %v6718 = vmul.f32 %v6715, %v6651
    %v6719 = vmul.f32 %v6715, %v6653
    %s6720 = sld [smem:[#allocation2 + $0x10c]]
    %v6721 = vstv %s6720
    %v6722 = vmul.f32 %v6721, %v6642
    %v6723 = vmul.f32 %v6721, %v6643
    %v6724 = vmul.f32 %v6721, %v6644
    %v6725 = vmul.f32 %v6721, %v6645
    %v6726 = vadd.f32 %v6716, %v6722
    %v6727 = vadd.f32 %v6717, %v6723
    %v6728 = vadd.f32 %v6718, %v6724
    %v6729 = vadd.f32 %v6719, %v6725
    %s6730 = sld [smem:[#allocation2 + $0x10d]]
    %v6731 = vstv %s6730
    %v6732 = vmul.f32 %v6731, %v6655
    %v6733 = vmul.f32 %v6731, %v6657
    %v6734 = vmul.f32 %v6731, %v6659
    %v6735 = vmul.f32 %v6731, %v6661
    %v6736 = vadd.f32 %v6726, %v6732
    %v6737 = vadd.f32 %v6727, %v6733
    %v6738 = vadd.f32 %v6728, %v6734
    %v6739 = vadd.f32 %v6729, %v6735
    %6740 = vmatpush.msra.mxu0 0.0
    %6741 = vmatpush.msra.mxu0 0.0
    %6742 = vmatpush.msra.mxu0 0.0
    %6743 = vmatpush.msra.mxu0 0.0
    %6744 = vmatpush.msra.mxu0 0.0
    %6745 = vmatpush.msra.mxu0 0.0
    %6746 = vmatpush.msra.mxu0 0.0
    %6747 = vmatpush.msra.mxu0 0.0
    %6748 = vmatpush.msra.mxu0 0.0
    %6749 = vmatpush.msra.mxu0 0.0
    %6750 = vmatpush.msra.mxu0 0.0
    %6751 = vmatpush.msra.mxu0 0.0
    %6752 = vmatpush.msra.mxu0 %v6687
    %6753 = vmatpush.msra.mxu0 %v6686
    %6754 = vmatpush.msra.mxu0 %v6685
    %6755 = vmatpush.msra.mxu0 %v6684
    %6756 = vmatmul.f32.gmra.mxu0 %v219
    %v6757 = vpop.f32.mrf.mxu0
    %v6758 = vadd.f32 %v6710, %v6757
    %6759 = vmatmul.f32.gmra.mxu0 %v222
    %v6760 = vpop.f32.mrf.mxu0
    %v6761 = vadd.f32 %v6711, %v6760
    %6762 = vmatmul.f32.gmra.mxu0 %v225
    %v6763 = vpop.f32.mrf.mxu0
    %v6764 = vadd.f32 %v6712, %v6763
    %6765 = vmatmul.f32.gmra.mxu0 %v228
    %v6766 = vpop.f32.mrf.mxu0
    %v6767 = vadd.f32 %v6713, %v6766
    %6768 = vdwg.mxu0
    %6769 = vmatpush.msra.mxu0 0.0
    %6770 = vmatpush.msra.mxu0 0.0
    %6771 = vmatpush.msra.mxu0 0.0
    %6772 = vmatpush.msra.mxu0 0.0
    %6773 = vmatpush.msra.mxu0 0.0
    %6774 = vmatpush.msra.mxu0 0.0
    %6775 = vmatpush.msra.mxu0 0.0
    %6776 = vmatpush.msra.mxu0 0.0
    %6777 = vmatpush.msra.mxu0 0.0
    %6778 = vmatpush.msra.mxu0 0.0
    %6779 = vmatpush.msra.mxu0 0.0
    %6780 = vmatpush.msra.mxu0 0.0
    %6781 = vmatpush.msra.mxu0 %v6739
    %6782 = vmatpush.msra.mxu0 %v6738
    %6783 = vmatpush.msra.mxu0 %v6737
    %6784 = vmatpush.msra.mxu0 %v6736
    %6785 = vmatmul.f32.gmra.mxu0 %v260
    %v6786 = vpop.f32.mrf.mxu0
    %v6787 = vadd.f32 0.0, %v6786
    %6788 = vmatmul.f32.gmra.mxu0 %v263
    %v6789 = vpop.f32.mrf.mxu0
    %v6790 = vadd.f32 0.0, %v6789
    %6791 = vmatmul.f32.gmra.mxu0 %v266
    %v6792 = vpop.f32.mrf.mxu0
    %v6793 = vadd.f32 0.0, %v6792
    %6794 = vmatmul.f32.gmra.mxu0 %v269
    %v6795 = vpop.f32.mrf.mxu0
    %v6796 = vadd.f32 0.0, %v6795
    %6797 = vdwg.mxu0
    %v6798 = vadd.f32 %v6758, %v6787
    %v6799 = vadd.f32 %v6761, %v6790
    %v6800 = vadd.f32 %v6764, %v6793
    %v6801 = vadd.f32 %v6767, %v6796
    %v6802 = vmul.f32 %v6798, %v109
    %v6803 = vmul.f32 %v6799, %v109
    %v6804 = vmul.f32 %v6800, %v109
    %v6805 = vmul.f32 %v6801, %v109
    %v6806 = vadd.f32 %v6802, %v6803
    %v6807 = vadd.f32 %v6806, %v6804
    %v6808 = vadd.f32 %v6807, %v6805
    %6809 = vadd.xlane.f32.xlu0 %v6808
    %v6810 = vpop.xlane.xlu0 %6809
    %v6811 = vrot.slane %v6810, 4
    %v6812 = vadd.f32 %v6810, %v6811
    %v6813 = vrot.slane %v6812, 2
    %v6814 = vadd.f32 %v6812, %v6813
    %v6815 = vrot.slane %v6814, 1
    %v6816 = vadd.f32 %v6814, %v6815
    %s6817 = vtos %v6816
    %v6818 = vmul.f32 %v6802, %v6802
    %v6819 = vmul.f32 %v6803, %v6803
    %v6820 = vmul.f32 %v6804, %v6804
    %v6821 = vmul.f32 %v6805, %v6805
    %v6822 = vadd.f32 %v6818, %v6819
    %v6823 = vadd.f32 %v6822, %v6820
    %v6824 = vadd.f32 %v6823, %v6821
    %6825 = vadd.xlane.f32.xlu0 %v6824
    %v6826 = vpop.xlane.xlu0 %6825
    %v6827 = vrot.slane %v6826, 4
    %v6828 = vadd.f32 %v6826, %v6827
    %v6829 = vrot.slane %v6828, 2
    %v6830 = vadd.f32 %v6828, %v6829
    %v6831 = vrot.slane %v6830, 1
    %v6832 = vadd.f32 %v6830, %v6831
    %s6833 = vtos %v6832
    %s6834 = smul.f32 %s6817, 0.001953125
    %s6835 = smul.f32 %s6833, 0.001953125
    %s6836 = smul.f32 %s6834, %s6834
    %s6837 = ssub.f32 %s6835, %s6836
    %s6838 = smax.f32 %s6837, 0.0
    %s6839 = sld [smem:[#allocation9 + $0x1c]]
    %s6840 = sadd.f32 %s6838, 1e-05
    %v6841 = vstv %s6840
    %v6842 = vrsqrt.pop %v6841
    %v6843 = vmul.f32 %v6842, %v6841
    %v6844 = vmul.f32 %v6843, %v6842
    %v6845 = vmul.f32 0.5, %v6844
    %v6846 = vsub.f32 1.5, %v6845
    %v6847 = vmul.f32 %v6842, %v6846
    %vm6848 = vweird.f32 %v6841
    %vm6849 = vweird.f32 %v6842
    %vm6850 = vmor %vm6848, %vm6849
    %v6851 = vsel %vm6850, %v6842, %v6847
    %s6852 = vtos %v6851
    %s6853 = smul.f32 %s6839, %s6852
    %s6854 = sld [smem:[#allocation10 + $0x1c]]
    %s6855 = smul.f32 %s6834, %s6853
    %s6856 = ssub.f32 %s6854, %s6855
    %v6857 = vstv %s6853
    %v6858 = vmul.f32 %v6802, %v6857
    %v6859 = vmul.f32 %v6803, %v6857
    %v6860 = vmul.f32 %v6804, %v6857
    %v6861 = vmul.f32 %v6805, %v6857
    %v6862 = vstv %s6856
    %v6863 = vmul.f32 %v6862, %v109
    %v6864 = vadd.f32 %v6858, %v6863
    %v6865 = vadd.f32 %v6859, %v6863
    %v6866 = vadd.f32 %v6860, %v6863
    %v6867 = vadd.f32 %v6861, %v6863
    %v6868 = vmax.f32 %v6864, 0.0
    %v6869 = vmax.f32 %v6865, 0.0
    %v6870 = vmax.f32 %v6866, 0.0
    %v6871 = vmax.f32 %v6867, 0.0
    %6872 = vrot.lane.b32.xlu0 %v6868, 1
    %v6873 = vpop.permute.xlu0 %6872
    %6874 = vrot.lane.b32.xlu0 %v6869, 1
    %v6875 = vpop.permute.xlu0 %6874
    %6876 = vrot.lane.b32.xlu0 %v6870, 1
    %v6877 = vpop.permute.xlu0 %6876
    %6878 = vrot.lane.b32.xlu0 %v6871, 1
    %v6879 = vpop.permute.xlu0 %6878
    %6880 = vrot.lane.b32.xlu0 %v6868, 127
    %v6881 = vpop.permute.xlu0 %6880
    %6882 = vrot.lane.b32.xlu0 %v6869, 127
    %v6883 = vpop.permute.xlu0 %6882
    %6884 = vrot.lane.b32.xlu0 %v6870, 127
    %v6885 = vpop.permute.xlu0 %6884
    %6886 = vrot.lane.b32.xlu0 %v6871, 127
    %v6887 = vpop.permute.xlu0 %6886
    %s6888 = sld [smem:[#allocation2 + $0x10e]]
    %v6889 = vstv %s6888
    %v6890 = vmul.f32 %v6889, %v6873
    %v6891 = vmul.f32 %v6889, %v6875
    %v6892 = vmul.f32 %v6889, %v6877
    %v6893 = vmul.f32 %v6889, %v6879
    %s6894 = sld [smem:[#allocation2 + $0x10f]]
    %v6895 = vstv %s6894
    %v6896 = vmul.f32 %v6895, %v6868
    %v6897 = vmul.f32 %v6895, %v6869
    %v6898 = vmul.f32 %v6895, %v6870
    %v6899 = vmul.f32 %v6895, %v6871
    %v6900 = vadd.f32 %v6890, %v6896
    %v6901 = vadd.f32 %v6891, %v6897
    %v6902 = vadd.f32 %v6892, %v6898
    %v6903 = vadd.f32 %v6893, %v6899
    %s6904 = sld [smem:[#allocation2 + $0x110]]
    %v6905 = vstv %s6904
    %v6906 = vmul.f32 %v6905, %v6881
    %v6907 = vmul.f32 %v6905, %v6883
    %v6908 = vmul.f32 %v6905, %v6885
    %v6909 = vmul.f32 %v6905, %v6887
    %v6910 = vadd.f32 %v6900, %v6906
    %v6911 = vadd.f32 %v6901, %v6907
    %v6912 = vadd.f32 %v6902, %v6908
    %v6913 = vadd.f32 %v6903, %v6909
    %s6914 = sld [smem:[#allocation2 + $0x111]]
    %v6915 = vstv %s6914
    %v6916 = vmul.f32 %v6915, %v6873
    %v6917 = vmul.f32 %v6915, %v6875
    %v6918 = vmul.f32 %v6915, %v6877
    %v6919 = vmul.f32 %v6915, %v6879
    %s6920 = sld [smem:[#allocation2 + $0x112]]
    %v6921 = vstv %s6920
    %v6922 = vmul.f32 %v6921, %v6868
    %v6923 = vmul.f32 %v6921, %v6869
    %v6924 = vmul.f32 %v6921, %v6870
    %v6925 = vmul.f32 %v6921, %v6871
    %v6926 = vadd.f32 %v6916, %v6922
    %v6927 = vadd.f32 %v6917, %v6923
    %v6928 = vadd.f32 %v6918, %v6924
    %v6929 = vadd.f32 %v6919, %v6925
    %s6930 = sld [smem:[#allocation2 + $0x113]]
    %v6931 = vstv %s6930
    %v6932 = vmul.f32 %v6931, %v6881
    %v6933 = vmul.f32 %v6931, %v6883
    %v6934 = vmul.f32 %v6931, %v6885
    %v6935 = vmul.f32 %v6931, %v6887
    %v6936 = vadd.f32 %v6926, %v6932
    %v6937 = vadd.f32 %v6927, %v6933
    %v6938 = vadd.f32 %v6928, %v6934
    %v6939 = vadd.f32 %v6929, %v6935
    %s6940 = sld [smem:[#allocation2 + $0x114]]
    %v6941 = vstv %s6940
    %v6942 = vmul.f32 %v6941, %v6873
    %v6943 = vmul.f32 %v6941, %v6875
    %v6944 = vmul.f32 %v6941, %v6877
    %v6945 = vmul.f32 %v6941, %v6879
    %s6946 = sld [smem:[#allocation2 + $0x115]]
    %v6947 = vstv %s6946
    %v6948 = vmul.f32 %v6947, %v6868
    %v6949 = vmul.f32 %v6947, %v6869
    %v6950 = vmul.f32 %v6947, %v6870
    %v6951 = vmul.f32 %v6947, %v6871
    %v6952 = vadd.f32 %v6942, %v6948
    %v6953 = vadd.f32 %v6943, %v6949
    %v6954 = vadd.f32 %v6944, %v6950
    %v6955 = vadd.f32 %v6945, %v6951
    %s6956 = sld [smem:[#allocation2 + $0x116]]
    %v6957 = vstv %s6956
    %v6958 = vmul.f32 %v6957, %v6881
    %v6959 = vmul.f32 %v6957, %v6883
    %v6960 = vmul.f32 %v6957, %v6885
    %v6961 = vmul.f32 %v6957, %v6887
    %v6962 = vadd.f32 %v6952, %v6958
    %v6963 = vadd.f32 %v6953, %v6959
    %v6964 = vadd.f32 %v6954, %v6960
    %v6965 = vadd.f32 %v6955, %v6961
    %6966 = vmatpush.msra.mxu0 0.0
    %6967 = vmatpush.msra.mxu0 0.0
    %6968 = vmatpush.msra.mxu0 0.0
    %6969 = vmatpush.msra.mxu0 0.0
    %6970 = vmatpush.msra.mxu0 0.0
    %6971 = vmatpush.msra.mxu0 0.0
    %6972 = vmatpush.msra.mxu0 0.0
    %6973 = vmatpush.msra.mxu0 0.0
    %6974 = vmatpush.msra.mxu0 0.0
    %6975 = vmatpush.msra.mxu0 0.0
    %6976 = vmatpush.msra.mxu0 0.0
    %6977 = vmatpush.msra.mxu0 0.0
    %6978 = vmatpush.msra.mxu0 %v6913
    %6979 = vmatpush.msra.mxu0 %v6912
    %6980 = vmatpush.msra.mxu0 %v6911
    %6981 = vmatpush.msra.mxu0 %v6910
    %6982 = vmatmul.f32.gmra.mxu0 %v219
    %v6983 = vpop.f32.mrf.mxu0
    %v6984 = vadd.f32 %v6936, %v6983
    %6985 = vmatmul.f32.gmra.mxu0 %v222
    %v6986 = vpop.f32.mrf.mxu0
    %v6987 = vadd.f32 %v6937, %v6986
    %6988 = vmatmul.f32.gmra.mxu0 %v225
    %v6989 = vpop.f32.mrf.mxu0
    %v6990 = vadd.f32 %v6938, %v6989
    %6991 = vmatmul.f32.gmra.mxu0 %v228
    %v6992 = vpop.f32.mrf.mxu0
    %v6993 = vadd.f32 %v6939, %v6992
    %6994 = vdwg.mxu0
    %6995 = vmatpush.msra.mxu0 0.0
    %6996 = vmatpush.msra.mxu0 0.0
    %6997 = vmatpush.msra.mxu0 0.0
    %6998 = vmatpush.msra.mxu0 0.0
    %6999 = vmatpush.msra.mxu0 0.0
    %7000 = vmatpush.msra.mxu0 0.0
    %7001 = vmatpush.msra.mxu0 0.0
    %7002 = vmatpush.msra.mxu0 0.0
    %7003 = vmatpush.msra.mxu0 0.0
    %7004 = vmatpush.msra.mxu0 0.0
    %7005 = vmatpush.msra.mxu0 0.0
    %7006 = vmatpush.msra.mxu0 0.0
    %7007 = vmatpush.msra.mxu0 %v6965
    %7008 = vmatpush.msra.mxu0 %v6964
    %7009 = vmatpush.msra.mxu0 %v6963
    %7010 = vmatpush.msra.mxu0 %v6962
    %7011 = vmatmul.f32.gmra.mxu0 %v260
    %v7012 = vpop.f32.mrf.mxu0
    %v7013 = vadd.f32 0.0, %v7012
    %7014 = vmatmul.f32.gmra.mxu0 %v263
    %v7015 = vpop.f32.mrf.mxu0
    %v7016 = vadd.f32 0.0, %v7015
    %7017 = vmatmul.f32.gmra.mxu0 %v266
    %v7018 = vpop.f32.mrf.mxu0
    %v7019 = vadd.f32 0.0, %v7018
    %7020 = vmatmul.f32.gmra.mxu0 %v269
    %v7021 = vpop.f32.mrf.mxu0
    %v7022 = vadd.f32 0.0, %v7021
    %7023 = vdwg.mxu0
    %v7024 = vadd.f32 %v6984, %v7013
    %v7025 = vadd.f32 %v6987, %v7016
    %v7026 = vadd.f32 %v6990, %v7019
    %v7027 = vadd.f32 %v6993, %v7022
    %v7028 = vmul.f32 %v7024, %v109
    %v7029 = vmul.f32 %v7025, %v109
    %v7030 = vmul.f32 %v7026, %v109
    %v7031 = vmul.f32 %v7027, %v109
    %v7032 = vadd.f32 %v7028, %v7029
    %v7033 = vadd.f32 %v7032, %v7030
    %v7034 = vadd.f32 %v7033, %v7031
    %7035 = vadd.xlane.f32.xlu0 %v7034
    %v7036 = vpop.xlane.xlu0 %7035
    %v7037 = vrot.slane %v7036, 4
    %v7038 = vadd.f32 %v7036, %v7037
    %v7039 = vrot.slane %v7038, 2
    %v7040 = vadd.f32 %v7038, %v7039
    %v7041 = vrot.slane %v7040, 1
    %v7042 = vadd.f32 %v7040, %v7041
    %s7043 = vtos %v7042
    %v7044 = vmul.f32 %v7028, %v7028
    %v7045 = vmul.f32 %v7029, %v7029
    %v7046 = vmul.f32 %v7030, %v7030
    %v7047 = vmul.f32 %v7031, %v7031
    %v7048 = vadd.f32 %v7044, %v7045
    %v7049 = vadd.f32 %v7048, %v7046
    %v7050 = vadd.f32 %v7049, %v7047
    %7051 = vadd.xlane.f32.xlu0 %v7050
    %v7052 = vpop.xlane.xlu0 %7051
    %v7053 = vrot.slane %v7052, 4
    %v7054 = vadd.f32 %v7052, %v7053
    %v7055 = vrot.slane %v7054, 2
    %v7056 = vadd.f32 %v7054, %v7055
    %v7057 = vrot.slane %v7056, 1
    %v7058 = vadd.f32 %v7056, %v7057
    %s7059 = vtos %v7058
    %s7060 = smul.f32 %s7043, 0.001953125
    %s7061 = smul.f32 %s7059, 0.001953125
    %s7062 = smul.f32 %s7060, %s7060
    %s7063 = ssub.f32 %s7061, %s7062
    %s7064 = smax.f32 %s7063, 0.0
    %s7065 = sld [smem:[#allocation9 + $0x1d]]
    %s7066 = sadd.f32 %s7064, 1e-05
    %v7067 = vstv %s7066
    %v7068 = vrsqrt.pop %v7067
    %v7069 = vmul.f32 %v7068, %v7067
    %v7070 = vmul.f32 %v7069, %v7068
    %v7071 = vmul.f32 0.5, %v7070
    %v7072 = vsub.f32 1.5, %v7071
    %v7073 = vmul.f32 %v7068, %v7072
    %vm7074 = vweird.f32 %v7067
    %vm7075 = vweird.f32 %v7068
    %vm7076 = vmor %vm7074, %vm7075
    %v7077 = vsel %vm7076, %v7068, %v7073
    %s7078 = vtos %v7077
    %s7079 = smul.f32 %s7065, %s7078
    %s7080 = sld [smem:[#allocation10 + $0x1d]]
    %s7081 = smul.f32 %s7060, %s7079
    %s7082 = ssub.f32 %s7080, %s7081
    %v7083 = vstv %s7079
    %v7084 = vmul.f32 %v7028, %v7083
    %v7085 = vmul.f32 %v7029, %v7083
    %v7086 = vmul.f32 %v7030, %v7083
    %v7087 = vmul.f32 %v7031, %v7083
    %v7088 = vstv %s7082
    %v7089 = vmul.f32 %v7088, %v109
    %v7090 = vadd.f32 %v7084, %v7089
    %v7091 = vadd.f32 %v7085, %v7089
    %v7092 = vadd.f32 %v7086, %v7089
    %v7093 = vadd.f32 %v7087, %v7089
    %v7094 = vadd.f32 %v6642, %v7090
    %v7095 = vadd.f32 %v6643, %v7091
    %v7096 = vadd.f32 %v6644, %v7092
    %v7097 = vadd.f32 %v6645, %v7093
    %7098 = vrot.lane.b32.xlu0 %v7094, 1
    %v7099 = vpop.permute.xlu0 %7098
    %7100 = vrot.lane.b32.xlu0 %v7095, 1
    %v7101 = vpop.permute.xlu0 %7100
    %7102 = vrot.lane.b32.xlu0 %v7096, 1
    %v7103 = vpop.permute.xlu0 %7102
    %7104 = vrot.lane.b32.xlu0 %v7097, 1
    %v7105 = vpop.permute.xlu0 %7104
    %7106 = vrot.lane.b32.xlu0 %v7094, 127
    %v7107 = vpop.permute.xlu0 %7106
    %7108 = vrot.lane.b32.xlu0 %v7095, 127
    %v7109 = vpop.permute.xlu0 %7108
    %7110 = vrot.lane.b32.xlu0 %v7096, 127
    %v7111 = vpop.permute.xlu0 %7110
    %7112 = vrot.lane.b32.xlu0 %v7097, 127
    %v7113 = vpop.permute.xlu0 %7112
    %s7114 = sld [smem:[#allocation2 + $0x117]]
    %v7115 = vstv %s7114
    %v7116 = vmul.f32 %v7115, %v7099
    %v7117 = vmul.f32 %v7115, %v7101
    %v7118 = vmul.f32 %v7115, %v7103
    %v7119 = vmul.f32 %v7115, %v7105
    %s7120 = sld [smem:[#allocation2 + $0x118]]
    %v7121 = vstv %s7120
    %v7122 = vmul.f32 %v7121, %v7094
    %v7123 = vmul.f32 %v7121, %v7095
    %v7124 = vmul.f32 %v7121, %v7096
    %v7125 = vmul.f32 %v7121, %v7097
    %v7126 = vadd.f32 %v7116, %v7122
    %v7127 = vadd.f32 %v7117, %v7123
    %v7128 = vadd.f32 %v7118, %v7124
    %v7129 = vadd.f32 %v7119, %v7125
    %s7130 = sld [smem:[#allocation2 + $0x119]]
    %v7131 = vstv %s7130
    %v7132 = vmul.f32 %v7131, %v7107
    %v7133 = vmul.f32 %v7131, %v7109
    %v7134 = vmul.f32 %v7131, %v7111
    %v7135 = vmul.f32 %v7131, %v7113
    %v7136 = vadd.f32 %v7126, %v7132
    %v7137 = vadd.f32 %v7127, %v7133
    %v7138 = vadd.f32 %v7128, %v7134
    %v7139 = vadd.f32 %v7129, %v7135
    %s7140 = sld [smem:[#allocation2 + $0x11a]]
    %v7141 = vstv %s7140
    %v7142 = vmul.f32 %v7141, %v7099
    %v7143 = vmul.f32 %v7141, %v7101
    %v7144 = vmul.f32 %v7141, %v7103
    %v7145 = vmul.f32 %v7141, %v7105
    %s7146 = sld [smem:[#allocation2 + $0x11b]]
    %v7147 = vstv %s7146
    %v7148 = vmul.f32 %v7147, %v7094
    %v7149 = vmul.f32 %v7147, %v7095
    %v7150 = vmul.f32 %v7147, %v7096
    %v7151 = vmul.f32 %v7147, %v7097
    %v7152 = vadd.f32 %v7142, %v7148
    %v7153 = vadd.f32 %v7143, %v7149
    %v7154 = vadd.f32 %v7144, %v7150
    %v7155 = vadd.f32 %v7145, %v7151
    %s7156 = sld [smem:[#allocation2 + $0x11c]]
    %v7157 = vstv %s7156
    %v7158 = vmul.f32 %v7157, %v7107
    %v7159 = vmul.f32 %v7157, %v7109
    %v7160 = vmul.f32 %v7157, %v7111
    %v7161 = vmul.f32 %v7157, %v7113
    %v7162 = vadd.f32 %v7152, %v7158
    %v7163 = vadd.f32 %v7153, %v7159
    %v7164 = vadd.f32 %v7154, %v7160
    %v7165 = vadd.f32 %v7155, %v7161
    %s7166 = sld [smem:[#allocation2 + $0x11d]]
    %v7167 = vstv %s7166
    %v7168 = vmul.f32 %v7167, %v7099
    %v7169 = vmul.f32 %v7167, %v7101
    %v7170 = vmul.f32 %v7167, %v7103
    %v7171 = vmul.f32 %v7167, %v7105
    %s7172 = sld [smem:[#allocation2 + $0x11e]]
    %v7173 = vstv %s7172
    %v7174 = vmul.f32 %v7173, %v7094
    %v7175 = vmul.f32 %v7173, %v7095
    %v7176 = vmul.f32 %v7173, %v7096
    %v7177 = vmul.f32 %v7173, %v7097
    %v7178 = vadd.f32 %v7168, %v7174
    %v7179 = vadd.f32 %v7169, %v7175
    %v7180 = vadd.f32 %v7170, %v7176
    %v7181 = vadd.f32 %v7171, %v7177
    %s7182 = sld [smem:[#allocation2 + $0x11f]]
    %v7183 = vstv %s7182
    %v7184 = vmul.f32 %v7183, %v7107
    %v7185 = vmul.f32 %v7183, %v7109
    %v7186 = vmul.f32 %v7183, %v7111
    %v7187 = vmul.f32 %v7183, %v7113
    %v7188 = vadd.f32 %v7178, %v7184
    %v7189 = vadd.f32 %v7179, %v7185
    %v7190 = vadd.f32 %v7180, %v7186
    %v7191 = vadd.f32 %v7181, %v7187
    %7192 = vmatpush.msra.mxu0 0.0
    %7193 = vmatpush.msra.mxu0 0.0
    %7194 = vmatpush.msra.mxu0 0.0
    %7195 = vmatpush.msra.mxu0 0.0
    %7196 = vmatpush.msra.mxu0 0.0
    %7197 = vmatpush.msra.mxu0 0.0
    %7198 = vmatpush.msra.mxu0 0.0
    %7199 = vmatpush.msra.mxu0 0.0
    %7200 = vmatpush.msra.mxu0 0.0
    %7201 = vmatpush.msra.mxu0 0.0
    %7202 = vmatpush.msra.mxu0 0.0
    %7203 = vmatpush.msra.mxu0 0.0
    %7204 = vmatpush.msra.mxu0 %v7139
    %7205 = vmatpush.msra.mxu0 %v7138
    %7206 = vmatpush.msra.mxu0 %v7137
    %7207 = vmatpush.msra.mxu0 %v7136
    %7208 = vmatmul.f32.gmra.mxu0 %v219
    %v7209 = vpop.f32.mrf.mxu0
    %v7210 = vadd.f32 %v7162, %v7209
    %7211 = vmatmul.f32.gmra.mxu0 %v222
    %v7212 = vpop.f32.mrf.mxu0
    %v7213 = vadd.f32 %v7163, %v7212
    %7214 = vmatmul.f32.gmra.mxu0 %v225
    %v7215 = vpop.f32.mrf.mxu0
    %v7216 = vadd.f32 %v7164, %v7215
    %7217 = vmatmul.f32.gmra.mxu0 %v228
    %v7218 = vpop.f32.mrf.mxu0
    %v7219 = vadd.f32 %v7165, %v7218
    %7220 = vdwg.mxu0
    %7221 = vmatpush.msra.mxu0 0.0
    %7222 = vmatpush.msra.mxu0 0.0
    %7223 = vmatpush.msra.mxu0 0.0
    %7224 = vmatpush.msra.mxu0 0.0
    %7225 = vmatpush.msra.mxu0 0.0
    %7226 = vmatpush.msra.mxu0 0.0
    %7227 = vmatpush.msra.mxu0 0.0
    %7228 = vmatpush.msra.mxu0 0.0
    %7229 = vmatpush.msra.mxu0 0.0
    %7230 = vmatpush.msra.mxu0 0.0
    %7231 = vmatpush.msra.mxu0 0.0
    %7232 = vmatpush.msra.mxu0 0.0
    %7233 = vmatpush.msra.mxu0 %v7191
    %7234 = vmatpush.msra.mxu0 %v7190
    %7235 = vmatpush.msra.mxu0 %v7189
    %7236 = vmatpush.msra.mxu0 %v7188
    %7237 = vmatmul.f32.gmra.mxu0 %v260
    %v7238 = vpop.f32.mrf.mxu0
    %v7239 = vadd.f32 0.0, %v7238
    %7240 = vmatmul.f32.gmra.mxu0 %v263
    %v7241 = vpop.f32.mrf.mxu0
    %v7242 = vadd.f32 0.0, %v7241
    %7243 = vmatmul.f32.gmra.mxu0 %v266
    %v7244 = vpop.f32.mrf.mxu0
    %v7245 = vadd.f32 0.0, %v7244
    %7246 = vmatmul.f32.gmra.mxu0 %v269
    %v7247 = vpop.f32.mrf.mxu0
    %v7248 = vadd.f32 0.0, %v7247
    %7249 = vdwg.mxu0
    %v7250 = vadd.f32 %v7210, %v7239
    %v7251 = vadd.f32 %v7213, %v7242
    %v7252 = vadd.f32 %v7216, %v7245
    %v7253 = vadd.f32 %v7219, %v7248
    %v7254 = vmul.f32 %v7250, %v109
    %v7255 = vmul.f32 %v7251, %v109
    %v7256 = vmul.f32 %v7252, %v109
    %v7257 = vmul.f32 %v7253, %v109
    %v7258 = vadd.f32 %v7254, %v7255
    %v7259 = vadd.f32 %v7258, %v7256
    %v7260 = vadd.f32 %v7259, %v7257
    %7261 = vadd.xlane.f32.xlu0 %v7260
    %v7262 = vpop.xlane.xlu0 %7261
    %v7263 = vrot.slane %v7262, 4
    %v7264 = vadd.f32 %v7262, %v7263
    %v7265 = vrot.slane %v7264, 2
    %v7266 = vadd.f32 %v7264, %v7265
    %v7267 = vrot.slane %v7266, 1
    %v7268 = vadd.f32 %v7266, %v7267
    %s7269 = vtos %v7268
    %v7270 = vmul.f32 %v7254, %v7254
    %v7271 = vmul.f32 %v7255, %v7255
    %v7272 = vmul.f32 %v7256, %v7256
    %v7273 = vmul.f32 %v7257, %v7257
    %v7274 = vadd.f32 %v7270, %v7271
    %v7275 = vadd.f32 %v7274, %v7272
    %v7276 = vadd.f32 %v7275, %v7273
    %7277 = vadd.xlane.f32.xlu0 %v7276
    %v7278 = vpop.xlane.xlu0 %7277
    %v7279 = vrot.slane %v7278, 4
    %v7280 = vadd.f32 %v7278, %v7279
    %v7281 = vrot.slane %v7280, 2
    %v7282 = vadd.f32 %v7280, %v7281
    %v7283 = vrot.slane %v7282, 1
    %v7284 = vadd.f32 %v7282, %v7283
    %s7285 = vtos %v7284
    %s7286 = smul.f32 %s7269, 0.001953125
    %s7287 = smul.f32 %s7285, 0.001953125
    %s7288 = smul.f32 %s7286, %s7286
    %s7289 = ssub.f32 %s7287, %s7288
    %s7290 = smax.f32 %s7289, 0.0
    %s7291 = sld [smem:[#allocation9 + $0x1e]]
    %s7292 = sadd.f32 %s7290, 1e-05
    %v7293 = vstv %s7292
    %v7294 = vrsqrt.pop %v7293
    %v7295 = vmul.f32 %v7294, %v7293
    %v7296 = vmul.f32 %v7295, %v7294
    %v7297 = vmul.f32 0.5, %v7296
    %v7298 = vsub.f32 1.5, %v7297
    %v7299 = vmul.f32 %v7294, %v7298
    %vm7300 = vweird.f32 %v7293
    %vm7301 = vweird.f32 %v7294
    %vm7302 = vmor %vm7300, %vm7301
    %v7303 = vsel %vm7302, %v7294, %v7299
    %s7304 = vtos %v7303
    %s7305 = smul.f32 %s7291, %s7304
    %s7306 = sld [smem:[#allocation10 + $0x1e]]
    %s7307 = smul.f32 %s7286, %s7305
    %s7308 = ssub.f32 %s7306, %s7307
    %v7309 = vstv %s7305
    %v7310 = vmul.f32 %v7254, %v7309
    %v7311 = vmul.f32 %v7255, %v7309
    %v7312 = vmul.f32 %v7256, %v7309
    %v7313 = vmul.f32 %v7257, %v7309
    %v7314 = vstv %s7308
    %v7315 = vmul.f32 %v7314, %v109
    %v7316 = vadd.f32 %v7310, %v7315
    %v7317 = vadd.f32 %v7311, %v7315
    %v7318 = vadd.f32 %v7312, %v7315
    %v7319 = vadd.f32 %v7313, %v7315
    %v7320 = vmax.f32 %v7316, 0.0
    %v7321 = vmax.f32 %v7317, 0.0
    %v7322 = vmax.f32 %v7318, 0.0
    %v7323 = vmax.f32 %v7319, 0.0
    %7324 = vrot.lane.b32.xlu0 %v7320, 1
    %v7325 = vpop.permute.xlu0 %7324
    %7326 = vrot.lane.b32.xlu0 %v7321, 1
    %v7327 = vpop.permute.xlu0 %7326
    %7328 = vrot.lane.b32.xlu0 %v7322, 1
    %v7329 = vpop.permute.xlu0 %7328
    %7330 = vrot.lane.b32.xlu0 %v7323, 1
    %v7331 = vpop.permute.xlu0 %7330
    %7332 = vrot.lane.b32.xlu0 %v7320, 127
    %v7333 = vpop.permute.xlu0 %7332
    %7334 = vrot.lane.b32.xlu0 %v7321, 127
    %v7335 = vpop.permute.xlu0 %7334
    %7336 = vrot.lane.b32.xlu0 %v7322, 127
    %v7337 = vpop.permute.xlu0 %7336
    %7338 = vrot.lane.b32.xlu0 %v7323, 127
    %v7339 = vpop.permute.xlu0 %7338
    %s7340 = sld [smem:[#allocation2 + $0x120]]
    %v7341 = vstv %s7340
    %v7342 = vmul.f32 %v7341, %v7325
    %v7343 = vmul.f32 %v7341, %v7327
    %v7344 = vmul.f32 %v7341, %v7329
    %v7345 = vmul.f32 %v7341, %v7331
    %s7346 = sld [smem:[#allocation2 + $0x121]]
    %v7347 = vstv %s7346
    %v7348 = vmul.f32 %v7347, %v7320
    %v7349 = vmul.f32 %v7347, %v7321
    %v7350 = vmul.f32 %v7347, %v7322
    %v7351 = vmul.f32 %v7347, %v7323
    %v7352 = vadd.f32 %v7342, %v7348
    %v7353 = vadd.f32 %v7343, %v7349
    %v7354 = vadd.f32 %v7344, %v7350
    %v7355 = vadd.f32 %v7345, %v7351
    %s7356 = sld [smem:[#allocation2 + $0x122]]
    %v7357 = vstv %s7356
    %v7358 = vmul.f32 %v7357, %v7333
    %v7359 = vmul.f32 %v7357, %v7335
    %v7360 = vmul.f32 %v7357, %v7337
    %v7361 = vmul.f32 %v7357, %v7339
    %v7362 = vadd.f32 %v7352, %v7358
    %v7363 = vadd.f32 %v7353, %v7359
    %v7364 = vadd.f32 %v7354, %v7360
    %v7365 = vadd.f32 %v7355, %v7361
    %s7366 = sld [smem:[#allocation2 + $0x123]]
    %v7367 = vstv %s7366
    %v7368 = vmul.f32 %v7367, %v7325
    %v7369 = vmul.f32 %v7367, %v7327
    %v7370 = vmul.f32 %v7367, %v7329
    %v7371 = vmul.f32 %v7367, %v7331
    %s7372 = sld [smem:[#allocation2 + $0x124]]
    %v7373 = vstv %s7372
    %v7374 = vmul.f32 %v7373, %v7320
    %v7375 = vmul.f32 %v7373, %v7321
    %v7376 = vmul.f32 %v7373, %v7322
    %v7377 = vmul.f32 %v7373, %v7323
    %v7378 = vadd.f32 %v7368, %v7374
    %v7379 = vadd.f32 %v7369, %v7375
    %v7380 = vadd.f32 %v7370, %v7376
    %v7381 = vadd.f32 %v7371, %v7377
    %s7382 = sld [smem:[#allocation2 + $0x125]]
    %v7383 = vstv %s7382
    %v7384 = vmul.f32 %v7383, %v7333
    %v7385 = vmul.f32 %v7383, %v7335
    %v7386 = vmul.f32 %v7383, %v7337
    %v7387 = vmul.f32 %v7383, %v7339
    %v7388 = vadd.f32 %v7378, %v7384
    %v7389 = vadd.f32 %v7379, %v7385
    %v7390 = vadd.f32 %v7380, %v7386
    %v7391 = vadd.f32 %v7381, %v7387
    %s7392 = sld [smem:[#allocation2 + $0x126]]
    %v7393 = vstv %s7392
    %v7394 = vmul.f32 %v7393, %v7325
    %v7395 = vmul.f32 %v7393, %v7327
    %v7396 = vmul.f32 %v7393, %v7329
    %v7397 = vmul.f32 %v7393, %v7331
    %s7398 = sld [smem:[#allocation2 + $0x127]]
    %v7399 = vstv %s7398
    %v7400 = vmul.f32 %v7399, %v7320
    %v7401 = vmul.f32 %v7399, %v7321
    %v7402 = vmul.f32 %v7399, %v7322
    %v7403 = vmul.f32 %v7399, %v7323
    %v7404 = vadd.f32 %v7394, %v7400
    %v7405 = vadd.f32 %v7395, %v7401
    %v7406 = vadd.f32 %v7396, %v7402
    %v7407 = vadd.f32 %v7397, %v7403
    %s7408 = sld [smem:[#allocation2 + $0x128]]
    %v7409 = vstv %s7408
    %v7410 = vmul.f32 %v7409, %v7333
    %v7411 = vmul.f32 %v7409, %v7335
    %v7412 = vmul.f32 %v7409, %v7337
    %v7413 = vmul.f32 %v7409, %v7339
    %v7414 = vadd.f32 %v7404, %v7410
    %v7415 = vadd.f32 %v7405, %v7411
    %v7416 = vadd.f32 %v7406, %v7412
    %v7417 = vadd.f32 %v7407, %v7413
    %7418 = vmatpush.msra.mxu0 0.0
    %7419 = vmatpush.msra.mxu0 0.0
    %7420 = vmatpush.msra.mxu0 0.0
    %7421 = vmatpush.msra.mxu0 0.0
    %7422 = vmatpush.msra.mxu0 0.0
    %7423 = vmatpush.msra.mxu0 0.0
    %7424 = vmatpush.msra.mxu0 0.0
    %7425 = vmatpush.msra.mxu0 0.0
    %7426 = vmatpush.msra.mxu0 0.0
    %7427 = vmatpush.msra.mxu0 0.0
    %7428 = vmatpush.msra.mxu0 0.0
    %7429 = vmatpush.msra.mxu0 0.0
    %7430 = vmatpush.msra.mxu0 %v7365
    %7431 = vmatpush.msra.mxu0 %v7364
    %7432 = vmatpush.msra.mxu0 %v7363
    %7433 = vmatpush.msra.mxu0 %v7362
    %7434 = vmatmul.f32.gmra.mxu0 %v219
    %v7435 = vpop.f32.mrf.mxu0
    %v7436 = vadd.f32 %v7388, %v7435
    %7437 = vmatmul.f32.gmra.mxu0 %v222
    %v7438 = vpop.f32.mrf.mxu0
    %v7439 = vadd.f32 %v7389, %v7438
    %7440 = vmatmul.f32.gmra.mxu0 %v225
    %v7441 = vpop.f32.mrf.mxu0
    %v7442 = vadd.f32 %v7390, %v7441
    %7443 = vmatmul.f32.gmra.mxu0 %v228
    %v7444 = vpop.f32.mrf.mxu0
    %v7445 = vadd.f32 %v7391, %v7444
    %7446 = vdwg.mxu0
    %7447 = vmatpush.msra.mxu0 0.0
    %7448 = vmatpush.msra.mxu0 0.0
    %7449 = vmatpush.msra.mxu0 0.0
    %7450 = vmatpush.msra.mxu0 0.0
    %7451 = vmatpush.msra.mxu0 0.0
    %7452 = vmatpush.msra.mxu0 0.0
    %7453 = vmatpush.msra.mxu0 0.0
    %7454 = vmatpush.msra.mxu0 0.0
    %7455 = vmatpush.msra.mxu0 0.0
    %7456 = vmatpush.msra.mxu0 0.0
    %7457 = vmatpush.msra.mxu0 0.0
    %7458 = vmatpush.msra.mxu0 0.0
    %7459 = vmatpush.msra.mxu0 %v7417
    %7460 = vmatpush.msra.mxu0 %v7416
    %7461 = vmatpush.msra.mxu0 %v7415
    %7462 = vmatpush.msra.mxu0 %v7414
    %7463 = vmatmul.f32.gmra.mxu0 %v260
    %v7464 = vpop.f32.mrf.mxu0
    %v7465 = vadd.f32 0.0, %v7464
    %7466 = vmatmul.f32.gmra.mxu0 %v263
    %v7467 = vpop.f32.mrf.mxu0
    %v7468 = vadd.f32 0.0, %v7467
    %7469 = vmatmul.f32.gmra.mxu0 %v266
    %v7470 = vpop.f32.mrf.mxu0
    %v7471 = vadd.f32 0.0, %v7470
    %7472 = vmatmul.f32.gmra.mxu0 %v269
    %v7473 = vpop.f32.mrf.mxu0
    %v7474 = vadd.f32 0.0, %v7473
    %7475 = vdwg.mxu0
    %v7476 = vadd.f32 %v7436, %v7465
    %v7477 = vadd.f32 %v7439, %v7468
    %v7478 = vadd.f32 %v7442, %v7471
    %v7479 = vadd.f32 %v7445, %v7474
    %v7480 = vmul.f32 %v7476, %v109
    %v7481 = vmul.f32 %v7477, %v109
    %v7482 = vmul.f32 %v7478, %v109
    %v7483 = vmul.f32 %v7479, %v109
    %v7484 = vadd.f32 %v7480, %v7481
    %v7485 = vadd.f32 %v7484, %v7482
    %v7486 = vadd.f32 %v7485, %v7483
    %7487 = vadd.xlane.f32.xlu0 %v7486
    %v7488 = vpop.xlane.xlu0 %7487
    %v7489 = vrot.slane %v7488, 4
    %v7490 = vadd.f32 %v7488, %v7489
    %v7491 = vrot.slane %v7490, 2
    %v7492 = vadd.f32 %v7490, %v7491
    %v7493 = vrot.slane %v7492, 1
    %v7494 = vadd.f32 %v7492, %v7493
    %s7495 = vtos %v7494
    %v7496 = vmul.f32 %v7480, %v7480
    %v7497 = vmul.f32 %v7481, %v7481
    %v7498 = vmul.f32 %v7482, %v7482
    %v7499 = vmul.f32 %v7483, %v7483
    %v7500 = vadd.f32 %v7496, %v7497
    %v7501 = vadd.f32 %v7500, %v7498
    %v7502 = vadd.f32 %v7501, %v7499
    %7503 = vadd.xlane.f32.xlu0 %v7502
    %v7504 = vpop.xlane.xlu0 %7503
    %v7505 = vrot.slane %v7504, 4
    %v7506 = vadd.f32 %v7504, %v7505
    %v7507 = vrot.slane %v7506, 2
    %v7508 = vadd.f32 %v7506, %v7507
    %v7509 = vrot.slane %v7508, 1
    %v7510 = vadd.f32 %v7508, %v7509
    %s7511 = vtos %v7510
    %s7512 = smul.f32 %s7495, 0.001953125
    %s7513 = smul.f32 %s7511, 0.001953125
    %s7514 = smul.f32 %s7512, %s7512
    %s7515 = ssub.f32 %s7513, %s7514
    %s7516 = smax.f32 %s7515, 0.0
    %s7517 = sld [smem:[#allocation9 + $0x1f]]
    %s7518 = sadd.f32 %s7516, 1e-05
    %v7519 = vstv %s7518
    %v7520 = vrsqrt.pop %v7519
    %v7521 = vmul.f32 %v7520, %v7519
    %v7522 = vmul.f32 %v7521, %v7520
    %v7523 = vmul.f32 0.5, %v7522
    %v7524 = vsub.f32 1.5, %v7523
    %v7525 = vmul.f32 %v7520, %v7524
    %vm7526 = vweird.f32 %v7519
    %vm7527 = vweird.f32 %v7520
    %vm7528 = vmor %vm7526, %vm7527
    %v7529 = vsel %vm7528, %v7520, %v7525
    %s7530 = vtos %v7529
    %s7531 = smul.f32 %s7517, %s7530
    %s7532 = sld [smem:[#allocation10 + $0x1f]]
    %s7533 = smul.f32 %s7512, %s7531
    %s7534 = ssub.f32 %s7532, %s7533
    %v7535 = vstv %s7531
    %v7536 = vmul.f32 %v7480, %v7535
    %v7537 = vmul.f32 %v7481, %v7535
    %v7538 = vmul.f32 %v7482, %v7535
    %v7539 = vmul.f32 %v7483, %v7535
    %v7540 = vstv %s7534
    %v7541 = vmul.f32 %v7540, %v109
    %v7542 = vadd.f32 %v7536, %v7541
    %v7543 = vadd.f32 %v7537, %v7541
    %v7544 = vadd.f32 %v7538, %v7541
    %v7545 = vadd.f32 %v7539, %v7541
    %v7546 = vadd.f32 %v7094, %v7542
    %v7547 = vadd.f32 %v7095, %v7543
    %v7548 = vadd.f32 %v7096, %v7544
    %v7549 = vadd.f32 %v7097, %v7545
    %7550 = vrot.lane.b32.xlu0 %v7546, 1
    %v7551 = vpop.permute.xlu0 %7550
    %7552 = vrot.lane.b32.xlu0 %v7547, 1
    %v7553 = vpop.permute.xlu0 %7552
    %7554 = vrot.lane.b32.xlu0 %v7548, 1
    %v7555 = vpop.permute.xlu0 %7554
    %7556 = vrot.lane.b32.xlu0 %v7549, 1
    %v7557 = vpop.permute.xlu0 %7556
    %7558 = vrot.lane.b32.xlu0 %v7546, 127
    %v7559 = vpop.permute.xlu0 %7558
    %7560 = vrot.lane.b32.xlu0 %v7547, 127
    %v7561 = vpop.permute.xlu0 %7560
    %7562 = vrot.lane.b32.xlu0 %v7548, 127
    %v7563 = vpop.permute.xlu0 %7562
    %7564 = vrot.lane.b32.xlu0 %v7549, 127
    %v7565 = vpop.permute.xlu0 %7564
    %s7566 = sld [smem:[#allocation2 + $0x129]]
    %v7567 = vstv %s7566
    %v7568 = vmul.f32 %v7567, %v7551
    %v7569 = vmul.f32 %v7567, %v7553
    %v7570 = vmul.f32 %v7567, %v7555
    %v7571 = vmul.f32 %v7567, %v7557
    %s7572 = sld [smem:[#allocation2 + $0x12a]]
    %v7573 = vstv %s7572
    %v7574 = vmul.f32 %v7573, %v7546
    %v7575 = vmul.f32 %v7573, %v7547
    %v7576 = vmul.f32 %v7573, %v7548
    %v7577 = vmul.f32 %v7573, %v7549
    %v7578 = vadd.f32 %v7568, %v7574
    %v7579 = vadd.f32 %v7569, %v7575
    %v7580 = vadd.f32 %v7570, %v7576
    %v7581 = vadd.f32 %v7571, %v7577
    %s7582 = sld [smem:[#allocation2 + $0x12b]]
    %v7583 = vstv %s7582
    %v7584 = vmul.f32 %v7583, %v7559
    %v7585 = vmul.f32 %v7583, %v7561
    %v7586 = vmul.f32 %v7583, %v7563
    %v7587 = vmul.f32 %v7583, %v7565
    %v7588 = vadd.f32 %v7578, %v7584
    %v7589 = vadd.f32 %v7579, %v7585
    %v7590 = vadd.f32 %v7580, %v7586
    %v7591 = vadd.f32 %v7581, %v7587
    %s7592 = sld [smem:[#allocation2 + $0x12c]]
    %v7593 = vstv %s7592
    %v7594 = vmul.f32 %v7593, %v7551
    %v7595 = vmul.f32 %v7593, %v7553
    %v7596 = vmul.f32 %v7593, %v7555
    %v7597 = vmul.f32 %v7593, %v7557
    %s7598 = sld [smem:[#allocation2 + $0x12d]]
    %v7599 = vstv %s7598
    %v7600 = vmul.f32 %v7599, %v7546
    %v7601 = vmul.f32 %v7599, %v7547
    %v7602 = vmul.f32 %v7599, %v7548
    %v7603 = vmul.f32 %v7599, %v7549
    %v7604 = vadd.f32 %v7594, %v7600
    %v7605 = vadd.f32 %v7595, %v7601
    %v7606 = vadd.f32 %v7596, %v7602
    %v7607 = vadd.f32 %v7597, %v7603
    %s7608 = sld [smem:[#allocation2 + $0x12e]]
    %v7609 = vstv %s7608
    %v7610 = vmul.f32 %v7609, %v7559
    %v7611 = vmul.f32 %v7609, %v7561
    %v7612 = vmul.f32 %v7609, %v7563
    %v7613 = vmul.f32 %v7609, %v7565
    %v7614 = vadd.f32 %v7604, %v7610
    %v7615 = vadd.f32 %v7605, %v7611
    %v7616 = vadd.f32 %v7606, %v7612
    %v7617 = vadd.f32 %v7607, %v7613
    %s7618 = sld [smem:[#allocation2 + $0x12f]]
    %v7619 = vstv %s7618
    %v7620 = vmul.f32 %v7619, %v7551
    %v7621 = vmul.f32 %v7619, %v7553
    %v7622 = vmul.f32 %v7619, %v7555
    %v7623 = vmul.f32 %v7619, %v7557
    %s7624 = sld [smem:[#allocation2 + $0x130]]
    %v7625 = vstv %s7624
    %v7626 = vmul.f32 %v7625, %v7546
    %v7627 = vmul.f32 %v7625, %v7547
    %v7628 = vmul.f32 %v7625, %v7548
    %v7629 = vmul.f32 %v7625, %v7549
    %v7630 = vadd.f32 %v7620, %v7626
    %v7631 = vadd.f32 %v7621, %v7627
    %v7632 = vadd.f32 %v7622, %v7628
    %v7633 = vadd.f32 %v7623, %v7629
    %s7634 = sld [smem:[#allocation2 + $0x131]]
    %v7635 = vstv %s7634
    %v7636 = vmul.f32 %v7635, %v7559
    %v7637 = vmul.f32 %v7635, %v7561
    %v7638 = vmul.f32 %v7635, %v7563
    %v7639 = vmul.f32 %v7635, %v7565
    %v7640 = vadd.f32 %v7630, %v7636
    %v7641 = vadd.f32 %v7631, %v7637
    %v7642 = vadd.f32 %v7632, %v7638
    %v7643 = vadd.f32 %v7633, %v7639
    %7644 = vmatpush.msra.mxu0 0.0
    %7645 = vmatpush.msra.mxu0 0.0
    %7646 = vmatpush.msra.mxu0 0.0
    %7647 = vmatpush.msra.mxu0 0.0
    %7648 = vmatpush.msra.mxu0 0.0
    %7649 = vmatpush.msra.mxu0 0.0
    %7650 = vmatpush.msra.mxu0 0.0
    %7651 = vmatpush.msra.mxu0 0.0
    %7652 = vmatpush.msra.mxu0 0.0
    %7653 = vmatpush.msra.mxu0 0.0
    %7654 = vmatpush.msra.mxu0 0.0
    %7655 = vmatpush.msra.mxu0 0.0
    %7656 = vmatpush.msra.mxu0 %v7591
    %7657 = vmatpush.msra.mxu0 %v7590
    %7658 = vmatpush.msra.mxu0 %v7589
    %7659 = vmatpush.msra.mxu0 %v7588
    %7660 = vmatmul.f32.gmra.mxu0 %v219
    %v7661 = vpop.f32.mrf.mxu0
    %v7662 = vadd.f32 %v7614, %v7661
    %7663 = vmatmul.f32.gmra.mxu0 %v222
    %v7664 = vpop.f32.mrf.mxu0
    %v7665 = vadd.f32 %v7615, %v7664
    %7666 = vmatmul.f32.gmra.mxu0 %v225
    %v7667 = vpop.f32.mrf.mxu0
    %v7668 = vadd.f32 %v7616, %v7667
    %7669 = vmatmul.f32.gmra.mxu0 %v228
    %v7670 = vpop.f32.mrf.mxu0
    %v7671 = vadd.f32 %v7617, %v7670
    %7672 = vdwg.mxu0
    %7673 = vmatpush.msra.mxu0 0.0
    %7674 = vmatpush.msra.mxu0 0.0
    %7675 = vmatpush.msra.mxu0 0.0
    %7676 = vmatpush.msra.mxu0 0.0
    %7677 = vmatpush.msra.mxu0 0.0
    %7678 = vmatpush.msra.mxu0 0.0
    %7679 = vmatpush.msra.mxu0 0.0
    %7680 = vmatpush.msra.mxu0 0.0
    %7681 = vmatpush.msra.mxu0 0.0
    %7682 = vmatpush.msra.mxu0 0.0
    %7683 = vmatpush.msra.mxu0 0.0
    %7684 = vmatpush.msra.mxu0 0.0
    %7685 = vmatpush.msra.mxu0 %v7643
    %7686 = vmatpush.msra.mxu0 %v7642
    %7687 = vmatpush.msra.mxu0 %v7641
    %7688 = vmatpush.msra.mxu0 %v7640
    %7689 = vmatmul.f32.gmra.mxu0 %v260
    %v7690 = vpop.f32.mrf.mxu0
    %v7691 = vadd.f32 0.0, %v7690
    %7692 = vmatmul.f32.gmra.mxu0 %v263
    %v7693 = vpop.f32.mrf.mxu0
    %v7694 = vadd.f32 0.0, %v7693
    %7695 = vmatmul.f32.gmra.mxu0 %v266
    %v7696 = vpop.f32.mrf.mxu0
    %v7697 = vadd.f32 0.0, %v7696
    %7698 = vmatmul.f32.gmra.mxu0 %v269
    %v7699 = vpop.f32.mrf.mxu0
    %v7700 = vadd.f32 0.0, %v7699
    %7701 = vdwg.mxu0
    %v7702 = vadd.f32 %v7662, %v7691
    %v7703 = vadd.f32 %v7665, %v7694
    %v7704 = vadd.f32 %v7668, %v7697
    %v7705 = vadd.f32 %v7671, %v7700
    %v7706 = vmul.f32 %v7702, %v109
    %v7707 = vmul.f32 %v7703, %v109
    %v7708 = vmul.f32 %v7704, %v109
    %v7709 = vmul.f32 %v7705, %v109
    %v7710 = vadd.f32 %v7706, %v7707
    %v7711 = vadd.f32 %v7710, %v7708
    %v7712 = vadd.f32 %v7711, %v7709
    %7713 = vadd.xlane.f32.xlu0 %v7712
    %v7714 = vpop.xlane.xlu0 %7713
    %v7715 = vrot.slane %v7714, 4
    %v7716 = vadd.f32 %v7714, %v7715
    %v7717 = vrot.slane %v7716, 2
    %v7718 = vadd.f32 %v7716, %v7717
    %v7719 = vrot.slane %v7718, 1
    %v7720 = vadd.f32 %v7718, %v7719
    %s7721 = vtos %v7720
    %v7722 = vmul.f32 %v7706, %v7706
    %v7723 = vmul.f32 %v7707, %v7707
    %v7724 = vmul.f32 %v7708, %v7708
    %v7725 = vmul.f32 %v7709, %v7709
    %v7726 = vadd.f32 %v7722, %v7723
    %v7727 = vadd.f32 %v7726, %v7724
    %v7728 = vadd.f32 %v7727, %v7725
    %7729 = vadd.xlane.f32.xlu0 %v7728
    %v7730 = vpop.xlane.xlu0 %7729
    %v7731 = vrot.slane %v7730, 4
    %v7732 = vadd.f32 %v7730, %v7731
    %v7733 = vrot.slane %v7732, 2
    %v7734 = vadd.f32 %v7732, %v7733
    %v7735 = vrot.slane %v7734, 1
    %v7736 = vadd.f32 %v7734, %v7735
    %s7737 = vtos %v7736
    %s7738 = smul.f32 %s7721, 0.001953125
    %s7739 = smul.f32 %s7737, 0.001953125
    %s7740 = smul.f32 %s7738, %s7738
    %s7741 = ssub.f32 %s7739, %s7740
    %s7742 = smax.f32 %s7741, 0.0
    %s7743 = sld [smem:[#allocation9 + $0x20]]
    %s7744 = sadd.f32 %s7742, 1e-05
    %v7745 = vstv %s7744
    %v7746 = vrsqrt.pop %v7745
    %v7747 = vmul.f32 %v7746, %v7745
    %v7748 = vmul.f32 %v7747, %v7746
    %v7749 = vmul.f32 0.5, %v7748
    %v7750 = vsub.f32 1.5, %v7749
    %v7751 = vmul.f32 %v7746, %v7750
    %vm7752 = vweird.f32 %v7745
    %vm7753 = vweird.f32 %v7746
    %vm7754 = vmor %vm7752, %vm7753
    %v7755 = vsel %vm7754, %v7746, %v7751
    %s7756 = vtos %v7755
    %s7757 = smul.f32 %s7743, %s7756
    %s7758 = sld [smem:[#allocation10 + $0x20]]
    %s7759 = smul.f32 %s7738, %s7757
    %s7760 = ssub.f32 %s7758, %s7759
    %v7761 = vstv %s7757
    %v7762 = vmul.f32 %v7706, %v7761
    %v7763 = vmul.f32 %v7707, %v7761
    %v7764 = vmul.f32 %v7708, %v7761
    %v7765 = vmul.f32 %v7709, %v7761
    %v7766 = vstv %s7760
    %v7767 = vmul.f32 %v7766, %v109
    %v7768 = vadd.f32 %v7762, %v7767
    %v7769 = vadd.f32 %v7763, %v7767
    %v7770 = vadd.f32 %v7764, %v7767
    %v7771 = vadd.f32 %v7765, %v7767
    %v7772 = vadd.f32 %v314, %v7768
    %v7773 = vadd.f32 %v315, %v7769
    %v7774 = vadd.f32 %v316, %v7770
    %v7775 = vadd.f32 %v317, %v7771
    %7776 = vrot.lane.b32.xlu0 %v7772, 1
    %v7777 = vpop.permute.xlu0 %7776
    %7778 = vrot.lane.b32.xlu0 %v7773, 1
    %v7779 = vpop.permute.xlu0 %7778
    %7780 = vrot.lane.b32.xlu0 %v7774, 1
    %v7781 = vpop.permute.xlu0 %7780
    %7782 = vrot.lane.b32.xlu0 %v7775, 1
    %v7783 = vpop.permute.xlu0 %7782
    %7784 = vrot.lane.b32.xlu0 %v7772, 127
    %v7785 = vpop.permute.xlu0 %7784
    %7786 = vrot.lane.b32.xlu0 %v7773, 127
    %v7787 = vpop.permute.xlu0 %7786
    %7788 = vrot.lane.b32.xlu0 %v7774, 127
    %v7789 = vpop.permute.xlu0 %7788
    %7790 = vrot.lane.b32.xlu0 %v7775, 127
    %v7791 = vpop.permute.xlu0 %7790
    %s7792 = sld [smem:[#allocation2 + $0x132]]
    %v7793 = vstv %s7792
    %v7794 = vmul.f32 %v7793, %v7777
    %v7795 = vmul.f32 %v7793, %v7779
    %v7796 = vmul.f32 %v7793, %v7781
    %v7797 = vmul.f32 %v7793, %v7783
    %s7798 = sld [smem:[#allocation2 + $0x133]]
    %v7799 = vstv %s7798
    %v7800 = vmul.f32 %v7799, %v7772
    %v7801 = vmul.f32 %v7799, %v7773
    %v7802 = vmul.f32 %v7799, %v7774
    %v7803 = vmul.f32 %v7799, %v7775
    %v7804 = vadd.f32 %v7794, %v7800
    %v7805 = vadd.f32 %v7795, %v7801
    %v7806 = vadd.f32 %v7796, %v7802
    %v7807 = vadd.f32 %v7797, %v7803
    %s7808 = sld [smem:[#allocation2 + $0x134]]
    %v7809 = vstv %s7808
    %v7810 = vmul.f32 %v7809, %v7785
    %v7811 = vmul.f32 %v7809, %v7787
    %v7812 = vmul.f32 %v7809, %v7789
    %v7813 = vmul.f32 %v7809, %v7791
    %v7814 = vadd.f32 %v7804, %v7810
    %v7815 = vadd.f32 %v7805, %v7811
    %v7816 = vadd.f32 %v7806, %v7812
    %v7817 = vadd.f32 %v7807, %v7813
    %s7818 = sld [smem:[#allocation2 + $0x135]]
    %v7819 = vstv %s7818
    %v7820 = vmul.f32 %v7819, %v7777
    %v7821 = vmul.f32 %v7819, %v7779
    %v7822 = vmul.f32 %v7819, %v7781
    %v7823 = vmul.f32 %v7819, %v7783
    %s7824 = sld [smem:[#allocation2 + $0x136]]
    %v7825 = vstv %s7824
    %v7826 = vmul.f32 %v7825, %v7772
    %v7827 = vmul.f32 %v7825, %v7773
    %v7828 = vmul.f32 %v7825, %v7774
    %v7829 = vmul.f32 %v7825, %v7775
    %v7830 = vadd.f32 %v7820, %v7826
    %v7831 = vadd.f32 %v7821, %v7827
    %v7832 = vadd.f32 %v7822, %v7828
    %v7833 = vadd.f32 %v7823, %v7829
    %s7834 = sld [smem:[#allocation2 + $0x137]]
    %v7835 = vstv %s7834
    %v7836 = vmul.f32 %v7835, %v7785
    %v7837 = vmul.f32 %v7835, %v7787
    %v7838 = vmul.f32 %v7835, %v7789
    %v7839 = vmul.f32 %v7835, %v7791
    %v7840 = vadd.f32 %v7830, %v7836
    %v7841 = vadd.f32 %v7831, %v7837
    %v7842 = vadd.f32 %v7832, %v7838
    %v7843 = vadd.f32 %v7833, %v7839
    %s7844 = sld [smem:[#allocation2 + $0x138]]
    %v7845 = vstv %s7844
    %v7846 = vmul.f32 %v7845, %v7777
    %v7847 = vmul.f32 %v7845, %v7779
    %v7848 = vmul.f32 %v7845, %v7781
    %v7849 = vmul.f32 %v7845, %v7783
    %s7850 = sld [smem:[#allocation2 + $0x139]]
    %v7851 = vstv %s7850
    %v7852 = vmul.f32 %v7851, %v7772
    %v7853 = vmul.f32 %v7851, %v7773
    %v7854 = vmul.f32 %v7851, %v7774
    %v7855 = vmul.f32 %v7851, %v7775
    %v7856 = vadd.f32 %v7846, %v7852
    %v7857 = vadd.f32 %v7847, %v7853
    %v7858 = vadd.f32 %v7848, %v7854
    %v7859 = vadd.f32 %v7849, %v7855
    %s7860 = sld [smem:[#allocation2 + $0x13a]]
    %v7861 = vstv %s7860
    %v7862 = vmul.f32 %v7861, %v7785
    %v7863 = vmul.f32 %v7861, %v7787
    %v7864 = vmul.f32 %v7861, %v7789
    %v7865 = vmul.f32 %v7861, %v7791
    %v7866 = vadd.f32 %v7856, %v7862
    %v7867 = vadd.f32 %v7857, %v7863
    %v7868 = vadd.f32 %v7858, %v7864
    %v7869 = vadd.f32 %v7859, %v7865
    %7870 = vmatpush.msra.mxu0 0.0
    %7871 = vmatpush.msra.mxu0 0.0
    %7872 = vmatpush.msra.mxu0 0.0
    %7873 = vmatpush.msra.mxu0 0.0
    %7874 = vmatpush.msra.mxu0 0.0
    %7875 = vmatpush.msra.mxu0 0.0
    %7876 = vmatpush.msra.mxu0 0.0
    %7877 = vmatpush.msra.mxu0 0.0
    %7878 = vmatpush.msra.mxu0 0.0
    %7879 = vmatpush.msra.mxu0 0.0
    %7880 = vmatpush.msra.mxu0 0.0
    %7881 = vmatpush.msra.mxu0 0.0
    %7882 = vmatpush.msra.mxu0 %v7817
    %7883 = vmatpush.msra.mxu0 %v7816
    %7884 = vmatpush.msra.mxu0 %v7815
    %7885 = vmatpush.msra.mxu0 %v7814
    %7886 = vmatmul.f32.gmra.mxu0 %v219
    %v7887 = vpop.f32.mrf.mxu0
    %v7888 = vadd.f32 %v7840, %v7887
    %7889 = vmatmul.f32.gmra.mxu0 %v222
    %v7890 = vpop.f32.mrf.mxu0
    %v7891 = vadd.f32 %v7841, %v7890
    %7892 = vmatmul.f32.gmra.mxu0 %v225
    %v7893 = vpop.f32.mrf.mxu0
    %v7894 = vadd.f32 %v7842, %v7893
    %7895 = vmatmul.f32.gmra.mxu0 %v228
    %v7896 = vpop.f32.mrf.mxu0
    %v7897 = vadd.f32 %v7843, %v7896
    %7898 = vdwg.mxu0
    %7899 = vmatpush.msra.mxu0 0.0
    %7900 = vmatpush.msra.mxu0 0.0
    %7901 = vmatpush.msra.mxu0 0.0
    %7902 = vmatpush.msra.mxu0 0.0
    %7903 = vmatpush.msra.mxu0 0.0
    %7904 = vmatpush.msra.mxu0 0.0
    %7905 = vmatpush.msra.mxu0 0.0
    %7906 = vmatpush.msra.mxu0 0.0
    %7907 = vmatpush.msra.mxu0 0.0
    %7908 = vmatpush.msra.mxu0 0.0
    %7909 = vmatpush.msra.mxu0 0.0
    %7910 = vmatpush.msra.mxu0 0.0
    %7911 = vmatpush.msra.mxu0 %v7869
    %7912 = vmatpush.msra.mxu0 %v7868
    %7913 = vmatpush.msra.mxu0 %v7867
    %7914 = vmatpush.msra.mxu0 %v7866
    %7915 = vmatmul.f32.gmra.mxu0 %v260
    %v7916 = vpop.f32.mrf.mxu0
    %v7917 = vadd.f32 0.0, %v7916
    %7918 = vmatmul.f32.gmra.mxu0 %v263
    %v7919 = vpop.f32.mrf.mxu0
    %v7920 = vadd.f32 0.0, %v7919
    %7921 = vmatmul.f32.gmra.mxu0 %v266
    %v7922 = vpop.f32.mrf.mxu0
    %v7923 = vadd.f32 0.0, %v7922
    %7924 = vmatmul.f32.gmra.mxu0 %v269
    %v7925 = vpop.f32.mrf.mxu0
    %v7926 = vadd.f32 0.0, %v7925
    %7927 = vdwg.mxu0
    %v7928 = vadd.f32 %v7888, %v7917
    %v7929 = vadd.f32 %v7891, %v7920
    %v7930 = vadd.f32 %v7894, %v7923
    %v7931 = vadd.f32 %v7897, %v7926
    %s7932 = sld [smem:[#allocation7 + $0x22]]
    %v7933 = vstv %s7932
    %v7934 = vadd.f32 %v7928, %v7933
    %v7935 = vadd.f32 %v7929, %v7933
    %v7936 = vadd.f32 %v7930, %v7933
    %v7937 = vadd.f32 %v7931, %v7933
    %v7938 = vmul.f32 %v7934, %v109
    %v7939 = vmul.f32 %v7935, %v109
    %v7940 = vmul.f32 %v7936, %v109
    %v7941 = vmul.f32 %v7937, %v109
    %7942 = vst [vmem:[#allocation15] sm:$0xff] %v7938
    %7943 = vst [vmem:[#allocation15 + $0x8] sm:$0xff] %v7939
    %7944 = vst [vmem:[#allocation15 + $0x10] sm:$0xff] %v7940
    %7945 = vst [vmem:[#allocation15 + $0x18] sm:$0xff] %v7941
    // Predicated region
    $region50: #{tpu_custom_call.1} parent=1 // pred_check
      _
    $region51: #{tpu_custom_call.1} parent=1 // pred_check_branch
      %7947 = sbr.rel (0) target = $region53
    $region52: #{tpu_custom_call.1} parent=1 // pred_region
      %7949 = vsyncadd [#allocation4], 0
      %s7950 = sshll.u32 [#allocation15], 4
      %s7951 = int_to_ptr.vmem [resolvable:$true] %s7950
      %s7952 = sshll.u32 %s6, 4
      %s7953 = int_to_ptr.hbm [resolvable:$true] %s7952
      %7958 = dma.vmem_to_hbm [thread:$0]  %s7951, 512, %s7953, [#allocation4], 128, 128, 8
    $region53: #{tpu_custom_call.1} parent=1 // pred_fallthru
      _
    // Predicated region
    $region54: #{tpu_custom_call.1} parent=1 // pred_check
      _
    $region55: #{tpu_custom_call.1} parent=1 // pred_check_branch
      %7960 = sbr.rel (0) target = $region57
    $region56: #{tpu_custom_call.1} parent=1 // pred_region
      %7962 = dma.done [#allocation4], 512
    $region57: #{tpu_custom_call.1} parent=1 // pred_fallthru
      _
    %7963 = vsyncpa [#allocation3], 1
    %7964 = vsyncpa [#allocation14], 1
    %7965 = vsyncpa [#allocation4], 1
    %7966 = vsyncpa [#allocation5], 1
    %7967 = vsyncpa [#allocation8], 1
    %7968 = vsyncpa [#allocation6], 1
    %7969 = vsyncpa [#allocation11], 1

</llo_original>
